<compile_context>
chip_gen: v7x
topology: tpu7x:2x2x1
jax: 0.10.0
libtpu: 0.0.40
codegen_flags: <defaults>
</compile_context>

<pallas_src>
import jax
import jax.numpy as jnp
from jax.experimental import pallas as pl
from jax.experimental.pallas import tpu as pltpu

IMG_BLK = 4  # images per grid step (keeps bf16 second-minor block dims % 16 == 0)


# ------------------------------ Pallas kernels ------------------------------ #

def _conv_pool_relu_kernel(patches_ref, w_ref, b_ref, o_ref, acc_ref):
    """Fused conv1 (as matmul) + bias + 2x2 max-pool + ReLU for one row tile.

    patches_ref: (4, tm, 80) bf16 -- quadrant-major; rows within a quadrant are
    (n, oh2, ow2). The 4 pool taps of every pooled pixel share a row index across
    quadrants, so pooling is an elementwise max of 4 quadrant matmuls.
    """
    def quadrant(qi):
        return jnp.dot(patches_ref[qi], w_ref[...],
                       preferred_element_type=jnp.float32)

    # Running max through a single f32 VMEM accumulator (one live temporary).
    acc_ref[...] = quadrant(0)
    acc_ref[...] = jnp.maximum(acc_ref[...], quadrant(1))
    acc_ref[...] = jnp.maximum(acc_ref[...], quadrant(2))
    acc_ref[...] = jnp.maximum(acc_ref[...], quadrant(3))
    # bias is uniform across the 4 taps, so adding after the max is exact.
    o_ref[...] = jnp.maximum(acc_ref[...] + b_ref[...], 0.0).astype(o_ref.dtype)


def _head_kernel(patches_ref, w2_ref, b2_ref, wf1_ref, bf1_ref,
                 wf2_ref, bf2_ref, wf3_ref, bf3_ref, o_ref, p2_ref):
    """conv2 (matmul) + bias + pool + ReLU + fc1 + fc2 + fc3 for one 4-image block.

    patches_ref: (4, 28*nb, 160) bf16, rows within a quadrant ordered (s, n_within),
    s = oh2*5 + ow2 padded 25->28. p2_ref: (28*nb, 128) bf16 scratch.
    """
    nb = o_ref.shape[0]                       # images per block

    def quadrant(qi):
        return jnp.dot(patches_ref[qi], w2_ref[...],
                       preferred_element_type=jnp.float32)

    acc = quadrant(0)
    acc = jnp.maximum(acc, quadrant(1))
    acc = jnp.maximum(acc, quadrant(2))
    acc = jnp.maximum(acc, quadrant(3))
    p2_ref[...] = jnp.maximum(acc + b2_ref[...], 0.0).astype(p2_ref.dtype)

    # fc1: contract over (spatial position s, channel) as 25 small MXU dots.
    # wf1 is K-padded to 128 so the LHS slab is a full-lane (nb, 128) read.
    # 4 independent partial-accumulator chains + tree add.
    parts = []
    for g in range(4):
        part = None
        for s in range(g, 25, 4):
            d = jnp.dot(p2_ref[pl.ds(s * nb, nb), :], wf1_ref[s],
                        preferred_element_type=jnp.float32)
            part = d if part is None else part + d
        parts.append(part)
    f = (parts[0] + parts[1]) + (parts[2] + parts[3])
    f = jnp.maximum(f + bf1_ref[...], 0.0)

    # fc2 + ReLU, fc3 (lane-dense 128-wide padded weights, bf16 operands).
    f = jnp.dot(f.astype(jnp.bfloat16), wf2_ref[...],
                preferred_element_type=jnp.float32) + bf2_ref[...]
    f = jnp.maximum(f, 0.0)
    f = jnp.dot(f.astype(jnp.bfloat16), wf3_ref[...],
                preferred_element_type=jnp.float32) + bf3_ref[...]
    o_ref[...] = f                            # (nb, 128) lane-dense, unmasked store


# ------------------------------- XLA glue ----------------------------------- #

def _im2col_conv1(x):
    """x (N,3,32,32) f32 -> patches (4, N*196, 80) bf16.

    Axis 0 = quadrant (h-parity, w-parity); rows within a quadrant ordered
    (n, oh2, ow2); features (tap-major, channel-minor), K padded 75 -> 80.
    """
    n = x.shape[0]
    taps = [x[:, :, i:i + 28, j:j + 28] for i in range(5) for j in range(5)]
    p = jnp.stack(taps, axis=2)                  # (N, 3, 25, 28, 28)
    p = p.transpose(0, 3, 4, 2, 1)               # (N, 28, 28, 25, 3)
    p = p.reshape(n, 14, 2, 14, 2, 75)           # oh -> (oh2, hp), ow -> (ow2, wp)
    p = p.transpose(2, 4, 0, 1, 3, 5)            # (hp, wp, N, 14, 14, 75)
    p = p.reshape(4, n * 196, 75)
    p = jnp.pad(p, ((0, 0), (0, 0), (0, 5)))     # K 75 -> 80
    return p.astype(jnp.bfloat16)


def _im2col_conv2(p1_flat, n_pad, nb):
    """p1 (N*196, 128) bf16, rows (n, oh2, ow2), channels 0..5 real ->
    patches (N//nb, 4, 28*nb, 160) bf16; within a quadrant rows ordered
    (s, n_within), s = oh2*5 + ow2 padded 25 -> 28; K padded 150 -> 160."""
    v = p1_flat.reshape(n_pad, 14, 14, 128)[:, :, :, :6]
    taps = [v[:, i:i + 10, j:j + 10, :] for i in range(5) for j in range(5)]
    q = jnp.stack(taps, axis=3)                            # (N, 10, 10, 25, 6)
    q = q.reshape(n_pad // nb, nb, 5, 2, 5, 2, 150)        # (blk, ni, oh2, hp, ow2, wp, K)
    q = q.transpose(0, 3, 5, 2, 4, 1, 6)                   # (blk, hp, wp, oh2, ow2, ni, K)
    q = q.reshape(n_pad // nb, 4, 25, nb, 150)
    q = jnp.pad(q, ((0, 0), (0, 0), (0, 3), (0, 0), (0, 10)))  # s 25->28, K 150->160
    return q.reshape(n_pad // nb, 4, 28 * nb, 160)


# ----------------------------- Param packing -------------------------------- #

def pack_params(params):
    """One-time packing: (K, N) layouts, N padded to 128, bf16 weights, f32 biases."""
    w1 = jnp.transpose(params["conv1_w"], (2, 3, 1, 0)).reshape(75, 6)
    w1 = jnp.pad(w1, ((0, 5), (0, 122))).astype(jnp.bfloat16)          # (80, 128)
    b1 = jnp.pad(params["conv1_b"], (0, 122)).reshape(1, 128)
    w2 = jnp.transpose(params["conv2_w"], (2, 3, 1, 0)).reshape(150, 16)
    w2 = jnp.pad(w2, ((0, 10), (0, 112))).astype(jnp.bfloat16)         # (160, 128)
    b2 = jnp.pad(params["conv2_b"], (0, 112)).reshape(1, 128)
    # fc1 columns are torch-flatten order c*25 + s -> pack per spatial position s,
    # K (channels) padded 16 -> 128 so in-kernel reads are full-lane.
    wf1 = jnp.transpose(params["fc1_w"].reshape(120, 16, 25), (2, 1, 0))
    wf1 = jnp.pad(wf1, ((0, 0), (0, 112), (0, 8))).astype(jnp.bfloat16)  # (25, 128, 128)
    bf1 = jnp.pad(params["fc1_b"], (0, 8)).reshape(1, 128)
    wf2 = jnp.pad(params["fc2_w"].T, ((0, 8), (0, 44))).astype(jnp.bfloat16)    # (128, 128)
    bf2 = jnp.pad(params["fc2_b"], (0, 44)).reshape(1, 128)
    wf3 = jnp.pad(params["fc3_w"].T, ((0, 44), (0, 118))).astype(jnp.bfloat16)  # (128, 128)
    bf3 = jnp.pad(params["fc3_b"], (0, 118)).reshape(1, 128)
    return dict(w1=w1, b1=b1, w2=w2, b2=b2, wf1=wf1, bf1=bf1,
                wf2=wf2, bf2=bf2, wf3=wf3, bf3=bf3)


# ------------------------------ Forward pass -------------------------------- #

@jax.jit
def net_forward(packed, x):
    n = x.shape[0]
    n_pad = ((n + IMG_BLK - 1) // IMG_BLK) * IMG_BLK
    x = x.astype(jnp.float32)
    if n_pad != n:
        x = jnp.pad(x, ((0, n_pad - n), (0, 0), (0, 0), (0, 0)))

    rows = n_pad * 196
    tm = IMG_BLK * 196                              # 784 pooled rows per grid step
    nblk = n_pad // IMG_BLK

    # --- call 1: conv1 + bias + pool + relu, gridded over 4-image row tiles --- #
    patches1 = _im2col_conv1(x)                     # (4, rows, 80) bf16
    p1 = pl.pallas_call(
        _conv_pool_relu_kernel,
        out_shape=jax.ShapeDtypeStruct((rows, 128), jnp.bfloat16),
        grid=(rows // tm,),
        in_specs=[pl.BlockSpec((4, tm, 80), lambda i: (0, i, 0)),
                  pl.BlockSpec((80, 128), lambda i: (0, 0)),      # resident
                  pl.BlockSpec((1, 128), lambda i: (0, 0))],      # resident
        out_specs=pl.BlockSpec((tm, 128), lambda i: (i, 0)),
        scratch_shapes=[pltpu.VMEM((tm, 128), jnp.float32)],
        compiler_params=pltpu.CompilerParams(dimension_semantics=("parallel",)),
    )(patches1, packed["w1"], packed["b1"])         # (rows, 128) bf16

    # --- call 2: conv2 + pool + relu + fc1 + fc2 + fc3, gridded over batch --- #
    patches2 = _im2col_conv2(p1, n_pad, IMG_BLK)    # (nblk, 4, 112, 160) bf16
    out_pad = pl.pallas_call(
        _head_kernel,
        out_shape=jax.ShapeDtypeStruct((nblk, IMG_BLK, 128), jnp.float32),
        grid=(nblk,),
        in_specs=[pl.BlockSpec((None, 4, 28 * IMG_BLK, 160), lambda b: (b, 0, 0, 0)),
                  pl.BlockSpec((160, 128), lambda b: (0, 0)),        # resident weights
                  pl.BlockSpec((1, 128), lambda b: (0, 0)),
                  pl.BlockSpec((25, 128, 128), lambda b: (0, 0, 0)),
                  pl.BlockSpec((1, 128), lambda b: (0, 0)),
                  pl.BlockSpec((128, 128), lambda b: (0, 0)),
                  pl.BlockSpec((1, 128), lambda b: (0, 0)),
                  pl.BlockSpec((128, 128), lambda b: (0, 0)),
                  pl.BlockSpec((1, 128), lambda b: (0, 0))],
        out_specs=pl.BlockSpec((None, IMG_BLK, 128), lambda b: (b, 0, 0)),
        scratch_shapes=[pltpu.VMEM((28 * IMG_BLK, 128), jnp.bfloat16)],
        compiler_params=pltpu.CompilerParams(dimension_semantics=("parallel",)),
    )(patches2, packed["w2"], packed["b2"], packed["wf1"], packed["bf1"],
      packed["wf2"], packed["bf2"], packed["wf3"], packed["bf3"])

    return out_pad.reshape(n_pad, 128)[:n, :10]


# ------------------------------ Reference / init ----------------------------- #

def init_params(key):
    keys = jax.random.split(key, 10)

    def u(k, shape, fan_in):
        bound = 1.0 / jnp.sqrt(jnp.float32(fan_in))
        return jax.random.uniform(k, shape, jnp.float32, -bound, bound)

    return {
        "conv1_w": u(keys[0], (6, 3, 5, 5), 3 * 25),
        "conv1_b": u(keys[1], (6,), 3 * 25),
        "conv2_w": u(keys[2], (16, 6, 5, 5), 6 * 25),
        "conv2_b": u(keys[3], (16,), 6 * 25),
        "fc1_w": u(keys[4], (120, 16 * 5 * 5), 16 * 5 * 5),
        "fc1_b": u(keys[5], (120,), 16 * 5 * 5),
        "fc2_w": u(keys[6], (84, 120), 120),
        "fc2_b": u(keys[7], (84,), 120),
        "fc3_w": u(keys[8], (10, 84), 84),
        "fc3_b": u(keys[9], (10,), 84),
    }


@jax.jit
def _reference_forward(params, x):
    def conv(x, w, b):
        dn = jax.lax.conv_dimension_numbers(x.shape, w.shape, ("NCHW", "OIHW", "NCHW"))
        y = jax.lax.conv_general_dilated(x, w, (1, 1), "VALID", dimension_numbers=dn)
        return y + b[None, :, None, None]

    def pool(x):
        return jax.lax.reduce_window(x, -jnp.inf, jax.lax.max,
                                     (1, 1, 2, 2), (1, 1, 2, 2), "VALID")

    x = pool(jax.nn.relu(conv(x, params["conv1_w"], params["conv1_b"])))
    x = pool(jax.nn.relu(conv(x, params["conv2_w"], params["conv2_b"])))
    x = x.reshape(x.shape[0], -1)                       # torch .view order (C,H,W)
    x = jax.nn.relu(x @ params["fc1_w"].T + params["fc1_b"])
    x = jax.nn.relu(x @ params["fc2_w"].T + params["fc2_b"])
    return x @ params["fc3_w"].T + params["fc3_b"]


if __name__ == "__main__":
    key = jax.random.PRNGKey(0)
    pkey, xkey = jax.random.split(key)
    params = init_params(pkey)
    packed = pack_params(params)
    # fc1 (16*5*5) fixes the spatial size at 32x32 (CIFAR); batch kept small.
    x = jax.random.normal(xkey, (2, 3, 32, 32), jnp.float32)

    out = jax.block_until_ready(net_forward(packed, x))
    assert out.shape == (2, 10), out.shape
    assert out.dtype == jnp.float32

    ref = jax.block_until_ready(_reference_forward(params, x))
    err = float(jnp.max(jnp.abs(out - ref)))
    assert err < 2e-2, f"mismatch vs reference: {err}"
    print("KERNEL_OK")
</pallas_src>

<mosaic_0001>
module attributes {stable_mosaic.version = 11 : i64} {
  func.func @_conv_pool_relu_kernel(%arg0: i32, %arg1: memref<4x784x80xbf16, #tpu.memory_space<vmem>>, %arg2: memref<80x128xbf16, #tpu.memory_space<vmem>>, %arg3: memref<1x128xf32, #tpu.memory_space<vmem>>, %arg4: memref<784x128xbf16, #tpu.memory_space<vmem>>, %arg5: memref<784x128xf32, #tpu.memory_space<vmem>>) attributes {dimension_semantics = [#tpu.dimension_semantics<parallel>], iteration_bounds = array<i64: 1>, scalar_prefetch = 0 : i64, scratch_operands = 1 : i64, tpu.core_type = #tpu.core_type<tc>, window_params = [{transform_indices = @transform_0, window_bounds = array<i64: 4, 784, 80>}, {pipeline_mode = #tpu.pipeline_mode<synchronous>, transform_indices = @transform_1, window_bounds = array<i64: 80, 128>}, {pipeline_mode = #tpu.pipeline_mode<synchronous>, transform_indices = @transform_2, window_bounds = array<i64: 1, 128>}, {transform_indices = @transform_3, window_bounds = array<i64: 784, 128>}]} {
    %c0 = arith.constant 0 : index
    %c0_0 = arith.constant 0 : index
    %c0_1 = arith.constant 0 : index
    %0 = vector.load %arg1[%c0, %c0_0, %c0_1] : memref<4x784x80xbf16, #tpu.memory_space<vmem>>, vector<1x784x80xbf16>
    %1 = vector.shape_cast %0 : vector<1x784x80xbf16> to vector<784x80xbf16>
    %c0_2 = arith.constant 0 : index
    %c0_3 = arith.constant 0 : index
    %2 = vector.load %arg2[%c0_2, %c0_3] : memref<80x128xbf16, #tpu.memory_space<vmem>>, vector<80x128xbf16>
    %cst = arith.constant dense<0.000000e+00> : vector<784x128xf32>
    %3 = tpu.matmul %1, %2, %cst {dimension_numbers = #tpu.dot_dimension_numbers<[1], [0], [0], [1], [0, 0, 1, 1], [], []>} : vector<784x80xbf16>, vector<80x128xbf16>, vector<784x128xf32> -> vector<784x128xf32>
    %c0_4 = arith.constant 0 : index
    %c0_5 = arith.constant 0 : index
    %4 = vector.load %arg5[%c0_4, %c0_5] : memref<784x128xf32, #tpu.memory_space<vmem>>, vector<784x128xf32>
    tpu.vector_store %arg5[%c0_4, %c0_5], %3 {strides = array<i32>} : memref<784x128xf32, #tpu.memory_space<vmem>>, vector<784x128xf32>,
    %c0_6 = arith.constant 0 : index
    %c0_7 = arith.constant 0 : index
    %5 = vector.load %arg5[%c0_6, %c0_7] : memref<784x128xf32, #tpu.memory_space<vmem>>, vector<784x128xf32>
    %c1 = arith.constant 1 : index
    %c0_8 = arith.constant 0 : index
    %c0_9 = arith.constant 0 : index
    %6 = vector.load %arg1[%c1, %c0_8, %c0_9] : memref<4x784x80xbf16, #tpu.memory_space<vmem>>, vector<1x784x80xbf16>
    %7 = vector.shape_cast %6 : vector<1x784x80xbf16> to vector<784x80xbf16>
    %c0_10 = arith.constant 0 : index
    %c0_11 = arith.constant 0 : index
    %8 = vector.load %arg2[%c0_10, %c0_11] : memref<80x128xbf16, #tpu.memory_space<vmem>>, vector<80x128xbf16>
    %cst_12 = arith.constant dense<0.000000e+00> : vector<784x128xf32>
    %9 = tpu.matmul %7, %8, %cst_12 {dimension_numbers = #tpu.dot_dimension_numbers<[1], [0], [0], [1], [0, 0, 1, 1], [], []>} : vector<784x80xbf16>, vector<80x128xbf16>, vector<784x128xf32> -> vector<784x128xf32>
    %10 = arith.maximumf %5, %9 : vector<784x128xf32>
    %c0_13 = arith.constant 0 : index
    %c0_14 = arith.constant 0 : index
    %11 = vector.load %arg5[%c0_13, %c0_14] : memref<784x128xf32, #tpu.memory_space<vmem>>, vector<784x128xf32>
    tpu.vector_store %arg5[%c0_13, %c0_14], %10 {strides = array<i32>} : memref<784x128xf32, #tpu.memory_space<vmem>>, vector<784x128xf32>,
    %c0_15 = arith.constant 0 : index
    %c0_16 = arith.constant 0 : index
    %12 = vector.load %arg5[%c0_15, %c0_16] : memref<784x128xf32, #tpu.memory_space<vmem>>, vector<784x128xf32>
    %c2 = arith.constant 2 : index
    %c0_17 = arith.constant 0 : index
    %c0_18 = arith.constant 0 : index
    %13 = vector.load %arg1[%c2, %c0_17, %c0_18] : memref<4x784x80xbf16, #tpu.memory_space<vmem>>, vector<1x784x80xbf16>
    %14 = vector.shape_cast %13 : vector<1x784x80xbf16> to vector<784x80xbf16>
    %c0_19 = arith.constant 0 : index
    %c0_20 = arith.constant 0 : index
    %15 = vector.load %arg2[%c0_19, %c0_20] : memref<80x128xbf16, #tpu.memory_space<vmem>>, vector<80x128xbf16>
    %cst_21 = arith.constant dense<0.000000e+00> : vector<784x128xf32>
    %16 = tpu.matmul %14, %15, %cst_21 {dimension_numbers = #tpu.dot_dimension_numbers<[1], [0], [0], [1], [0, 0, 1, 1], [], []>} : vector<784x80xbf16>, vector<80x128xbf16>, vector<784x128xf32> -> vector<784x128xf32>
    %17 = arith.maximumf %12, %16 : vector<784x128xf32>
    %c0_22 = arith.constant 0 : index
    %c0_23 = arith.constant 0 : index
    %18 = vector.load %arg5[%c0_22, %c0_23] : memref<784x128xf32, #tpu.memory_space<vmem>>, vector<784x128xf32>
    tpu.vector_store %arg5[%c0_22, %c0_23], %17 {strides = array<i32>} : memref<784x128xf32, #tpu.memory_space<vmem>>, vector<784x128xf32>,
    %c0_24 = arith.constant 0 : index
    %c0_25 = arith.constant 0 : index
    %19 = vector.load %arg5[%c0_24, %c0_25] : memref<784x128xf32, #tpu.memory_space<vmem>>, vector<784x128xf32>
    %c3 = arith.constant 3 : index
    %c0_26 = arith.constant 0 : index
    %c0_27 = arith.constant 0 : index
    %20 = vector.load %arg1[%c3, %c0_26, %c0_27] : memref<4x784x80xbf16, #tpu.memory_space<vmem>>, vector<1x784x80xbf16>
    %21 = vector.shape_cast %20 : vector<1x784x80xbf16> to vector<784x80xbf16>
    %c0_28 = arith.constant 0 : index
    %c0_29 = arith.constant 0 : index
    %22 = vector.load %arg2[%c0_28, %c0_29] : memref<80x128xbf16, #tpu.memory_space<vmem>>, vector<80x128xbf16>
    %cst_30 = arith.constant dense<0.000000e+00> : vector<784x128xf32>
    %23 = tpu.matmul %21, %22, %cst_30 {dimension_numbers = #tpu.dot_dimension_numbers<[1], [0], [0], [1], [0, 0, 1, 1], [], []>} : vector<784x80xbf16>, vector<80x128xbf16>, vector<784x128xf32> -> vector<784x128xf32>
    %24 = arith.maximumf %19, %23 : vector<784x128xf32>
    %c0_31 = arith.constant 0 : index
    %c0_32 = arith.constant 0 : index
    %25 = vector.load %arg5[%c0_31, %c0_32] : memref<784x128xf32, #tpu.memory_space<vmem>>, vector<784x128xf32>
    tpu.vector_store %arg5[%c0_31, %c0_32], %24 {strides = array<i32>} : memref<784x128xf32, #tpu.memory_space<vmem>>, vector<784x128xf32>,
    %c0_33 = arith.constant 0 : index
    %c0_34 = arith.constant 0 : index
    %26 = vector.load %arg5[%c0_33, %c0_34] : memref<784x128xf32, #tpu.memory_space<vmem>>, vector<784x128xf32>
    %c0_35 = arith.constant 0 : index
    %c0_36 = arith.constant 0 : index
    %27 = vector.load %arg3[%c0_35, %c0_36] : memref<1x128xf32, #tpu.memory_space<vmem>>, vector<1x128xf32>
    %28 = vector.broadcast %27 : vector<1x128xf32> to vector<784x128xf32>
    %29 = arith.addf %26, %28 : vector<784x128xf32>
    %cst_37 = arith.constant 0.000000e+00 : f32
    %30 = vector.broadcast %cst_37 : f32 to vector<784x128xf32>
    %31 = arith.maximumf %29, %30 : vector<784x128xf32>
    %32 = arith.truncf %31 : vector<784x128xf32> to vector<784x128xbf16>
    %c0_38 = arith.constant 0 : index
    %c0_39 = arith.constant 0 : index
    %33 = vector.load %arg4[%c0_38, %c0_39] : memref<784x128xbf16, #tpu.memory_space<vmem>>, vector<784x128xbf16>
    tpu.vector_store %arg4[%c0_38, %c0_39], %32 {strides = array<i32>} : memref<784x128xbf16, #tpu.memory_space<vmem>>, vector<784x128xbf16>,
    return
  }
  func.func @transform_0(%arg0: i32) -> (i32, i32, i32) {
    %c0_i32 = arith.constant 0 : i32
    %c0_i32_0 = arith.constant 0 : i32
    %c0_i32_1 = arith.constant 0 : i32
    return %c0_i32, %arg0, %c0_i32_0 : i32, i32, i32
  }
  func.func @transform_1(%arg0: i32) -> (i32, i32) {
    %c0_i32 = arith.constant 0 : i32
    %c0_i32_0 = arith.constant 0 : i32
    %c0_i32_1 = arith.constant 0 : i32
    return %c0_i32, %c0_i32_0 : i32, i32
  }
  func.func @transform_2(%arg0: i32) -> (i32, i32) {
    %c0_i32 = arith.constant 0 : i32
    %c0_i32_0 = arith.constant 0 : i32
    %c0_i32_1 = arith.constant 0 : i32
    return %c0_i32, %c0_i32_0 : i32, i32
  }
  func.func @transform_3(%arg0: i32) -> (i32, i32) {
    %c0_i32 = arith.constant 0 : i32
    %c0_i32_0 = arith.constant 0 : i32
    return %arg0, %c0_i32 : i32, i32
  }
}

module attributes {stable_mosaic.version = 11 : i64} {
  func.func @_head_kernel(%arg0: i32, %arg1: memref<1x4x112x160xbf16, #tpu.memory_space<vmem>>, %arg2: memref<160x128xbf16, #tpu.memory_space<vmem>>, %arg3: memref<1x128xf32, #tpu.memory_space<vmem>>, %arg4: memref<25x128x128xbf16, #tpu.memory_space<vmem>>, %arg5: memref<1x128xf32, #tpu.memory_space<vmem>>, %arg6: memref<128x128xbf16, #tpu.memory_space<vmem>>, %arg7: memref<1x128xf32, #tpu.memory_space<vmem>>, %arg8: memref<128x128xbf16, #tpu.memory_space<vmem>>, %arg9: memref<1x128xf32, #tpu.memory_space<vmem>>, %arg10: memref<1x4x128xf32, #tpu.memory_space<vmem>>, %arg11: memref<112x128xbf16, #tpu.memory_space<vmem>>) attributes {dimension_semantics = [#tpu.dimension_semantics<parallel>], iteration_bounds = array<i64: 1>, scalar_prefetch = 0 : i64, scratch_operands = 1 : i64, tpu.core_type = #tpu.core_type<tc>, window_params = [{transform_indices = @transform_0, window_bounds = array<i64: 1, 4, 112, 160>}, {pipeline_mode = #tpu.pipeline_mode<synchronous>, transform_indices = @transform_1, window_bounds = array<i64: 160, 128>}, {pipeline_mode = #tpu.pipeline_mode<synchronous>, transform_indices = @transform_2, window_bounds = array<i64: 1, 128>}, {pipeline_mode = #tpu.pipeline_mode<synchronous>, transform_indices = @transform_3, window_bounds = array<i64: 25, 128, 128>}, {pipeline_mode = #tpu.pipeline_mode<synchronous>, transform_indices = @transform_4, window_bounds = array<i64: 1, 128>}, {pipeline_mode = #tpu.pipeline_mode<synchronous>, transform_indices = @transform_5, window_bounds = array<i64: 128, 128>}, {pipeline_mode = #tpu.pipeline_mode<synchronous>, transform_indices = @transform_6, window_bounds = array<i64: 1, 128>}, {pipeline_mode = #tpu.pipeline_mode<synchronous>, transform_indices = @transform_7, window_bounds = array<i64: 128, 128>}, {pipeline_mode = #tpu.pipeline_mode<synchronous>, transform_indices = @transform_8, window_bounds = array<i64: 1, 128>}, {transform_indices = @transform_9, window_bounds = array<i64: 1, 4, 128>}]} {
    %c0 = arith.constant 0 : index
    %c0_0 = arith.constant 0 : index
    %c0_1 = arith.constant 0 : index
    %c0_2 = arith.constant 0 : index
    %0 = vector.load %arg1[%c0, %c0_0, %c0_1, %c0_2] : memref<1x4x112x160xbf16, #tpu.memory_space<vmem>>, vector<1x1x112x160xbf16>
    %1 = vector.shape_cast %0 : vector<1x1x112x160xbf16> to vector<112x160xbf16>
    %c0_3 = arith.constant 0 : index
    %c0_4 = arith.constant 0 : index
    %2 = vector.load %arg2[%c0_3, %c0_4] : memref<160x128xbf16, #tpu.memory_space<vmem>>, vector<160x128xbf16>
    %cst = arith.constant dense<0.000000e+00> : vector<112x128xf32>
    %3 = tpu.matmul %1, %2, %cst {dimension_numbers = #tpu.dot_dimension_numbers<[1], [0], [0], [1], [0, 0, 1, 1], [], []>} : vector<112x160xbf16>, vector<160x128xbf16>, vector<112x128xf32> -> vector<112x128xf32>
    %c0_5 = arith.constant 0 : index
    %c1 = arith.constant 1 : index
    %c0_6 = arith.constant 0 : index
    %c0_7 = arith.constant 0 : index
    %4 = vector.load %arg1[%c0_5, %c1, %c0_6, %c0_7] : memref<1x4x112x160xbf16, #tpu.memory_space<vmem>>, vector<1x1x112x160xbf16>
    %5 = vector.shape_cast %4 : vector<1x1x112x160xbf16> to vector<112x160xbf16>
    %c0_8 = arith.constant 0 : index
    %c0_9 = arith.constant 0 : index
    %6 = vector.load %arg2[%c0_8, %c0_9] : memref<160x128xbf16, #tpu.memory_space<vmem>>, vector<160x128xbf16>
    %cst_10 = arith.constant dense<0.000000e+00> : vector<112x128xf32>
    %7 = tpu.matmul %5, %6, %cst_10 {dimension_numbers = #tpu.dot_dimension_numbers<[1], [0], [0], [1], [0, 0, 1, 1], [], []>} : vector<112x160xbf16>, vector<160x128xbf16>, vector<112x128xf32> -> vector<112x128xf32>
    %8 = arith.maximumf %3, %7 : vector<112x128xf32>
    %c0_11 = arith.constant 0 : index
    %c2 = arith.constant 2 : index
    %c0_12 = arith.constant 0 : index
    %c0_13 = arith.constant 0 : index
    %9 = vector.load %arg1[%c0_11, %c2, %c0_12, %c0_13] : memref<1x4x112x160xbf16, #tpu.memory_space<vmem>>, vector<1x1x112x160xbf16>
    %10 = vector.shape_cast %9 : vector<1x1x112x160xbf16> to vector<112x160xbf16>
    %c0_14 = arith.constant 0 : index
    %c0_15 = arith.constant 0 : index
    %11 = vector.load %arg2[%c0_14, %c0_15] : memref<160x128xbf16, #tpu.memory_space<vmem>>, vector<160x128xbf16>
    %cst_16 = arith.constant dense<0.000000e+00> : vector<112x128xf32>
    %12 = tpu.matmul %10, %11, %cst_16 {dimension_numbers = #tpu.dot_dimension_numbers<[1], [0], [0], [1], [0, 0, 1, 1], [], []>} : vector<112x160xbf16>, vector<160x128xbf16>, vector<112x128xf32> -> vector<112x128xf32>
    %13 = arith.maximumf %8, %12 : vector<112x128xf32>
    %c0_17 = arith.constant 0 : index
    %c3 = arith.constant 3 : index
    %c0_18 = arith.constant 0 : index
    %c0_19 = arith.constant 0 : index
    %14 = vector.load %arg1[%c0_17, %c3, %c0_18, %c0_19] : memref<1x4x112x160xbf16, #tpu.memory_space<vmem>>, vector<1x1x112x160xbf16>
    %15 = vector.shape_cast %14 : vector<1x1x112x160xbf16> to vector<112x160xbf16>
    %c0_20 = arith.constant 0 : index
    %c0_21 = arith.constant 0 : index
    %16 = vector.load %arg2[%c0_20, %c0_21] : memref<160x128xbf16, #tpu.memory_space<vmem>>, vector<160x128xbf16>
    %cst_22 = arith.constant dense<0.000000e+00> : vector<112x128xf32>
    %17 = tpu.matmul %15, %16, %cst_22 {dimension_numbers = #tpu.dot_dimension_numbers<[1], [0], [0], [1], [0, 0, 1, 1], [], []>} : vector<112x160xbf16>, vector<160x128xbf16>, vector<112x128xf32> -> vector<112x128xf32>
    %18 = arith.maximumf %13, %17 : vector<112x128xf32>
    %c0_23 = arith.constant 0 : index
    %c0_24 = arith.constant 0 : index
    %19 = vector.load %arg3[%c0_23, %c0_24] : memref<1x128xf32, #tpu.memory_space<vmem>>, vector<1x128xf32>
    %20 = vector.broadcast %19 : vector<1x128xf32> to vector<112x128xf32>
    %21 = arith.addf %18, %20 : vector<112x128xf32>
    %cst_25 = arith.constant 0.000000e+00 : f32
    %22 = vector.broadcast %cst_25 : f32 to vector<112x128xf32>
    %23 = arith.maximumf %21, %22 : vector<112x128xf32>
    %24 = arith.truncf %23 : vector<112x128xf32> to vector<112x128xbf16>
    %c0_26 = arith.constant 0 : index
    %c0_27 = arith.constant 0 : index
    %25 = vector.load %arg11[%c0_26, %c0_27] : memref<112x128xbf16, #tpu.memory_space<vmem>>, vector<112x128xbf16>
    tpu.vector_store %arg11[%c0_26, %c0_27], %24 {strides = array<i32>} : memref<112x128xbf16, #tpu.memory_space<vmem>>, vector<112x128xbf16>,
    %c0_28 = arith.constant 0 : index
    %c0_29 = arith.constant 0 : index
    %26 = vector.load %arg11[%c0_28, %c0_29] : memref<112x128xbf16, #tpu.memory_space<vmem>>, vector<4x128xbf16>
    %c0_30 = arith.constant 0 : index
    %c0_31 = arith.constant 0 : index
    %c0_32 = arith.constant 0 : index
    %27 = vector.load %arg4[%c0_30, %c0_31, %c0_32] : memref<25x128x128xbf16, #tpu.memory_space<vmem>>, vector<1x128x128xbf16>
    %28 = vector.shape_cast %27 : vector<1x128x128xbf16> to vector<128x128xbf16>
    %cst_33 = arith.constant dense<0.000000e+00> : vector<4x128xf32>
    %29 = tpu.matmul %26, %28, %cst_33 {dimension_numbers = #tpu.dot_dimension_numbers<[1], [0], [0], [1], [0, 0, 1, 1], [], []>} : vector<4x128xbf16>, vector<128x128xbf16>, vector<4x128xf32> -> vector<4x128xf32>
    %c16 = arith.constant 16 : index
    %c0_34 = arith.constant 0 : index
    %30 = vector.load %arg11[%c16, %c0_34] : memref<112x128xbf16, #tpu.memory_space<vmem>>, vector<4x128xbf16>
    %c4 = arith.constant 4 : index
    %c0_35 = arith.constant 0 : index
    %c0_36 = arith.constant 0 : index
    %31 = vector.load %arg4[%c4, %c0_35, %c0_36] : memref<25x128x128xbf16, #tpu.memory_space<vmem>>, vector<1x128x128xbf16>
    %32 = vector.shape_cast %31 : vector<1x128x128xbf16> to vector<128x128xbf16>
    %cst_37 = arith.constant dense<0.000000e+00> : vector<4x128xf32>
    %33 = tpu.matmul %30, %32, %cst_37 {dimension_numbers = #tpu.dot_dimension_numbers<[1], [0], [0], [1], [0, 0, 1, 1], [], []>} : vector<4x128xbf16>, vector<128x128xbf16>, vector<4x128xf32> -> vector<4x128xf32>
    %34 = arith.addf %29, %33 : vector<4x128xf32>
    %c32 = arith.constant 32 : index
    %c0_38 = arith.constant 0 : index
    %35 = vector.load %arg11[%c32, %c0_38] : memref<112x128xbf16, #tpu.memory_space<vmem>>, vector<4x128xbf16>
    %c8 = arith.constant 8 : index
    %c0_39 = arith.constant 0 : index
    %c0_40 = arith.constant 0 : index
    %36 = vector.load %arg4[%c8, %c0_39, %c0_40] : memref<25x128x128xbf16, #tpu.memory_space<vmem>>, vector<1x128x128xbf16>
    %37 = vector.shape_cast %36 : vector<1x128x128xbf16> to vector<128x128xbf16>
    %cst_41 = arith.constant dense<0.000000e+00> : vector<4x128xf32>
    %38 = tpu.matmul %35, %37, %cst_41 {dimension_numbers = #tpu.dot_dimension_numbers<[1], [0], [0], [1], [0, 0, 1, 1], [], []>} : vector<4x128xbf16>, vector<128x128xbf16>, vector<4x128xf32> -> vector<4x128xf32>
    %39 = arith.addf %34, %38 : vector<4x128xf32>
    %c48 = arith.constant 48 : index
    %c0_42 = arith.constant 0 : index
    %40 = vector.load %arg11[%c48, %c0_42] : memref<112x128xbf16, #tpu.memory_space<vmem>>, vector<4x128xbf16>
    %c12 = arith.constant 12 : index
    %c0_43 = arith.constant 0 : index
    %c0_44 = arith.constant 0 : index
    %41 = vector.load %arg4[%c12, %c0_43, %c0_44] : memref<25x128x128xbf16, #tpu.memory_space<vmem>>, vector<1x128x128xbf16>
    %42 = vector.shape_cast %41 : vector<1x128x128xbf16> to vector<128x128xbf16>
    %cst_45 = arith.constant dense<0.000000e+00> : vector<4x128xf32>
    %43 = tpu.matmul %40, %42, %cst_45 {dimension_numbers = #tpu.dot_dimension_numbers<[1], [0], [0], [1], [0, 0, 1, 1], [], []>} : vector<4x128xbf16>, vector<128x128xbf16>, vector<4x128xf32> -> vector<4x128xf32>
    %44 = arith.addf %39, %43 : vector<4x128xf32>
    %c64 = arith.constant 64 : index
    %c0_46 = arith.constant 0 : index
    %45 = vector.load %arg11[%c64, %c0_46] : memref<112x128xbf16, #tpu.memory_space<vmem>>, vector<4x128xbf16>
    %c16_47 = arith.constant 16 : index
    %c0_48 = arith.constant 0 : index
    %c0_49 = arith.constant 0 : index
    %46 = vector.load %arg4[%c16_47, %c0_48, %c0_49] : memref<25x128x128xbf16, #tpu.memory_space<vmem>>, vector<1x128x128xbf16>
    %47 = vector.shape_cast %46 : vector<1x128x128xbf16> to vector<128x128xbf16>
    %cst_50 = arith.constant dense<0.000000e+00> : vector<4x128xf32>
    %48 = tpu.matmul %45, %47, %cst_50 {dimension_numbers = #tpu.dot_dimension_numbers<[1], [0], [0], [1], [0, 0, 1, 1], [], []>} : vector<4x128xbf16>, vector<128x128xbf16>, vector<4x128xf32> -> vector<4x128xf32>
    %49 = arith.addf %44, %48 : vector<4x128xf32>
    %c80 = arith.constant 80 : index
    %c0_51 = arith.constant 0 : index
    %50 = vector.load %arg11[%c80, %c0_51] : memref<112x128xbf16, #tpu.memory_space<vmem>>, vector<4x128xbf16>
    %c20 = arith.constant 20 : index
    %c0_52 = arith.constant 0 : index
    %c0_53 = arith.constant 0 : index
    %51 = vector.load %arg4[%c20, %c0_52, %c0_53] : memref<25x128x128xbf16, #tpu.memory_space<vmem>>, vector<1x128x128xbf16>
    %52 = vector.shape_cast %51 : vector<1x128x128xbf16> to vector<128x128xbf16>
    %cst_54 = arith.constant dense<0.000000e+00> : vector<4x128xf32>
    %53 = tpu.matmul %50, %52, %cst_54 {dimension_numbers = #tpu.dot_dimension_numbers<[1], [0], [0], [1], [0, 0, 1, 1], [], []>} : vector<4x128xbf16>, vector<128x128xbf16>, vector<4x128xf32> -> vector<4x128xf32>
    %54 = arith.addf %49, %53 : vector<4x128xf32>
    %c96 = arith.constant 96 : index
    %c0_55 = arith.constant 0 : index
    %55 = vector.load %arg11[%c96, %c0_55] : memref<112x128xbf16, #tpu.memory_space<vmem>>, vector<4x128xbf16>
    %c24 = arith.constant 24 : index
    %c0_56 = arith.constant 0 : index
    %c0_57 = arith.constant 0 : index
    %56 = vector.load %arg4[%c24, %c0_56, %c0_57] : memref<25x128x128xbf16, #tpu.memory_space<vmem>>, vector<1x128x128xbf16>
    %57 = vector.shape_cast %56 : vector<1x128x128xbf16> to vector<128x128xbf16>
    %cst_58 = arith.constant dense<0.000000e+00> : vector<4x128xf32>
    %58 = tpu.matmul %55, %57, %cst_58 {dimension_numbers = #tpu.dot_dimension_numbers<[1], [0], [0], [1], [0, 0, 1, 1], [], []>} : vector<4x128xbf16>, vector<128x128xbf16>, vector<4x128xf32> -> vector<4x128xf32>
    %59 = arith.addf %54, %58 : vector<4x128xf32>
    %c4_59 = arith.constant 4 : index
    %c0_60 = arith.constant 0 : index
    %60 = vector.load %arg11[%c4_59, %c0_60] : memref<112x128xbf16, #tpu.memory_space<vmem>>, vector<4x128xbf16>
    %c1_61 = arith.constant 1 : index
    %c0_62 = arith.constant 0 : index
    %c0_63 = arith.constant 0 : index
    %61 = vector.load %arg4[%c1_61, %c0_62, %c0_63] : memref<25x128x128xbf16, #tpu.memory_space<vmem>>, vector<1x128x128xbf16>
    %62 = vector.shape_cast %61 : vector<1x128x128xbf16> to vector<128x128xbf16>
    %cst_64 = arith.constant dense<0.000000e+00> : vector<4x128xf32>
    %63 = tpu.matmul %60, %62, %cst_64 {dimension_numbers = #tpu.dot_dimension_numbers<[1], [0], [0], [1], [0, 0, 1, 1], [], []>} : vector<4x128xbf16>, vector<128x128xbf16>, vector<4x128xf32> -> vector<4x128xf32>
    %c20_65 = arith.constant 20 : index
    %c0_66 = arith.constant 0 : index
    %64 = vector.load %arg11[%c20_65, %c0_66] : memref<112x128xbf16, #tpu.memory_space<vmem>>, vector<4x128xbf16>
    %c5 = arith.constant 5 : index
    %c0_67 = arith.constant 0 : index
    %c0_68 = arith.constant 0 : index
    %65 = vector.load %arg4[%c5, %c0_67, %c0_68] : memref<25x128x128xbf16, #tpu.memory_space<vmem>>, vector<1x128x128xbf16>
    %66 = vector.shape_cast %65 : vector<1x128x128xbf16> to vector<128x128xbf16>
    %cst_69 = arith.constant dense<0.000000e+00> : vector<4x128xf32>
    %67 = tpu.matmul %64, %66, %cst_69 {dimension_numbers = #tpu.dot_dimension_numbers<[1], [0], [0], [1], [0, 0, 1, 1], [], []>} : vector<4x128xbf16>, vector<128x128xbf16>, vector<4x128xf32> -> vector<4x128xf32>
    %68 = arith.addf %63, %67 : vector<4x128xf32>
    %c36 = arith.constant 36 : index
    %c0_70 = arith.constant 0 : index
    %69 = vector.load %arg11[%c36, %c0_70] : memref<112x128xbf16, #tpu.memory_space<vmem>>, vector<4x128xbf16>
    %c9 = arith.constant 9 : index
    %c0_71 = arith.constant 0 : index
    %c0_72 = arith.constant 0 : index
    %70 = vector.load %arg4[%c9, %c0_71, %c0_72] : memref<25x128x128xbf16, #tpu.memory_space<vmem>>, vector<1x128x128xbf16>
    %71 = vector.shape_cast %70 : vector<1x128x128xbf16> to vector<128x128xbf16>
    %cst_73 = arith.constant dense<0.000000e+00> : vector<4x128xf32>
    %72 = tpu.matmul %69, %71, %cst_73 {dimension_numbers = #tpu.dot_dimension_numbers<[1], [0], [0], [1], [0, 0, 1, 1], [], []>} : vector<4x128xbf16>, vector<128x128xbf16>, vector<4x128xf32> -> vector<4x128xf32>
    %73 = arith.addf %68, %72 : vector<4x128xf32>
    %c52 = arith.constant 52 : index
    %c0_74 = arith.constant 0 : index
    %74 = vector.load %arg11[%c52, %c0_74] : memref<112x128xbf16, #tpu.memory_space<vmem>>, vector<4x128xbf16>
    %c13 = arith.constant 13 : index
    %c0_75 = arith.constant 0 : index
    %c0_76 = arith.constant 0 : index
    %75 = vector.load %arg4[%c13, %c0_75, %c0_76] : memref<25x128x128xbf16, #tpu.memory_space<vmem>>, vector<1x128x128xbf16>
    %76 = vector.shape_cast %75 : vector<1x128x128xbf16> to vector<128x128xbf16>
    %cst_77 = arith.constant dense<0.000000e+00> : vector<4x128xf32>
    %77 = tpu.matmul %74, %76, %cst_77 {dimension_numbers = #tpu.dot_dimension_numbers<[1], [0], [0], [1], [0, 0, 1, 1], [], []>} : vector<4x128xbf16>, vector<128x128xbf16>, vector<4x128xf32> -> vector<4x128xf32>
    %78 = arith.addf %73, %77 : vector<4x128xf32>
    %c68 = arith.constant 68 : index
    %c0_78 = arith.constant 0 : index
    %79 = vector.load %arg11[%c68, %c0_78] : memref<112x128xbf16, #tpu.memory_space<vmem>>, vector<4x128xbf16>
    %c17 = arith.constant 17 : index
    %c0_79 = arith.constant 0 : index
    %c0_80 = arith.constant 0 : index
    %80 = vector.load %arg4[%c17, %c0_79, %c0_80] : memref<25x128x128xbf16, #tpu.memory_space<vmem>>, vector<1x128x128xbf16>
    %81 = vector.shape_cast %80 : vector<1x128x128xbf16> to vector<128x128xbf16>
    %cst_81 = arith.constant dense<0.000000e+00> : vector<4x128xf32>
    %82 = tpu.matmul %79, %81, %cst_81 {dimension_numbers = #tpu.dot_dimension_numbers<[1], [0], [0], [1], [0, 0, 1, 1], [], []>} : vector<4x128xbf16>, vector<128x128xbf16>, vector<4x128xf32> -> vector<4x128xf32>
    %83 = arith.addf %78, %82 : vector<4x128xf32>
    %c84 = arith.constant 84 : index
    %c0_82 = arith.constant 0 : index
    %84 = vector.load %arg11[%c84, %c0_82] : memref<112x128xbf16, #tpu.memory_space<vmem>>, vector<4x128xbf16>
    %c21 = arith.constant 21 : index
    %c0_83 = arith.constant 0 : index
    %c0_84 = arith.constant 0 : index
    %85 = vector.load %arg4[%c21, %c0_83, %c0_84] : memref<25x128x128xbf16, #tpu.memory_space<vmem>>, vector<1x128x128xbf16>
    %86 = vector.shape_cast %85 : vector<1x128x128xbf16> to vector<128x128xbf16>
    %cst_85 = arith.constant dense<0.000000e+00> : vector<4x128xf32>
    %87 = tpu.matmul %84, %86, %cst_85 {dimension_numbers = #tpu.dot_dimension_numbers<[1], [0], [0], [1], [0, 0, 1, 1], [], []>} : vector<4x128xbf16>, vector<128x128xbf16>, vector<4x128xf32> -> vector<4x128xf32>
    %88 = arith.addf %83, %87 : vector<4x128xf32>
    %c8_86 = arith.constant 8 : index
    %c0_87 = arith.constant 0 : index
    %89 = vector.load %arg11[%c8_86, %c0_87] : memref<112x128xbf16, #tpu.memory_space<vmem>>, vector<4x128xbf16>
    %c2_88 = arith.constant 2 : index
    %c0_89 = arith.constant 0 : index
    %c0_90 = arith.constant 0 : index
    %90 = vector.load %arg4[%c2_88, %c0_89, %c0_90] : memref<25x128x128xbf16, #tpu.memory_space<vmem>>, vector<1x128x128xbf16>
    %91 = vector.shape_cast %90 : vector<1x128x128xbf16> to vector<128x128xbf16>
    %cst_91 = arith.constant dense<0.000000e+00> : vector<4x128xf32>
    %92 = tpu.matmul %89, %91, %cst_91 {dimension_numbers = #tpu.dot_dimension_numbers<[1], [0], [0], [1], [0, 0, 1, 1], [], []>} : vector<4x128xbf16>, vector<128x128xbf16>, vector<4x128xf32> -> vector<4x128xf32>
    %c24_92 = arith.constant 24 : index
    %c0_93 = arith.constant 0 : index
    %93 = vector.load %arg11[%c24_92, %c0_93] : memref<112x128xbf16, #tpu.memory_space<vmem>>, vector<4x128xbf16>
    %c6 = arith.constant 6 : index
    %c0_94 = arith.constant 0 : index
    %c0_95 = arith.constant 0 : index
    %94 = vector.load %arg4[%c6, %c0_94, %c0_95] : memref<25x128x128xbf16, #tpu.memory_space<vmem>>, vector<1x128x128xbf16>
    %95 = vector.shape_cast %94 : vector<1x128x128xbf16> to vector<128x128xbf16>
    %cst_96 = arith.constant dense<0.000000e+00> : vector<4x128xf32>
    %96 = tpu.matmul %93, %95, %cst_96 {dimension_numbers = #tpu.dot_dimension_numbers<[1], [0], [0], [1], [0, 0, 1, 1], [], []>} : vector<4x128xbf16>, vector<128x128xbf16>, vector<4x128xf32> -> vector<4x128xf32>
    %97 = arith.addf %92, %96 : vector<4x128xf32>
    %c40 = arith.constant 40 : index
    %c0_97 = arith.constant 0 : index
    %98 = vector.load %arg11[%c40, %c0_97] : memref<112x128xbf16, #tpu.memory_space<vmem>>, vector<4x128xbf16>
    %c10 = arith.constant 10 : index
    %c0_98 = arith.constant 0 : index
    %c0_99 = arith.constant 0 : index
    %99 = vector.load %arg4[%c10, %c0_98, %c0_99] : memref<25x128x128xbf16, #tpu.memory_space<vmem>>, vector<1x128x128xbf16>
    %100 = vector.shape_cast %99 : vector<1x128x128xbf16> to vector<128x128xbf16>
    %cst_100 = arith.constant dense<0.000000e+00> : vector<4x128xf32>
    %101 = tpu.matmul %98, %100, %cst_100 {dimension_numbers = #tpu.dot_dimension_numbers<[1], [0], [0], [1], [0, 0, 1, 1], [], []>} : vector<4x128xbf16>, vector<128x128xbf16>, vector<4x128xf32> -> vector<4x128xf32>
    %102 = arith.addf %97, %101 : vector<4x128xf32>
    %c56 = arith.constant 56 : index
    %c0_101 = arith.constant 0 : index
    %103 = vector.load %arg11[%c56, %c0_101] : memref<112x128xbf16, #tpu.memory_space<vmem>>, vector<4x128xbf16>
    %c14 = arith.constant 14 : index
    %c0_102 = arith.constant 0 : index
    %c0_103 = arith.constant 0 : index
    %104 = vector.load %arg4[%c14, %c0_102, %c0_103] : memref<25x128x128xbf16, #tpu.memory_space<vmem>>, vector<1x128x128xbf16>
    %105 = vector.shape_cast %104 : vector<1x128x128xbf16> to vector<128x128xbf16>
    %cst_104 = arith.constant dense<0.000000e+00> : vector<4x128xf32>
    %106 = tpu.matmul %103, %105, %cst_104 {dimension_numbers = #tpu.dot_dimension_numbers<[1], [0], [0], [1], [0, 0, 1, 1], [], []>} : vector<4x128xbf16>, vector<128x128xbf16>, vector<4x128xf32> -> vector<4x128xf32>
    %107 = arith.addf %102, %106 : vector<4x128xf32>
    %c72 = arith.constant 72 : index
    %c0_105 = arith.constant 0 : index
    %108 = vector.load %arg11[%c72, %c0_105] : memref<112x128xbf16, #tpu.memory_space<vmem>>, vector<4x128xbf16>
    %c18 = arith.constant 18 : index
    %c0_106 = arith.constant 0 : index
    %c0_107 = arith.constant 0 : index
    %109 = vector.load %arg4[%c18, %c0_106, %c0_107] : memref<25x128x128xbf16, #tpu.memory_space<vmem>>, vector<1x128x128xbf16>
    %110 = vector.shape_cast %109 : vector<1x128x128xbf16> to vector<128x128xbf16>
    %cst_108 = arith.constant dense<0.000000e+00> : vector<4x128xf32>
    %111 = tpu.matmul %108, %110, %cst_108 {dimension_numbers = #tpu.dot_dimension_numbers<[1], [0], [0], [1], [0, 0, 1, 1], [], []>} : vector<4x128xbf16>, vector<128x128xbf16>, vector<4x128xf32> -> vector<4x128xf32>
    %112 = arith.addf %107, %111 : vector<4x128xf32>
    %c88 = arith.constant 88 : index
    %c0_109 = arith.constant 0 : index
    %113 = vector.load %arg11[%c88, %c0_109] : memref<112x128xbf16, #tpu.memory_space<vmem>>, vector<4x128xbf16>
    %c22 = arith.constant 22 : index
    %c0_110 = arith.constant 0 : index
    %c0_111 = arith.constant 0 : index
    %114 = vector.load %arg4[%c22, %c0_110, %c0_111] : memref<25x128x128xbf16, #tpu.memory_space<vmem>>, vector<1x128x128xbf16>
    %115 = vector.shape_cast %114 : vector<1x128x128xbf16> to vector<128x128xbf16>
    %cst_112 = arith.constant dense<0.000000e+00> : vector<4x128xf32>
    %116 = tpu.matmul %113, %115, %cst_112 {dimension_numbers = #tpu.dot_dimension_numbers<[1], [0], [0], [1], [0, 0, 1, 1], [], []>} : vector<4x128xbf16>, vector<128x128xbf16>, vector<4x128xf32> -> vector<4x128xf32>
    %117 = arith.addf %112, %116 : vector<4x128xf32>
    %c12_113 = arith.constant 12 : index
    %c0_114 = arith.constant 0 : index
    %118 = vector.load %arg11[%c12_113, %c0_114] : memref<112x128xbf16, #tpu.memory_space<vmem>>, vector<4x128xbf16>
    %c3_115 = arith.constant 3 : index
    %c0_116 = arith.constant 0 : index
    %c0_117 = arith.constant 0 : index
    %119 = vector.load %arg4[%c3_115, %c0_116, %c0_117] : memref<25x128x128xbf16, #tpu.memory_space<vmem>>, vector<1x128x128xbf16>
    %120 = vector.shape_cast %119 : vector<1x128x128xbf16> to vector<128x128xbf16>
    %cst_118 = arith.constant dense<0.000000e+00> : vector<4x128xf32>
    %121 = tpu.matmul %118, %120, %cst_118 {dimension_numbers = #tpu.dot_dimension_numbers<[1], [0], [0], [1], [0, 0, 1, 1], [], []>} : vector<4x128xbf16>, vector<128x128xbf16>, vector<4x128xf32> -> vector<4x128xf32>
    %c28 = arith.constant 28 : index
    %c0_119 = arith.constant 0 : index
    %122 = vector.load %arg11[%c28, %c0_119] : memref<112x128xbf16, #tpu.memory_space<vmem>>, vector<4x128xbf16>
    %c7 = arith.constant 7 : index
    %c0_120 = arith.constant 0 : index
    %c0_121 = arith.constant 0 : index
    %123 = vector.load %arg4[%c7, %c0_120, %c0_121] : memref<25x128x128xbf16, #tpu.memory_space<vmem>>, vector<1x128x128xbf16>
    %124 = vector.shape_cast %123 : vector<1x128x128xbf16> to vector<128x128xbf16>
    %cst_122 = arith.constant dense<0.000000e+00> : vector<4x128xf32>
    %125 = tpu.matmul %122, %124, %cst_122 {dimension_numbers = #tpu.dot_dimension_numbers<[1], [0], [0], [1], [0, 0, 1, 1], [], []>} : vector<4x128xbf16>, vector<128x128xbf16>, vector<4x128xf32> -> vector<4x128xf32>
    %126 = arith.addf %121, %125 : vector<4x128xf32>
    %c44 = arith.constant 44 : index
    %c0_123 = arith.constant 0 : index
    %127 = vector.load %arg11[%c44, %c0_123] : memref<112x128xbf16, #tpu.memory_space<vmem>>, vector<4x128xbf16>
    %c11 = arith.constant 11 : index
    %c0_124 = arith.constant 0 : index
    %c0_125 = arith.constant 0 : index
    %128 = vector.load %arg4[%c11, %c0_124, %c0_125] : memref<25x128x128xbf16, #tpu.memory_space<vmem>>, vector<1x128x128xbf16>
    %129 = vector.shape_cast %128 : vector<1x128x128xbf16> to vector<128x128xbf16>
    %cst_126 = arith.constant dense<0.000000e+00> : vector<4x128xf32>
    %130 = tpu.matmul %127, %129, %cst_126 {dimension_numbers = #tpu.dot_dimension_numbers<[1], [0], [0], [1], [0, 0, 1, 1], [], []>} : vector<4x128xbf16>, vector<128x128xbf16>, vector<4x128xf32> -> vector<4x128xf32>
    %131 = arith.addf %126, %130 : vector<4x128xf32>
    %c60 = arith.constant 60 : index
    %c0_127 = arith.constant 0 : index
    %132 = vector.load %arg11[%c60, %c0_127] : memref<112x128xbf16, #tpu.memory_space<vmem>>, vector<4x128xbf16>
    %c15 = arith.constant 15 : index
    %c0_128 = arith.constant 0 : index
    %c0_129 = arith.constant 0 : index
    %133 = vector.load %arg4[%c15, %c0_128, %c0_129] : memref<25x128x128xbf16, #tpu.memory_space<vmem>>, vector<1x128x128xbf16>
    %134 = vector.shape_cast %133 : vector<1x128x128xbf16> to vector<128x128xbf16>
    %cst_130 = arith.constant dense<0.000000e+00> : vector<4x128xf32>
    %135 = tpu.matmul %132, %134, %cst_130 {dimension_numbers = #tpu.dot_dimension_numbers<[1], [0], [0], [1], [0, 0, 1, 1], [], []>} : vector<4x128xbf16>, vector<128x128xbf16>, vector<4x128xf32> -> vector<4x128xf32>
    %136 = arith.addf %131, %135 : vector<4x128xf32>
    %c76 = arith.constant 76 : index
    %c0_131 = arith.constant 0 : index
    %137 = vector.load %arg11[%c76, %c0_131] : memref<112x128xbf16, #tpu.memory_space<vmem>>, vector<4x128xbf16>
    %c19 = arith.constant 19 : index
    %c0_132 = arith.constant 0 : index
    %c0_133 = arith.constant 0 : index
    %138 = vector.load %arg4[%c19, %c0_132, %c0_133] : memref<25x128x128xbf16, #tpu.memory_space<vmem>>, vector<1x128x128xbf16>
    %139 = vector.shape_cast %138 : vector<1x128x128xbf16> to vector<128x128xbf16>
    %cst_134 = arith.constant dense<0.000000e+00> : vector<4x128xf32>
    %140 = tpu.matmul %137, %139, %cst_134 {dimension_numbers = #tpu.dot_dimension_numbers<[1], [0], [0], [1], [0, 0, 1, 1], [], []>} : vector<4x128xbf16>, vector<128x128xbf16>, vector<4x128xf32> -> vector<4x128xf32>
    %141 = arith.addf %136, %140 : vector<4x128xf32>
    %c92 = arith.constant 92 : index
    %c0_135 = arith.constant 0 : index
    %142 = vector.load %arg11[%c92, %c0_135] : memref<112x128xbf16, #tpu.memory_space<vmem>>, vector<4x128xbf16>
    %c23 = arith.constant 23 : index
    %c0_136 = arith.constant 0 : index
    %c0_137 = arith.constant 0 : index
    %143 = vector.load %arg4[%c23, %c0_136, %c0_137] : memref<25x128x128xbf16, #tpu.memory_space<vmem>>, vector<1x128x128xbf16>
    %144 = vector.shape_cast %143 : vector<1x128x128xbf16> to vector<128x128xbf16>
    %cst_138 = arith.constant dense<0.000000e+00> : vector<4x128xf32>
    %145 = tpu.matmul %142, %144, %cst_138 {dimension_numbers = #tpu.dot_dimension_numbers<[1], [0], [0], [1], [0, 0, 1, 1], [], []>} : vector<4x128xbf16>, vector<128x128xbf16>, vector<4x128xf32> -> vector<4x128xf32>
    %146 = arith.addf %141, %145 : vector<4x128xf32>
    %147 = arith.addf %59, %88 : vector<4x128xf32>
    %148 = arith.addf %117, %146 : vector<4x128xf32>
    %149 = arith.addf %147, %148 : vector<4x128xf32>
    %c0_139 = arith.constant 0 : index
    %c0_140 = arith.constant 0 : index
    %150 = vector.load %arg5[%c0_139, %c0_140] : memref<1x128xf32, #tpu.memory_space<vmem>>, vector<1x128xf32>
    %151 = vector.broadcast %150 : vector<1x128xf32> to vector<4x128xf32>
    %152 = arith.addf %149, %151 : vector<4x128xf32>
    %cst_141 = arith.constant 0.000000e+00 : f32
    %153 = vector.broadcast %cst_141 : f32 to vector<4x128xf32>
    %154 = arith.maximumf %152, %153 : vector<4x128xf32>
    %155 = arith.truncf %154 : vector<4x128xf32> to vector<4x128xbf16>
    %c0_142 = arith.constant 0 : index
    %c0_143 = arith.constant 0 : index
    %156 = vector.load %arg6[%c0_142, %c0_143] : memref<128x128xbf16, #tpu.memory_space<vmem>>, vector<128x128xbf16>
    %cst_144 = arith.constant dense<0.000000e+00> : vector<4x128xf32>
    %157 = tpu.matmul %155, %156, %cst_144 {dimension_numbers = #tpu.dot_dimension_numbers<[1], [0], [0], [1], [0, 0, 1, 1], [], []>} : vector<4x128xbf16>, vector<128x128xbf16>, vector<4x128xf32> -> vector<4x128xf32>
    %c0_145 = arith.constant 0 : index
    %c0_146 = arith.constant 0 : index
    %158 = vector.load %arg7[%c0_145, %c0_146] : memref<1x128xf32, #tpu.memory_space<vmem>>, vector<1x128xf32>
    %159 = vector.broadcast %158 : vector<1x128xf32> to vector<4x128xf32>
    %160 = arith.addf %157, %159 : vector<4x128xf32>
    %cst_147 = arith.constant 0.000000e+00 : f32
    %161 = vector.broadcast %cst_147 : f32 to vector<4x128xf32>
    %162 = arith.maximumf %160, %161 : vector<4x128xf32>
    %163 = arith.truncf %162 : vector<4x128xf32> to vector<4x128xbf16>
    %c0_148 = arith.constant 0 : index
    %c0_149 = arith.constant 0 : index
    %164 = vector.load %arg8[%c0_148, %c0_149] : memref<128x128xbf16, #tpu.memory_space<vmem>>, vector<128x128xbf16>
    %cst_150 = arith.constant dense<0.000000e+00> : vector<4x128xf32>
    %165 = tpu.matmul %163, %164, %cst_150 {dimension_numbers = #tpu.dot_dimension_numbers<[1], [0], [0], [1], [0, 0, 1, 1], [], []>} : vector<4x128xbf16>, vector<128x128xbf16>, vector<4x128xf32> -> vector<4x128xf32>
    %c0_151 = arith.constant 0 : index
    %c0_152 = arith.constant 0 : index
    %166 = vector.load %arg9[%c0_151, %c0_152] : memref<1x128xf32, #tpu.memory_space<vmem>>, vector<1x128xf32>
    %167 = vector.broadcast %166 : vector<1x128xf32> to vector<4x128xf32>
    %168 = arith.addf %165, %167 : vector<4x128xf32>
    %c0_153 = arith.constant 0 : index
    %c0_154 = arith.constant 0 : index
    %c0_155 = arith.constant 0 : index
    %169 = vector.load %arg10[%c0_153, %c0_154, %c0_155] : memref<1x4x128xf32, #tpu.memory_space<vmem>>, vector<1x4x128xf32>
    %170 = vector.shape_cast %169 : vector<1x4x128xf32> to vector<4x128xf32>
    %171 = vector.shape_cast %168 : vector<4x128xf32> to vector<1x4x128xf32>
    tpu.vector_store %arg10[%c0_153, %c0_154, %c0_155], %171 {strides = array<i32>} : memref<1x4x128xf32, #tpu.memory_space<vmem>>, vector<1x4x128xf32>,
    return
  }
  func.func @transform_0(%arg0: i32) -> (i32, i32, i32, i32) {
    %c0_i32 = arith.constant 0 : i32
    %c0_i32_0 = arith.constant 0 : i32
    %c0_i32_1 = arith.constant 0 : i32
    %c0_i32_2 = arith.constant 0 : i32
    return %arg0, %c0_i32, %c0_i32_0, %c0_i32_1 : i32, i32, i32, i32
  }
  func.func @transform_1(%arg0: i32) -> (i32, i32) {
    %c0_i32 = arith.constant 0 : i32
    %c0_i32_0 = arith.constant 0 : i32
    %c0_i32_1 = arith.constant 0 : i32
    return %c0_i32, %c0_i32_0 : i32, i32
  }
  func.func @transform_2(%arg0: i32) -> (i32, i32) {
    %c0_i32 = arith.constant 0 : i32
    %c0_i32_0 = arith.constant 0 : i32
    %c0_i32_1 = arith.constant 0 : i32
    return %c0_i32, %c0_i32_0 : i32, i32
  }
  func.func @transform_3(%arg0: i32) -> (i32, i32, i32) {
    %c0_i32 = arith.constant 0 : i32
    %c0_i32_0 = arith.constant 0 : i32
    %c0_i32_1 = arith.constant 0 : i32
    %c0_i32_2 = arith.constant 0 : i32
    return %c0_i32, %c0_i32_0, %c0_i32_1 : i32, i32, i32
  }
  func.func @transform_4(%arg0: i32) -> (i32, i32) {
    %c0_i32 = arith.constant 0 : i32
    %c0_i32_0 = arith.constant 0 : i32
    %c0_i32_1 = arith.constant 0 : i32
    return %c0_i32, %c0_i32_0 : i32, i32
  }
  func.func @transform_5(%arg0: i32) -> (i32, i32) {
    %c0_i32 = arith.constant 0 : i32
    %c0_i32_0 = arith.constant 0 : i32
    %c0_i32_1 = arith.constant 0 : i32
    return %c0_i32, %c0_i32_0 : i32, i32
  }
  func.func @transform_6(%arg0: i32) -> (i32, i32) {
    %c0_i32 = arith.constant 0 : i32
    %c0_i32_0 = arith.constant 0 : i32
    %c0_i32_1 = arith.constant 0 : i32
    return %c0_i32, %c0_i32_0 : i32, i32
  }
  func.func @transform_7(%arg0: i32) -> (i32, i32) {
    %c0_i32 = arith.constant 0 : i32
    %c0_i32_0 = arith.constant 0 : i32
    %c0_i32_1 = arith.constant 0 : i32
    return %c0_i32, %c0_i32_0 : i32, i32
  }
  func.func @transform_8(%arg0: i32) -> (i32, i32) {
    %c0_i32 = arith.constant 0 : i32
    %c0_i32_0 = arith.constant 0 : i32
    %c0_i32_1 = arith.constant 0 : i32
    return %c0_i32, %c0_i32_0 : i32, i32
  }
  func.func @transform_9(%arg0: i32) -> (i32, i32, i32) {
    %c0_i32 = arith.constant 0 : i32
    %c0_i32_0 = arith.constant 0 : i32
    %c0_i32_1 = arith.constant 0 : i32
    return %arg0, %c0_i32, %c0_i32_0 : i32, i32, i32
  }
}

</mosaic_0001>

<llo_original>
// kernel: net_forward.2
$region0: #{net_forward.2}
  #allocation0 [shape = 'u32[]', space=smem, size = 0x4, offset = 0x4, fixed_abs, tag = 'smem constant byte address 0x4 - core index']
  #allocation1 [shape = 'u32[144,128]{1,0:T(1,128)}', space=vmem, size = 0x12000, scoped, tag = 'internal scratch']
  #allocation2 [shape = 'f32[784,128]{1,0:T(8,128)}', space=vmem, size = 0x62000, scoped, tag = 'scratch operand']
  %s0 = inlined_call_operand.vmem [shape: bf16[4,784,80], index: 0, kind: input, shape index: {}]
  %s1 = inlined_call_operand.vmem [shape: bf16[80,128], index: 1, kind: input, shape index: {}]
  %s2 = inlined_call_operand.vmem [shape: f32[1,128], index: 2, kind: input, shape index: {}]
  %s3 = inlined_call_operand.vmem [shape: bf16[784,128], index: 3, kind: output, shape index: {}]
  %s4 = sld [smem:[#allocation0]]
  $region22: #{net_forward.2} parent=0
    _
  %s6 = ssub.s32 1, %s4
  %s7 = scalar_select 0, %s6, %s4
  // Predicated region
  $region2: #{net_forward.2} parent=0 // pred_check
    _
  $region3: #{net_forward.2} parent=0 // pred_check_branch
    %9 = sbr.rel (0) target = $region5
  $region4: #{net_forward.2} parent=0 // pred_region
    _
  $region5: #{net_forward.2} parent=0 // pred_fallthru
    _
  // Predicated region
  $region6: #{net_forward.2} parent=0 // pred_check
    _
  $region7: #{net_forward.2} parent=0 // pred_check_branch
    %11 = sbr.rel (0) target = $region9
  $region8: #{net_forward.2} parent=0 // pred_region
    _
  $region9: #{net_forward.2} parent=0 // pred_fallthru
    _
  // Predicated region
  $region10: #{net_forward.2} parent=0 // pred_check
    _
  $region11: #{net_forward.2} parent=0 // pred_check_branch
    %13 = sbr.rel (0) target = $region13
  $region12: #{net_forward.2} parent=0 // pred_region
    _
  $region13: #{net_forward.2} parent=0 // pred_fallthru
    _
  %v15 = vld [vmem:[%s0] sm:$0xf]
  %v16 = vld [vmem:[%s0 + $0x4] sm:$0xf]
  %v17 = vld [vmem:[%s0 + $0x8] sm:$0xf]
  %v18 = vld [vmem:[%s0 + $0xc] sm:$0xf]
  %v19 = vld [vmem:[%s0 + $0x10] sm:$0xf]
  %v20 = vld [vmem:[%s0 + $0x14] sm:$0xf]
  %v21 = vld [vmem:[%s0 + $0x18] sm:$0xf]
  %v22 = vld [vmem:[%s0 + $0x1c] sm:$0xf]
  %v23 = vld [vmem:[%s0 + $0x20] sm:$0xf]
  %v24 = vld [vmem:[%s0 + $0x24] sm:$0xf]
  %v25 = vld [vmem:[%s0 + $0x28] sm:$0xf]
  %v26 = vld [vmem:[%s0 + $0x2c] sm:$0xf]
  %v27 = vld [vmem:[%s0 + $0x30] sm:$0xf]
  %v28 = vld [vmem:[%s0 + $0x34] sm:$0xf]
  %v29 = vld [vmem:[%s0 + $0x38] sm:$0xf]
  %v30 = vld [vmem:[%s0 + $0x3c] sm:$0xf]
  %v31 = vld [vmem:[%s0 + $0x40] sm:$0xf]
  %v32 = vld [vmem:[%s0 + $0x44] sm:$0xf]
  %v33 = vld [vmem:[%s0 + $0x48] sm:$0xf]
  %v34 = vld [vmem:[%s0 + $0x4c] sm:$0xf]
  %v35 = vld [vmem:[%s0 + $0x50] sm:$0xf]
  %v36 = vld [vmem:[%s0 + $0x54] sm:$0xf]
  %v37 = vld [vmem:[%s0 + $0x58] sm:$0xf]
  %v38 = vld [vmem:[%s0 + $0x5c] sm:$0xf]
  %v39 = vld [vmem:[%s0 + $0x60] sm:$0xf]
  %v40 = vld [vmem:[%s0 + $0x64] sm:$0xf]
  %v41 = vld [vmem:[%s0 + $0x68] sm:$0xf]
  %v42 = vld [vmem:[%s0 + $0x6c] sm:$0xf]
  %v43 = vld [vmem:[%s0 + $0x70] sm:$0xf]
  %v44 = vld [vmem:[%s0 + $0x74] sm:$0xf]
  %v45 = vld [vmem:[%s0 + $0x78] sm:$0xf]
  %v46 = vld [vmem:[%s0 + $0x7c] sm:$0xf]
  %v47 = vld [vmem:[%s0 + $0x80] sm:$0xf]
  %v48 = vld [vmem:[%s0 + $0x84] sm:$0xf]
  %v49 = vld [vmem:[%s0 + $0x88] sm:$0xf]
  %v50 = vld [vmem:[%s0 + $0x8c] sm:$0xf]
  %v51 = vld [vmem:[%s0 + $0x90] sm:$0xf]
  %v52 = vld [vmem:[%s0 + $0x94] sm:$0xf]
  %v53 = vld [vmem:[%s0 + $0x98] sm:$0xf]
  %v54 = vld [vmem:[%s0 + $0x9c] sm:$0xf]
  %v55 = vld [vmem:[%s0 + $0xa0] sm:$0xf]
  %v56 = vld [vmem:[%s0 + $0xa4] sm:$0xf]
  %v57 = vld [vmem:[%s0 + $0xa8] sm:$0xf]
  %v58 = vld [vmem:[%s0 + $0xac] sm:$0xf]
  %v59 = vld [vmem:[%s0 + $0xb0] sm:$0xf]
  %v60 = vld [vmem:[%s0 + $0xb4] sm:$0xf]
  %v61 = vld [vmem:[%s0 + $0xb8] sm:$0xf]
  %v62 = vld [vmem:[%s0 + $0xbc] sm:$0xf]
  %v63 = vld [vmem:[%s0 + $0xc0] sm:$0xf]
  %v64 = vld [vmem:[%s0 + $0xc4] sm:$0xf]
  %v65 = vld [vmem:[%s0 + $0xc8] sm:$0xf]
  %v66 = vld [vmem:[%s0 + $0xcc] sm:$0xf]
  %v67 = vld [vmem:[%s0 + $0xd0] sm:$0xf]
  %v68 = vld [vmem:[%s0 + $0xd4] sm:$0xf]
  %v69 = vld [vmem:[%s0 + $0xd8] sm:$0xf]
  %v70 = vld [vmem:[%s0 + $0xdc] sm:$0xf]
  %v71 = vld [vmem:[%s0 + $0xe0] sm:$0xf]
  %v72 = vld [vmem:[%s0 + $0xe4] sm:$0xf]
  %v73 = vld [vmem:[%s0 + $0xe8] sm:$0xf]
  %v74 = vld [vmem:[%s0 + $0xec] sm:$0xf]
  %v75 = vld [vmem:[%s0 + $0xf0] sm:$0xf]
  %v76 = vld [vmem:[%s0 + $0xf4] sm:$0xf]
  %v77 = vld [vmem:[%s0 + $0xf8] sm:$0xf]
  %v78 = vld [vmem:[%s0 + $0xfc] sm:$0xf]
  %v79 = vld [vmem:[%s0 + $0x100] sm:$0xf]
  %v80 = vld [vmem:[%s0 + $0x104] sm:$0xf]
  %v81 = vld [vmem:[%s0 + $0x108] sm:$0xf]
  %v82 = vld [vmem:[%s0 + $0x10c] sm:$0xf]
  %v83 = vld [vmem:[%s0 + $0x110] sm:$0xf]
  %v84 = vld [vmem:[%s0 + $0x114] sm:$0xf]
  %v85 = vld [vmem:[%s0 + $0x118] sm:$0xf]
  %v86 = vld [vmem:[%s0 + $0x11c] sm:$0xf]
  %v87 = vld [vmem:[%s0 + $0x120] sm:$0xf]
  %v88 = vld [vmem:[%s0 + $0x124] sm:$0xf]
  %v89 = vld [vmem:[%s0 + $0x128] sm:$0xf]
  %v90 = vld [vmem:[%s0 + $0x12c] sm:$0xf]
  %v91 = vld [vmem:[%s0 + $0x130] sm:$0xf]
  %v92 = vld [vmem:[%s0 + $0x134] sm:$0xf]
  %v93 = vld [vmem:[%s0 + $0x138] sm:$0xf]
  %v94 = vld [vmem:[%s0 + $0x13c] sm:$0xf]
  %v95 = vld [vmem:[%s0 + $0x140] sm:$0xf]
  %v96 = vld [vmem:[%s0 + $0x144] sm:$0xf]
  %v97 = vld [vmem:[%s0 + $0x148] sm:$0xf]
  %v98 = vld [vmem:[%s0 + $0x14c] sm:$0xf]
  %v99 = vld [vmem:[%s0 + $0x150] sm:$0xf]
  %v100 = vld [vmem:[%s0 + $0x154] sm:$0xf]
  %v101 = vld [vmem:[%s0 + $0x158] sm:$0xf]
  %v102 = vld [vmem:[%s0 + $0x15c] sm:$0xf]
  %v103 = vld [vmem:[%s0 + $0x160] sm:$0xf]
  %v104 = vld [vmem:[%s0 + $0x164] sm:$0xf]
  %v105 = vld [vmem:[%s0 + $0x168] sm:$0xf]
  %v106 = vld [vmem:[%s0 + $0x16c] sm:$0xf]
  %v107 = vld [vmem:[%s0 + $0x170] sm:$0xf]
  %v108 = vld [vmem:[%s0 + $0x174] sm:$0xf]
  %v109 = vld [vmem:[%s0 + $0x178] sm:$0xf]
  %v110 = vld [vmem:[%s0 + $0x17c] sm:$0xf]
  %v111 = vld [vmem:[%s0 + $0x180] sm:$0xf]
  %v112 = vld [vmem:[%s0 + $0x184] sm:$0xf]
  %v113 = vld [vmem:[%s1] sm:$0xf]
  %v114 = vld [vmem:[%s1 + $0x4] sm:$0xf]
  %v115 = vld [vmem:[%s1 + $0x8] sm:$0xf]
  %v116 = vld [vmem:[%s1 + $0xc] sm:$0xf]
  %v117 = vld [vmem:[%s1 + $0x10] sm:$0xf]
  %v118 = vld [vmem:[%s1 + $0x14] sm:$0xf]
  %v119 = vld [vmem:[%s1 + $0x18] sm:$0xf]
  %v120 = vld [vmem:[%s1 + $0x1c] sm:$0xf]
  %v121 = vld [vmem:[%s1 + $0x20] sm:$0xf]
  %v122 = vld [vmem:[%s1 + $0x24] sm:$0xf]
  %v221 = vunpack.c.l.b16 %v15
  %v222 = vunpack.c.l.b16 %v16
  %v223 = vunpack.c.l.b16 %v17
  %v224 = vunpack.c.l.b16 %v18
  %v225 = vunpack.c.l.b16 %v19
  %v226 = vunpack.c.l.b16 %v20
  %v227 = vunpack.c.l.b16 %v21
  %v228 = vunpack.c.l.b16 %v22
  %v229 = vunpack.c.l.b16 %v23
  %v230 = vunpack.c.l.b16 %v24
  %v231 = vunpack.c.l.b16 %v25
  %v232 = vunpack.c.l.b16 %v26
  %v233 = vunpack.c.l.b16 %v27
  %v234 = vunpack.c.l.b16 %v28
  %v235 = vunpack.c.l.b16 %v29
  %v236 = vunpack.c.l.b16 %v30
  %v237 = vunpack.c.l.b16 %v31
  %v238 = vunpack.c.l.b16 %v32
  %v239 = vunpack.c.l.b16 %v33
  %v240 = vunpack.c.l.b16 %v34
  %v241 = vunpack.c.l.b16 %v35
  %v242 = vunpack.c.l.b16 %v36
  %v243 = vunpack.c.l.b16 %v37
  %v244 = vunpack.c.l.b16 %v38
  %v245 = vunpack.c.l.b16 %v39
  %v246 = vunpack.c.l.b16 %v40
  %v247 = vunpack.c.l.b16 %v41
  %v248 = vunpack.c.l.b16 %v42
  %v249 = vunpack.c.l.b16 %v43
  %v250 = vunpack.c.l.b16 %v44
  %v251 = vunpack.c.l.b16 %v45
  %v252 = vunpack.c.l.b16 %v46
  %v253 = vunpack.c.l.b16 %v47
  %v254 = vunpack.c.l.b16 %v48
  %v255 = vunpack.c.l.b16 %v49
  %v256 = vunpack.c.l.b16 %v50
  %v257 = vunpack.c.l.b16 %v51
  %v258 = vunpack.c.l.b16 %v52
  %v259 = vunpack.c.l.b16 %v53
  %v260 = vunpack.c.l.b16 %v54
  %v261 = vunpack.c.l.b16 %v55
  %v262 = vunpack.c.l.b16 %v56
  %v263 = vunpack.c.l.b16 %v57
  %v264 = vunpack.c.l.b16 %v58
  %v265 = vunpack.c.l.b16 %v59
  %v266 = vunpack.c.l.b16 %v60
  %v267 = vunpack.c.l.b16 %v61
  %v268 = vunpack.c.l.b16 %v62
  %v269 = vunpack.c.l.b16 %v63
  %v270 = vunpack.c.l.b16 %v64
  %v271 = vunpack.c.l.b16 %v65
  %v272 = vunpack.c.l.b16 %v66
  %v273 = vunpack.c.l.b16 %v67
  %v274 = vunpack.c.l.b16 %v68
  %v275 = vunpack.c.l.b16 %v69
  %v276 = vunpack.c.l.b16 %v70
  %v277 = vunpack.c.l.b16 %v71
  %v278 = vunpack.c.l.b16 %v72
  %v279 = vunpack.c.l.b16 %v73
  %v280 = vunpack.c.l.b16 %v74
  %v281 = vunpack.c.l.b16 %v75
  %v282 = vunpack.c.l.b16 %v76
  %v283 = vunpack.c.l.b16 %v77
  %v284 = vunpack.c.l.b16 %v78
  %v285 = vunpack.c.l.b16 %v79
  %v286 = vunpack.c.l.b16 %v80
  %v287 = vunpack.c.l.b16 %v81
  %v288 = vunpack.c.l.b16 %v82
  %v289 = vunpack.c.l.b16 %v83
  %v290 = vunpack.c.l.b16 %v84
  %v291 = vunpack.c.l.b16 %v85
  %v292 = vunpack.c.l.b16 %v86
  %v293 = vunpack.c.l.b16 %v87
  %v294 = vunpack.c.l.b16 %v88
  %v295 = vunpack.c.l.b16 %v89
  %v296 = vunpack.c.l.b16 %v90
  %v297 = vunpack.c.l.b16 %v91
  %v298 = vunpack.c.l.b16 %v92
  %v299 = vunpack.c.l.b16 %v93
  %v300 = vunpack.c.l.b16 %v94
  %v301 = vunpack.c.l.b16 %v95
  %v302 = vunpack.c.l.b16 %v96
  %v303 = vunpack.c.l.b16 %v97
  %v304 = vunpack.c.l.b16 %v98
  %v305 = vunpack.c.l.b16 %v99
  %v306 = vunpack.c.l.b16 %v100
  %v307 = vunpack.c.l.b16 %v101
  %v308 = vunpack.c.l.b16 %v102
  %v309 = vunpack.c.l.b16 %v103
  %v310 = vunpack.c.l.b16 %v104
  %v311 = vunpack.c.l.b16 %v105
  %v312 = vunpack.c.l.b16 %v106
  %v313 = vunpack.c.l.b16 %v107
  %v314 = vunpack.c.l.b16 %v108
  %v315 = vunpack.c.l.b16 %v109
  %v316 = vunpack.c.l.b16 %v110
  %v317 = vunpack.c.l.b16 %v111
  %v318 = vunpack.c.l.b16 %v112
  %v319 = vpack.c.b16 %v222, %v221
  %v320 = vpack.c.b16 %v224, %v223
  %v321 = vpack.c.b16 %v226, %v225
  %v322 = vpack.c.b16 %v228, %v227
  %v323 = vpack.c.b16 %v230, %v229
  %v324 = vpack.c.b16 %v232, %v231
  %v325 = vpack.c.b16 %v234, %v233
  %v326 = vpack.c.b16 %v236, %v235
  %v327 = vpack.c.b16 %v238, %v237
  %v328 = vpack.c.b16 %v240, %v239
  %v329 = vpack.c.b16 %v242, %v241
  %v330 = vpack.c.b16 %v244, %v243
  %v331 = vpack.c.b16 %v246, %v245
  %v332 = vpack.c.b16 %v248, %v247
  %v333 = vpack.c.b16 %v250, %v249
  %v334 = vpack.c.b16 %v252, %v251
  %v335 = vpack.c.b16 %v254, %v253
  %v336 = vpack.c.b16 %v256, %v255
  %v337 = vpack.c.b16 %v258, %v257
  %v338 = vpack.c.b16 %v260, %v259
  %v339 = vpack.c.b16 %v262, %v261
  %v340 = vpack.c.b16 %v264, %v263
  %v341 = vpack.c.b16 %v266, %v265
  %v342 = vpack.c.b16 %v268, %v267
  %v343 = vpack.c.b16 %v270, %v269
  %v344 = vpack.c.b16 %v272, %v271
  %v345 = vpack.c.b16 %v274, %v273
  %v346 = vpack.c.b16 %v276, %v275
  %v347 = vpack.c.b16 %v278, %v277
  %v348 = vpack.c.b16 %v280, %v279
  %v349 = vpack.c.b16 %v282, %v281
  %v350 = vpack.c.b16 %v284, %v283
  %v351 = vpack.c.b16 %v286, %v285
  %v352 = vpack.c.b16 %v288, %v287
  %v353 = vpack.c.b16 %v290, %v289
  %v354 = vpack.c.b16 %v292, %v291
  %v355 = vpack.c.b16 %v294, %v293
  %v356 = vpack.c.b16 %v296, %v295
  %v357 = vpack.c.b16 %v298, %v297
  %v358 = vpack.c.b16 %v300, %v299
  %v359 = vpack.c.b16 %v302, %v301
  %v360 = vpack.c.b16 %v304, %v303
  %v361 = vpack.c.b16 %v306, %v305
  %v362 = vpack.c.b16 %v308, %v307
  %v363 = vpack.c.b16 %v310, %v309
  %v364 = vpack.c.b16 %v312, %v311
  %v365 = vpack.c.b16 %v314, %v313
  %v366 = vpack.c.b16 %v316, %v315
  %v367 = vpack.c.b16 %v318, %v317
  %v378 = vunpack.c.l.b16 %v113
  %v379 = vunpack.c.l.b16 %v114
  %v380 = vunpack.c.l.b16 %v115
  %v381 = vunpack.c.l.b16 %v116
  %v382 = vunpack.c.l.b16 %v117
  %v383 = vunpack.c.l.b16 %v118
  %v384 = vunpack.c.l.b16 %v119
  %v385 = vunpack.c.l.b16 %v120
  %v386 = vunpack.c.l.b16 %v121
  %v387 = vunpack.c.l.b16 %v122
  %v388 = vpack.c.b16 %v379, %v378
  %v389 = vpack.c.b16 %v381, %v380
  %v390 = vpack.c.b16 %v383, %v382
  %v391 = vpack.c.b16 %v385, %v384
  %v392 = vpack.c.b16 %v387, %v386
  %vm398 = vcmask 654336
  %v400 = vsel %vm398, %v319, 0
  %v403 = vsel %vm398, %v320, 0
  %v406 = vsel %vm398, %v321, 0
  %v409 = vsel %vm398, %v322, 0
  %v412 = vsel %vm398, %v323, 0
  %v415 = vsel %vm398, %v324, 0
  %v418 = vsel %vm398, %v325, 0
  %v421 = vsel %vm398, %v326, 0
  %v424 = vsel %vm398, %v327, 0
  %v427 = vsel %vm398, %v328, 0
  %v430 = vsel %vm398, %v329, 0
  %v433 = vsel %vm398, %v330, 0
  %v436 = vsel %vm398, %v331, 0
  %v439 = vsel %vm398, %v332, 0
  %v442 = vsel %vm398, %v333, 0
  %v445 = vsel %vm398, %v334, 0
  %v448 = vsel %vm398, %v335, 0
  %v451 = vsel %vm398, %v336, 0
  %v454 = vsel %vm398, %v337, 0
  %v457 = vsel %vm398, %v338, 0
  %v460 = vsel %vm398, %v339, 0
  %v463 = vsel %vm398, %v340, 0
  %v466 = vsel %vm398, %v341, 0
  %v469 = vsel %vm398, %v342, 0
  %v472 = vsel %vm398, %v343, 0
  %v475 = vsel %vm398, %v344, 0
  %v478 = vsel %vm398, %v345, 0
  %v481 = vsel %vm398, %v346, 0
  %v484 = vsel %vm398, %v347, 0
  %v487 = vsel %vm398, %v348, 0
  %v490 = vsel %vm398, %v349, 0
  %v493 = vsel %vm398, %v350, 0
  %v496 = vsel %vm398, %v351, 0
  %v499 = vsel %vm398, %v352, 0
  %v502 = vsel %vm398, %v353, 0
  %v505 = vsel %vm398, %v354, 0
  %v508 = vsel %vm398, %v355, 0
  %v511 = vsel %vm398, %v356, 0
  %v514 = vsel %vm398, %v357, 0
  %v517 = vsel %vm398, %v358, 0
  %v520 = vsel %vm398, %v359, 0
  %v523 = vsel %vm398, %v360, 0
  %v526 = vsel %vm398, %v361, 0
  %v529 = vsel %vm398, %v362, 0
  %v532 = vsel %vm398, %v363, 0
  %v535 = vsel %vm398, %v364, 0
  %v538 = vsel %vm398, %v365, 0
  %v541 = vsel %vm398, %v366, 0
  %v544 = vsel %vm398, %v367, 0
  %546 = vmatprep.subr.bf16.mxu0 0
  %547 = vmatpush1.bf16.msra.mxu0 %v388
  %548 = vmatprep.subr.bf16.mxu0 0
  %549 = vmatpush1.bf16.msra.mxu0 %v389
  %550 = vmatprep.subr.bf16.mxu0 0
  %551 = vmatpush1.bf16.msra.mxu0 %v390
  %552 = vmatprep.subr.bf16.mxu0 0
  %553 = vmatpush1.bf16.msra.mxu0 %v391
  %554 = vmatprep.subr.bf16.mxu0 0
  %555 = vmatpush1.bf16.msra.mxu0 %v392
  %556 = vmatprep.subr.bf16.mxu0 0
  %557 = vmatpush1.bf16.msra.mxu0 0
  %558 = vmatprep.subr.bf16.mxu0 0
  %559 = vmatpush1.bf16.msra.mxu0 0
  %560 = vmatprep.subr.bf16.mxu0 0
  %561 = vmatpush1.bf16.msra.mxu0 0
  %562 = vmatprep.subr.bf16.mxu0 0
  %563 = vmatpush1.bf16.msra.mxu0 0
  %564 = vmatprep.subr.bf16.mxu0 0
  %565 = vmatpush1.bf16.msra.mxu0 0
  %566 = vmatprep.subr.bf16.mxu0 0
  %567 = vmatpush1.bf16.msra.mxu0 0
  %568 = vmatprep.subr.bf16.mxu0 0
  %569 = vmatpush1.bf16.msra.mxu0 0
  %570 = vmatprep.subr.bf16.mxu0 0
  %571 = vmatpush1.bf16.msra.mxu0 0
  %572 = vmatprep.subr.bf16.mxu0 0
  %573 = vmatpush1.bf16.msra.mxu0 0
  %574 = vmatprep.subr.bf16.mxu0 0
  %575 = vmatpush1.bf16.msra.mxu0 0
  %576 = vmatprep.subr.bf16.mxu0 0
  %577 = vmatpush1.bf16.msra.mxu0 0
  %578 = vmatprep.mubr.bf16.mxu0 0
  %579 = vmatmul.mubr.bf16.gmra.mrb[0].mxu0 %v400
  %v580 = vpop.f32.mrb[0].mxu0
  %v581 = vadd.f32 0.0, %v580
  %v582 = vpop.f32.mrb[0].mxu0
  %v583 = vpop.f32.mrb[0].mxu0
  %v584 = vadd.f32 0.0, %v583
  %v585 = vpop.f32.mrb[0].mxu0
  %586 = vmatprep.mubr.bf16.mxu0 0
  %587 = vmatmul.mubr.bf16.gmra.mrb[0].mxu0 %v403
  %v588 = vpop.f32.mrb[0].mxu0
  %v589 = vadd.f32 0.0, %v588
  %v590 = vpop.f32.mrb[0].mxu0
  %v591 = vpop.f32.mrb[0].mxu0
  %v592 = vadd.f32 0.0, %v591
  %v593 = vpop.f32.mrb[0].mxu0
  %594 = vmatprep.mubr.bf16.mxu0 0
  %595 = vmatmul.mubr.bf16.gmra.mrb[0].mxu0 %v406
  %v596 = vpop.f32.mrb[0].mxu0
  %v597 = vadd.f32 0.0, %v596
  %v598 = vpop.f32.mrb[0].mxu0
  %v599 = vpop.f32.mrb[0].mxu0
  %v600 = vadd.f32 0.0, %v599
  %v601 = vpop.f32.mrb[0].mxu0
  %602 = vmatprep.mubr.bf16.mxu0 0
  %603 = vmatmul.mubr.bf16.gmra.mrb[0].mxu0 %v409
  %v604 = vpop.f32.mrb[0].mxu0
  %v605 = vadd.f32 0.0, %v604
  %v606 = vpop.f32.mrb[0].mxu0
  %v607 = vpop.f32.mrb[0].mxu0
  %v608 = vadd.f32 0.0, %v607
  %v609 = vpop.f32.mrb[0].mxu0
  %610 = vmatprep.mubr.bf16.mxu0 0
  %611 = vmatmul.mubr.bf16.gmra.mrb[0].mxu0 %v412
  %v612 = vpop.f32.mrb[0].mxu0
  %v613 = vadd.f32 0.0, %v612
  %v614 = vpop.f32.mrb[0].mxu0
  %v615 = vpop.f32.mrb[0].mxu0
  %v616 = vadd.f32 0.0, %v615
  %v617 = vpop.f32.mrb[0].mxu0
  %618 = vmatprep.mubr.bf16.mxu0 0
  %619 = vmatmul.mubr.bf16.gmra.mrb[0].mxu0 %v415
  %v620 = vpop.f32.mrb[0].mxu0
  %v621 = vadd.f32 0.0, %v620
  %v622 = vpop.f32.mrb[0].mxu0
  %v623 = vpop.f32.mrb[0].mxu0
  %v624 = vadd.f32 0.0, %v623
  %v625 = vpop.f32.mrb[0].mxu0
  %626 = vmatprep.mubr.bf16.mxu0 0
  %627 = vmatmul.mubr.bf16.gmra.mrb[0].mxu0 %v418
  %v628 = vpop.f32.mrb[0].mxu0
  %v629 = vadd.f32 0.0, %v628
  %v630 = vpop.f32.mrb[0].mxu0
  %v631 = vpop.f32.mrb[0].mxu0
  %v632 = vadd.f32 0.0, %v631
  %v633 = vpop.f32.mrb[0].mxu0
  %634 = vmatprep.mubr.bf16.mxu0 0
  %635 = vmatmul.mubr.bf16.gmra.mrb[0].mxu0 %v421
  %v636 = vpop.f32.mrb[0].mxu0
  %v637 = vadd.f32 0.0, %v636
  %v638 = vpop.f32.mrb[0].mxu0
  %v639 = vpop.f32.mrb[0].mxu0
  %v640 = vadd.f32 0.0, %v639
  %v641 = vpop.f32.mrb[0].mxu0
  %642 = vmatprep.mubr.bf16.mxu0 0
  %643 = vmatmul.mubr.bf16.gmra.mrb[0].mxu0 %v424
  %v644 = vpop.f32.mrb[0].mxu0
  %v645 = vadd.f32 0.0, %v644
  %v646 = vpop.f32.mrb[0].mxu0
  %v647 = vpop.f32.mrb[0].mxu0
  %v648 = vadd.f32 0.0, %v647
  %v649 = vpop.f32.mrb[0].mxu0
  %650 = vmatprep.mubr.bf16.mxu0 0
  %651 = vmatmul.mubr.bf16.gmra.mrb[0].mxu0 %v427
  %v652 = vpop.f32.mrb[0].mxu0
  %v653 = vadd.f32 0.0, %v652
  %v654 = vpop.f32.mrb[0].mxu0
  %v655 = vpop.f32.mrb[0].mxu0
  %v656 = vadd.f32 0.0, %v655
  %v657 = vpop.f32.mrb[0].mxu0
  %658 = vmatprep.mubr.bf16.mxu0 0
  %659 = vmatmul.mubr.bf16.gmra.mrb[0].mxu0 %v430
  %v660 = vpop.f32.mrb[0].mxu0
  %v661 = vadd.f32 0.0, %v660
  %v662 = vpop.f32.mrb[0].mxu0
  %v663 = vpop.f32.mrb[0].mxu0
  %v664 = vadd.f32 0.0, %v663
  %v665 = vpop.f32.mrb[0].mxu0
  %666 = vmatprep.mubr.bf16.mxu0 0
  %667 = vmatmul.mubr.bf16.gmra.mrb[0].mxu0 %v433
  %v668 = vpop.f32.mrb[0].mxu0
  %v669 = vadd.f32 0.0, %v668
  %v670 = vpop.f32.mrb[0].mxu0
  %v671 = vpop.f32.mrb[0].mxu0
  %v672 = vadd.f32 0.0, %v671
  %v673 = vpop.f32.mrb[0].mxu0
  %674 = vmatprep.mubr.bf16.mxu0 0
  %675 = vmatmul.mubr.bf16.gmra.mrb[0].mxu0 %v436
  %v676 = vpop.f32.mrb[0].mxu0
  %v677 = vadd.f32 0.0, %v676
  %v678 = vpop.f32.mrb[0].mxu0
  %v679 = vpop.f32.mrb[0].mxu0
  %v680 = vadd.f32 0.0, %v679
  %v681 = vpop.f32.mrb[0].mxu0
  %682 = vmatprep.mubr.bf16.mxu0 0
  %683 = vmatmul.mubr.bf16.gmra.mrb[0].mxu0 %v439
  %v684 = vpop.f32.mrb[0].mxu0
  %v685 = vadd.f32 0.0, %v684
  %v686 = vpop.f32.mrb[0].mxu0
  %v687 = vpop.f32.mrb[0].mxu0
  %v688 = vadd.f32 0.0, %v687
  %v689 = vpop.f32.mrb[0].mxu0
  %690 = vmatprep.mubr.bf16.mxu0 0
  %691 = vmatmul.mubr.bf16.gmra.mrb[0].mxu0 %v442
  %v692 = vpop.f32.mrb[0].mxu0
  %v693 = vadd.f32 0.0, %v692
  %v694 = vpop.f32.mrb[0].mxu0
  %v695 = vpop.f32.mrb[0].mxu0
  %v696 = vadd.f32 0.0, %v695
  %v697 = vpop.f32.mrb[0].mxu0
  %698 = vmatprep.mubr.bf16.mxu0 0
  %699 = vmatmul.mubr.bf16.gmra.mrb[0].mxu0 %v445
  %v700 = vpop.f32.mrb[0].mxu0
  %v701 = vadd.f32 0.0, %v700
  %v702 = vpop.f32.mrb[0].mxu0
  %v703 = vpop.f32.mrb[0].mxu0
  %v704 = vadd.f32 0.0, %v703
  %v705 = vpop.f32.mrb[0].mxu0
  %706 = vmatprep.mubr.bf16.mxu0 0
  %707 = vmatmul.mubr.bf16.gmra.mrb[0].mxu0 %v448
  %v708 = vpop.f32.mrb[0].mxu0
  %v709 = vadd.f32 0.0, %v708
  %v710 = vpop.f32.mrb[0].mxu0
  %v711 = vpop.f32.mrb[0].mxu0
  %v712 = vadd.f32 0.0, %v711
  %v713 = vpop.f32.mrb[0].mxu0
  %714 = vmatprep.mubr.bf16.mxu0 0
  %715 = vmatmul.mubr.bf16.gmra.mrb[0].mxu0 %v451
  %v716 = vpop.f32.mrb[0].mxu0
  %v717 = vadd.f32 0.0, %v716
  %v718 = vpop.f32.mrb[0].mxu0
  %v719 = vpop.f32.mrb[0].mxu0
  %v720 = vadd.f32 0.0, %v719
  %v721 = vpop.f32.mrb[0].mxu0
  %722 = vmatprep.mubr.bf16.mxu0 0
  %723 = vmatmul.mubr.bf16.gmra.mrb[0].mxu0 %v454
  %v724 = vpop.f32.mrb[0].mxu0
  %v725 = vadd.f32 0.0, %v724
  %v726 = vpop.f32.mrb[0].mxu0
  %v727 = vpop.f32.mrb[0].mxu0
  %v728 = vadd.f32 0.0, %v727
  %v729 = vpop.f32.mrb[0].mxu0
  %730 = vmatprep.mubr.bf16.mxu0 0
  %731 = vmatmul.mubr.bf16.gmra.mrb[0].mxu0 %v457
  %v732 = vpop.f32.mrb[0].mxu0
  %v733 = vadd.f32 0.0, %v732
  %v734 = vpop.f32.mrb[0].mxu0
  %v735 = vpop.f32.mrb[0].mxu0
  %v736 = vadd.f32 0.0, %v735
  %v737 = vpop.f32.mrb[0].mxu0
  %738 = vmatprep.mubr.bf16.mxu0 0
  %739 = vmatmul.mubr.bf16.gmra.mrb[0].mxu0 %v460
  %v740 = vpop.f32.mrb[0].mxu0
  %v741 = vadd.f32 0.0, %v740
  %v742 = vpop.f32.mrb[0].mxu0
  %v743 = vpop.f32.mrb[0].mxu0
  %v744 = vadd.f32 0.0, %v743
  %v745 = vpop.f32.mrb[0].mxu0
  %746 = vmatprep.mubr.bf16.mxu0 0
  %747 = vmatmul.mubr.bf16.gmra.mrb[0].mxu0 %v463
  %v748 = vpop.f32.mrb[0].mxu0
  %v749 = vadd.f32 0.0, %v748
  %v750 = vpop.f32.mrb[0].mxu0
  %v751 = vpop.f32.mrb[0].mxu0
  %v752 = vadd.f32 0.0, %v751
  %v753 = vpop.f32.mrb[0].mxu0
  %754 = vmatprep.mubr.bf16.mxu0 0
  %755 = vmatmul.mubr.bf16.gmra.mrb[0].mxu0 %v466
  %v756 = vpop.f32.mrb[0].mxu0
  %v757 = vadd.f32 0.0, %v756
  %v758 = vpop.f32.mrb[0].mxu0
  %v759 = vpop.f32.mrb[0].mxu0
  %v760 = vadd.f32 0.0, %v759
  %v761 = vpop.f32.mrb[0].mxu0
  %762 = vmatprep.mubr.bf16.mxu0 0
  %763 = vmatmul.mubr.bf16.gmra.mrb[0].mxu0 %v469
  %v764 = vpop.f32.mrb[0].mxu0
  %v765 = vadd.f32 0.0, %v764
  %v766 = vpop.f32.mrb[0].mxu0
  %v767 = vpop.f32.mrb[0].mxu0
  %v768 = vadd.f32 0.0, %v767
  %v769 = vpop.f32.mrb[0].mxu0
  %770 = vmatprep.mubr.bf16.mxu0 0
  %771 = vmatmul.mubr.bf16.gmra.mrb[0].mxu0 %v472
  %v772 = vpop.f32.mrb[0].mxu0
  %v773 = vadd.f32 0.0, %v772
  %v774 = vpop.f32.mrb[0].mxu0
  %v775 = vpop.f32.mrb[0].mxu0
  %v776 = vadd.f32 0.0, %v775
  %v777 = vpop.f32.mrb[0].mxu0
  %778 = vmatprep.mubr.bf16.mxu0 0
  %779 = vmatmul.mubr.bf16.gmra.mrb[0].mxu0 %v475
  %v780 = vpop.f32.mrb[0].mxu0
  %v781 = vadd.f32 0.0, %v780
  %v782 = vpop.f32.mrb[0].mxu0
  %v783 = vpop.f32.mrb[0].mxu0
  %v784 = vadd.f32 0.0, %v783
  %v785 = vpop.f32.mrb[0].mxu0
  %786 = vmatprep.mubr.bf16.mxu0 0
  %787 = vmatmul.mubr.bf16.gmra.mrb[0].mxu0 %v478
  %v788 = vpop.f32.mrb[0].mxu0
  %v789 = vadd.f32 0.0, %v788
  %v790 = vpop.f32.mrb[0].mxu0
  %v791 = vpop.f32.mrb[0].mxu0
  %v792 = vadd.f32 0.0, %v791
  %v793 = vpop.f32.mrb[0].mxu0
  %794 = vmatprep.mubr.bf16.mxu0 0
  %795 = vmatmul.mubr.bf16.gmra.mrb[0].mxu0 %v481
  %v796 = vpop.f32.mrb[0].mxu0
  %v797 = vadd.f32 0.0, %v796
  %v798 = vpop.f32.mrb[0].mxu0
  %v799 = vpop.f32.mrb[0].mxu0
  %v800 = vadd.f32 0.0, %v799
  %v801 = vpop.f32.mrb[0].mxu0
  %802 = vmatprep.mubr.bf16.mxu0 0
  %803 = vmatmul.mubr.bf16.gmra.mrb[0].mxu0 %v484
  %v804 = vpop.f32.mrb[0].mxu0
  %v805 = vadd.f32 0.0, %v804
  %v806 = vpop.f32.mrb[0].mxu0
  %v807 = vpop.f32.mrb[0].mxu0
  %v808 = vadd.f32 0.0, %v807
  %v809 = vpop.f32.mrb[0].mxu0
  %810 = vmatprep.mubr.bf16.mxu0 0
  %811 = vmatmul.mubr.bf16.gmra.mrb[0].mxu0 %v487
  %v812 = vpop.f32.mrb[0].mxu0
  %v813 = vadd.f32 0.0, %v812
  %v814 = vpop.f32.mrb[0].mxu0
  %v815 = vpop.f32.mrb[0].mxu0
  %v816 = vadd.f32 0.0, %v815
  %v817 = vpop.f32.mrb[0].mxu0
  %818 = vmatprep.mubr.bf16.mxu0 0
  %819 = vmatmul.mubr.bf16.gmra.mrb[0].mxu0 %v490
  %v820 = vpop.f32.mrb[0].mxu0
  %v821 = vadd.f32 0.0, %v820
  %v822 = vpop.f32.mrb[0].mxu0
  %v823 = vpop.f32.mrb[0].mxu0
  %v824 = vadd.f32 0.0, %v823
  %v825 = vpop.f32.mrb[0].mxu0
  %826 = vmatprep.mubr.bf16.mxu0 0
  %827 = vmatmul.mubr.bf16.gmra.mrb[0].mxu0 %v493
  %v828 = vpop.f32.mrb[0].mxu0
  %v829 = vadd.f32 0.0, %v828
  %v830 = vpop.f32.mrb[0].mxu0
  %v831 = vpop.f32.mrb[0].mxu0
  %v832 = vadd.f32 0.0, %v831
  %v833 = vpop.f32.mrb[0].mxu0
  %834 = vmatprep.mubr.bf16.mxu0 0
  %835 = vmatmul.mubr.bf16.gmra.mrb[0].mxu0 %v496
  %v836 = vpop.f32.mrb[0].mxu0
  %v837 = vadd.f32 0.0, %v836
  %v838 = vpop.f32.mrb[0].mxu0
  %v839 = vpop.f32.mrb[0].mxu0
  %v840 = vadd.f32 0.0, %v839
  %v841 = vpop.f32.mrb[0].mxu0
  %842 = vmatprep.mubr.bf16.mxu0 0
  %843 = vmatmul.mubr.bf16.gmra.mrb[0].mxu0 %v499
  %v844 = vpop.f32.mrb[0].mxu0
  %v845 = vadd.f32 0.0, %v844
  %v846 = vpop.f32.mrb[0].mxu0
  %v847 = vpop.f32.mrb[0].mxu0
  %v848 = vadd.f32 0.0, %v847
  %v849 = vpop.f32.mrb[0].mxu0
  %850 = vmatprep.mubr.bf16.mxu0 0
  %851 = vmatmul.mubr.bf16.gmra.mrb[0].mxu0 %v502
  %v852 = vpop.f32.mrb[0].mxu0
  %v853 = vadd.f32 0.0, %v852
  %v854 = vpop.f32.mrb[0].mxu0
  %v855 = vpop.f32.mrb[0].mxu0
  %v856 = vadd.f32 0.0, %v855
  %v857 = vpop.f32.mrb[0].mxu0
  %858 = vmatprep.mubr.bf16.mxu0 0
  %859 = vmatmul.mubr.bf16.gmra.mrb[0].mxu0 %v505
  %v860 = vpop.f32.mrb[0].mxu0
  %v861 = vadd.f32 0.0, %v860
  %v862 = vpop.f32.mrb[0].mxu0
  %v863 = vpop.f32.mrb[0].mxu0
  %v864 = vadd.f32 0.0, %v863
  %v865 = vpop.f32.mrb[0].mxu0
  %866 = vmatprep.mubr.bf16.mxu0 0
  %867 = vmatmul.mubr.bf16.gmra.mrb[0].mxu0 %v508
  %v868 = vpop.f32.mrb[0].mxu0
  %v869 = vadd.f32 0.0, %v868
  %v870 = vpop.f32.mrb[0].mxu0
  %v871 = vpop.f32.mrb[0].mxu0
  %v872 = vadd.f32 0.0, %v871
  %v873 = vpop.f32.mrb[0].mxu0
  %874 = vmatprep.mubr.bf16.mxu0 0
  %875 = vmatmul.mubr.bf16.gmra.mrb[0].mxu0 %v511
  %v876 = vpop.f32.mrb[0].mxu0
  %v877 = vadd.f32 0.0, %v876
  %v878 = vpop.f32.mrb[0].mxu0
  %v879 = vpop.f32.mrb[0].mxu0
  %v880 = vadd.f32 0.0, %v879
  %v881 = vpop.f32.mrb[0].mxu0
  %882 = vmatprep.mubr.bf16.mxu0 0
  %883 = vmatmul.mubr.bf16.gmra.mrb[0].mxu0 %v514
  %v884 = vpop.f32.mrb[0].mxu0
  %v885 = vadd.f32 0.0, %v884
  %v886 = vpop.f32.mrb[0].mxu0
  %v887 = vpop.f32.mrb[0].mxu0
  %v888 = vadd.f32 0.0, %v887
  %v889 = vpop.f32.mrb[0].mxu0
  %890 = vmatprep.mubr.bf16.mxu0 0
  %891 = vmatmul.mubr.bf16.gmra.mrb[0].mxu0 %v517
  %v892 = vpop.f32.mrb[0].mxu0
  %v893 = vadd.f32 0.0, %v892
  %v894 = vpop.f32.mrb[0].mxu0
  %v895 = vpop.f32.mrb[0].mxu0
  %v896 = vadd.f32 0.0, %v895
  %v897 = vpop.f32.mrb[0].mxu0
  %898 = vmatprep.mubr.bf16.mxu0 0
  %899 = vmatmul.mubr.bf16.gmra.mrb[0].mxu0 %v520
  %v900 = vpop.f32.mrb[0].mxu0
  %v901 = vadd.f32 0.0, %v900
  %v902 = vpop.f32.mrb[0].mxu0
  %v903 = vpop.f32.mrb[0].mxu0
  %v904 = vadd.f32 0.0, %v903
  %v905 = vpop.f32.mrb[0].mxu0
  %906 = vmatprep.mubr.bf16.mxu0 0
  %907 = vmatmul.mubr.bf16.gmra.mrb[0].mxu0 %v523
  %v908 = vpop.f32.mrb[0].mxu0
  %v909 = vadd.f32 0.0, %v908
  %v910 = vpop.f32.mrb[0].mxu0
  %v911 = vpop.f32.mrb[0].mxu0
  %v912 = vadd.f32 0.0, %v911
  %v913 = vpop.f32.mrb[0].mxu0
  %914 = vmatprep.mubr.bf16.mxu0 0
  %915 = vmatmul.mubr.bf16.gmra.mrb[0].mxu0 %v526
  %v916 = vpop.f32.mrb[0].mxu0
  %v917 = vadd.f32 0.0, %v916
  %v918 = vpop.f32.mrb[0].mxu0
  %v919 = vpop.f32.mrb[0].mxu0
  %v920 = vadd.f32 0.0, %v919
  %v921 = vpop.f32.mrb[0].mxu0
  %922 = vmatprep.mubr.bf16.mxu0 0
  %923 = vmatmul.mubr.bf16.gmra.mrb[0].mxu0 %v529
  %v924 = vpop.f32.mrb[0].mxu0
  %v925 = vadd.f32 0.0, %v924
  %v926 = vpop.f32.mrb[0].mxu0
  %v927 = vpop.f32.mrb[0].mxu0
  %v928 = vadd.f32 0.0, %v927
  %v929 = vpop.f32.mrb[0].mxu0
  %930 = vmatprep.mubr.bf16.mxu0 0
  %931 = vmatmul.mubr.bf16.gmra.mrb[0].mxu0 %v532
  %v932 = vpop.f32.mrb[0].mxu0
  %v933 = vadd.f32 0.0, %v932
  %v934 = vpop.f32.mrb[0].mxu0
  %v935 = vpop.f32.mrb[0].mxu0
  %v936 = vadd.f32 0.0, %v935
  %v937 = vpop.f32.mrb[0].mxu0
  %938 = vmatprep.mubr.bf16.mxu0 0
  %939 = vmatmul.mubr.bf16.gmra.mrb[0].mxu0 %v535
  %v940 = vpop.f32.mrb[0].mxu0
  %v941 = vadd.f32 0.0, %v940
  %v942 = vpop.f32.mrb[0].mxu0
  %v943 = vpop.f32.mrb[0].mxu0
  %v944 = vadd.f32 0.0, %v943
  %v945 = vpop.f32.mrb[0].mxu0
  %946 = vmatprep.mubr.bf16.mxu0 0
  %947 = vmatmul.mubr.bf16.gmra.mrb[0].mxu0 %v538
  %v948 = vpop.f32.mrb[0].mxu0
  %v949 = vadd.f32 0.0, %v948
  %v950 = vpop.f32.mrb[0].mxu0
  %v951 = vpop.f32.mrb[0].mxu0
  %v952 = vadd.f32 0.0, %v951
  %v953 = vpop.f32.mrb[0].mxu0
  %954 = vmatprep.mubr.bf16.mxu0 0
  %955 = vmatmul.mubr.bf16.gmra.mrb[0].mxu0 %v541
  %v956 = vpop.f32.mrb[0].mxu0
  %v957 = vadd.f32 0.0, %v956
  %v958 = vpop.f32.mrb[0].mxu0
  %v959 = vpop.f32.mrb[0].mxu0
  %v960 = vadd.f32 0.0, %v959
  %v961 = vpop.f32.mrb[0].mxu0
  %962 = vmatprep.mubr.bf16.mxu0 0
  %963 = vmatmul.mubr.bf16.gmra.mrb[0].mxu0 %v544
  %v964 = vpop.f32.mrb[0].mxu0
  %v965 = vadd.f32 0.0, %v964
  %v966 = vpop.f32.mrb[0].mxu0
  %v967 = vpop.f32.mrb[0].mxu0
  %v968 = vadd.f32 0.0, %v967
  %v969 = vpop.f32.mrb[0].mxu0
  %970 = vdwg.mxu0
  %971 = vst [vmem:[#allocation2] sm:$0xff] %v581
  %972 = vst [vmem:[#allocation2 + $0x8] sm:$0xff] %v584
  %973 = vst [vmem:[#allocation2 + $0x10] sm:$0xff] %v589
  %974 = vst [vmem:[#allocation2 + $0x18] sm:$0xff] %v592
  %975 = vst [vmem:[#allocation2 + $0x20] sm:$0xff] %v597
  %976 = vst [vmem:[#allocation2 + $0x28] sm:$0xff] %v600
  %977 = vst [vmem:[#allocation2 + $0x30] sm:$0xff] %v605
  %978 = vst [vmem:[#allocation2 + $0x38] sm:$0xff] %v608
  %979 = vst [vmem:[#allocation2 + $0x40] sm:$0xff] %v613
  %980 = vst [vmem:[#allocation2 + $0x48] sm:$0xff] %v616
  %981 = vst [vmem:[#allocation2 + $0x50] sm:$0xff] %v621
  %982 = vst [vmem:[#allocation2 + $0x58] sm:$0xff] %v624
  %983 = vst [vmem:[#allocation2 + $0x60] sm:$0xff] %v629
  %984 = vst [vmem:[#allocation2 + $0x68] sm:$0xff] %v632
  %985 = vst [vmem:[#allocation2 + $0x70] sm:$0xff] %v637
  %986 = vst [vmem:[#allocation2 + $0x78] sm:$0xff] %v640
  %987 = vst [vmem:[#allocation2 + $0x80] sm:$0xff] %v645
  %988 = vst [vmem:[#allocation2 + $0x88] sm:$0xff] %v648
  %989 = vst [vmem:[#allocation2 + $0x90] sm:$0xff] %v653
  %990 = vst [vmem:[#allocation2 + $0x98] sm:$0xff] %v656
  %991 = vst [vmem:[#allocation2 + $0xa0] sm:$0xff] %v661
  %992 = vst [vmem:[#allocation2 + $0xa8] sm:$0xff] %v664
  %993 = vst [vmem:[#allocation2 + $0xb0] sm:$0xff] %v669
  %994 = vst [vmem:[#allocation2 + $0xb8] sm:$0xff] %v672
  %995 = vst [vmem:[#allocation2 + $0xc0] sm:$0xff] %v677
  %996 = vst [vmem:[#allocation2 + $0xc8] sm:$0xff] %v680
  %997 = vst [vmem:[#allocation2 + $0xd0] sm:$0xff] %v685
  %998 = vst [vmem:[#allocation2 + $0xd8] sm:$0xff] %v688
  %999 = vst [vmem:[#allocation2 + $0xe0] sm:$0xff] %v693
  %1000 = vst [vmem:[#allocation2 + $0xe8] sm:$0xff] %v696
  %1001 = vst [vmem:[#allocation2 + $0xf0] sm:$0xff] %v701
  %1002 = vst [vmem:[#allocation2 + $0xf8] sm:$0xff] %v704
  %1003 = vst [vmem:[#allocation2 + $0x100] sm:$0xff] %v709
  %1004 = vst [vmem:[#allocation2 + $0x108] sm:$0xff] %v712
  %1005 = vst [vmem:[#allocation2 + $0x110] sm:$0xff] %v717
  %1006 = vst [vmem:[#allocation2 + $0x118] sm:$0xff] %v720
  %1007 = vst [vmem:[#allocation2 + $0x120] sm:$0xff] %v725
  %1008 = vst [vmem:[#allocation2 + $0x128] sm:$0xff] %v728
  %1009 = vst [vmem:[#allocation2 + $0x130] sm:$0xff] %v733
  %1010 = vst [vmem:[#allocation2 + $0x138] sm:$0xff] %v736
  %1011 = vst [vmem:[#allocation2 + $0x140] sm:$0xff] %v741
  %1012 = vst [vmem:[#allocation2 + $0x148] sm:$0xff] %v744
  %1013 = vst [vmem:[#allocation2 + $0x150] sm:$0xff] %v749
  %1014 = vst [vmem:[#allocation2 + $0x158] sm:$0xff] %v752
  %1015 = vst [vmem:[#allocation2 + $0x160] sm:$0xff] %v757
  %1016 = vst [vmem:[#allocation2 + $0x168] sm:$0xff] %v760
  %1017 = vst [vmem:[#allocation2 + $0x170] sm:$0xff] %v765
  %1018 = vst [vmem:[#allocation2 + $0x178] sm:$0xff] %v768
  %1019 = vst [vmem:[#allocation2 + $0x180] sm:$0xff] %v773
  %1020 = vst [vmem:[#allocation2 + $0x188] sm:$0xff] %v776
  %1021 = vst [vmem:[#allocation2 + $0x190] sm:$0xff] %v781
  %1022 = vst [vmem:[#allocation2 + $0x198] sm:$0xff] %v784
  %1023 = vst [vmem:[#allocation2 + $0x1a0] sm:$0xff] %v789
  %1024 = vst [vmem:[#allocation2 + $0x1a8] sm:$0xff] %v792
  %1025 = vst [vmem:[#allocation2 + $0x1b0] sm:$0xff] %v797
  %1026 = vst [vmem:[#allocation2 + $0x1b8] sm:$0xff] %v800
  %1027 = vst [vmem:[#allocation2 + $0x1c0] sm:$0xff] %v805
  %1028 = vst [vmem:[#allocation2 + $0x1c8] sm:$0xff] %v808
  %1029 = vst [vmem:[#allocation2 + $0x1d0] sm:$0xff] %v813
  %1030 = vst [vmem:[#allocation2 + $0x1d8] sm:$0xff] %v816
  %1031 = vst [vmem:[#allocation2 + $0x1e0] sm:$0xff] %v821
  %1032 = vst [vmem:[#allocation2 + $0x1e8] sm:$0xff] %v824
  %1033 = vst [vmem:[#allocation2 + $0x1f0] sm:$0xff] %v829
  %1034 = vst [vmem:[#allocation2 + $0x1f8] sm:$0xff] %v832
  %1035 = vst [vmem:[#allocation2 + $0x200] sm:$0xff] %v837
  %1036 = vst [vmem:[#allocation2 + $0x208] sm:$0xff] %v840
  %1037 = vst [vmem:[#allocation2 + $0x210] sm:$0xff] %v845
  %1038 = vst [vmem:[#allocation2 + $0x218] sm:$0xff] %v848
  %1039 = vst [vmem:[#allocation2 + $0x220] sm:$0xff] %v853
  %1040 = vst [vmem:[#allocation2 + $0x228] sm:$0xff] %v856
  %1041 = vst [vmem:[#allocation2 + $0x230] sm:$0xff] %v861
  %1042 = vst [vmem:[#allocation2 + $0x238] sm:$0xff] %v864
  %1043 = vst [vmem:[#allocation2 + $0x240] sm:$0xff] %v869
  %1044 = vst [vmem:[#allocation2 + $0x248] sm:$0xff] %v872
  %1045 = vst [vmem:[#allocation2 + $0x250] sm:$0xff] %v877
  %1046 = vst [vmem:[#allocation2 + $0x258] sm:$0xff] %v880
  %1047 = vst [vmem:[#allocation2 + $0x260] sm:$0xff] %v885
  %1048 = vst [vmem:[#allocation2 + $0x268] sm:$0xff] %v888
  %1049 = vst [vmem:[#allocation2 + $0x270] sm:$0xff] %v893
  %1050 = vst [vmem:[#allocation2 + $0x278] sm:$0xff] %v896
  %1051 = vst [vmem:[#allocation2 + $0x280] sm:$0xff] %v901
  %1052 = vst [vmem:[#allocation2 + $0x288] sm:$0xff] %v904
  %1053 = vst [vmem:[#allocation2 + $0x290] sm:$0xff] %v909
  %1054 = vst [vmem:[#allocation2 + $0x298] sm:$0xff] %v912
  %1055 = vst [vmem:[#allocation2 + $0x2a0] sm:$0xff] %v917
  %1056 = vst [vmem:[#allocation2 + $0x2a8] sm:$0xff] %v920
  %1057 = vst [vmem:[#allocation2 + $0x2b0] sm:$0xff] %v925
  %1058 = vst [vmem:[#allocation2 + $0x2b8] sm:$0xff] %v928
  %1059 = vst [vmem:[#allocation2 + $0x2c0] sm:$0xff] %v933
  %1060 = vst [vmem:[#allocation2 + $0x2c8] sm:$0xff] %v936
  %1061 = vst [vmem:[#allocation2 + $0x2d0] sm:$0xff] %v941
  %1062 = vst [vmem:[#allocation2 + $0x2d8] sm:$0xff] %v944
  %1063 = vst [vmem:[#allocation2 + $0x2e0] sm:$0xff] %v949
  %1064 = vst [vmem:[#allocation2 + $0x2e8] sm:$0xff] %v952
  %1065 = vst [vmem:[#allocation2 + $0x2f0] sm:$0xff] %v957
  %1066 = vst [vmem:[#allocation2 + $0x2f8] sm:$0xff] %v960
  %1067 = vst [vmem:[#allocation2 + $0x300] sm:$0xff] %v965
  %1068 = vst [vmem:[#allocation2 + $0x308] sm:$0xff] %v968
  %v1069 = vld [vmem:[#allocation2] sm:$0xff]
  %v1070 = vld [vmem:[#allocation2 + $0x8] sm:$0xff]
  %v1071 = vld [vmem:[#allocation2 + $0x10] sm:$0xff]
  %v1072 = vld [vmem:[#allocation2 + $0x18] sm:$0xff]
  %v1073 = vld [vmem:[#allocation2 + $0x20] sm:$0xff]
  %v1074 = vld [vmem:[#allocation2 + $0x28] sm:$0xff]
  %v1075 = vld [vmem:[#allocation2 + $0x30] sm:$0xff]
  %v1076 = vld [vmem:[#allocation2 + $0x38] sm:$0xff]
  %v1077 = vld [vmem:[#allocation2 + $0x40] sm:$0xff]
  %v1078 = vld [vmem:[#allocation2 + $0x48] sm:$0xff]
  %v1079 = vld [vmem:[#allocation2 + $0x50] sm:$0xff]
  %v1080 = vld [vmem:[#allocation2 + $0x58] sm:$0xff]
  %v1081 = vld [vmem:[#allocation2 + $0x60] sm:$0xff]
  %v1082 = vld [vmem:[#allocation2 + $0x68] sm:$0xff]
  %v1083 = vld [vmem:[#allocation2 + $0x70] sm:$0xff]
  %v1084 = vld [vmem:[#allocation2 + $0x78] sm:$0xff]
  %v1085 = vld [vmem:[#allocation2 + $0x80] sm:$0xff]
  %v1086 = vld [vmem:[#allocation2 + $0x88] sm:$0xff]
  %v1087 = vld [vmem:[#allocation2 + $0x90] sm:$0xff]
  %v1088 = vld [vmem:[#allocation2 + $0x98] sm:$0xff]
  %v1089 = vld [vmem:[#allocation2 + $0xa0] sm:$0xff]
  %v1090 = vld [vmem:[#allocation2 + $0xa8] sm:$0xff]
  %v1091 = vld [vmem:[#allocation2 + $0xb0] sm:$0xff]
  %v1092 = vld [vmem:[#allocation2 + $0xb8] sm:$0xff]
  %v1093 = vld [vmem:[#allocation2 + $0xc0] sm:$0xff]
  %v1094 = vld [vmem:[#allocation2 + $0xc8] sm:$0xff]
  %v1095 = vld [vmem:[#allocation2 + $0xd0] sm:$0xff]
  %v1096 = vld [vmem:[#allocation2 + $0xd8] sm:$0xff]
  %v1097 = vld [vmem:[#allocation2 + $0xe0] sm:$0xff]
  %v1098 = vld [vmem:[#allocation2 + $0xe8] sm:$0xff]
  %v1099 = vld [vmem:[#allocation2 + $0xf0] sm:$0xff]
  %v1100 = vld [vmem:[#allocation2 + $0xf8] sm:$0xff]
  %v1101 = vld [vmem:[#allocation2 + $0x100] sm:$0xff]
  %v1102 = vld [vmem:[#allocation2 + $0x108] sm:$0xff]
  %v1103 = vld [vmem:[#allocation2 + $0x110] sm:$0xff]
  %v1104 = vld [vmem:[#allocation2 + $0x118] sm:$0xff]
  %v1105 = vld [vmem:[#allocation2 + $0x120] sm:$0xff]
  %v1106 = vld [vmem:[#allocation2 + $0x128] sm:$0xff]
  %v1107 = vld [vmem:[#allocation2 + $0x130] sm:$0xff]
  %v1108 = vld [vmem:[#allocation2 + $0x138] sm:$0xff]
  %v1109 = vld [vmem:[#allocation2 + $0x140] sm:$0xff]
  %v1110 = vld [vmem:[#allocation2 + $0x148] sm:$0xff]
  %v1111 = vld [vmem:[#allocation2 + $0x150] sm:$0xff]
  %v1112 = vld [vmem:[#allocation2 + $0x158] sm:$0xff]
  %v1113 = vld [vmem:[#allocation2 + $0x160] sm:$0xff]
  %v1114 = vld [vmem:[#allocation2 + $0x168] sm:$0xff]
  %v1115 = vld [vmem:[#allocation2 + $0x170] sm:$0xff]
  %v1116 = vld [vmem:[#allocation2 + $0x178] sm:$0xff]
  %v1117 = vld [vmem:[#allocation2 + $0x180] sm:$0xff]
  %v1118 = vld [vmem:[#allocation2 + $0x188] sm:$0xff]
  %v1119 = vld [vmem:[#allocation2 + $0x190] sm:$0xff]
  %v1120 = vld [vmem:[#allocation2 + $0x198] sm:$0xff]
  %v1121 = vld [vmem:[#allocation2 + $0x1a0] sm:$0xff]
  %v1122 = vld [vmem:[#allocation2 + $0x1a8] sm:$0xff]
  %v1123 = vld [vmem:[#allocation2 + $0x1b0] sm:$0xff]
  %v1124 = vld [vmem:[#allocation2 + $0x1b8] sm:$0xff]
  %v1125 = vld [vmem:[#allocation2 + $0x1c0] sm:$0xff]
  %v1126 = vld [vmem:[#allocation2 + $0x1c8] sm:$0xff]
  %v1127 = vld [vmem:[#allocation2 + $0x1d0] sm:$0xff]
  %v1128 = vld [vmem:[#allocation2 + $0x1d8] sm:$0xff]
  %v1129 = vld [vmem:[#allocation2 + $0x1e0] sm:$0xff]
  %v1130 = vld [vmem:[#allocation2 + $0x1e8] sm:$0xff]
  %v1131 = vld [vmem:[#allocation2 + $0x1f0] sm:$0xff]
  %v1132 = vld [vmem:[#allocation2 + $0x1f8] sm:$0xff]
  %v1133 = vld [vmem:[#allocation2 + $0x200] sm:$0xff]
  %v1134 = vld [vmem:[#allocation2 + $0x208] sm:$0xff]
  %v1135 = vld [vmem:[#allocation2 + $0x210] sm:$0xff]
  %v1136 = vld [vmem:[#allocation2 + $0x218] sm:$0xff]
  %v1137 = vld [vmem:[#allocation2 + $0x220] sm:$0xff]
  %v1138 = vld [vmem:[#allocation2 + $0x228] sm:$0xff]
  %v1139 = vld [vmem:[#allocation2 + $0x230] sm:$0xff]
  %v1140 = vld [vmem:[#allocation2 + $0x238] sm:$0xff]
  %v1141 = vld [vmem:[#allocation2 + $0x240] sm:$0xff]
  %v1142 = vld [vmem:[#allocation2 + $0x248] sm:$0xff]
  %v1143 = vld [vmem:[#allocation2 + $0x250] sm:$0xff]
  %v1144 = vld [vmem:[#allocation2 + $0x258] sm:$0xff]
  %v1145 = vld [vmem:[#allocation2 + $0x260] sm:$0xff]
  %v1146 = vld [vmem:[#allocation2 + $0x268] sm:$0xff]
  %v1147 = vld [vmem:[#allocation2 + $0x270] sm:$0xff]
  %v1148 = vld [vmem:[#allocation2 + $0x278] sm:$0xff]
  %v1149 = vld [vmem:[#allocation2 + $0x280] sm:$0xff]
  %v1150 = vld [vmem:[#allocation2 + $0x288] sm:$0xff]
  %v1151 = vld [vmem:[#allocation2 + $0x290] sm:$0xff]
  %v1152 = vld [vmem:[#allocation2 + $0x298] sm:$0xff]
  %v1153 = vld [vmem:[#allocation2 + $0x2a0] sm:$0xff]
  %v1154 = vld [vmem:[#allocation2 + $0x2a8] sm:$0xff]
  %v1155 = vld [vmem:[#allocation2 + $0x2b0] sm:$0xff]
  %v1156 = vld [vmem:[#allocation2 + $0x2b8] sm:$0xff]
  %v1157 = vld [vmem:[#allocation2 + $0x2c0] sm:$0xff]
  %v1158 = vld [vmem:[#allocation2 + $0x2c8] sm:$0xff]
  %v1159 = vld [vmem:[#allocation2 + $0x2d0] sm:$0xff]
  %v1160 = vld [vmem:[#allocation2 + $0x2d8] sm:$0xff]
  %v1161 = vld [vmem:[#allocation2 + $0x2e0] sm:$0xff]
  %v1162 = vld [vmem:[#allocation2 + $0x2e8] sm:$0xff]
  %v1163 = vld [vmem:[#allocation2 + $0x2f0] sm:$0xff]
  %v1164 = vld [vmem:[#allocation2 + $0x2f8] sm:$0xff]
  %v1165 = vld [vmem:[#allocation2 + $0x300] sm:$0xff]
  %v1166 = vld [vmem:[#allocation2 + $0x308] sm:$0xff]
  %s1167 = scalar_lea.vmem %s0, 392
  %v1168 = vld [vmem:[%s1167] sm:$0xf]
  %v1169 = vld [vmem:[%s1167 + $0x4] sm:$0xf]
  %v1170 = vld [vmem:[%s1167 + $0x8] sm:$0xf]
  %v1171 = vld [vmem:[%s1167 + $0xc] sm:$0xf]
  %v1172 = vld [vmem:[%s1167 + $0x10] sm:$0xf]
  %v1173 = vld [vmem:[%s1167 + $0x14] sm:$0xf]
  %v1174 = vld [vmem:[%s1167 + $0x18] sm:$0xf]
  %v1175 = vld [vmem:[%s1167 + $0x1c] sm:$0xf]
  %v1176 = vld [vmem:[%s1167 + $0x20] sm:$0xf]
  %v1177 = vld [vmem:[%s1167 + $0x24] sm:$0xf]
  %v1178 = vld [vmem:[%s1167 + $0x28] sm:$0xf]
  %v1179 = vld [vmem:[%s1167 + $0x2c] sm:$0xf]
  %v1180 = vld [vmem:[%s1167 + $0x30] sm:$0xf]
  %v1181 = vld [vmem:[%s1167 + $0x34] sm:$0xf]
  %v1182 = vld [vmem:[%s1167 + $0x38] sm:$0xf]
  %v1183 = vld [vmem:[%s1167 + $0x3c] sm:$0xf]
  %v1184 = vld [vmem:[%s1167 + $0x40] sm:$0xf]
  %v1185 = vld [vmem:[%s1167 + $0x44] sm:$0xf]
  %v1186 = vld [vmem:[%s1167 + $0x48] sm:$0xf]
  %v1187 = vld [vmem:[%s1167 + $0x4c] sm:$0xf]
  %v1188 = vld [vmem:[%s1167 + $0x50] sm:$0xf]
  %v1189 = vld [vmem:[%s1167 + $0x54] sm:$0xf]
  %v1190 = vld [vmem:[%s1167 + $0x58] sm:$0xf]
  %v1191 = vld [vmem:[%s1167 + $0x5c] sm:$0xf]
  %v1192 = vld [vmem:[%s1167 + $0x60] sm:$0xf]
  %v1193 = vld [vmem:[%s1167 + $0x64] sm:$0xf]
  %v1194 = vld [vmem:[%s1167 + $0x68] sm:$0xf]
  %v1195 = vld [vmem:[%s1167 + $0x6c] sm:$0xf]
  %v1196 = vld [vmem:[%s1167 + $0x70] sm:$0xf]
  %v1197 = vld [vmem:[%s1167 + $0x74] sm:$0xf]
  %v1198 = vld [vmem:[%s1167 + $0x78] sm:$0xf]
  %v1199 = vld [vmem:[%s1167 + $0x7c] sm:$0xf]
  %v1200 = vld [vmem:[%s1167 + $0x80] sm:$0xf]
  %v1201 = vld [vmem:[%s1167 + $0x84] sm:$0xf]
  %v1202 = vld [vmem:[%s1167 + $0x88] sm:$0xf]
  %v1203 = vld [vmem:[%s1167 + $0x8c] sm:$0xf]
  %v1204 = vld [vmem:[%s1167 + $0x90] sm:$0xf]
  %v1205 = vld [vmem:[%s1167 + $0x94] sm:$0xf]
  %v1206 = vld [vmem:[%s1167 + $0x98] sm:$0xf]
  %v1207 = vld [vmem:[%s1167 + $0x9c] sm:$0xf]
  %v1208 = vld [vmem:[%s1167 + $0xa0] sm:$0xf]
  %v1209 = vld [vmem:[%s1167 + $0xa4] sm:$0xf]
  %v1210 = vld [vmem:[%s1167 + $0xa8] sm:$0xf]
  %v1211 = vld [vmem:[%s1167 + $0xac] sm:$0xf]
  %v1212 = vld [vmem:[%s1167 + $0xb0] sm:$0xf]
  %v1213 = vld [vmem:[%s1167 + $0xb4] sm:$0xf]
  %v1214 = vld [vmem:[%s1167 + $0xb8] sm:$0xf]
  %v1215 = vld [vmem:[%s1167 + $0xbc] sm:$0xf]
  %v1216 = vld [vmem:[%s1167 + $0xc0] sm:$0xf]
  %v1217 = vld [vmem:[%s1167 + $0xc4] sm:$0xf]
  %v1218 = vld [vmem:[%s1167 + $0xc8] sm:$0xf]
  %v1219 = vld [vmem:[%s1167 + $0xcc] sm:$0xf]
  %v1220 = vld [vmem:[%s1167 + $0xd0] sm:$0xf]
  %v1221 = vld [vmem:[%s1167 + $0xd4] sm:$0xf]
  %v1222 = vld [vmem:[%s1167 + $0xd8] sm:$0xf]
  %v1223 = vld [vmem:[%s1167 + $0xdc] sm:$0xf]
  %v1224 = vld [vmem:[%s1167 + $0xe0] sm:$0xf]
  %v1225 = vld [vmem:[%s1167 + $0xe4] sm:$0xf]
  %v1226 = vld [vmem:[%s1167 + $0xe8] sm:$0xf]
  %v1227 = vld [vmem:[%s1167 + $0xec] sm:$0xf]
  %v1228 = vld [vmem:[%s1167 + $0xf0] sm:$0xf]
  %v1229 = vld [vmem:[%s1167 + $0xf4] sm:$0xf]
  %v1230 = vld [vmem:[%s1167 + $0xf8] sm:$0xf]
  %v1231 = vld [vmem:[%s1167 + $0xfc] sm:$0xf]
  %v1232 = vld [vmem:[%s1167 + $0x100] sm:$0xf]
  %v1233 = vld [vmem:[%s1167 + $0x104] sm:$0xf]
  %v1234 = vld [vmem:[%s1167 + $0x108] sm:$0xf]
  %v1235 = vld [vmem:[%s1167 + $0x10c] sm:$0xf]
  %v1236 = vld [vmem:[%s1167 + $0x110] sm:$0xf]
  %v1237 = vld [vmem:[%s1167 + $0x114] sm:$0xf]
  %v1238 = vld [vmem:[%s1167 + $0x118] sm:$0xf]
  %v1239 = vld [vmem:[%s1167 + $0x11c] sm:$0xf]
  %v1240 = vld [vmem:[%s1167 + $0x120] sm:$0xf]
  %v1241 = vld [vmem:[%s1167 + $0x124] sm:$0xf]
  %v1242 = vld [vmem:[%s1167 + $0x128] sm:$0xf]
  %v1243 = vld [vmem:[%s1167 + $0x12c] sm:$0xf]
  %v1244 = vld [vmem:[%s1167 + $0x130] sm:$0xf]
  %v1245 = vld [vmem:[%s1167 + $0x134] sm:$0xf]
  %v1246 = vld [vmem:[%s1167 + $0x138] sm:$0xf]
  %v1247 = vld [vmem:[%s1167 + $0x13c] sm:$0xf]
  %v1248 = vld [vmem:[%s1167 + $0x140] sm:$0xf]
  %v1249 = vld [vmem:[%s1167 + $0x144] sm:$0xf]
  %v1250 = vld [vmem:[%s1167 + $0x148] sm:$0xf]
  %v1251 = vld [vmem:[%s1167 + $0x14c] sm:$0xf]
  %v1252 = vld [vmem:[%s1167 + $0x150] sm:$0xf]
  %v1253 = vld [vmem:[%s1167 + $0x154] sm:$0xf]
  %v1254 = vld [vmem:[%s1167 + $0x158] sm:$0xf]
  %v1255 = vld [vmem:[%s1167 + $0x15c] sm:$0xf]
  %v1256 = vld [vmem:[%s1167 + $0x160] sm:$0xf]
  %v1257 = vld [vmem:[%s1167 + $0x164] sm:$0xf]
  %v1258 = vld [vmem:[%s1167 + $0x168] sm:$0xf]
  %v1259 = vld [vmem:[%s1167 + $0x16c] sm:$0xf]
  %v1260 = vld [vmem:[%s1167 + $0x170] sm:$0xf]
  %v1261 = vld [vmem:[%s1167 + $0x174] sm:$0xf]
  %v1262 = vld [vmem:[%s1167 + $0x178] sm:$0xf]
  %v1263 = vld [vmem:[%s1167 + $0x17c] sm:$0xf]
  %v1264 = vld [vmem:[%s1167 + $0x180] sm:$0xf]
  %v1265 = vld [vmem:[%s1167 + $0x184] sm:$0xf]
  %v1266 = vld [vmem:[%s1] sm:$0xf]
  %v1267 = vld [vmem:[%s1 + $0x4] sm:$0xf]
  %v1268 = vld [vmem:[%s1 + $0x8] sm:$0xf]
  %v1269 = vld [vmem:[%s1 + $0xc] sm:$0xf]
  %v1270 = vld [vmem:[%s1 + $0x10] sm:$0xf]
  %v1271 = vld [vmem:[%s1 + $0x14] sm:$0xf]
  %v1272 = vld [vmem:[%s1 + $0x18] sm:$0xf]
  %v1273 = vld [vmem:[%s1 + $0x1c] sm:$0xf]
  %v1274 = vld [vmem:[%s1 + $0x20] sm:$0xf]
  %v1275 = vld [vmem:[%s1 + $0x24] sm:$0xf]
  %v1374 = vunpack.c.l.b16 %v1168
  %v1375 = vunpack.c.l.b16 %v1169
  %v1376 = vunpack.c.l.b16 %v1170
  %v1377 = vunpack.c.l.b16 %v1171
  %v1378 = vunpack.c.l.b16 %v1172
  %v1379 = vunpack.c.l.b16 %v1173
  %v1380 = vunpack.c.l.b16 %v1174
  %v1381 = vunpack.c.l.b16 %v1175
  %v1382 = vunpack.c.l.b16 %v1176
  %v1383 = vunpack.c.l.b16 %v1177
  %v1384 = vunpack.c.l.b16 %v1178
  %v1385 = vunpack.c.l.b16 %v1179
  %v1386 = vunpack.c.l.b16 %v1180
  %v1387 = vunpack.c.l.b16 %v1181
  %v1388 = vunpack.c.l.b16 %v1182
  %v1389 = vunpack.c.l.b16 %v1183
  %v1390 = vunpack.c.l.b16 %v1184
  %v1391 = vunpack.c.l.b16 %v1185
  %v1392 = vunpack.c.l.b16 %v1186
  %v1393 = vunpack.c.l.b16 %v1187
  %v1394 = vunpack.c.l.b16 %v1188
  %v1395 = vunpack.c.l.b16 %v1189
  %v1396 = vunpack.c.l.b16 %v1190
  %v1397 = vunpack.c.l.b16 %v1191
  %v1398 = vunpack.c.l.b16 %v1192
  %v1399 = vunpack.c.l.b16 %v1193
  %v1400 = vunpack.c.l.b16 %v1194
  %v1401 = vunpack.c.l.b16 %v1195
  %v1402 = vunpack.c.l.b16 %v1196
  %v1403 = vunpack.c.l.b16 %v1197
  %v1404 = vunpack.c.l.b16 %v1198
  %v1405 = vunpack.c.l.b16 %v1199
  %v1406 = vunpack.c.l.b16 %v1200
  %v1407 = vunpack.c.l.b16 %v1201
  %v1408 = vunpack.c.l.b16 %v1202
  %v1409 = vunpack.c.l.b16 %v1203
  %v1410 = vunpack.c.l.b16 %v1204
  %v1411 = vunpack.c.l.b16 %v1205
  %v1412 = vunpack.c.l.b16 %v1206
  %v1413 = vunpack.c.l.b16 %v1207
  %v1414 = vunpack.c.l.b16 %v1208
  %v1415 = vunpack.c.l.b16 %v1209
  %v1416 = vunpack.c.l.b16 %v1210
  %v1417 = vunpack.c.l.b16 %v1211
  %v1418 = vunpack.c.l.b16 %v1212
  %v1419 = vunpack.c.l.b16 %v1213
  %v1420 = vunpack.c.l.b16 %v1214
  %v1421 = vunpack.c.l.b16 %v1215
  %v1422 = vunpack.c.l.b16 %v1216
  %v1423 = vunpack.c.l.b16 %v1217
  %v1424 = vunpack.c.l.b16 %v1218
  %v1425 = vunpack.c.l.b16 %v1219
  %v1426 = vunpack.c.l.b16 %v1220
  %v1427 = vunpack.c.l.b16 %v1221
  %v1428 = vunpack.c.l.b16 %v1222
  %v1429 = vunpack.c.l.b16 %v1223
  %v1430 = vunpack.c.l.b16 %v1224
  %v1431 = vunpack.c.l.b16 %v1225
  %v1432 = vunpack.c.l.b16 %v1226
  %v1433 = vunpack.c.l.b16 %v1227
  %v1434 = vunpack.c.l.b16 %v1228
  %v1435 = vunpack.c.l.b16 %v1229
  %v1436 = vunpack.c.l.b16 %v1230
  %v1437 = vunpack.c.l.b16 %v1231
  %v1438 = vunpack.c.l.b16 %v1232
  %v1439 = vunpack.c.l.b16 %v1233
  %v1440 = vunpack.c.l.b16 %v1234
  %v1441 = vunpack.c.l.b16 %v1235
  %v1442 = vunpack.c.l.b16 %v1236
  %v1443 = vunpack.c.l.b16 %v1237
  %v1444 = vunpack.c.l.b16 %v1238
  %v1445 = vunpack.c.l.b16 %v1239
  %v1446 = vunpack.c.l.b16 %v1240
  %v1447 = vunpack.c.l.b16 %v1241
  %v1448 = vunpack.c.l.b16 %v1242
  %v1449 = vunpack.c.l.b16 %v1243
  %v1450 = vunpack.c.l.b16 %v1244
  %v1451 = vunpack.c.l.b16 %v1245
  %v1452 = vunpack.c.l.b16 %v1246
  %v1453 = vunpack.c.l.b16 %v1247
  %v1454 = vunpack.c.l.b16 %v1248
  %v1455 = vunpack.c.l.b16 %v1249
  %v1456 = vunpack.c.l.b16 %v1250
  %v1457 = vunpack.c.l.b16 %v1251
  %v1458 = vunpack.c.l.b16 %v1252
  %v1459 = vunpack.c.l.b16 %v1253
  %v1460 = vunpack.c.l.b16 %v1254
  %v1461 = vunpack.c.l.b16 %v1255
  %v1462 = vunpack.c.l.b16 %v1256
  %v1463 = vunpack.c.l.b16 %v1257
  %v1464 = vunpack.c.l.b16 %v1258
  %v1465 = vunpack.c.l.b16 %v1259
  %v1466 = vunpack.c.l.b16 %v1260
  %v1467 = vunpack.c.l.b16 %v1261
  %v1468 = vunpack.c.l.b16 %v1262
  %v1469 = vunpack.c.l.b16 %v1263
  %v1470 = vunpack.c.l.b16 %v1264
  %v1471 = vunpack.c.l.b16 %v1265
  %v1472 = vpack.c.b16 %v1375, %v1374
  %v1473 = vpack.c.b16 %v1377, %v1376
  %v1474 = vpack.c.b16 %v1379, %v1378
  %v1475 = vpack.c.b16 %v1381, %v1380
  %v1476 = vpack.c.b16 %v1383, %v1382
  %v1477 = vpack.c.b16 %v1385, %v1384
  %v1478 = vpack.c.b16 %v1387, %v1386
  %v1479 = vpack.c.b16 %v1389, %v1388
  %v1480 = vpack.c.b16 %v1391, %v1390
  %v1481 = vpack.c.b16 %v1393, %v1392
  %v1482 = vpack.c.b16 %v1395, %v1394
  %v1483 = vpack.c.b16 %v1397, %v1396
  %v1484 = vpack.c.b16 %v1399, %v1398
  %v1485 = vpack.c.b16 %v1401, %v1400
  %v1486 = vpack.c.b16 %v1403, %v1402
  %v1487 = vpack.c.b16 %v1405, %v1404
  %v1488 = vpack.c.b16 %v1407, %v1406
  %v1489 = vpack.c.b16 %v1409, %v1408
  %v1490 = vpack.c.b16 %v1411, %v1410
  %v1491 = vpack.c.b16 %v1413, %v1412
  %v1492 = vpack.c.b16 %v1415, %v1414
  %v1493 = vpack.c.b16 %v1417, %v1416
  %v1494 = vpack.c.b16 %v1419, %v1418
  %v1495 = vpack.c.b16 %v1421, %v1420
  %v1496 = vpack.c.b16 %v1423, %v1422
  %v1497 = vpack.c.b16 %v1425, %v1424
  %v1498 = vpack.c.b16 %v1427, %v1426
  %v1499 = vpack.c.b16 %v1429, %v1428
  %v1500 = vpack.c.b16 %v1431, %v1430
  %v1501 = vpack.c.b16 %v1433, %v1432
  %v1502 = vpack.c.b16 %v1435, %v1434
  %v1503 = vpack.c.b16 %v1437, %v1436
  %v1504 = vpack.c.b16 %v1439, %v1438
  %v1505 = vpack.c.b16 %v1441, %v1440
  %v1506 = vpack.c.b16 %v1443, %v1442
  %v1507 = vpack.c.b16 %v1445, %v1444
  %v1508 = vpack.c.b16 %v1447, %v1446
  %v1509 = vpack.c.b16 %v1449, %v1448
  %v1510 = vpack.c.b16 %v1451, %v1450
  %v1511 = vpack.c.b16 %v1453, %v1452
  %v1512 = vpack.c.b16 %v1455, %v1454
  %v1513 = vpack.c.b16 %v1457, %v1456
  %v1514 = vpack.c.b16 %v1459, %v1458
  %v1515 = vpack.c.b16 %v1461, %v1460
  %v1516 = vpack.c.b16 %v1463, %v1462
  %v1517 = vpack.c.b16 %v1465, %v1464
  %v1518 = vpack.c.b16 %v1467, %v1466
  %v1519 = vpack.c.b16 %v1469, %v1468
  %v1520 = vpack.c.b16 %v1471, %v1470
  %v1531 = vunpack.c.l.b16 %v1266
  %v1532 = vunpack.c.l.b16 %v1267
  %v1533 = vunpack.c.l.b16 %v1268
  %v1534 = vunpack.c.l.b16 %v1269
  %v1535 = vunpack.c.l.b16 %v1270
  %v1536 = vunpack.c.l.b16 %v1271
  %v1537 = vunpack.c.l.b16 %v1272
  %v1538 = vunpack.c.l.b16 %v1273
  %v1539 = vunpack.c.l.b16 %v1274
  %v1540 = vunpack.c.l.b16 %v1275
  %v1541 = vpack.c.b16 %v1532, %v1531
  %v1542 = vpack.c.b16 %v1534, %v1533
  %v1543 = vpack.c.b16 %v1536, %v1535
  %v1544 = vpack.c.b16 %v1538, %v1537
  %v1545 = vpack.c.b16 %v1540, %v1539
  %v1552 = vsel %vm398, %v1472, 0
  %v1555 = vsel %vm398, %v1473, 0
  %v1558 = vsel %vm398, %v1474, 0
  %v1561 = vsel %vm398, %v1475, 0
  %v1564 = vsel %vm398, %v1476, 0
  %v1567 = vsel %vm398, %v1477, 0
  %v1570 = vsel %vm398, %v1478, 0
  %v1573 = vsel %vm398, %v1479, 0
  %v1576 = vsel %vm398, %v1480, 0
  %v1579 = vsel %vm398, %v1481, 0
  %v1582 = vsel %vm398, %v1482, 0
  %v1585 = vsel %vm398, %v1483, 0
  %v1588 = vsel %vm398, %v1484, 0
  %v1591 = vsel %vm398, %v1485, 0
  %v1594 = vsel %vm398, %v1486, 0
  %v1597 = vsel %vm398, %v1487, 0
  %v1600 = vsel %vm398, %v1488, 0
  %v1603 = vsel %vm398, %v1489, 0
  %v1606 = vsel %vm398, %v1490, 0
  %v1609 = vsel %vm398, %v1491, 0
  %v1612 = vsel %vm398, %v1492, 0
  %v1615 = vsel %vm398, %v1493, 0
  %v1618 = vsel %vm398, %v1494, 0
  %v1621 = vsel %vm398, %v1495, 0
  %v1624 = vsel %vm398, %v1496, 0
  %v1627 = vsel %vm398, %v1497, 0
  %v1630 = vsel %vm398, %v1498, 0
  %v1633 = vsel %vm398, %v1499, 0
  %v1636 = vsel %vm398, %v1500, 0
  %v1639 = vsel %vm398, %v1501, 0
  %v1642 = vsel %vm398, %v1502, 0
  %v1645 = vsel %vm398, %v1503, 0
  %v1648 = vsel %vm398, %v1504, 0
  %v1651 = vsel %vm398, %v1505, 0
  %v1654 = vsel %vm398, %v1506, 0
  %v1657 = vsel %vm398, %v1507, 0
  %v1660 = vsel %vm398, %v1508, 0
  %v1663 = vsel %vm398, %v1509, 0
  %v1666 = vsel %vm398, %v1510, 0
  %v1669 = vsel %vm398, %v1511, 0
  %v1672 = vsel %vm398, %v1512, 0
  %v1675 = vsel %vm398, %v1513, 0
  %v1678 = vsel %vm398, %v1514, 0
  %v1681 = vsel %vm398, %v1515, 0
  %v1684 = vsel %vm398, %v1516, 0
  %v1687 = vsel %vm398, %v1517, 0
  %v1690 = vsel %vm398, %v1518, 0
  %v1693 = vsel %vm398, %v1519, 0
  %v1696 = vsel %vm398, %v1520, 0
  %1698 = vmatprep.subr.bf16.mxu0 0
  %1699 = vmatpush1.bf16.msra.mxu0 %v1541
  %1700 = vmatprep.subr.bf16.mxu0 0
  %1701 = vmatpush1.bf16.msra.mxu0 %v1542
  %1702 = vmatprep.subr.bf16.mxu0 0
  %1703 = vmatpush1.bf16.msra.mxu0 %v1543
  %1704 = vmatprep.subr.bf16.mxu0 0
  %1705 = vmatpush1.bf16.msra.mxu0 %v1544
  %1706 = vmatprep.subr.bf16.mxu0 0
  %1707 = vmatpush1.bf16.msra.mxu0 %v1545
  %1708 = vmatprep.subr.bf16.mxu0 0
  %1709 = vmatpush1.bf16.msra.mxu0 0
  %1710 = vmatprep.subr.bf16.mxu0 0
  %1711 = vmatpush1.bf16.msra.mxu0 0
  %1712 = vmatprep.subr.bf16.mxu0 0
  %1713 = vmatpush1.bf16.msra.mxu0 0
  %1714 = vmatprep.subr.bf16.mxu0 0
  %1715 = vmatpush1.bf16.msra.mxu0 0
  %1716 = vmatprep.subr.bf16.mxu0 0
  %1717 = vmatpush1.bf16.msra.mxu0 0
  %1718 = vmatprep.subr.bf16.mxu0 0
  %1719 = vmatpush1.bf16.msra.mxu0 0
  %1720 = vmatprep.subr.bf16.mxu0 0
  %1721 = vmatpush1.bf16.msra.mxu0 0
  %1722 = vmatprep.subr.bf16.mxu0 0
  %1723 = vmatpush1.bf16.msra.mxu0 0
  %1724 = vmatprep.subr.bf16.mxu0 0
  %1725 = vmatpush1.bf16.msra.mxu0 0
  %1726 = vmatprep.subr.bf16.mxu0 0
  %1727 = vmatpush1.bf16.msra.mxu0 0
  %1728 = vmatprep.subr.bf16.mxu0 0
  %1729 = vmatpush1.bf16.msra.mxu0 0
  %1730 = vmatprep.mubr.bf16.mxu0 0
  %1731 = vmatmul.mubr.bf16.gmra.mrb[0].mxu0 %v1552
  %v1732 = vpop.f32.mrb[0].mxu0
  %v1733 = vadd.f32 0.0, %v1732
  %v1734 = vpop.f32.mrb[0].mxu0
  %v1735 = vpop.f32.mrb[0].mxu0
  %v1736 = vadd.f32 0.0, %v1735
  %v1737 = vpop.f32.mrb[0].mxu0
  %1738 = vmatprep.mubr.bf16.mxu0 0
  %1739 = vmatmul.mubr.bf16.gmra.mrb[0].mxu0 %v1555
  %v1740 = vpop.f32.mrb[0].mxu0
  %v1741 = vadd.f32 0.0, %v1740
  %v1742 = vpop.f32.mrb[0].mxu0
  %v1743 = vpop.f32.mrb[0].mxu0
  %v1744 = vadd.f32 0.0, %v1743
  %v1745 = vpop.f32.mrb[0].mxu0
  %1746 = vmatprep.mubr.bf16.mxu0 0
  %1747 = vmatmul.mubr.bf16.gmra.mrb[0].mxu0 %v1558
  %v1748 = vpop.f32.mrb[0].mxu0
  %v1749 = vadd.f32 0.0, %v1748
  %v1750 = vpop.f32.mrb[0].mxu0
  %v1751 = vpop.f32.mrb[0].mxu0
  %v1752 = vadd.f32 0.0, %v1751
  %v1753 = vpop.f32.mrb[0].mxu0
  %1754 = vmatprep.mubr.bf16.mxu0 0
  %1755 = vmatmul.mubr.bf16.gmra.mrb[0].mxu0 %v1561
  %v1756 = vpop.f32.mrb[0].mxu0
  %v1757 = vadd.f32 0.0, %v1756
  %v1758 = vpop.f32.mrb[0].mxu0
  %v1759 = vpop.f32.mrb[0].mxu0
  %v1760 = vadd.f32 0.0, %v1759
  %v1761 = vpop.f32.mrb[0].mxu0
  %1762 = vmatprep.mubr.bf16.mxu0 0
  %1763 = vmatmul.mubr.bf16.gmra.mrb[0].mxu0 %v1564
  %v1764 = vpop.f32.mrb[0].mxu0
  %v1765 = vadd.f32 0.0, %v1764
  %v1766 = vpop.f32.mrb[0].mxu0
  %v1767 = vpop.f32.mrb[0].mxu0
  %v1768 = vadd.f32 0.0, %v1767
  %v1769 = vpop.f32.mrb[0].mxu0
  %1770 = vmatprep.mubr.bf16.mxu0 0
  %1771 = vmatmul.mubr.bf16.gmra.mrb[0].mxu0 %v1567
  %v1772 = vpop.f32.mrb[0].mxu0
  %v1773 = vadd.f32 0.0, %v1772
  %v1774 = vpop.f32.mrb[0].mxu0
  %v1775 = vpop.f32.mrb[0].mxu0
  %v1776 = vadd.f32 0.0, %v1775
  %v1777 = vpop.f32.mrb[0].mxu0
  %1778 = vmatprep.mubr.bf16.mxu0 0
  %1779 = vmatmul.mubr.bf16.gmra.mrb[0].mxu0 %v1570
  %v1780 = vpop.f32.mrb[0].mxu0
  %v1781 = vadd.f32 0.0, %v1780
  %v1782 = vpop.f32.mrb[0].mxu0
  %v1783 = vpop.f32.mrb[0].mxu0
  %v1784 = vadd.f32 0.0, %v1783
  %v1785 = vpop.f32.mrb[0].mxu0
  %1786 = vmatprep.mubr.bf16.mxu0 0
  %1787 = vmatmul.mubr.bf16.gmra.mrb[0].mxu0 %v1573
  %v1788 = vpop.f32.mrb[0].mxu0
  %v1789 = vadd.f32 0.0, %v1788
  %v1790 = vpop.f32.mrb[0].mxu0
  %v1791 = vpop.f32.mrb[0].mxu0
  %v1792 = vadd.f32 0.0, %v1791
  %v1793 = vpop.f32.mrb[0].mxu0
  %1794 = vmatprep.mubr.bf16.mxu0 0
  %1795 = vmatmul.mubr.bf16.gmra.mrb[0].mxu0 %v1576
  %v1796 = vpop.f32.mrb[0].mxu0
  %v1797 = vadd.f32 0.0, %v1796
  %v1798 = vpop.f32.mrb[0].mxu0
  %v1799 = vpop.f32.mrb[0].mxu0
  %v1800 = vadd.f32 0.0, %v1799
  %v1801 = vpop.f32.mrb[0].mxu0
  %1802 = vmatprep.mubr.bf16.mxu0 0
  %1803 = vmatmul.mubr.bf16.gmra.mrb[0].mxu0 %v1579
  %v1804 = vpop.f32.mrb[0].mxu0
  %v1805 = vadd.f32 0.0, %v1804
  %v1806 = vpop.f32.mrb[0].mxu0
  %v1807 = vpop.f32.mrb[0].mxu0
  %v1808 = vadd.f32 0.0, %v1807
  %v1809 = vpop.f32.mrb[0].mxu0
  %1810 = vmatprep.mubr.bf16.mxu0 0
  %1811 = vmatmul.mubr.bf16.gmra.mrb[0].mxu0 %v1582
  %v1812 = vpop.f32.mrb[0].mxu0
  %v1813 = vadd.f32 0.0, %v1812
  %v1814 = vpop.f32.mrb[0].mxu0
  %v1815 = vpop.f32.mrb[0].mxu0
  %v1816 = vadd.f32 0.0, %v1815
  %v1817 = vpop.f32.mrb[0].mxu0
  %1818 = vmatprep.mubr.bf16.mxu0 0
  %1819 = vmatmul.mubr.bf16.gmra.mrb[0].mxu0 %v1585
  %v1820 = vpop.f32.mrb[0].mxu0
  %v1821 = vadd.f32 0.0, %v1820
  %v1822 = vpop.f32.mrb[0].mxu0
  %v1823 = vpop.f32.mrb[0].mxu0
  %v1824 = vadd.f32 0.0, %v1823
  %v1825 = vpop.f32.mrb[0].mxu0
  %1826 = vmatprep.mubr.bf16.mxu0 0
  %1827 = vmatmul.mubr.bf16.gmra.mrb[0].mxu0 %v1588
  %v1828 = vpop.f32.mrb[0].mxu0
  %v1829 = vadd.f32 0.0, %v1828
  %v1830 = vpop.f32.mrb[0].mxu0
  %v1831 = vpop.f32.mrb[0].mxu0
  %v1832 = vadd.f32 0.0, %v1831
  %v1833 = vpop.f32.mrb[0].mxu0
  %1834 = vmatprep.mubr.bf16.mxu0 0
  %1835 = vmatmul.mubr.bf16.gmra.mrb[0].mxu0 %v1591
  %v1836 = vpop.f32.mrb[0].mxu0
  %v1837 = vadd.f32 0.0, %v1836
  %v1838 = vpop.f32.mrb[0].mxu0
  %v1839 = vpop.f32.mrb[0].mxu0
  %v1840 = vadd.f32 0.0, %v1839
  %v1841 = vpop.f32.mrb[0].mxu0
  %1842 = vmatprep.mubr.bf16.mxu0 0
  %1843 = vmatmul.mubr.bf16.gmra.mrb[0].mxu0 %v1594
  %v1844 = vpop.f32.mrb[0].mxu0
  %v1845 = vadd.f32 0.0, %v1844
  %v1846 = vpop.f32.mrb[0].mxu0
  %v1847 = vpop.f32.mrb[0].mxu0
  %v1848 = vadd.f32 0.0, %v1847
  %v1849 = vpop.f32.mrb[0].mxu0
  %1850 = vmatprep.mubr.bf16.mxu0 0
  %1851 = vmatmul.mubr.bf16.gmra.mrb[0].mxu0 %v1597
  %v1852 = vpop.f32.mrb[0].mxu0
  %v1853 = vadd.f32 0.0, %v1852
  %v1854 = vpop.f32.mrb[0].mxu0
  %v1855 = vpop.f32.mrb[0].mxu0
  %v1856 = vadd.f32 0.0, %v1855
  %v1857 = vpop.f32.mrb[0].mxu0
  %1858 = vmatprep.mubr.bf16.mxu0 0
  %1859 = vmatmul.mubr.bf16.gmra.mrb[0].mxu0 %v1600
  %v1860 = vpop.f32.mrb[0].mxu0
  %v1861 = vadd.f32 0.0, %v1860
  %v1862 = vpop.f32.mrb[0].mxu0
  %v1863 = vpop.f32.mrb[0].mxu0
  %v1864 = vadd.f32 0.0, %v1863
  %v1865 = vpop.f32.mrb[0].mxu0
  %1866 = vmatprep.mubr.bf16.mxu0 0
  %1867 = vmatmul.mubr.bf16.gmra.mrb[0].mxu0 %v1603
  %v1868 = vpop.f32.mrb[0].mxu0
  %v1869 = vadd.f32 0.0, %v1868
  %v1870 = vpop.f32.mrb[0].mxu0
  %v1871 = vpop.f32.mrb[0].mxu0
  %v1872 = vadd.f32 0.0, %v1871
  %v1873 = vpop.f32.mrb[0].mxu0
  %1874 = vmatprep.mubr.bf16.mxu0 0
  %1875 = vmatmul.mubr.bf16.gmra.mrb[0].mxu0 %v1606
  %v1876 = vpop.f32.mrb[0].mxu0
  %v1877 = vadd.f32 0.0, %v1876
  %v1878 = vpop.f32.mrb[0].mxu0
  %v1879 = vpop.f32.mrb[0].mxu0
  %v1880 = vadd.f32 0.0, %v1879
  %v1881 = vpop.f32.mrb[0].mxu0
  %1882 = vmatprep.mubr.bf16.mxu0 0
  %1883 = vmatmul.mubr.bf16.gmra.mrb[0].mxu0 %v1609
  %v1884 = vpop.f32.mrb[0].mxu0
  %v1885 = vadd.f32 0.0, %v1884
  %v1886 = vpop.f32.mrb[0].mxu0
  %v1887 = vpop.f32.mrb[0].mxu0
  %v1888 = vadd.f32 0.0, %v1887
  %v1889 = vpop.f32.mrb[0].mxu0
  %1890 = vmatprep.mubr.bf16.mxu0 0
  %1891 = vmatmul.mubr.bf16.gmra.mrb[0].mxu0 %v1612
  %v1892 = vpop.f32.mrb[0].mxu0
  %v1893 = vadd.f32 0.0, %v1892
  %v1894 = vpop.f32.mrb[0].mxu0
  %v1895 = vpop.f32.mrb[0].mxu0
  %v1896 = vadd.f32 0.0, %v1895
  %v1897 = vpop.f32.mrb[0].mxu0
  %1898 = vmatprep.mubr.bf16.mxu0 0
  %1899 = vmatmul.mubr.bf16.gmra.mrb[0].mxu0 %v1615
  %v1900 = vpop.f32.mrb[0].mxu0
  %v1901 = vadd.f32 0.0, %v1900
  %v1902 = vpop.f32.mrb[0].mxu0
  %v1903 = vpop.f32.mrb[0].mxu0
  %v1904 = vadd.f32 0.0, %v1903
  %v1905 = vpop.f32.mrb[0].mxu0
  %1906 = vmatprep.mubr.bf16.mxu0 0
  %1907 = vmatmul.mubr.bf16.gmra.mrb[0].mxu0 %v1618
  %v1908 = vpop.f32.mrb[0].mxu0
  %v1909 = vadd.f32 0.0, %v1908
  %v1910 = vpop.f32.mrb[0].mxu0
  %v1911 = vpop.f32.mrb[0].mxu0
  %v1912 = vadd.f32 0.0, %v1911
  %v1913 = vpop.f32.mrb[0].mxu0
  %1914 = vmatprep.mubr.bf16.mxu0 0
  %1915 = vmatmul.mubr.bf16.gmra.mrb[0].mxu0 %v1621
  %v1916 = vpop.f32.mrb[0].mxu0
  %v1917 = vadd.f32 0.0, %v1916
  %v1918 = vpop.f32.mrb[0].mxu0
  %v1919 = vpop.f32.mrb[0].mxu0
  %v1920 = vadd.f32 0.0, %v1919
  %v1921 = vpop.f32.mrb[0].mxu0
  %1922 = vmatprep.mubr.bf16.mxu0 0
  %1923 = vmatmul.mubr.bf16.gmra.mrb[0].mxu0 %v1624
  %v1924 = vpop.f32.mrb[0].mxu0
  %v1925 = vadd.f32 0.0, %v1924
  %v1926 = vpop.f32.mrb[0].mxu0
  %v1927 = vpop.f32.mrb[0].mxu0
  %v1928 = vadd.f32 0.0, %v1927
  %v1929 = vpop.f32.mrb[0].mxu0
  %1930 = vmatprep.mubr.bf16.mxu0 0
  %1931 = vmatmul.mubr.bf16.gmra.mrb[0].mxu0 %v1627
  %v1932 = vpop.f32.mrb[0].mxu0
  %v1933 = vadd.f32 0.0, %v1932
  %v1934 = vpop.f32.mrb[0].mxu0
  %v1935 = vpop.f32.mrb[0].mxu0
  %v1936 = vadd.f32 0.0, %v1935
  %v1937 = vpop.f32.mrb[0].mxu0
  %1938 = vmatprep.mubr.bf16.mxu0 0
  %1939 = vmatmul.mubr.bf16.gmra.mrb[0].mxu0 %v1630
  %v1940 = vpop.f32.mrb[0].mxu0
  %v1941 = vadd.f32 0.0, %v1940
  %v1942 = vpop.f32.mrb[0].mxu0
  %v1943 = vpop.f32.mrb[0].mxu0
  %v1944 = vadd.f32 0.0, %v1943
  %v1945 = vpop.f32.mrb[0].mxu0
  %1946 = vmatprep.mubr.bf16.mxu0 0
  %1947 = vmatmul.mubr.bf16.gmra.mrb[0].mxu0 %v1633
  %v1948 = vpop.f32.mrb[0].mxu0
  %v1949 = vadd.f32 0.0, %v1948
  %v1950 = vpop.f32.mrb[0].mxu0
  %v1951 = vpop.f32.mrb[0].mxu0
  %v1952 = vadd.f32 0.0, %v1951
  %v1953 = vpop.f32.mrb[0].mxu0
  %1954 = vmatprep.mubr.bf16.mxu0 0
  %1955 = vmatmul.mubr.bf16.gmra.mrb[0].mxu0 %v1636
  %v1956 = vpop.f32.mrb[0].mxu0
  %v1957 = vadd.f32 0.0, %v1956
  %v1958 = vpop.f32.mrb[0].mxu0
  %v1959 = vpop.f32.mrb[0].mxu0
  %v1960 = vadd.f32 0.0, %v1959
  %v1961 = vpop.f32.mrb[0].mxu0
  %1962 = vmatprep.mubr.bf16.mxu0 0
  %1963 = vmatmul.mubr.bf16.gmra.mrb[0].mxu0 %v1639
  %v1964 = vpop.f32.mrb[0].mxu0
  %v1965 = vadd.f32 0.0, %v1964
  %v1966 = vpop.f32.mrb[0].mxu0
  %v1967 = vpop.f32.mrb[0].mxu0
  %v1968 = vadd.f32 0.0, %v1967
  %v1969 = vpop.f32.mrb[0].mxu0
  %1970 = vmatprep.mubr.bf16.mxu0 0
  %1971 = vmatmul.mubr.bf16.gmra.mrb[0].mxu0 %v1642
  %v1972 = vpop.f32.mrb[0].mxu0
  %v1973 = vadd.f32 0.0, %v1972
  %v1974 = vpop.f32.mrb[0].mxu0
  %v1975 = vpop.f32.mrb[0].mxu0
  %v1976 = vadd.f32 0.0, %v1975
  %v1977 = vpop.f32.mrb[0].mxu0
  %1978 = vmatprep.mubr.bf16.mxu0 0
  %1979 = vmatmul.mubr.bf16.gmra.mrb[0].mxu0 %v1645
  %v1980 = vpop.f32.mrb[0].mxu0
  %v1981 = vadd.f32 0.0, %v1980
  %v1982 = vpop.f32.mrb[0].mxu0
  %v1983 = vpop.f32.mrb[0].mxu0
  %v1984 = vadd.f32 0.0, %v1983
  %v1985 = vpop.f32.mrb[0].mxu0
  %1986 = vmatprep.mubr.bf16.mxu0 0
  %1987 = vmatmul.mubr.bf16.gmra.mrb[0].mxu0 %v1648
  %v1988 = vpop.f32.mrb[0].mxu0
  %v1989 = vadd.f32 0.0, %v1988
  %v1990 = vpop.f32.mrb[0].mxu0
  %v1991 = vpop.f32.mrb[0].mxu0
  %v1992 = vadd.f32 0.0, %v1991
  %v1993 = vpop.f32.mrb[0].mxu0
  %1994 = vmatprep.mubr.bf16.mxu0 0
  %1995 = vmatmul.mubr.bf16.gmra.mrb[0].mxu0 %v1651
  %v1996 = vpop.f32.mrb[0].mxu0
  %v1997 = vadd.f32 0.0, %v1996
  %v1998 = vpop.f32.mrb[0].mxu0
  %v1999 = vpop.f32.mrb[0].mxu0
  %v2000 = vadd.f32 0.0, %v1999
  %v2001 = vpop.f32.mrb[0].mxu0
  %2002 = vmatprep.mubr.bf16.mxu0 0
  %2003 = vmatmul.mubr.bf16.gmra.mrb[0].mxu0 %v1654
  %v2004 = vpop.f32.mrb[0].mxu0
  %v2005 = vadd.f32 0.0, %v2004
  %v2006 = vpop.f32.mrb[0].mxu0
  %v2007 = vpop.f32.mrb[0].mxu0
  %v2008 = vadd.f32 0.0, %v2007
  %v2009 = vpop.f32.mrb[0].mxu0
  %2010 = vmatprep.mubr.bf16.mxu0 0
  %2011 = vmatmul.mubr.bf16.gmra.mrb[0].mxu0 %v1657
  %v2012 = vpop.f32.mrb[0].mxu0
  %v2013 = vadd.f32 0.0, %v2012
  %v2014 = vpop.f32.mrb[0].mxu0
  %v2015 = vpop.f32.mrb[0].mxu0
  %v2016 = vadd.f32 0.0, %v2015
  %v2017 = vpop.f32.mrb[0].mxu0
  %2018 = vmatprep.mubr.bf16.mxu0 0
  %2019 = vmatmul.mubr.bf16.gmra.mrb[0].mxu0 %v1660
  %v2020 = vpop.f32.mrb[0].mxu0
  %v2021 = vadd.f32 0.0, %v2020
  %v2022 = vpop.f32.mrb[0].mxu0
  %v2023 = vpop.f32.mrb[0].mxu0
  %v2024 = vadd.f32 0.0, %v2023
  %v2025 = vpop.f32.mrb[0].mxu0
  %2026 = vmatprep.mubr.bf16.mxu0 0
  %2027 = vmatmul.mubr.bf16.gmra.mrb[0].mxu0 %v1663
  %v2028 = vpop.f32.mrb[0].mxu0
  %v2029 = vadd.f32 0.0, %v2028
  %v2030 = vpop.f32.mrb[0].mxu0
  %v2031 = vpop.f32.mrb[0].mxu0
  %v2032 = vadd.f32 0.0, %v2031
  %v2033 = vpop.f32.mrb[0].mxu0
  %2034 = vmatprep.mubr.bf16.mxu0 0
  %2035 = vmatmul.mubr.bf16.gmra.mrb[0].mxu0 %v1666
  %v2036 = vpop.f32.mrb[0].mxu0
  %v2037 = vadd.f32 0.0, %v2036
  %v2038 = vpop.f32.mrb[0].mxu0
  %v2039 = vpop.f32.mrb[0].mxu0
  %v2040 = vadd.f32 0.0, %v2039
  %v2041 = vpop.f32.mrb[0].mxu0
  %2042 = vmatprep.mubr.bf16.mxu0 0
  %2043 = vmatmul.mubr.bf16.gmra.mrb[0].mxu0 %v1669
  %v2044 = vpop.f32.mrb[0].mxu0
  %v2045 = vadd.f32 0.0, %v2044
  %v2046 = vpop.f32.mrb[0].mxu0
  %v2047 = vpop.f32.mrb[0].mxu0
  %v2048 = vadd.f32 0.0, %v2047
  %v2049 = vpop.f32.mrb[0].mxu0
  %2050 = vmatprep.mubr.bf16.mxu0 0
  %2051 = vmatmul.mubr.bf16.gmra.mrb[0].mxu0 %v1672
  %v2052 = vpop.f32.mrb[0].mxu0
  %v2053 = vadd.f32 0.0, %v2052
  %v2054 = vpop.f32.mrb[0].mxu0
  %v2055 = vpop.f32.mrb[0].mxu0
  %v2056 = vadd.f32 0.0, %v2055
  %v2057 = vpop.f32.mrb[0].mxu0
  %2058 = vmatprep.mubr.bf16.mxu0 0
  %2059 = vmatmul.mubr.bf16.gmra.mrb[0].mxu0 %v1675
  %v2060 = vpop.f32.mrb[0].mxu0
  %v2061 = vadd.f32 0.0, %v2060
  %v2062 = vpop.f32.mrb[0].mxu0
  %v2063 = vpop.f32.mrb[0].mxu0
  %v2064 = vadd.f32 0.0, %v2063
  %v2065 = vpop.f32.mrb[0].mxu0
  %2066 = vmatprep.mubr.bf16.mxu0 0
  %2067 = vmatmul.mubr.bf16.gmra.mrb[0].mxu0 %v1678
  %v2068 = vpop.f32.mrb[0].mxu0
  %v2069 = vadd.f32 0.0, %v2068
  %v2070 = vpop.f32.mrb[0].mxu0
  %v2071 = vpop.f32.mrb[0].mxu0
  %v2072 = vadd.f32 0.0, %v2071
  %v2073 = vpop.f32.mrb[0].mxu0
  %2074 = vmatprep.mubr.bf16.mxu0 0
  %2075 = vmatmul.mubr.bf16.gmra.mrb[0].mxu0 %v1681
  %v2076 = vpop.f32.mrb[0].mxu0
  %v2077 = vadd.f32 0.0, %v2076
  %v2078 = vpop.f32.mrb[0].mxu0
  %v2079 = vpop.f32.mrb[0].mxu0
  %v2080 = vadd.f32 0.0, %v2079
  %v2081 = vpop.f32.mrb[0].mxu0
  %2082 = vmatprep.mubr.bf16.mxu0 0
  %2083 = vmatmul.mubr.bf16.gmra.mrb[0].mxu0 %v1684
  %v2084 = vpop.f32.mrb[0].mxu0
  %v2085 = vadd.f32 0.0, %v2084
  %v2086 = vpop.f32.mrb[0].mxu0
  %v2087 = vpop.f32.mrb[0].mxu0
  %v2088 = vadd.f32 0.0, %v2087
  %v2089 = vpop.f32.mrb[0].mxu0
  %2090 = vmatprep.mubr.bf16.mxu0 0
  %2091 = vmatmul.mubr.bf16.gmra.mrb[0].mxu0 %v1687
  %v2092 = vpop.f32.mrb[0].mxu0
  %v2093 = vadd.f32 0.0, %v2092
  %v2094 = vpop.f32.mrb[0].mxu0
  %v2095 = vpop.f32.mrb[0].mxu0
  %v2096 = vadd.f32 0.0, %v2095
  %v2097 = vpop.f32.mrb[0].mxu0
  %2098 = vmatprep.mubr.bf16.mxu0 0
  %2099 = vmatmul.mubr.bf16.gmra.mrb[0].mxu0 %v1690
  %v2100 = vpop.f32.mrb[0].mxu0
  %v2101 = vadd.f32 0.0, %v2100
  %v2102 = vpop.f32.mrb[0].mxu0
  %v2103 = vpop.f32.mrb[0].mxu0
  %v2104 = vadd.f32 0.0, %v2103
  %v2105 = vpop.f32.mrb[0].mxu0
  %2106 = vmatprep.mubr.bf16.mxu0 0
  %2107 = vmatmul.mubr.bf16.gmra.mrb[0].mxu0 %v1693
  %v2108 = vpop.f32.mrb[0].mxu0
  %v2109 = vadd.f32 0.0, %v2108
  %v2110 = vpop.f32.mrb[0].mxu0
  %v2111 = vpop.f32.mrb[0].mxu0
  %v2112 = vadd.f32 0.0, %v2111
  %v2113 = vpop.f32.mrb[0].mxu0
  %2114 = vmatprep.mubr.bf16.mxu0 0
  %2115 = vmatmul.mubr.bf16.gmra.mrb[0].mxu0 %v1696
  %v2116 = vpop.f32.mrb[0].mxu0
  %v2117 = vadd.f32 0.0, %v2116
  %v2118 = vpop.f32.mrb[0].mxu0
  %v2119 = vpop.f32.mrb[0].mxu0
  %v2120 = vadd.f32 0.0, %v2119
  %v2121 = vpop.f32.mrb[0].mxu0
  %2122 = vdwg.mxu0
  %v2123 = vmax.f32 %v1069, %v1733
  %v2124 = vmax.f32 %v1070, %v1736
  %v2125 = vmax.f32 %v1071, %v1741
  %v2126 = vmax.f32 %v1072, %v1744
  %v2127 = vmax.f32 %v1073, %v1749
  %v2128 = vmax.f32 %v1074, %v1752
  %v2129 = vmax.f32 %v1075, %v1757
  %v2130 = vmax.f32 %v1076, %v1760
  %v2131 = vmax.f32 %v1077, %v1765
  %v2132 = vmax.f32 %v1078, %v1768
  %v2133 = vmax.f32 %v1079, %v1773
  %v2134 = vmax.f32 %v1080, %v1776
  %v2135 = vmax.f32 %v1081, %v1781
  %v2136 = vmax.f32 %v1082, %v1784
  %v2137 = vmax.f32 %v1083, %v1789
  %v2138 = vmax.f32 %v1084, %v1792
  %v2139 = vmax.f32 %v1085, %v1797
  %v2140 = vmax.f32 %v1086, %v1800
  %v2141 = vmax.f32 %v1087, %v1805
  %v2142 = vmax.f32 %v1088, %v1808
  %v2143 = vmax.f32 %v1089, %v1813
  %v2144 = vmax.f32 %v1090, %v1816
  %v2145 = vmax.f32 %v1091, %v1821
  %v2146 = vmax.f32 %v1092, %v1824
  %v2147 = vmax.f32 %v1093, %v1829
  %v2148 = vmax.f32 %v1094, %v1832
  %v2149 = vmax.f32 %v1095, %v1837
  %v2150 = vmax.f32 %v1096, %v1840
  %v2151 = vmax.f32 %v1097, %v1845
  %v2152 = vmax.f32 %v1098, %v1848
  %v2153 = vmax.f32 %v1099, %v1853
  %v2154 = vmax.f32 %v1100, %v1856
  %v2155 = vmax.f32 %v1101, %v1861
  %v2156 = vmax.f32 %v1102, %v1864
  %v2157 = vmax.f32 %v1103, %v1869
  %v2158 = vmax.f32 %v1104, %v1872
  %v2159 = vmax.f32 %v1105, %v1877
  %v2160 = vmax.f32 %v1106, %v1880
  %v2161 = vmax.f32 %v1107, %v1885
  %v2162 = vmax.f32 %v1108, %v1888
  %v2163 = vmax.f32 %v1109, %v1893
  %v2164 = vmax.f32 %v1110, %v1896
  %v2165 = vmax.f32 %v1111, %v1901
  %v2166 = vmax.f32 %v1112, %v1904
  %v2167 = vmax.f32 %v1113, %v1909
  %v2168 = vmax.f32 %v1114, %v1912
  %v2169 = vmax.f32 %v1115, %v1917
  %v2170 = vmax.f32 %v1116, %v1920
  %v2171 = vmax.f32 %v1117, %v1925
  %v2172 = vmax.f32 %v1118, %v1928
  %v2173 = vmax.f32 %v1119, %v1933
  %v2174 = vmax.f32 %v1120, %v1936
  %v2175 = vmax.f32 %v1121, %v1941
  %v2176 = vmax.f32 %v1122, %v1944
  %v2177 = vmax.f32 %v1123, %v1949
  %v2178 = vmax.f32 %v1124, %v1952
  %v2179 = vmax.f32 %v1125, %v1957
  %v2180 = vmax.f32 %v1126, %v1960
  %v2181 = vmax.f32 %v1127, %v1965
  %v2182 = vmax.f32 %v1128, %v1968
  %v2183 = vmax.f32 %v1129, %v1973
  %v2184 = vmax.f32 %v1130, %v1976
  %v2185 = vmax.f32 %v1131, %v1981
  %v2186 = vmax.f32 %v1132, %v1984
  %v2187 = vmax.f32 %v1133, %v1989
  %v2188 = vmax.f32 %v1134, %v1992
  %v2189 = vmax.f32 %v1135, %v1997
  %v2190 = vmax.f32 %v1136, %v2000
  %v2191 = vmax.f32 %v1137, %v2005
  %v2192 = vmax.f32 %v1138, %v2008
  %v2193 = vmax.f32 %v1139, %v2013
  %v2194 = vmax.f32 %v1140, %v2016
  %v2195 = vmax.f32 %v1141, %v2021
  %v2196 = vmax.f32 %v1142, %v2024
  %v2197 = vmax.f32 %v1143, %v2029
  %v2198 = vmax.f32 %v1144, %v2032
  %v2199 = vmax.f32 %v1145, %v2037
  %v2200 = vmax.f32 %v1146, %v2040
  %v2201 = vmax.f32 %v1147, %v2045
  %v2202 = vmax.f32 %v1148, %v2048
  %v2203 = vmax.f32 %v1149, %v2053
  %v2204 = vmax.f32 %v1150, %v2056
  %v2205 = vmax.f32 %v1151, %v2061
  %v2206 = vmax.f32 %v1152, %v2064
  %v2207 = vmax.f32 %v1153, %v2069
  %v2208 = vmax.f32 %v1154, %v2072
  %v2209 = vmax.f32 %v1155, %v2077
  %v2210 = vmax.f32 %v1156, %v2080
  %v2211 = vmax.f32 %v1157, %v2085
  %v2212 = vmax.f32 %v1158, %v2088
  %v2213 = vmax.f32 %v1159, %v2093
  %v2214 = vmax.f32 %v1160, %v2096
  %v2215 = vmax.f32 %v1161, %v2101
  %v2216 = vmax.f32 %v1162, %v2104
  %v2217 = vmax.f32 %v1163, %v2109
  %v2218 = vmax.f32 %v1164, %v2112
  %v2219 = vmax.f32 %v1165, %v2117
  %v2220 = vmax.f32 %v1166, %v2120
  %2221 = vst [vmem:[#allocation2] sm:$0xff] %v2123
  %2222 = vst [vmem:[#allocation2 + $0x8] sm:$0xff] %v2124
  %2223 = vst [vmem:[#allocation2 + $0x10] sm:$0xff] %v2125
  %2224 = vst [vmem:[#allocation2 + $0x18] sm:$0xff] %v2126
  %2225 = vst [vmem:[#allocation2 + $0x20] sm:$0xff] %v2127
  %2226 = vst [vmem:[#allocation2 + $0x28] sm:$0xff] %v2128
  %2227 = vst [vmem:[#allocation2 + $0x30] sm:$0xff] %v2129
  %2228 = vst [vmem:[#allocation2 + $0x38] sm:$0xff] %v2130
  %2229 = vst [vmem:[#allocation2 + $0x40] sm:$0xff] %v2131
  %2230 = vst [vmem:[#allocation2 + $0x48] sm:$0xff] %v2132
  %2231 = vst [vmem:[#allocation2 + $0x50] sm:$0xff] %v2133
  %2232 = vst [vmem:[#allocation2 + $0x58] sm:$0xff] %v2134
  %2233 = vst [vmem:[#allocation2 + $0x60] sm:$0xff] %v2135
  %2234 = vst [vmem:[#allocation2 + $0x68] sm:$0xff] %v2136
  %2235 = vst [vmem:[#allocation2 + $0x70] sm:$0xff] %v2137
  %2236 = vst [vmem:[#allocation2 + $0x78] sm:$0xff] %v2138
  %2237 = vst [vmem:[#allocation2 + $0x80] sm:$0xff] %v2139
  %2238 = vst [vmem:[#allocation2 + $0x88] sm:$0xff] %v2140
  %2239 = vst [vmem:[#allocation2 + $0x90] sm:$0xff] %v2141
  %2240 = vst [vmem:[#allocation2 + $0x98] sm:$0xff] %v2142
  %2241 = vst [vmem:[#allocation2 + $0xa0] sm:$0xff] %v2143
  %2242 = vst [vmem:[#allocation2 + $0xa8] sm:$0xff] %v2144
  %2243 = vst [vmem:[#allocation2 + $0xb0] sm:$0xff] %v2145
  %2244 = vst [vmem:[#allocation2 + $0xb8] sm:$0xff] %v2146
  %2245 = vst [vmem:[#allocation2 + $0xc0] sm:$0xff] %v2147
  %2246 = vst [vmem:[#allocation2 + $0xc8] sm:$0xff] %v2148
  %2247 = vst [vmem:[#allocation2 + $0xd0] sm:$0xff] %v2149
  %2248 = vst [vmem:[#allocation2 + $0xd8] sm:$0xff] %v2150
  %2249 = vst [vmem:[#allocation2 + $0xe0] sm:$0xff] %v2151
  %2250 = vst [vmem:[#allocation2 + $0xe8] sm:$0xff] %v2152
  %2251 = vst [vmem:[#allocation2 + $0xf0] sm:$0xff] %v2153
  %2252 = vst [vmem:[#allocation2 + $0xf8] sm:$0xff] %v2154
  %2253 = vst [vmem:[#allocation2 + $0x100] sm:$0xff] %v2155
  %2254 = vst [vmem:[#allocation2 + $0x108] sm:$0xff] %v2156
  %2255 = vst [vmem:[#allocation2 + $0x110] sm:$0xff] %v2157
  %2256 = vst [vmem:[#allocation2 + $0x118] sm:$0xff] %v2158
  %2257 = vst [vmem:[#allocation2 + $0x120] sm:$0xff] %v2159
  %2258 = vst [vmem:[#allocation2 + $0x128] sm:$0xff] %v2160
  %2259 = vst [vmem:[#allocation2 + $0x130] sm:$0xff] %v2161
  %2260 = vst [vmem:[#allocation2 + $0x138] sm:$0xff] %v2162
  %2261 = vst [vmem:[#allocation2 + $0x140] sm:$0xff] %v2163
  %2262 = vst [vmem:[#allocation2 + $0x148] sm:$0xff] %v2164
  %2263 = vst [vmem:[#allocation2 + $0x150] sm:$0xff] %v2165
  %2264 = vst [vmem:[#allocation2 + $0x158] sm:$0xff] %v2166
  %2265 = vst [vmem:[#allocation2 + $0x160] sm:$0xff] %v2167
  %2266 = vst [vmem:[#allocation2 + $0x168] sm:$0xff] %v2168
  %2267 = vst [vmem:[#allocation2 + $0x170] sm:$0xff] %v2169
  %2268 = vst [vmem:[#allocation2 + $0x178] sm:$0xff] %v2170
  %2269 = vst [vmem:[#allocation2 + $0x180] sm:$0xff] %v2171
  %2270 = vst [vmem:[#allocation2 + $0x188] sm:$0xff] %v2172
  %2271 = vst [vmem:[#allocation2 + $0x190] sm:$0xff] %v2173
  %2272 = vst [vmem:[#allocation2 + $0x198] sm:$0xff] %v2174
  %2273 = vst [vmem:[#allocation2 + $0x1a0] sm:$0xff] %v2175
  %2274 = vst [vmem:[#allocation2 + $0x1a8] sm:$0xff] %v2176
  %2275 = vst [vmem:[#allocation2 + $0x1b0] sm:$0xff] %v2177
  %2276 = vst [vmem:[#allocation2 + $0x1b8] sm:$0xff] %v2178
  %2277 = vst [vmem:[#allocation2 + $0x1c0] sm:$0xff] %v2179
  %2278 = vst [vmem:[#allocation2 + $0x1c8] sm:$0xff] %v2180
  %2279 = vst [vmem:[#allocation2 + $0x1d0] sm:$0xff] %v2181
  %2280 = vst [vmem:[#allocation2 + $0x1d8] sm:$0xff] %v2182
  %2281 = vst [vmem:[#allocation2 + $0x1e0] sm:$0xff] %v2183
  %2282 = vst [vmem:[#allocation2 + $0x1e8] sm:$0xff] %v2184
  %2283 = vst [vmem:[#allocation2 + $0x1f0] sm:$0xff] %v2185
  %2284 = vst [vmem:[#allocation2 + $0x1f8] sm:$0xff] %v2186
  %2285 = vst [vmem:[#allocation2 + $0x200] sm:$0xff] %v2187
  %2286 = vst [vmem:[#allocation2 + $0x208] sm:$0xff] %v2188
  %2287 = vst [vmem:[#allocation2 + $0x210] sm:$0xff] %v2189
  %2288 = vst [vmem:[#allocation2 + $0x218] sm:$0xff] %v2190
  %2289 = vst [vmem:[#allocation2 + $0x220] sm:$0xff] %v2191
  %2290 = vst [vmem:[#allocation2 + $0x228] sm:$0xff] %v2192
  %2291 = vst [vmem:[#allocation2 + $0x230] sm:$0xff] %v2193
  %2292 = vst [vmem:[#allocation2 + $0x238] sm:$0xff] %v2194
  %2293 = vst [vmem:[#allocation2 + $0x240] sm:$0xff] %v2195
  %2294 = vst [vmem:[#allocation2 + $0x248] sm:$0xff] %v2196
  %2295 = vst [vmem:[#allocation2 + $0x250] sm:$0xff] %v2197
  %2296 = vst [vmem:[#allocation2 + $0x258] sm:$0xff] %v2198
  %2297 = vst [vmem:[#allocation2 + $0x260] sm:$0xff] %v2199
  %2298 = vst [vmem:[#allocation2 + $0x268] sm:$0xff] %v2200
  %2299 = vst [vmem:[#allocation2 + $0x270] sm:$0xff] %v2201
  %2300 = vst [vmem:[#allocation2 + $0x278] sm:$0xff] %v2202
  %2301 = vst [vmem:[#allocation2 + $0x280] sm:$0xff] %v2203
  %2302 = vst [vmem:[#allocation2 + $0x288] sm:$0xff] %v2204
  %2303 = vst [vmem:[#allocation2 + $0x290] sm:$0xff] %v2205
  %2304 = vst [vmem:[#allocation2 + $0x298] sm:$0xff] %v2206
  %2305 = vst [vmem:[#allocation2 + $0x2a0] sm:$0xff] %v2207
  %2306 = vst [vmem:[#allocation2 + $0x2a8] sm:$0xff] %v2208
  %2307 = vst [vmem:[#allocation2 + $0x2b0] sm:$0xff] %v2209
  %2308 = vst [vmem:[#allocation2 + $0x2b8] sm:$0xff] %v2210
  %2309 = vst [vmem:[#allocation2 + $0x2c0] sm:$0xff] %v2211
  %2310 = vst [vmem:[#allocation2 + $0x2c8] sm:$0xff] %v2212
  %2311 = vst [vmem:[#allocation2 + $0x2d0] sm:$0xff] %v2213
  %2312 = vst [vmem:[#allocation2 + $0x2d8] sm:$0xff] %v2214
  %2313 = vst [vmem:[#allocation2 + $0x2e0] sm:$0xff] %v2215
  %2314 = vst [vmem:[#allocation2 + $0x2e8] sm:$0xff] %v2216
  %2315 = vst [vmem:[#allocation2 + $0x2f0] sm:$0xff] %v2217
  %2316 = vst [vmem:[#allocation2 + $0x2f8] sm:$0xff] %v2218
  %2317 = vst [vmem:[#allocation2 + $0x300] sm:$0xff] %v2219
  %2318 = vst [vmem:[#allocation2 + $0x308] sm:$0xff] %v2220
  %v2319 = vld [vmem:[#allocation2] sm:$0xff]
  %v2320 = vld [vmem:[#allocation2 + $0x8] sm:$0xff]
  %v2321 = vld [vmem:[#allocation2 + $0x10] sm:$0xff]
  %v2322 = vld [vmem:[#allocation2 + $0x18] sm:$0xff]
  %v2323 = vld [vmem:[#allocation2 + $0x20] sm:$0xff]
  %v2324 = vld [vmem:[#allocation2 + $0x28] sm:$0xff]
  %v2325 = vld [vmem:[#allocation2 + $0x30] sm:$0xff]
  %v2326 = vld [vmem:[#allocation2 + $0x38] sm:$0xff]
  %v2327 = vld [vmem:[#allocation2 + $0x40] sm:$0xff]
  %v2328 = vld [vmem:[#allocation2 + $0x48] sm:$0xff]
  %v2329 = vld [vmem:[#allocation2 + $0x50] sm:$0xff]
  %v2330 = vld [vmem:[#allocation2 + $0x58] sm:$0xff]
  %v2331 = vld [vmem:[#allocation2 + $0x60] sm:$0xff]
  %v2332 = vld [vmem:[#allocation2 + $0x68] sm:$0xff]
  %v2333 = vld [vmem:[#allocation2 + $0x70] sm:$0xff]
  %v2334 = vld [vmem:[#allocation2 + $0x78] sm:$0xff]
  %v2335 = vld [vmem:[#allocation2 + $0x80] sm:$0xff]
  %v2336 = vld [vmem:[#allocation2 + $0x88] sm:$0xff]
  %v2337 = vld [vmem:[#allocation2 + $0x90] sm:$0xff]
  %v2338 = vld [vmem:[#allocation2 + $0x98] sm:$0xff]
  %v2339 = vld [vmem:[#allocation2 + $0xa0] sm:$0xff]
  %v2340 = vld [vmem:[#allocation2 + $0xa8] sm:$0xff]
  %v2341 = vld [vmem:[#allocation2 + $0xb0] sm:$0xff]
  %v2342 = vld [vmem:[#allocation2 + $0xb8] sm:$0xff]
  %v2343 = vld [vmem:[#allocation2 + $0xc0] sm:$0xff]
  %v2344 = vld [vmem:[#allocation2 + $0xc8] sm:$0xff]
  %v2345 = vld [vmem:[#allocation2 + $0xd0] sm:$0xff]
  %v2346 = vld [vmem:[#allocation2 + $0xd8] sm:$0xff]
  %v2347 = vld [vmem:[#allocation2 + $0xe0] sm:$0xff]
  %v2348 = vld [vmem:[#allocation2 + $0xe8] sm:$0xff]
  %v2349 = vld [vmem:[#allocation2 + $0xf0] sm:$0xff]
  %v2350 = vld [vmem:[#allocation2 + $0xf8] sm:$0xff]
  %v2351 = vld [vmem:[#allocation2 + $0x100] sm:$0xff]
  %v2352 = vld [vmem:[#allocation2 + $0x108] sm:$0xff]
  %v2353 = vld [vmem:[#allocation2 + $0x110] sm:$0xff]
  %v2354 = vld [vmem:[#allocation2 + $0x118] sm:$0xff]
  %v2355 = vld [vmem:[#allocation2 + $0x120] sm:$0xff]
  %v2356 = vld [vmem:[#allocation2 + $0x128] sm:$0xff]
  %v2357 = vld [vmem:[#allocation2 + $0x130] sm:$0xff]
  %v2358 = vld [vmem:[#allocation2 + $0x138] sm:$0xff]
  %v2359 = vld [vmem:[#allocation2 + $0x140] sm:$0xff]
  %v2360 = vld [vmem:[#allocation2 + $0x148] sm:$0xff]
  %v2361 = vld [vmem:[#allocation2 + $0x150] sm:$0xff]
  %v2362 = vld [vmem:[#allocation2 + $0x158] sm:$0xff]
  %v2363 = vld [vmem:[#allocation2 + $0x160] sm:$0xff]
  %v2364 = vld [vmem:[#allocation2 + $0x168] sm:$0xff]
  %v2365 = vld [vmem:[#allocation2 + $0x170] sm:$0xff]
  %v2366 = vld [vmem:[#allocation2 + $0x178] sm:$0xff]
  %v2367 = vld [vmem:[#allocation2 + $0x180] sm:$0xff]
  %v2368 = vld [vmem:[#allocation2 + $0x188] sm:$0xff]
  %v2369 = vld [vmem:[#allocation2 + $0x190] sm:$0xff]
  %v2370 = vld [vmem:[#allocation2 + $0x198] sm:$0xff]
  %v2371 = vld [vmem:[#allocation2 + $0x1a0] sm:$0xff]
  %v2372 = vld [vmem:[#allocation2 + $0x1a8] sm:$0xff]
  %v2373 = vld [vmem:[#allocation2 + $0x1b0] sm:$0xff]
  %v2374 = vld [vmem:[#allocation2 + $0x1b8] sm:$0xff]
  %v2375 = vld [vmem:[#allocation2 + $0x1c0] sm:$0xff]
  %v2376 = vld [vmem:[#allocation2 + $0x1c8] sm:$0xff]
  %v2377 = vld [vmem:[#allocation2 + $0x1d0] sm:$0xff]
  %v2378 = vld [vmem:[#allocation2 + $0x1d8] sm:$0xff]
  %v2379 = vld [vmem:[#allocation2 + $0x1e0] sm:$0xff]
  %v2380 = vld [vmem:[#allocation2 + $0x1e8] sm:$0xff]
  %v2381 = vld [vmem:[#allocation2 + $0x1f0] sm:$0xff]
  %v2382 = vld [vmem:[#allocation2 + $0x1f8] sm:$0xff]
  %v2383 = vld [vmem:[#allocation2 + $0x200] sm:$0xff]
  %v2384 = vld [vmem:[#allocation2 + $0x208] sm:$0xff]
  %v2385 = vld [vmem:[#allocation2 + $0x210] sm:$0xff]
  %v2386 = vld [vmem:[#allocation2 + $0x218] sm:$0xff]
  %v2387 = vld [vmem:[#allocation2 + $0x220] sm:$0xff]
  %v2388 = vld [vmem:[#allocation2 + $0x228] sm:$0xff]
  %v2389 = vld [vmem:[#allocation2 + $0x230] sm:$0xff]
  %v2390 = vld [vmem:[#allocation2 + $0x238] sm:$0xff]
  %v2391 = vld [vmem:[#allocation2 + $0x240] sm:$0xff]
  %v2392 = vld [vmem:[#allocation2 + $0x248] sm:$0xff]
  %v2393 = vld [vmem:[#allocation2 + $0x250] sm:$0xff]
  %v2394 = vld [vmem:[#allocation2 + $0x258] sm:$0xff]
  %v2395 = vld [vmem:[#allocation2 + $0x260] sm:$0xff]
  %v2396 = vld [vmem:[#allocation2 + $0x268] sm:$0xff]
  %v2397 = vld [vmem:[#allocation2 + $0x270] sm:$0xff]
  %v2398 = vld [vmem:[#allocation2 + $0x278] sm:$0xff]
  %v2399 = vld [vmem:[#allocation2 + $0x280] sm:$0xff]
  %v2400 = vld [vmem:[#allocation2 + $0x288] sm:$0xff]
  %v2401 = vld [vmem:[#allocation2 + $0x290] sm:$0xff]
  %v2402 = vld [vmem:[#allocation2 + $0x298] sm:$0xff]
  %v2403 = vld [vmem:[#allocation2 + $0x2a0] sm:$0xff]
  %v2404 = vld [vmem:[#allocation2 + $0x2a8] sm:$0xff]
  %v2405 = vld [vmem:[#allocation2 + $0x2b0] sm:$0xff]
  %v2406 = vld [vmem:[#allocation2 + $0x2b8] sm:$0xff]
  %v2407 = vld [vmem:[#allocation2 + $0x2c0] sm:$0xff]
  %v2408 = vld [vmem:[#allocation2 + $0x2c8] sm:$0xff]
  %v2409 = vld [vmem:[#allocation2 + $0x2d0] sm:$0xff]
  %v2410 = vld [vmem:[#allocation2 + $0x2d8] sm:$0xff]
  %v2411 = vld [vmem:[#allocation2 + $0x2e0] sm:$0xff]
  %v2412 = vld [vmem:[#allocation2 + $0x2e8] sm:$0xff]
  %v2413 = vld [vmem:[#allocation2 + $0x2f0] sm:$0xff]
  %v2414 = vld [vmem:[#allocation2 + $0x2f8] sm:$0xff]
  %v2415 = vld [vmem:[#allocation2 + $0x300] sm:$0xff]
  %v2416 = vld [vmem:[#allocation2 + $0x308] sm:$0xff]
  %s2417 = scalar_lea.vmem %s0, 784
  %v2418 = vld [vmem:[%s2417] sm:$0xf]
  %v2419 = vld [vmem:[%s2417 + $0x4] sm:$0xf]
  %v2420 = vld [vmem:[%s2417 + $0x8] sm:$0xf]
  %v2421 = vld [vmem:[%s2417 + $0xc] sm:$0xf]
  %v2422 = vld [vmem:[%s2417 + $0x10] sm:$0xf]
  %v2423 = vld [vmem:[%s2417 + $0x14] sm:$0xf]
  %v2424 = vld [vmem:[%s2417 + $0x18] sm:$0xf]
  %v2425 = vld [vmem:[%s2417 + $0x1c] sm:$0xf]
  %v2426 = vld [vmem:[%s2417 + $0x20] sm:$0xf]
  %v2427 = vld [vmem:[%s2417 + $0x24] sm:$0xf]
  %v2428 = vld [vmem:[%s2417 + $0x28] sm:$0xf]
  %v2429 = vld [vmem:[%s2417 + $0x2c] sm:$0xf]
  %v2430 = vld [vmem:[%s2417 + $0x30] sm:$0xf]
  %v2431 = vld [vmem:[%s2417 + $0x34] sm:$0xf]
  %v2432 = vld [vmem:[%s2417 + $0x38] sm:$0xf]
  %v2433 = vld [vmem:[%s2417 + $0x3c] sm:$0xf]
  %v2434 = vld [vmem:[%s2417 + $0x40] sm:$0xf]
  %v2435 = vld [vmem:[%s2417 + $0x44] sm:$0xf]
  %v2436 = vld [vmem:[%s2417 + $0x48] sm:$0xf]
  %v2437 = vld [vmem:[%s2417 + $0x4c] sm:$0xf]
  %v2438 = vld [vmem:[%s2417 + $0x50] sm:$0xf]
  %v2439 = vld [vmem:[%s2417 + $0x54] sm:$0xf]
  %v2440 = vld [vmem:[%s2417 + $0x58] sm:$0xf]
  %v2441 = vld [vmem:[%s2417 + $0x5c] sm:$0xf]
  %v2442 = vld [vmem:[%s2417 + $0x60] sm:$0xf]
  %v2443 = vld [vmem:[%s2417 + $0x64] sm:$0xf]
  %v2444 = vld [vmem:[%s2417 + $0x68] sm:$0xf]
  %v2445 = vld [vmem:[%s2417 + $0x6c] sm:$0xf]
  %v2446 = vld [vmem:[%s2417 + $0x70] sm:$0xf]
  %v2447 = vld [vmem:[%s2417 + $0x74] sm:$0xf]
  %v2448 = vld [vmem:[%s2417 + $0x78] sm:$0xf]
  %v2449 = vld [vmem:[%s2417 + $0x7c] sm:$0xf]
  %v2450 = vld [vmem:[%s2417 + $0x80] sm:$0xf]
  %v2451 = vld [vmem:[%s2417 + $0x84] sm:$0xf]
  %v2452 = vld [vmem:[%s2417 + $0x88] sm:$0xf]
  %v2453 = vld [vmem:[%s2417 + $0x8c] sm:$0xf]
  %v2454 = vld [vmem:[%s2417 + $0x90] sm:$0xf]
  %v2455 = vld [vmem:[%s2417 + $0x94] sm:$0xf]
  %v2456 = vld [vmem:[%s2417 + $0x98] sm:$0xf]
  %v2457 = vld [vmem:[%s2417 + $0x9c] sm:$0xf]
  %v2458 = vld [vmem:[%s2417 + $0xa0] sm:$0xf]
  %v2459 = vld [vmem:[%s2417 + $0xa4] sm:$0xf]
  %v2460 = vld [vmem:[%s2417 + $0xa8] sm:$0xf]
  %v2461 = vld [vmem:[%s2417 + $0xac] sm:$0xf]
  %v2462 = vld [vmem:[%s2417 + $0xb0] sm:$0xf]
  %v2463 = vld [vmem:[%s2417 + $0xb4] sm:$0xf]
  %v2464 = vld [vmem:[%s2417 + $0xb8] sm:$0xf]
  %v2465 = vld [vmem:[%s2417 + $0xbc] sm:$0xf]
  %v2466 = vld [vmem:[%s2417 + $0xc0] sm:$0xf]
  %v2467 = vld [vmem:[%s2417 + $0xc4] sm:$0xf]
  %v2468 = vld [vmem:[%s2417 + $0xc8] sm:$0xf]
  %v2469 = vld [vmem:[%s2417 + $0xcc] sm:$0xf]
  %v2470 = vld [vmem:[%s2417 + $0xd0] sm:$0xf]
  %v2471 = vld [vmem:[%s2417 + $0xd4] sm:$0xf]
  %v2472 = vld [vmem:[%s2417 + $0xd8] sm:$0xf]
  %v2473 = vld [vmem:[%s2417 + $0xdc] sm:$0xf]
  %v2474 = vld [vmem:[%s2417 + $0xe0] sm:$0xf]
  %v2475 = vld [vmem:[%s2417 + $0xe4] sm:$0xf]
  %v2476 = vld [vmem:[%s2417 + $0xe8] sm:$0xf]
  %v2477 = vld [vmem:[%s2417 + $0xec] sm:$0xf]
  %v2478 = vld [vmem:[%s2417 + $0xf0] sm:$0xf]
  %v2479 = vld [vmem:[%s2417 + $0xf4] sm:$0xf]
  %v2480 = vld [vmem:[%s2417 + $0xf8] sm:$0xf]
  %v2481 = vld [vmem:[%s2417 + $0xfc] sm:$0xf]
  %v2482 = vld [vmem:[%s2417 + $0x100] sm:$0xf]
  %v2483 = vld [vmem:[%s2417 + $0x104] sm:$0xf]
  %v2484 = vld [vmem:[%s2417 + $0x108] sm:$0xf]
  %v2485 = vld [vmem:[%s2417 + $0x10c] sm:$0xf]
  %v2486 = vld [vmem:[%s2417 + $0x110] sm:$0xf]
  %v2487 = vld [vmem:[%s2417 + $0x114] sm:$0xf]
  %v2488 = vld [vmem:[%s2417 + $0x118] sm:$0xf]
  %v2489 = vld [vmem:[%s2417 + $0x11c] sm:$0xf]
  %v2490 = vld [vmem:[%s2417 + $0x120] sm:$0xf]
  %v2491 = vld [vmem:[%s2417 + $0x124] sm:$0xf]
  %v2492 = vld [vmem:[%s2417 + $0x128] sm:$0xf]
  %v2493 = vld [vmem:[%s2417 + $0x12c] sm:$0xf]
  %v2494 = vld [vmem:[%s2417 + $0x130] sm:$0xf]
  %v2495 = vld [vmem:[%s2417 + $0x134] sm:$0xf]
  %v2496 = vld [vmem:[%s2417 + $0x138] sm:$0xf]
  %v2497 = vld [vmem:[%s2417 + $0x13c] sm:$0xf]
  %v2498 = vld [vmem:[%s2417 + $0x140] sm:$0xf]
  %v2499 = vld [vmem:[%s2417 + $0x144] sm:$0xf]
  %v2500 = vld [vmem:[%s2417 + $0x148] sm:$0xf]
  %v2501 = vld [vmem:[%s2417 + $0x14c] sm:$0xf]
  %v2502 = vld [vmem:[%s2417 + $0x150] sm:$0xf]
  %v2503 = vld [vmem:[%s2417 + $0x154] sm:$0xf]
  %v2504 = vld [vmem:[%s2417 + $0x158] sm:$0xf]
  %v2505 = vld [vmem:[%s2417 + $0x15c] sm:$0xf]
  %v2506 = vld [vmem:[%s2417 + $0x160] sm:$0xf]
  %v2507 = vld [vmem:[%s2417 + $0x164] sm:$0xf]
  %v2508 = vld [vmem:[%s2417 + $0x168] sm:$0xf]
  %v2509 = vld [vmem:[%s2417 + $0x16c] sm:$0xf]
  %v2510 = vld [vmem:[%s2417 + $0x170] sm:$0xf]
  %v2511 = vld [vmem:[%s2417 + $0x174] sm:$0xf]
  %v2512 = vld [vmem:[%s2417 + $0x178] sm:$0xf]
  %v2513 = vld [vmem:[%s2417 + $0x17c] sm:$0xf]
  %v2514 = vld [vmem:[%s2417 + $0x180] sm:$0xf]
  %v2515 = vld [vmem:[%s2417 + $0x184] sm:$0xf]
  %v2516 = vld [vmem:[%s1] sm:$0xf]
  %v2517 = vld [vmem:[%s1 + $0x4] sm:$0xf]
  %v2518 = vld [vmem:[%s1 + $0x8] sm:$0xf]
  %v2519 = vld [vmem:[%s1 + $0xc] sm:$0xf]
  %v2520 = vld [vmem:[%s1 + $0x10] sm:$0xf]
  %v2521 = vld [vmem:[%s1 + $0x14] sm:$0xf]
  %v2522 = vld [vmem:[%s1 + $0x18] sm:$0xf]
  %v2523 = vld [vmem:[%s1 + $0x1c] sm:$0xf]
  %v2524 = vld [vmem:[%s1 + $0x20] sm:$0xf]
  %v2525 = vld [vmem:[%s1 + $0x24] sm:$0xf]
  %v2624 = vunpack.c.l.b16 %v2418
  %v2625 = vunpack.c.l.b16 %v2419
  %v2626 = vunpack.c.l.b16 %v2420
  %v2627 = vunpack.c.l.b16 %v2421
  %v2628 = vunpack.c.l.b16 %v2422
  %v2629 = vunpack.c.l.b16 %v2423
  %v2630 = vunpack.c.l.b16 %v2424
  %v2631 = vunpack.c.l.b16 %v2425
  %v2632 = vunpack.c.l.b16 %v2426
  %v2633 = vunpack.c.l.b16 %v2427
  %v2634 = vunpack.c.l.b16 %v2428
  %v2635 = vunpack.c.l.b16 %v2429
  %v2636 = vunpack.c.l.b16 %v2430
  %v2637 = vunpack.c.l.b16 %v2431
  %v2638 = vunpack.c.l.b16 %v2432
  %v2639 = vunpack.c.l.b16 %v2433
  %v2640 = vunpack.c.l.b16 %v2434
  %v2641 = vunpack.c.l.b16 %v2435
  %v2642 = vunpack.c.l.b16 %v2436
  %v2643 = vunpack.c.l.b16 %v2437
  %v2644 = vunpack.c.l.b16 %v2438
  %v2645 = vunpack.c.l.b16 %v2439
  %v2646 = vunpack.c.l.b16 %v2440
  %v2647 = vunpack.c.l.b16 %v2441
  %v2648 = vunpack.c.l.b16 %v2442
  %v2649 = vunpack.c.l.b16 %v2443
  %v2650 = vunpack.c.l.b16 %v2444
  %v2651 = vunpack.c.l.b16 %v2445
  %v2652 = vunpack.c.l.b16 %v2446
  %v2653 = vunpack.c.l.b16 %v2447
  %v2654 = vunpack.c.l.b16 %v2448
  %v2655 = vunpack.c.l.b16 %v2449
  %v2656 = vunpack.c.l.b16 %v2450
  %v2657 = vunpack.c.l.b16 %v2451
  %v2658 = vunpack.c.l.b16 %v2452
  %v2659 = vunpack.c.l.b16 %v2453
  %v2660 = vunpack.c.l.b16 %v2454
  %v2661 = vunpack.c.l.b16 %v2455
  %v2662 = vunpack.c.l.b16 %v2456
  %v2663 = vunpack.c.l.b16 %v2457
  %v2664 = vunpack.c.l.b16 %v2458
  %v2665 = vunpack.c.l.b16 %v2459
  %v2666 = vunpack.c.l.b16 %v2460
  %v2667 = vunpack.c.l.b16 %v2461
  %v2668 = vunpack.c.l.b16 %v2462
  %v2669 = vunpack.c.l.b16 %v2463
  %v2670 = vunpack.c.l.b16 %v2464
  %v2671 = vunpack.c.l.b16 %v2465
  %v2672 = vunpack.c.l.b16 %v2466
  %v2673 = vunpack.c.l.b16 %v2467
  %v2674 = vunpack.c.l.b16 %v2468
  %v2675 = vunpack.c.l.b16 %v2469
  %v2676 = vunpack.c.l.b16 %v2470
  %v2677 = vunpack.c.l.b16 %v2471
  %v2678 = vunpack.c.l.b16 %v2472
  %v2679 = vunpack.c.l.b16 %v2473
  %v2680 = vunpack.c.l.b16 %v2474
  %v2681 = vunpack.c.l.b16 %v2475
  %v2682 = vunpack.c.l.b16 %v2476
  %v2683 = vunpack.c.l.b16 %v2477
  %v2684 = vunpack.c.l.b16 %v2478
  %v2685 = vunpack.c.l.b16 %v2479
  %v2686 = vunpack.c.l.b16 %v2480
  %v2687 = vunpack.c.l.b16 %v2481
  %v2688 = vunpack.c.l.b16 %v2482
  %v2689 = vunpack.c.l.b16 %v2483
  %v2690 = vunpack.c.l.b16 %v2484
  %v2691 = vunpack.c.l.b16 %v2485
  %v2692 = vunpack.c.l.b16 %v2486
  %v2693 = vunpack.c.l.b16 %v2487
  %v2694 = vunpack.c.l.b16 %v2488
  %v2695 = vunpack.c.l.b16 %v2489
  %v2696 = vunpack.c.l.b16 %v2490
  %v2697 = vunpack.c.l.b16 %v2491
  %v2698 = vunpack.c.l.b16 %v2492
  %v2699 = vunpack.c.l.b16 %v2493
  %v2700 = vunpack.c.l.b16 %v2494
  %v2701 = vunpack.c.l.b16 %v2495
  %v2702 = vunpack.c.l.b16 %v2496
  %v2703 = vunpack.c.l.b16 %v2497
  %v2704 = vunpack.c.l.b16 %v2498
  %v2705 = vunpack.c.l.b16 %v2499
  %v2706 = vunpack.c.l.b16 %v2500
  %v2707 = vunpack.c.l.b16 %v2501
  %v2708 = vunpack.c.l.b16 %v2502
  %v2709 = vunpack.c.l.b16 %v2503
  %v2710 = vunpack.c.l.b16 %v2504
  %v2711 = vunpack.c.l.b16 %v2505
  %v2712 = vunpack.c.l.b16 %v2506
  %v2713 = vunpack.c.l.b16 %v2507
  %v2714 = vunpack.c.l.b16 %v2508
  %v2715 = vunpack.c.l.b16 %v2509
  %v2716 = vunpack.c.l.b16 %v2510
  %v2717 = vunpack.c.l.b16 %v2511
  %v2718 = vunpack.c.l.b16 %v2512
  %v2719 = vunpack.c.l.b16 %v2513
  %v2720 = vunpack.c.l.b16 %v2514
  %v2721 = vunpack.c.l.b16 %v2515
  %v2722 = vpack.c.b16 %v2625, %v2624
  %v2723 = vpack.c.b16 %v2627, %v2626
  %v2724 = vpack.c.b16 %v2629, %v2628
  %v2725 = vpack.c.b16 %v2631, %v2630
  %v2726 = vpack.c.b16 %v2633, %v2632
  %v2727 = vpack.c.b16 %v2635, %v2634
  %v2728 = vpack.c.b16 %v2637, %v2636
  %v2729 = vpack.c.b16 %v2639, %v2638
  %v2730 = vpack.c.b16 %v2641, %v2640
  %v2731 = vpack.c.b16 %v2643, %v2642
  %v2732 = vpack.c.b16 %v2645, %v2644
  %v2733 = vpack.c.b16 %v2647, %v2646
  %v2734 = vpack.c.b16 %v2649, %v2648
  %v2735 = vpack.c.b16 %v2651, %v2650
  %v2736 = vpack.c.b16 %v2653, %v2652
  %v2737 = vpack.c.b16 %v2655, %v2654
  %v2738 = vpack.c.b16 %v2657, %v2656
  %v2739 = vpack.c.b16 %v2659, %v2658
  %v2740 = vpack.c.b16 %v2661, %v2660
  %v2741 = vpack.c.b16 %v2663, %v2662
  %v2742 = vpack.c.b16 %v2665, %v2664
  %v2743 = vpack.c.b16 %v2667, %v2666
  %v2744 = vpack.c.b16 %v2669, %v2668
  %v2745 = vpack.c.b16 %v2671, %v2670
  %v2746 = vpack.c.b16 %v2673, %v2672
  %v2747 = vpack.c.b16 %v2675, %v2674
  %v2748 = vpack.c.b16 %v2677, %v2676
  %v2749 = vpack.c.b16 %v2679, %v2678
  %v2750 = vpack.c.b16 %v2681, %v2680
  %v2751 = vpack.c.b16 %v2683, %v2682
  %v2752 = vpack.c.b16 %v2685, %v2684
  %v2753 = vpack.c.b16 %v2687, %v2686
  %v2754 = vpack.c.b16 %v2689, %v2688
  %v2755 = vpack.c.b16 %v2691, %v2690
  %v2756 = vpack.c.b16 %v2693, %v2692
  %v2757 = vpack.c.b16 %v2695, %v2694
  %v2758 = vpack.c.b16 %v2697, %v2696
  %v2759 = vpack.c.b16 %v2699, %v2698
  %v2760 = vpack.c.b16 %v2701, %v2700
  %v2761 = vpack.c.b16 %v2703, %v2702
  %v2762 = vpack.c.b16 %v2705, %v2704
  %v2763 = vpack.c.b16 %v2707, %v2706
  %v2764 = vpack.c.b16 %v2709, %v2708
  %v2765 = vpack.c.b16 %v2711, %v2710
  %v2766 = vpack.c.b16 %v2713, %v2712
  %v2767 = vpack.c.b16 %v2715, %v2714
  %v2768 = vpack.c.b16 %v2717, %v2716
  %v2769 = vpack.c.b16 %v2719, %v2718
  %v2770 = vpack.c.b16 %v2721, %v2720
  %v2781 = vunpack.c.l.b16 %v2516
  %v2782 = vunpack.c.l.b16 %v2517
  %v2783 = vunpack.c.l.b16 %v2518
  %v2784 = vunpack.c.l.b16 %v2519
  %v2785 = vunpack.c.l.b16 %v2520
  %v2786 = vunpack.c.l.b16 %v2521
  %v2787 = vunpack.c.l.b16 %v2522
  %v2788 = vunpack.c.l.b16 %v2523
  %v2789 = vunpack.c.l.b16 %v2524
  %v2790 = vunpack.c.l.b16 %v2525
  %v2791 = vpack.c.b16 %v2782, %v2781
  %v2792 = vpack.c.b16 %v2784, %v2783
  %v2793 = vpack.c.b16 %v2786, %v2785
  %v2794 = vpack.c.b16 %v2788, %v2787
  %v2795 = vpack.c.b16 %v2790, %v2789
  %v2802 = vsel %vm398, %v2722, 0
  %v2805 = vsel %vm398, %v2723, 0
  %v2808 = vsel %vm398, %v2724, 0
  %v2811 = vsel %vm398, %v2725, 0
  %v2814 = vsel %vm398, %v2726, 0
  %v2817 = vsel %vm398, %v2727, 0
  %v2820 = vsel %vm398, %v2728, 0
  %v2823 = vsel %vm398, %v2729, 0
  %v2826 = vsel %vm398, %v2730, 0
  %v2829 = vsel %vm398, %v2731, 0
  %v2832 = vsel %vm398, %v2732, 0
  %v2835 = vsel %vm398, %v2733, 0
  %v2838 = vsel %vm398, %v2734, 0
  %v2841 = vsel %vm398, %v2735, 0
  %v2844 = vsel %vm398, %v2736, 0
  %v2847 = vsel %vm398, %v2737, 0
  %v2850 = vsel %vm398, %v2738, 0
  %v2853 = vsel %vm398, %v2739, 0
  %v2856 = vsel %vm398, %v2740, 0
  %v2859 = vsel %vm398, %v2741, 0
  %v2862 = vsel %vm398, %v2742, 0
  %v2865 = vsel %vm398, %v2743, 0
  %v2868 = vsel %vm398, %v2744, 0
  %v2871 = vsel %vm398, %v2745, 0
  %v2874 = vsel %vm398, %v2746, 0
  %v2877 = vsel %vm398, %v2747, 0
  %v2880 = vsel %vm398, %v2748, 0
  %v2883 = vsel %vm398, %v2749, 0
  %v2886 = vsel %vm398, %v2750, 0
  %v2889 = vsel %vm398, %v2751, 0
  %v2892 = vsel %vm398, %v2752, 0
  %v2895 = vsel %vm398, %v2753, 0
  %v2898 = vsel %vm398, %v2754, 0
  %v2901 = vsel %vm398, %v2755, 0
  %v2904 = vsel %vm398, %v2756, 0
  %v2907 = vsel %vm398, %v2757, 0
  %v2910 = vsel %vm398, %v2758, 0
  %v2913 = vsel %vm398, %v2759, 0
  %v2916 = vsel %vm398, %v2760, 0
  %v2919 = vsel %vm398, %v2761, 0
  %v2922 = vsel %vm398, %v2762, 0
  %v2925 = vsel %vm398, %v2763, 0
  %v2928 = vsel %vm398, %v2764, 0
  %v2931 = vsel %vm398, %v2765, 0
  %v2934 = vsel %vm398, %v2766, 0
  %v2937 = vsel %vm398, %v2767, 0
  %v2940 = vsel %vm398, %v2768, 0
  %v2943 = vsel %vm398, %v2769, 0
  %v2946 = vsel %vm398, %v2770, 0
  %2948 = vmatprep.subr.bf16.mxu0 0
  %2949 = vmatpush1.bf16.msra.mxu0 %v2791
  %2950 = vmatprep.subr.bf16.mxu0 0
  %2951 = vmatpush1.bf16.msra.mxu0 %v2792
  %2952 = vmatprep.subr.bf16.mxu0 0
  %2953 = vmatpush1.bf16.msra.mxu0 %v2793
  %2954 = vmatprep.subr.bf16.mxu0 0
  %2955 = vmatpush1.bf16.msra.mxu0 %v2794
  %2956 = vmatprep.subr.bf16.mxu0 0
  %2957 = vmatpush1.bf16.msra.mxu0 %v2795
  %2958 = vmatprep.subr.bf16.mxu0 0
  %2959 = vmatpush1.bf16.msra.mxu0 0
  %2960 = vmatprep.subr.bf16.mxu0 0
  %2961 = vmatpush1.bf16.msra.mxu0 0
  %2962 = vmatprep.subr.bf16.mxu0 0
  %2963 = vmatpush1.bf16.msra.mxu0 0
  %2964 = vmatprep.subr.bf16.mxu0 0
  %2965 = vmatpush1.bf16.msra.mxu0 0
  %2966 = vmatprep.subr.bf16.mxu0 0
  %2967 = vmatpush1.bf16.msra.mxu0 0
  %2968 = vmatprep.subr.bf16.mxu0 0
  %2969 = vmatpush1.bf16.msra.mxu0 0
  %2970 = vmatprep.subr.bf16.mxu0 0
  %2971 = vmatpush1.bf16.msra.mxu0 0
  %2972 = vmatprep.subr.bf16.mxu0 0
  %2973 = vmatpush1.bf16.msra.mxu0 0
  %2974 = vmatprep.subr.bf16.mxu0 0
  %2975 = vmatpush1.bf16.msra.mxu0 0
  %2976 = vmatprep.subr.bf16.mxu0 0
  %2977 = vmatpush1.bf16.msra.mxu0 0
  %2978 = vmatprep.subr.bf16.mxu0 0
  %2979 = vmatpush1.bf16.msra.mxu0 0
  %2980 = vmatprep.mubr.bf16.mxu0 0
  %2981 = vmatmul.mubr.bf16.gmra.mrb[0].mxu0 %v2802
  %v2982 = vpop.f32.mrb[0].mxu0
  %v2983 = vadd.f32 0.0, %v2982
  %v2984 = vpop.f32.mrb[0].mxu0
  %v2985 = vpop.f32.mrb[0].mxu0
  %v2986 = vadd.f32 0.0, %v2985
  %v2987 = vpop.f32.mrb[0].mxu0
  %2988 = vmatprep.mubr.bf16.mxu0 0
  %2989 = vmatmul.mubr.bf16.gmra.mrb[0].mxu0 %v2805
  %v2990 = vpop.f32.mrb[0].mxu0
  %v2991 = vadd.f32 0.0, %v2990
  %v2992 = vpop.f32.mrb[0].mxu0
  %v2993 = vpop.f32.mrb[0].mxu0
  %v2994 = vadd.f32 0.0, %v2993
  %v2995 = vpop.f32.mrb[0].mxu0
  %2996 = vmatprep.mubr.bf16.mxu0 0
  %2997 = vmatmul.mubr.bf16.gmra.mrb[0].mxu0 %v2808
  %v2998 = vpop.f32.mrb[0].mxu0
  %v2999 = vadd.f32 0.0, %v2998
  %v3000 = vpop.f32.mrb[0].mxu0
  %v3001 = vpop.f32.mrb[0].mxu0
  %v3002 = vadd.f32 0.0, %v3001
  %v3003 = vpop.f32.mrb[0].mxu0
  %3004 = vmatprep.mubr.bf16.mxu0 0
  %3005 = vmatmul.mubr.bf16.gmra.mrb[0].mxu0 %v2811
  %v3006 = vpop.f32.mrb[0].mxu0
  %v3007 = vadd.f32 0.0, %v3006
  %v3008 = vpop.f32.mrb[0].mxu0
  %v3009 = vpop.f32.mrb[0].mxu0
  %v3010 = vadd.f32 0.0, %v3009
  %v3011 = vpop.f32.mrb[0].mxu0
  %3012 = vmatprep.mubr.bf16.mxu0 0
  %3013 = vmatmul.mubr.bf16.gmra.mrb[0].mxu0 %v2814
  %v3014 = vpop.f32.mrb[0].mxu0
  %v3015 = vadd.f32 0.0, %v3014
  %v3016 = vpop.f32.mrb[0].mxu0
  %v3017 = vpop.f32.mrb[0].mxu0
  %v3018 = vadd.f32 0.0, %v3017
  %v3019 = vpop.f32.mrb[0].mxu0
  %3020 = vmatprep.mubr.bf16.mxu0 0
  %3021 = vmatmul.mubr.bf16.gmra.mrb[0].mxu0 %v2817
  %v3022 = vpop.f32.mrb[0].mxu0
  %v3023 = vadd.f32 0.0, %v3022
  %v3024 = vpop.f32.mrb[0].mxu0
  %v3025 = vpop.f32.mrb[0].mxu0
  %v3026 = vadd.f32 0.0, %v3025
  %v3027 = vpop.f32.mrb[0].mxu0
  %3028 = vmatprep.mubr.bf16.mxu0 0
  %3029 = vmatmul.mubr.bf16.gmra.mrb[0].mxu0 %v2820
  %v3030 = vpop.f32.mrb[0].mxu0
  %v3031 = vadd.f32 0.0, %v3030
  %v3032 = vpop.f32.mrb[0].mxu0
  %v3033 = vpop.f32.mrb[0].mxu0
  %v3034 = vadd.f32 0.0, %v3033
  %v3035 = vpop.f32.mrb[0].mxu0
  %3036 = vmatprep.mubr.bf16.mxu0 0
  %3037 = vmatmul.mubr.bf16.gmra.mrb[0].mxu0 %v2823
  %v3038 = vpop.f32.mrb[0].mxu0
  %v3039 = vadd.f32 0.0, %v3038
  %v3040 = vpop.f32.mrb[0].mxu0
  %v3041 = vpop.f32.mrb[0].mxu0
  %v3042 = vadd.f32 0.0, %v3041
  %v3043 = vpop.f32.mrb[0].mxu0
  %3044 = vmatprep.mubr.bf16.mxu0 0
  %3045 = vmatmul.mubr.bf16.gmra.mrb[0].mxu0 %v2826
  %v3046 = vpop.f32.mrb[0].mxu0
  %v3047 = vadd.f32 0.0, %v3046
  %v3048 = vpop.f32.mrb[0].mxu0
  %v3049 = vpop.f32.mrb[0].mxu0
  %v3050 = vadd.f32 0.0, %v3049
  %v3051 = vpop.f32.mrb[0].mxu0
  %3052 = vmatprep.mubr.bf16.mxu0 0
  %3053 = vmatmul.mubr.bf16.gmra.mrb[0].mxu0 %v2829
  %v3054 = vpop.f32.mrb[0].mxu0
  %v3055 = vadd.f32 0.0, %v3054
  %v3056 = vpop.f32.mrb[0].mxu0
  %v3057 = vpop.f32.mrb[0].mxu0
  %v3058 = vadd.f32 0.0, %v3057
  %v3059 = vpop.f32.mrb[0].mxu0
  %3060 = vmatprep.mubr.bf16.mxu0 0
  %3061 = vmatmul.mubr.bf16.gmra.mrb[0].mxu0 %v2832
  %v3062 = vpop.f32.mrb[0].mxu0
  %v3063 = vadd.f32 0.0, %v3062
  %v3064 = vpop.f32.mrb[0].mxu0
  %v3065 = vpop.f32.mrb[0].mxu0
  %v3066 = vadd.f32 0.0, %v3065
  %v3067 = vpop.f32.mrb[0].mxu0
  %3068 = vmatprep.mubr.bf16.mxu0 0
  %3069 = vmatmul.mubr.bf16.gmra.mrb[0].mxu0 %v2835
  %v3070 = vpop.f32.mrb[0].mxu0
  %v3071 = vadd.f32 0.0, %v3070
  %v3072 = vpop.f32.mrb[0].mxu0
  %v3073 = vpop.f32.mrb[0].mxu0
  %v3074 = vadd.f32 0.0, %v3073
  %v3075 = vpop.f32.mrb[0].mxu0
  %3076 = vmatprep.mubr.bf16.mxu0 0
  %3077 = vmatmul.mubr.bf16.gmra.mrb[0].mxu0 %v2838
  %v3078 = vpop.f32.mrb[0].mxu0
  %v3079 = vadd.f32 0.0, %v3078
  %v3080 = vpop.f32.mrb[0].mxu0
  %v3081 = vpop.f32.mrb[0].mxu0
  %v3082 = vadd.f32 0.0, %v3081
  %v3083 = vpop.f32.mrb[0].mxu0
  %3084 = vmatprep.mubr.bf16.mxu0 0
  %3085 = vmatmul.mubr.bf16.gmra.mrb[0].mxu0 %v2841
  %v3086 = vpop.f32.mrb[0].mxu0
  %v3087 = vadd.f32 0.0, %v3086
  %v3088 = vpop.f32.mrb[0].mxu0
  %v3089 = vpop.f32.mrb[0].mxu0
  %v3090 = vadd.f32 0.0, %v3089
  %v3091 = vpop.f32.mrb[0].mxu0
  %3092 = vmatprep.mubr.bf16.mxu0 0
  %3093 = vmatmul.mubr.bf16.gmra.mrb[0].mxu0 %v2844
  %v3094 = vpop.f32.mrb[0].mxu0
  %v3095 = vadd.f32 0.0, %v3094
  %v3096 = vpop.f32.mrb[0].mxu0
  %v3097 = vpop.f32.mrb[0].mxu0
  %v3098 = vadd.f32 0.0, %v3097
  %v3099 = vpop.f32.mrb[0].mxu0
  %3100 = vmatprep.mubr.bf16.mxu0 0
  %3101 = vmatmul.mubr.bf16.gmra.mrb[0].mxu0 %v2847
  %v3102 = vpop.f32.mrb[0].mxu0
  %v3103 = vadd.f32 0.0, %v3102
  %v3104 = vpop.f32.mrb[0].mxu0
  %v3105 = vpop.f32.mrb[0].mxu0
  %v3106 = vadd.f32 0.0, %v3105
  %v3107 = vpop.f32.mrb[0].mxu0
  %3108 = vmatprep.mubr.bf16.mxu0 0
  %3109 = vmatmul.mubr.bf16.gmra.mrb[0].mxu0 %v2850
  %v3110 = vpop.f32.mrb[0].mxu0
  %v3111 = vadd.f32 0.0, %v3110
  %v3112 = vpop.f32.mrb[0].mxu0
  %v3113 = vpop.f32.mrb[0].mxu0
  %v3114 = vadd.f32 0.0, %v3113
  %v3115 = vpop.f32.mrb[0].mxu0
  %3116 = vmatprep.mubr.bf16.mxu0 0
  %3117 = vmatmul.mubr.bf16.gmra.mrb[0].mxu0 %v2853
  %v3118 = vpop.f32.mrb[0].mxu0
  %v3119 = vadd.f32 0.0, %v3118
  %v3120 = vpop.f32.mrb[0].mxu0
  %v3121 = vpop.f32.mrb[0].mxu0
  %v3122 = vadd.f32 0.0, %v3121
  %v3123 = vpop.f32.mrb[0].mxu0
  %3124 = vmatprep.mubr.bf16.mxu0 0
  %3125 = vmatmul.mubr.bf16.gmra.mrb[0].mxu0 %v2856
  %v3126 = vpop.f32.mrb[0].mxu0
  %v3127 = vadd.f32 0.0, %v3126
  %v3128 = vpop.f32.mrb[0].mxu0
  %v3129 = vpop.f32.mrb[0].mxu0
  %v3130 = vadd.f32 0.0, %v3129
  %v3131 = vpop.f32.mrb[0].mxu0
  %3132 = vmatprep.mubr.bf16.mxu0 0
  %3133 = vmatmul.mubr.bf16.gmra.mrb[0].mxu0 %v2859
  %v3134 = vpop.f32.mrb[0].mxu0
  %v3135 = vadd.f32 0.0, %v3134
  %v3136 = vpop.f32.mrb[0].mxu0
  %v3137 = vpop.f32.mrb[0].mxu0
  %v3138 = vadd.f32 0.0, %v3137
  %v3139 = vpop.f32.mrb[0].mxu0
  %3140 = vmatprep.mubr.bf16.mxu0 0
  %3141 = vmatmul.mubr.bf16.gmra.mrb[0].mxu0 %v2862
  %v3142 = vpop.f32.mrb[0].mxu0
  %v3143 = vadd.f32 0.0, %v3142
  %v3144 = vpop.f32.mrb[0].mxu0
  %v3145 = vpop.f32.mrb[0].mxu0
  %v3146 = vadd.f32 0.0, %v3145
  %v3147 = vpop.f32.mrb[0].mxu0
  %3148 = vmatprep.mubr.bf16.mxu0 0
  %3149 = vmatmul.mubr.bf16.gmra.mrb[0].mxu0 %v2865
  %v3150 = vpop.f32.mrb[0].mxu0
  %v3151 = vadd.f32 0.0, %v3150
  %v3152 = vpop.f32.mrb[0].mxu0
  %v3153 = vpop.f32.mrb[0].mxu0
  %v3154 = vadd.f32 0.0, %v3153
  %v3155 = vpop.f32.mrb[0].mxu0
  %3156 = vmatprep.mubr.bf16.mxu0 0
  %3157 = vmatmul.mubr.bf16.gmra.mrb[0].mxu0 %v2868
  %v3158 = vpop.f32.mrb[0].mxu0
  %v3159 = vadd.f32 0.0, %v3158
  %v3160 = vpop.f32.mrb[0].mxu0
  %v3161 = vpop.f32.mrb[0].mxu0
  %v3162 = vadd.f32 0.0, %v3161
  %v3163 = vpop.f32.mrb[0].mxu0
  %3164 = vmatprep.mubr.bf16.mxu0 0
  %3165 = vmatmul.mubr.bf16.gmra.mrb[0].mxu0 %v2871
  %v3166 = vpop.f32.mrb[0].mxu0
  %v3167 = vadd.f32 0.0, %v3166
  %v3168 = vpop.f32.mrb[0].mxu0
  %v3169 = vpop.f32.mrb[0].mxu0
  %v3170 = vadd.f32 0.0, %v3169
  %v3171 = vpop.f32.mrb[0].mxu0
  %3172 = vmatprep.mubr.bf16.mxu0 0
  %3173 = vmatmul.mubr.bf16.gmra.mrb[0].mxu0 %v2874
  %v3174 = vpop.f32.mrb[0].mxu0
  %v3175 = vadd.f32 0.0, %v3174
  %v3176 = vpop.f32.mrb[0].mxu0
  %v3177 = vpop.f32.mrb[0].mxu0
  %v3178 = vadd.f32 0.0, %v3177
  %v3179 = vpop.f32.mrb[0].mxu0
  %3180 = vmatprep.mubr.bf16.mxu0 0
  %3181 = vmatmul.mubr.bf16.gmra.mrb[0].mxu0 %v2877
  %v3182 = vpop.f32.mrb[0].mxu0
  %v3183 = vadd.f32 0.0, %v3182
  %v3184 = vpop.f32.mrb[0].mxu0
  %v3185 = vpop.f32.mrb[0].mxu0
  %v3186 = vadd.f32 0.0, %v3185
  %v3187 = vpop.f32.mrb[0].mxu0
  %3188 = vmatprep.mubr.bf16.mxu0 0
  %3189 = vmatmul.mubr.bf16.gmra.mrb[0].mxu0 %v2880
  %v3190 = vpop.f32.mrb[0].mxu0
  %v3191 = vadd.f32 0.0, %v3190
  %v3192 = vpop.f32.mrb[0].mxu0
  %v3193 = vpop.f32.mrb[0].mxu0
  %v3194 = vadd.f32 0.0, %v3193
  %v3195 = vpop.f32.mrb[0].mxu0
  %3196 = vmatprep.mubr.bf16.mxu0 0
  %3197 = vmatmul.mubr.bf16.gmra.mrb[0].mxu0 %v2883
  %v3198 = vpop.f32.mrb[0].mxu0
  %v3199 = vadd.f32 0.0, %v3198
  %v3200 = vpop.f32.mrb[0].mxu0
  %v3201 = vpop.f32.mrb[0].mxu0
  %v3202 = vadd.f32 0.0, %v3201
  %v3203 = vpop.f32.mrb[0].mxu0
  %3204 = vmatprep.mubr.bf16.mxu0 0
  %3205 = vmatmul.mubr.bf16.gmra.mrb[0].mxu0 %v2886
  %v3206 = vpop.f32.mrb[0].mxu0
  %v3207 = vadd.f32 0.0, %v3206
  %v3208 = vpop.f32.mrb[0].mxu0
  %v3209 = vpop.f32.mrb[0].mxu0
  %v3210 = vadd.f32 0.0, %v3209
  %v3211 = vpop.f32.mrb[0].mxu0
  %3212 = vmatprep.mubr.bf16.mxu0 0
  %3213 = vmatmul.mubr.bf16.gmra.mrb[0].mxu0 %v2889
  %v3214 = vpop.f32.mrb[0].mxu0
  %v3215 = vadd.f32 0.0, %v3214
  %v3216 = vpop.f32.mrb[0].mxu0
  %v3217 = vpop.f32.mrb[0].mxu0
  %v3218 = vadd.f32 0.0, %v3217
  %v3219 = vpop.f32.mrb[0].mxu0
  %3220 = vmatprep.mubr.bf16.mxu0 0
  %3221 = vmatmul.mubr.bf16.gmra.mrb[0].mxu0 %v2892
  %v3222 = vpop.f32.mrb[0].mxu0
  %v3223 = vadd.f32 0.0, %v3222
  %v3224 = vpop.f32.mrb[0].mxu0
  %v3225 = vpop.f32.mrb[0].mxu0
  %v3226 = vadd.f32 0.0, %v3225
  %v3227 = vpop.f32.mrb[0].mxu0
  %3228 = vmatprep.mubr.bf16.mxu0 0
  %3229 = vmatmul.mubr.bf16.gmra.mrb[0].mxu0 %v2895
  %v3230 = vpop.f32.mrb[0].mxu0
  %v3231 = vadd.f32 0.0, %v3230
  %v3232 = vpop.f32.mrb[0].mxu0
  %v3233 = vpop.f32.mrb[0].mxu0
  %v3234 = vadd.f32 0.0, %v3233
  %v3235 = vpop.f32.mrb[0].mxu0
  %3236 = vmatprep.mubr.bf16.mxu0 0
  %3237 = vmatmul.mubr.bf16.gmra.mrb[0].mxu0 %v2898
  %v3238 = vpop.f32.mrb[0].mxu0
  %v3239 = vadd.f32 0.0, %v3238
  %v3240 = vpop.f32.mrb[0].mxu0
  %v3241 = vpop.f32.mrb[0].mxu0
  %v3242 = vadd.f32 0.0, %v3241
  %v3243 = vpop.f32.mrb[0].mxu0
  %3244 = vmatprep.mubr.bf16.mxu0 0
  %3245 = vmatmul.mubr.bf16.gmra.mrb[0].mxu0 %v2901
  %v3246 = vpop.f32.mrb[0].mxu0
  %v3247 = vadd.f32 0.0, %v3246
  %v3248 = vpop.f32.mrb[0].mxu0
  %v3249 = vpop.f32.mrb[0].mxu0
  %v3250 = vadd.f32 0.0, %v3249
  %v3251 = vpop.f32.mrb[0].mxu0
  %3252 = vmatprep.mubr.bf16.mxu0 0
  %3253 = vmatmul.mubr.bf16.gmra.mrb[0].mxu0 %v2904
  %v3254 = vpop.f32.mrb[0].mxu0
  %v3255 = vadd.f32 0.0, %v3254
  %v3256 = vpop.f32.mrb[0].mxu0
  %v3257 = vpop.f32.mrb[0].mxu0
  %v3258 = vadd.f32 0.0, %v3257
  %v3259 = vpop.f32.mrb[0].mxu0
  %3260 = vmatprep.mubr.bf16.mxu0 0
  %3261 = vmatmul.mubr.bf16.gmra.mrb[0].mxu0 %v2907
  %v3262 = vpop.f32.mrb[0].mxu0
  %v3263 = vadd.f32 0.0, %v3262
  %v3264 = vpop.f32.mrb[0].mxu0
  %v3265 = vpop.f32.mrb[0].mxu0
  %v3266 = vadd.f32 0.0, %v3265
  %v3267 = vpop.f32.mrb[0].mxu0
  %3268 = vmatprep.mubr.bf16.mxu0 0
  %3269 = vmatmul.mubr.bf16.gmra.mrb[0].mxu0 %v2910
  %v3270 = vpop.f32.mrb[0].mxu0
  %v3271 = vadd.f32 0.0, %v3270
  %v3272 = vpop.f32.mrb[0].mxu0
  %v3273 = vpop.f32.mrb[0].mxu0
  %v3274 = vadd.f32 0.0, %v3273
  %v3275 = vpop.f32.mrb[0].mxu0
  %3276 = vmatprep.mubr.bf16.mxu0 0
  %3277 = vmatmul.mubr.bf16.gmra.mrb[0].mxu0 %v2913
  %v3278 = vpop.f32.mrb[0].mxu0
  %v3279 = vadd.f32 0.0, %v3278
  %v3280 = vpop.f32.mrb[0].mxu0
  %v3281 = vpop.f32.mrb[0].mxu0
  %v3282 = vadd.f32 0.0, %v3281
  %v3283 = vpop.f32.mrb[0].mxu0
  %3284 = vmatprep.mubr.bf16.mxu0 0
  %3285 = vmatmul.mubr.bf16.gmra.mrb[0].mxu0 %v2916
  %v3286 = vpop.f32.mrb[0].mxu0
  %v3287 = vadd.f32 0.0, %v3286
  %v3288 = vpop.f32.mrb[0].mxu0
  %v3289 = vpop.f32.mrb[0].mxu0
  %v3290 = vadd.f32 0.0, %v3289
  %v3291 = vpop.f32.mrb[0].mxu0
  %3292 = vmatprep.mubr.bf16.mxu0 0
  %3293 = vmatmul.mubr.bf16.gmra.mrb[0].mxu0 %v2919
  %v3294 = vpop.f32.mrb[0].mxu0
  %v3295 = vadd.f32 0.0, %v3294
  %v3296 = vpop.f32.mrb[0].mxu0
  %v3297 = vpop.f32.mrb[0].mxu0
  %v3298 = vadd.f32 0.0, %v3297
  %v3299 = vpop.f32.mrb[0].mxu0
  %3300 = vmatprep.mubr.bf16.mxu0 0
  %3301 = vmatmul.mubr.bf16.gmra.mrb[0].mxu0 %v2922
  %v3302 = vpop.f32.mrb[0].mxu0
  %v3303 = vadd.f32 0.0, %v3302
  %v3304 = vpop.f32.mrb[0].mxu0
  %v3305 = vpop.f32.mrb[0].mxu0
  %v3306 = vadd.f32 0.0, %v3305
  %v3307 = vpop.f32.mrb[0].mxu0
  %3308 = vmatprep.mubr.bf16.mxu0 0
  %3309 = vmatmul.mubr.bf16.gmra.mrb[0].mxu0 %v2925
  %v3310 = vpop.f32.mrb[0].mxu0
  %v3311 = vadd.f32 0.0, %v3310
  %v3312 = vpop.f32.mrb[0].mxu0
  %v3313 = vpop.f32.mrb[0].mxu0
  %v3314 = vadd.f32 0.0, %v3313
  %v3315 = vpop.f32.mrb[0].mxu0
  %3316 = vmatprep.mubr.bf16.mxu0 0
  %3317 = vmatmul.mubr.bf16.gmra.mrb[0].mxu0 %v2928
  %v3318 = vpop.f32.mrb[0].mxu0
  %v3319 = vadd.f32 0.0, %v3318
  %v3320 = vpop.f32.mrb[0].mxu0
  %v3321 = vpop.f32.mrb[0].mxu0
  %v3322 = vadd.f32 0.0, %v3321
  %v3323 = vpop.f32.mrb[0].mxu0
  %3324 = vmatprep.mubr.bf16.mxu0 0
  %3325 = vmatmul.mubr.bf16.gmra.mrb[0].mxu0 %v2931
  %v3326 = vpop.f32.mrb[0].mxu0
  %v3327 = vadd.f32 0.0, %v3326
  %v3328 = vpop.f32.mrb[0].mxu0
  %v3329 = vpop.f32.mrb[0].mxu0
  %v3330 = vadd.f32 0.0, %v3329
  %v3331 = vpop.f32.mrb[0].mxu0
  %3332 = vmatprep.mubr.bf16.mxu0 0
  %3333 = vmatmul.mubr.bf16.gmra.mrb[0].mxu0 %v2934
  %v3334 = vpop.f32.mrb[0].mxu0
  %v3335 = vadd.f32 0.0, %v3334
  %v3336 = vpop.f32.mrb[0].mxu0
  %v3337 = vpop.f32.mrb[0].mxu0
  %v3338 = vadd.f32 0.0, %v3337
  %v3339 = vpop.f32.mrb[0].mxu0
  %3340 = vmatprep.mubr.bf16.mxu0 0
  %3341 = vmatmul.mubr.bf16.gmra.mrb[0].mxu0 %v2937
  %v3342 = vpop.f32.mrb[0].mxu0
  %v3343 = vadd.f32 0.0, %v3342
  %v3344 = vpop.f32.mrb[0].mxu0
  %v3345 = vpop.f32.mrb[0].mxu0
  %v3346 = vadd.f32 0.0, %v3345
  %v3347 = vpop.f32.mrb[0].mxu0
  %3348 = vmatprep.mubr.bf16.mxu0 0
  %3349 = vmatmul.mubr.bf16.gmra.mrb[0].mxu0 %v2940
  %v3350 = vpop.f32.mrb[0].mxu0
  %v3351 = vadd.f32 0.0, %v3350
  %v3352 = vpop.f32.mrb[0].mxu0
  %v3353 = vpop.f32.mrb[0].mxu0
  %v3354 = vadd.f32 0.0, %v3353
  %v3355 = vpop.f32.mrb[0].mxu0
  %3356 = vmatprep.mubr.bf16.mxu0 0
  %3357 = vmatmul.mubr.bf16.gmra.mrb[0].mxu0 %v2943
  %v3358 = vpop.f32.mrb[0].mxu0
  %v3359 = vadd.f32 0.0, %v3358
  %v3360 = vpop.f32.mrb[0].mxu0
  %v3361 = vpop.f32.mrb[0].mxu0
  %v3362 = vadd.f32 0.0, %v3361
  %v3363 = vpop.f32.mrb[0].mxu0
  %3364 = vmatprep.mubr.bf16.mxu0 0
  %3365 = vmatmul.mubr.bf16.gmra.mrb[0].mxu0 %v2946
  %v3366 = vpop.f32.mrb[0].mxu0
  %v3367 = vadd.f32 0.0, %v3366
  %v3368 = vpop.f32.mrb[0].mxu0
  %v3369 = vpop.f32.mrb[0].mxu0
  %v3370 = vadd.f32 0.0, %v3369
  %v3371 = vpop.f32.mrb[0].mxu0
  %3372 = vdwg.mxu0
  %v3373 = vmax.f32 %v2319, %v2983
  %v3374 = vmax.f32 %v2320, %v2986
  %v3375 = vmax.f32 %v2321, %v2991
  %v3376 = vmax.f32 %v2322, %v2994
  %v3377 = vmax.f32 %v2323, %v2999
  %v3378 = vmax.f32 %v2324, %v3002
  %v3379 = vmax.f32 %v2325, %v3007
  %v3380 = vmax.f32 %v2326, %v3010
  %v3381 = vmax.f32 %v2327, %v3015
  %v3382 = vmax.f32 %v2328, %v3018
  %v3383 = vmax.f32 %v2329, %v3023
  %v3384 = vmax.f32 %v2330, %v3026
  %v3385 = vmax.f32 %v2331, %v3031
  %v3386 = vmax.f32 %v2332, %v3034
  %v3387 = vmax.f32 %v2333, %v3039
  %v3388 = vmax.f32 %v2334, %v3042
  %v3389 = vmax.f32 %v2335, %v3047
  %v3390 = vmax.f32 %v2336, %v3050
  %v3391 = vmax.f32 %v2337, %v3055
  %v3392 = vmax.f32 %v2338, %v3058
  %v3393 = vmax.f32 %v2339, %v3063
  %v3394 = vmax.f32 %v2340, %v3066
  %v3395 = vmax.f32 %v2341, %v3071
  %v3396 = vmax.f32 %v2342, %v3074
  %v3397 = vmax.f32 %v2343, %v3079
  %v3398 = vmax.f32 %v2344, %v3082
  %v3399 = vmax.f32 %v2345, %v3087
  %v3400 = vmax.f32 %v2346, %v3090
  %v3401 = vmax.f32 %v2347, %v3095
  %v3402 = vmax.f32 %v2348, %v3098
  %v3403 = vmax.f32 %v2349, %v3103
  %v3404 = vmax.f32 %v2350, %v3106
  %v3405 = vmax.f32 %v2351, %v3111
  %v3406 = vmax.f32 %v2352, %v3114
  %v3407 = vmax.f32 %v2353, %v3119
  %v3408 = vmax.f32 %v2354, %v3122
  %v3409 = vmax.f32 %v2355, %v3127
  %v3410 = vmax.f32 %v2356, %v3130
  %v3411 = vmax.f32 %v2357, %v3135
  %v3412 = vmax.f32 %v2358, %v3138
  %v3413 = vmax.f32 %v2359, %v3143
  %v3414 = vmax.f32 %v2360, %v3146
  %v3415 = vmax.f32 %v2361, %v3151
  %v3416 = vmax.f32 %v2362, %v3154
  %v3417 = vmax.f32 %v2363, %v3159
  %v3418 = vmax.f32 %v2364, %v3162
  %v3419 = vmax.f32 %v2365, %v3167
  %v3420 = vmax.f32 %v2366, %v3170
  %v3421 = vmax.f32 %v2367, %v3175
  %v3422 = vmax.f32 %v2368, %v3178
  %v3423 = vmax.f32 %v2369, %v3183
  %v3424 = vmax.f32 %v2370, %v3186
  %v3425 = vmax.f32 %v2371, %v3191
  %v3426 = vmax.f32 %v2372, %v3194
  %v3427 = vmax.f32 %v2373, %v3199
  %v3428 = vmax.f32 %v2374, %v3202
  %v3429 = vmax.f32 %v2375, %v3207
  %v3430 = vmax.f32 %v2376, %v3210
  %v3431 = vmax.f32 %v2377, %v3215
  %v3432 = vmax.f32 %v2378, %v3218
  %v3433 = vmax.f32 %v2379, %v3223
  %v3434 = vmax.f32 %v2380, %v3226
  %v3435 = vmax.f32 %v2381, %v3231
  %v3436 = vmax.f32 %v2382, %v3234
  %v3437 = vmax.f32 %v2383, %v3239
  %v3438 = vmax.f32 %v2384, %v3242
  %v3439 = vmax.f32 %v2385, %v3247
  %v3440 = vmax.f32 %v2386, %v3250
  %v3441 = vmax.f32 %v2387, %v3255
  %v3442 = vmax.f32 %v2388, %v3258
  %v3443 = vmax.f32 %v2389, %v3263
  %v3444 = vmax.f32 %v2390, %v3266
  %v3445 = vmax.f32 %v2391, %v3271
  %v3446 = vmax.f32 %v2392, %v3274
  %v3447 = vmax.f32 %v2393, %v3279
  %v3448 = vmax.f32 %v2394, %v3282
  %v3449 = vmax.f32 %v2395, %v3287
  %v3450 = vmax.f32 %v2396, %v3290
  %v3451 = vmax.f32 %v2397, %v3295
  %v3452 = vmax.f32 %v2398, %v3298
  %v3453 = vmax.f32 %v2399, %v3303
  %v3454 = vmax.f32 %v2400, %v3306
  %v3455 = vmax.f32 %v2401, %v3311
  %v3456 = vmax.f32 %v2402, %v3314
  %v3457 = vmax.f32 %v2403, %v3319
  %v3458 = vmax.f32 %v2404, %v3322
  %v3459 = vmax.f32 %v2405, %v3327
  %v3460 = vmax.f32 %v2406, %v3330
  %v3461 = vmax.f32 %v2407, %v3335
  %v3462 = vmax.f32 %v2408, %v3338
  %v3463 = vmax.f32 %v2409, %v3343
  %v3464 = vmax.f32 %v2410, %v3346
  %v3465 = vmax.f32 %v2411, %v3351
  %v3466 = vmax.f32 %v2412, %v3354
  %v3467 = vmax.f32 %v2413, %v3359
  %v3468 = vmax.f32 %v2414, %v3362
  %v3469 = vmax.f32 %v2415, %v3367
  %v3470 = vmax.f32 %v2416, %v3370
  %3471 = vst [vmem:[#allocation2] sm:$0xff] %v3373
  %3472 = vst [vmem:[#allocation2 + $0x8] sm:$0xff] %v3374
  %3473 = vst [vmem:[#allocation2 + $0x10] sm:$0xff] %v3375
  %3474 = vst [vmem:[#allocation2 + $0x18] sm:$0xff] %v3376
  %3475 = vst [vmem:[#allocation2 + $0x20] sm:$0xff] %v3377
  %3476 = vst [vmem:[#allocation2 + $0x28] sm:$0xff] %v3378
  %3477 = vst [vmem:[#allocation2 + $0x30] sm:$0xff] %v3379
  %3478 = vst [vmem:[#allocation2 + $0x38] sm:$0xff] %v3380
  %3479 = vst [vmem:[#allocation2 + $0x40] sm:$0xff] %v3381
  %3480 = vst [vmem:[#allocation2 + $0x48] sm:$0xff] %v3382
  %3481 = vst [vmem:[#allocation2 + $0x50] sm:$0xff] %v3383
  %3482 = vst [vmem:[#allocation2 + $0x58] sm:$0xff] %v3384
  %3483 = vst [vmem:[#allocation2 + $0x60] sm:$0xff] %v3385
  %3484 = vst [vmem:[#allocation2 + $0x68] sm:$0xff] %v3386
  %3485 = vst [vmem:[#allocation2 + $0x70] sm:$0xff] %v3387
  %3486 = vst [vmem:[#allocation2 + $0x78] sm:$0xff] %v3388
  %3487 = vst [vmem:[#allocation2 + $0x80] sm:$0xff] %v3389
  %3488 = vst [vmem:[#allocation2 + $0x88] sm:$0xff] %v3390
  %3489 = vst [vmem:[#allocation2 + $0x90] sm:$0xff] %v3391
  %3490 = vst [vmem:[#allocation2 + $0x98] sm:$0xff] %v3392
  %3491 = vst [vmem:[#allocation2 + $0xa0] sm:$0xff] %v3393
  %3492 = vst [vmem:[#allocation2 + $0xa8] sm:$0xff] %v3394
  %3493 = vst [vmem:[#allocation2 + $0xb0] sm:$0xff] %v3395
  %3494 = vst [vmem:[#allocation2 + $0xb8] sm:$0xff] %v3396
  %3495 = vst [vmem:[#allocation2 + $0xc0] sm:$0xff] %v3397
  %3496 = vst [vmem:[#allocation2 + $0xc8] sm:$0xff] %v3398
  %3497 = vst [vmem:[#allocation2 + $0xd0] sm:$0xff] %v3399
  %3498 = vst [vmem:[#allocation2 + $0xd8] sm:$0xff] %v3400
  %3499 = vst [vmem:[#allocation2 + $0xe0] sm:$0xff] %v3401
  %3500 = vst [vmem:[#allocation2 + $0xe8] sm:$0xff] %v3402
  %3501 = vst [vmem:[#allocation2 + $0xf0] sm:$0xff] %v3403
  %3502 = vst [vmem:[#allocation2 + $0xf8] sm:$0xff] %v3404
  %3503 = vst [vmem:[#allocation2 + $0x100] sm:$0xff] %v3405
  %3504 = vst [vmem:[#allocation2 + $0x108] sm:$0xff] %v3406
  %3505 = vst [vmem:[#allocation2 + $0x110] sm:$0xff] %v3407
  %3506 = vst [vmem:[#allocation2 + $0x118] sm:$0xff] %v3408
  %3507 = vst [vmem:[#allocation2 + $0x120] sm:$0xff] %v3409
  %3508 = vst [vmem:[#allocation2 + $0x128] sm:$0xff] %v3410
  %3509 = vst [vmem:[#allocation2 + $0x130] sm:$0xff] %v3411
  %3510 = vst [vmem:[#allocation2 + $0x138] sm:$0xff] %v3412
  %3511 = vst [vmem:[#allocation2 + $0x140] sm:$0xff] %v3413
  %3512 = vst [vmem:[#allocation2 + $0x148] sm:$0xff] %v3414
  %3513 = vst [vmem:[#allocation2 + $0x150] sm:$0xff] %v3415
  %3514 = vst [vmem:[#allocation2 + $0x158] sm:$0xff] %v3416
  %3515 = vst [vmem:[#allocation2 + $0x160] sm:$0xff] %v3417
  %3516 = vst [vmem:[#allocation2 + $0x168] sm:$0xff] %v3418
  %3517 = vst [vmem:[#allocation2 + $0x170] sm:$0xff] %v3419
  %3518 = vst [vmem:[#allocation2 + $0x178] sm:$0xff] %v3420
  %3519 = vst [vmem:[#allocation2 + $0x180] sm:$0xff] %v3421
  %3520 = vst [vmem:[#allocation2 + $0x188] sm:$0xff] %v3422
  %3521 = vst [vmem:[#allocation2 + $0x190] sm:$0xff] %v3423
  %3522 = vst [vmem:[#allocation2 + $0x198] sm:$0xff] %v3424
  %3523 = vst [vmem:[#allocation2 + $0x1a0] sm:$0xff] %v3425
  %3524 = vst [vmem:[#allocation2 + $0x1a8] sm:$0xff] %v3426
  %3525 = vst [vmem:[#allocation2 + $0x1b0] sm:$0xff] %v3427
  %3526 = vst [vmem:[#allocation2 + $0x1b8] sm:$0xff] %v3428
  %3527 = vst [vmem:[#allocation2 + $0x1c0] sm:$0xff] %v3429
  %3528 = vst [vmem:[#allocation2 + $0x1c8] sm:$0xff] %v3430
  %3529 = vst [vmem:[#allocation2 + $0x1d0] sm:$0xff] %v3431
  %3530 = vst [vmem:[#allocation2 + $0x1d8] sm:$0xff] %v3432
  %3531 = vst [vmem:[#allocation2 + $0x1e0] sm:$0xff] %v3433
  %3532 = vst [vmem:[#allocation2 + $0x1e8] sm:$0xff] %v3434
  %3533 = vst [vmem:[#allocation2 + $0x1f0] sm:$0xff] %v3435
  %3534 = vst [vmem:[#allocation2 + $0x1f8] sm:$0xff] %v3436
  %3535 = vst [vmem:[#allocation2 + $0x200] sm:$0xff] %v3437
  %3536 = vst [vmem:[#allocation2 + $0x208] sm:$0xff] %v3438
  %3537 = vst [vmem:[#allocation2 + $0x210] sm:$0xff] %v3439
  %3538 = vst [vmem:[#allocation2 + $0x218] sm:$0xff] %v3440
  %3539 = vst [vmem:[#allocation2 + $0x220] sm:$0xff] %v3441
  %3540 = vst [vmem:[#allocation2 + $0x228] sm:$0xff] %v3442
  %3541 = vst [vmem:[#allocation2 + $0x230] sm:$0xff] %v3443
  %3542 = vst [vmem:[#allocation2 + $0x238] sm:$0xff] %v3444
  %3543 = vst [vmem:[#allocation2 + $0x240] sm:$0xff] %v3445
  %3544 = vst [vmem:[#allocation2 + $0x248] sm:$0xff] %v3446
  %3545 = vst [vmem:[#allocation2 + $0x250] sm:$0xff] %v3447
  %3546 = vst [vmem:[#allocation2 + $0x258] sm:$0xff] %v3448
  %3547 = vst [vmem:[#allocation2 + $0x260] sm:$0xff] %v3449
  %3548 = vst [vmem:[#allocation2 + $0x268] sm:$0xff] %v3450
  %3549 = vst [vmem:[#allocation2 + $0x270] sm:$0xff] %v3451
  %3550 = vst [vmem:[#allocation2 + $0x278] sm:$0xff] %v3452
  %3551 = vst [vmem:[#allocation2 + $0x280] sm:$0xff] %v3453
  %3552 = vst [vmem:[#allocation2 + $0x288] sm:$0xff] %v3454
  %3553 = vst [vmem:[#allocation2 + $0x290] sm:$0xff] %v3455
  %3554 = vst [vmem:[#allocation2 + $0x298] sm:$0xff] %v3456
  %3555 = vst [vmem:[#allocation2 + $0x2a0] sm:$0xff] %v3457
  %3556 = vst [vmem:[#allocation2 + $0x2a8] sm:$0xff] %v3458
  %3557 = vst [vmem:[#allocation2 + $0x2b0] sm:$0xff] %v3459
  %3558 = vst [vmem:[#allocation2 + $0x2b8] sm:$0xff] %v3460
  %3559 = vst [vmem:[#allocation2 + $0x2c0] sm:$0xff] %v3461
  %3560 = vst [vmem:[#allocation2 + $0x2c8] sm:$0xff] %v3462
  %3561 = vst [vmem:[#allocation2 + $0x2d0] sm:$0xff] %v3463
  %3562 = vst [vmem:[#allocation2 + $0x2d8] sm:$0xff] %v3464
  %3563 = vst [vmem:[#allocation2 + $0x2e0] sm:$0xff] %v3465
  %3564 = vst [vmem:[#allocation2 + $0x2e8] sm:$0xff] %v3466
  %3565 = vst [vmem:[#allocation2 + $0x2f0] sm:$0xff] %v3467
  %3566 = vst [vmem:[#allocation2 + $0x2f8] sm:$0xff] %v3468
  %3567 = vst [vmem:[#allocation2 + $0x300] sm:$0xff] %v3469
  %3568 = vst [vmem:[#allocation2 + $0x308] sm:$0xff] %v3470
  %v3569 = vld [vmem:[#allocation2] sm:$0xff]
  %v3570 = vld [vmem:[#allocation2 + $0x8] sm:$0xff]
  %v3571 = vld [vmem:[#allocation2 + $0x10] sm:$0xff]
  %v3572 = vld [vmem:[#allocation2 + $0x18] sm:$0xff]
  %v3573 = vld [vmem:[#allocation2 + $0x20] sm:$0xff]
  %v3574 = vld [vmem:[#allocation2 + $0x28] sm:$0xff]
  %v3575 = vld [vmem:[#allocation2 + $0x30] sm:$0xff]
  %v3576 = vld [vmem:[#allocation2 + $0x38] sm:$0xff]
  %v3577 = vld [vmem:[#allocation2 + $0x40] sm:$0xff]
  %v3578 = vld [vmem:[#allocation2 + $0x48] sm:$0xff]
  %v3579 = vld [vmem:[#allocation2 + $0x50] sm:$0xff]
  %v3580 = vld [vmem:[#allocation2 + $0x58] sm:$0xff]
  %v3581 = vld [vmem:[#allocation2 + $0x60] sm:$0xff]
  %v3582 = vld [vmem:[#allocation2 + $0x68] sm:$0xff]
  %v3583 = vld [vmem:[#allocation2 + $0x70] sm:$0xff]
  %v3584 = vld [vmem:[#allocation2 + $0x78] sm:$0xff]
  %v3585 = vld [vmem:[#allocation2 + $0x80] sm:$0xff]
  %v3586 = vld [vmem:[#allocation2 + $0x88] sm:$0xff]
  %v3587 = vld [vmem:[#allocation2 + $0x90] sm:$0xff]
  %v3588 = vld [vmem:[#allocation2 + $0x98] sm:$0xff]
  %v3589 = vld [vmem:[#allocation2 + $0xa0] sm:$0xff]
  %v3590 = vld [vmem:[#allocation2 + $0xa8] sm:$0xff]
  %v3591 = vld [vmem:[#allocation2 + $0xb0] sm:$0xff]
  %v3592 = vld [vmem:[#allocation2 + $0xb8] sm:$0xff]
  %v3593 = vld [vmem:[#allocation2 + $0xc0] sm:$0xff]
  %v3594 = vld [vmem:[#allocation2 + $0xc8] sm:$0xff]
  %v3595 = vld [vmem:[#allocation2 + $0xd0] sm:$0xff]
  %v3596 = vld [vmem:[#allocation2 + $0xd8] sm:$0xff]
  %v3597 = vld [vmem:[#allocation2 + $0xe0] sm:$0xff]
  %v3598 = vld [vmem:[#allocation2 + $0xe8] sm:$0xff]
  %v3599 = vld [vmem:[#allocation2 + $0xf0] sm:$0xff]
  %v3600 = vld [vmem:[#allocation2 + $0xf8] sm:$0xff]
  %v3601 = vld [vmem:[#allocation2 + $0x100] sm:$0xff]
  %v3602 = vld [vmem:[#allocation2 + $0x108] sm:$0xff]
  %v3603 = vld [vmem:[#allocation2 + $0x110] sm:$0xff]
  %v3604 = vld [vmem:[#allocation2 + $0x118] sm:$0xff]
  %v3605 = vld [vmem:[#allocation2 + $0x120] sm:$0xff]
  %v3606 = vld [vmem:[#allocation2 + $0x128] sm:$0xff]
  %v3607 = vld [vmem:[#allocation2 + $0x130] sm:$0xff]
  %v3608 = vld [vmem:[#allocation2 + $0x138] sm:$0xff]
  %v3609 = vld [vmem:[#allocation2 + $0x140] sm:$0xff]
  %v3610 = vld [vmem:[#allocation2 + $0x148] sm:$0xff]
  %v3611 = vld [vmem:[#allocation2 + $0x150] sm:$0xff]
  %v3612 = vld [vmem:[#allocation2 + $0x158] sm:$0xff]
  %v3613 = vld [vmem:[#allocation2 + $0x160] sm:$0xff]
  %v3614 = vld [vmem:[#allocation2 + $0x168] sm:$0xff]
  %v3615 = vld [vmem:[#allocation2 + $0x170] sm:$0xff]
  %v3616 = vld [vmem:[#allocation2 + $0x178] sm:$0xff]
  %v3617 = vld [vmem:[#allocation2 + $0x180] sm:$0xff]
  %v3618 = vld [vmem:[#allocation2 + $0x188] sm:$0xff]
  %v3619 = vld [vmem:[#allocation2 + $0x190] sm:$0xff]
  %v3620 = vld [vmem:[#allocation2 + $0x198] sm:$0xff]
  %v3621 = vld [vmem:[#allocation2 + $0x1a0] sm:$0xff]
  %v3622 = vld [vmem:[#allocation2 + $0x1a8] sm:$0xff]
  %v3623 = vld [vmem:[#allocation2 + $0x1b0] sm:$0xff]
  %v3624 = vld [vmem:[#allocation2 + $0x1b8] sm:$0xff]
  %v3625 = vld [vmem:[#allocation2 + $0x1c0] sm:$0xff]
  %v3626 = vld [vmem:[#allocation2 + $0x1c8] sm:$0xff]
  %v3627 = vld [vmem:[#allocation2 + $0x1d0] sm:$0xff]
  %v3628 = vld [vmem:[#allocation2 + $0x1d8] sm:$0xff]
  %v3629 = vld [vmem:[#allocation2 + $0x1e0] sm:$0xff]
  %v3630 = vld [vmem:[#allocation2 + $0x1e8] sm:$0xff]
  %v3631 = vld [vmem:[#allocation2 + $0x1f0] sm:$0xff]
  %v3632 = vld [vmem:[#allocation2 + $0x1f8] sm:$0xff]
  %v3633 = vld [vmem:[#allocation2 + $0x200] sm:$0xff]
  %v3634 = vld [vmem:[#allocation2 + $0x208] sm:$0xff]
  %v3635 = vld [vmem:[#allocation2 + $0x210] sm:$0xff]
  %v3636 = vld [vmem:[#allocation2 + $0x218] sm:$0xff]
  %v3637 = vld [vmem:[#allocation2 + $0x220] sm:$0xff]
  %v3638 = vld [vmem:[#allocation2 + $0x228] sm:$0xff]
  %v3639 = vld [vmem:[#allocation2 + $0x230] sm:$0xff]
  %v3640 = vld [vmem:[#allocation2 + $0x238] sm:$0xff]
  %v3641 = vld [vmem:[#allocation2 + $0x240] sm:$0xff]
  %v3642 = vld [vmem:[#allocation2 + $0x248] sm:$0xff]
  %v3643 = vld [vmem:[#allocation2 + $0x250] sm:$0xff]
  %v3644 = vld [vmem:[#allocation2 + $0x258] sm:$0xff]
  %v3645 = vld [vmem:[#allocation2 + $0x260] sm:$0xff]
  %v3646 = vld [vmem:[#allocation2 + $0x268] sm:$0xff]
  %v3647 = vld [vmem:[#allocation2 + $0x270] sm:$0xff]
  %v3648 = vld [vmem:[#allocation2 + $0x278] sm:$0xff]
  %v3649 = vld [vmem:[#allocation2 + $0x280] sm:$0xff]
  %v3650 = vld [vmem:[#allocation2 + $0x288] sm:$0xff]
  %v3651 = vld [vmem:[#allocation2 + $0x290] sm:$0xff]
  %v3652 = vld [vmem:[#allocation2 + $0x298] sm:$0xff]
  %v3653 = vld [vmem:[#allocation2 + $0x2a0] sm:$0xff]
  %v3654 = vld [vmem:[#allocation2 + $0x2a8] sm:$0xff]
  %v3655 = vld [vmem:[#allocation2 + $0x2b0] sm:$0xff]
  %v3656 = vld [vmem:[#allocation2 + $0x2b8] sm:$0xff]
  %v3657 = vld [vmem:[#allocation2 + $0x2c0] sm:$0xff]
  %v3658 = vld [vmem:[#allocation2 + $0x2c8] sm:$0xff]
  %v3659 = vld [vmem:[#allocation2 + $0x2d0] sm:$0xff]
  %v3660 = vld [vmem:[#allocation2 + $0x2d8] sm:$0xff]
  %v3661 = vld [vmem:[#allocation2 + $0x2e0] sm:$0xff]
  %v3662 = vld [vmem:[#allocation2 + $0x2e8] sm:$0xff]
  %v3663 = vld [vmem:[#allocation2 + $0x2f0] sm:$0xff]
  %v3664 = vld [vmem:[#allocation2 + $0x2f8] sm:$0xff]
  %v3665 = vld [vmem:[#allocation2 + $0x300] sm:$0xff]
  %v3666 = vld [vmem:[#allocation2 + $0x308] sm:$0xff]
  %s3667 = scalar_lea.vmem %s0, 1176
  %v3668 = vld [vmem:[%s3667] sm:$0xf]
  %v3669 = vld [vmem:[%s3667 + $0x4] sm:$0xf]
  %v3670 = vld [vmem:[%s3667 + $0x8] sm:$0xf]
  %v3671 = vld [vmem:[%s3667 + $0xc] sm:$0xf]
  %v3672 = vld [vmem:[%s3667 + $0x10] sm:$0xf]
  %v3673 = vld [vmem:[%s3667 + $0x14] sm:$0xf]
  %v3674 = vld [vmem:[%s3667 + $0x18] sm:$0xf]
  %v3675 = vld [vmem:[%s3667 + $0x1c] sm:$0xf]
  %v3676 = vld [vmem:[%s3667 + $0x20] sm:$0xf]
  %v3677 = vld [vmem:[%s3667 + $0x24] sm:$0xf]
  %v3678 = vld [vmem:[%s3667 + $0x28] sm:$0xf]
  %v3679 = vld [vmem:[%s3667 + $0x2c] sm:$0xf]
  %v3680 = vld [vmem:[%s3667 + $0x30] sm:$0xf]
  %v3681 = vld [vmem:[%s3667 + $0x34] sm:$0xf]
  %v3682 = vld [vmem:[%s3667 + $0x38] sm:$0xf]
  %v3683 = vld [vmem:[%s3667 + $0x3c] sm:$0xf]
  %v3684 = vld [vmem:[%s3667 + $0x40] sm:$0xf]
  %v3685 = vld [vmem:[%s3667 + $0x44] sm:$0xf]
  %v3686 = vld [vmem:[%s3667 + $0x48] sm:$0xf]
  %v3687 = vld [vmem:[%s3667 + $0x4c] sm:$0xf]
  %v3688 = vld [vmem:[%s3667 + $0x50] sm:$0xf]
  %v3689 = vld [vmem:[%s3667 + $0x54] sm:$0xf]
  %v3690 = vld [vmem:[%s3667 + $0x58] sm:$0xf]
  %v3691 = vld [vmem:[%s3667 + $0x5c] sm:$0xf]
  %v3692 = vld [vmem:[%s3667 + $0x60] sm:$0xf]
  %v3693 = vld [vmem:[%s3667 + $0x64] sm:$0xf]
  %v3694 = vld [vmem:[%s3667 + $0x68] sm:$0xf]
  %v3695 = vld [vmem:[%s3667 + $0x6c] sm:$0xf]
  %v3696 = vld [vmem:[%s3667 + $0x70] sm:$0xf]
  %v3697 = vld [vmem:[%s3667 + $0x74] sm:$0xf]
  %v3698 = vld [vmem:[%s3667 + $0x78] sm:$0xf]
  %v3699 = vld [vmem:[%s3667 + $0x7c] sm:$0xf]
  %v3700 = vld [vmem:[%s3667 + $0x80] sm:$0xf]
  %v3701 = vld [vmem:[%s3667 + $0x84] sm:$0xf]
  %v3702 = vld [vmem:[%s3667 + $0x88] sm:$0xf]
  %v3703 = vld [vmem:[%s3667 + $0x8c] sm:$0xf]
  %v3704 = vld [vmem:[%s3667 + $0x90] sm:$0xf]
  %v3705 = vld [vmem:[%s3667 + $0x94] sm:$0xf]
  %v3706 = vld [vmem:[%s3667 + $0x98] sm:$0xf]
  %v3707 = vld [vmem:[%s3667 + $0x9c] sm:$0xf]
  %v3708 = vld [vmem:[%s3667 + $0xa0] sm:$0xf]
  %v3709 = vld [vmem:[%s3667 + $0xa4] sm:$0xf]
  %v3710 = vld [vmem:[%s3667 + $0xa8] sm:$0xf]
  %v3711 = vld [vmem:[%s3667 + $0xac] sm:$0xf]
  %v3712 = vld [vmem:[%s3667 + $0xb0] sm:$0xf]
  %v3713 = vld [vmem:[%s3667 + $0xb4] sm:$0xf]
  %v3714 = vld [vmem:[%s3667 + $0xb8] sm:$0xf]
  %v3715 = vld [vmem:[%s3667 + $0xbc] sm:$0xf]
  %v3716 = vld [vmem:[%s3667 + $0xc0] sm:$0xf]
  %v3717 = vld [vmem:[%s3667 + $0xc4] sm:$0xf]
  %v3718 = vld [vmem:[%s3667 + $0xc8] sm:$0xf]
  %v3719 = vld [vmem:[%s3667 + $0xcc] sm:$0xf]
  %v3720 = vld [vmem:[%s3667 + $0xd0] sm:$0xf]
  %v3721 = vld [vmem:[%s3667 + $0xd4] sm:$0xf]
  %v3722 = vld [vmem:[%s3667 + $0xd8] sm:$0xf]
  %v3723 = vld [vmem:[%s3667 + $0xdc] sm:$0xf]
  %v3724 = vld [vmem:[%s3667 + $0xe0] sm:$0xf]
  %v3725 = vld [vmem:[%s3667 + $0xe4] sm:$0xf]
  %v3726 = vld [vmem:[%s3667 + $0xe8] sm:$0xf]
  %v3727 = vld [vmem:[%s3667 + $0xec] sm:$0xf]
  %v3728 = vld [vmem:[%s3667 + $0xf0] sm:$0xf]
  %v3729 = vld [vmem:[%s3667 + $0xf4] sm:$0xf]
  %v3730 = vld [vmem:[%s3667 + $0xf8] sm:$0xf]
  %v3731 = vld [vmem:[%s3667 + $0xfc] sm:$0xf]
  %v3732 = vld [vmem:[%s3667 + $0x100] sm:$0xf]
  %v3733 = vld [vmem:[%s3667 + $0x104] sm:$0xf]
  %v3734 = vld [vmem:[%s3667 + $0x108] sm:$0xf]
  %v3735 = vld [vmem:[%s3667 + $0x10c] sm:$0xf]
  %v3736 = vld [vmem:[%s3667 + $0x110] sm:$0xf]
  %v3737 = vld [vmem:[%s3667 + $0x114] sm:$0xf]
  %v3738 = vld [vmem:[%s3667 + $0x118] sm:$0xf]
  %v3739 = vld [vmem:[%s3667 + $0x11c] sm:$0xf]
  %v3740 = vld [vmem:[%s3667 + $0x120] sm:$0xf]
  %v3741 = vld [vmem:[%s3667 + $0x124] sm:$0xf]
  %v3742 = vld [vmem:[%s3667 + $0x128] sm:$0xf]
  %v3743 = vld [vmem:[%s3667 + $0x12c] sm:$0xf]
  %v3744 = vld [vmem:[%s3667 + $0x130] sm:$0xf]
  %v3745 = vld [vmem:[%s3667 + $0x134] sm:$0xf]
  %v3746 = vld [vmem:[%s3667 + $0x138] sm:$0xf]
  %v3747 = vld [vmem:[%s3667 + $0x13c] sm:$0xf]
  %v3748 = vld [vmem:[%s3667 + $0x140] sm:$0xf]
  %v3749 = vld [vmem:[%s3667 + $0x144] sm:$0xf]
  %v3750 = vld [vmem:[%s3667 + $0x148] sm:$0xf]
  %v3751 = vld [vmem:[%s3667 + $0x14c] sm:$0xf]
  %v3752 = vld [vmem:[%s3667 + $0x150] sm:$0xf]
  %v3753 = vld [vmem:[%s3667 + $0x154] sm:$0xf]
  %v3754 = vld [vmem:[%s3667 + $0x158] sm:$0xf]
  %v3755 = vld [vmem:[%s3667 + $0x15c] sm:$0xf]
  %v3756 = vld [vmem:[%s3667 + $0x160] sm:$0xf]
  %v3757 = vld [vmem:[%s3667 + $0x164] sm:$0xf]
  %v3758 = vld [vmem:[%s3667 + $0x168] sm:$0xf]
  %v3759 = vld [vmem:[%s3667 + $0x16c] sm:$0xf]
  %v3760 = vld [vmem:[%s3667 + $0x170] sm:$0xf]
  %v3761 = vld [vmem:[%s3667 + $0x174] sm:$0xf]
  %v3762 = vld [vmem:[%s3667 + $0x178] sm:$0xf]
  %v3763 = vld [vmem:[%s3667 + $0x17c] sm:$0xf]
  %v3764 = vld [vmem:[%s3667 + $0x180] sm:$0xf]
  %v3765 = vld [vmem:[%s3667 + $0x184] sm:$0xf]
  %v3766 = vld [vmem:[%s1] sm:$0xf]
  %v3767 = vld [vmem:[%s1 + $0x4] sm:$0xf]
  %v3768 = vld [vmem:[%s1 + $0x8] sm:$0xf]
  %v3769 = vld [vmem:[%s1 + $0xc] sm:$0xf]
  %v3770 = vld [vmem:[%s1 + $0x10] sm:$0xf]
  %v3771 = vld [vmem:[%s1 + $0x14] sm:$0xf]
  %v3772 = vld [vmem:[%s1 + $0x18] sm:$0xf]
  %v3773 = vld [vmem:[%s1 + $0x1c] sm:$0xf]
  %v3774 = vld [vmem:[%s1 + $0x20] sm:$0xf]
  %v3775 = vld [vmem:[%s1 + $0x24] sm:$0xf]
  %v3874 = vunpack.c.l.b16 %v3668
  %v3875 = vunpack.c.l.b16 %v3669
  %v3876 = vunpack.c.l.b16 %v3670
  %v3877 = vunpack.c.l.b16 %v3671
  %v3878 = vunpack.c.l.b16 %v3672
  %v3879 = vunpack.c.l.b16 %v3673
  %v3880 = vunpack.c.l.b16 %v3674
  %v3881 = vunpack.c.l.b16 %v3675
  %v3882 = vunpack.c.l.b16 %v3676
  %v3883 = vunpack.c.l.b16 %v3677
  %v3884 = vunpack.c.l.b16 %v3678
  %v3885 = vunpack.c.l.b16 %v3679
  %v3886 = vunpack.c.l.b16 %v3680
  %v3887 = vunpack.c.l.b16 %v3681
  %v3888 = vunpack.c.l.b16 %v3682
  %v3889 = vunpack.c.l.b16 %v3683
  %v3890 = vunpack.c.l.b16 %v3684
  %v3891 = vunpack.c.l.b16 %v3685
  %v3892 = vunpack.c.l.b16 %v3686
  %v3893 = vunpack.c.l.b16 %v3687
  %v3894 = vunpack.c.l.b16 %v3688
  %v3895 = vunpack.c.l.b16 %v3689
  %v3896 = vunpack.c.l.b16 %v3690
  %v3897 = vunpack.c.l.b16 %v3691
  %v3898 = vunpack.c.l.b16 %v3692
  %v3899 = vunpack.c.l.b16 %v3693
  %v3900 = vunpack.c.l.b16 %v3694
  %v3901 = vunpack.c.l.b16 %v3695
  %v3902 = vunpack.c.l.b16 %v3696
  %v3903 = vunpack.c.l.b16 %v3697
  %v3904 = vunpack.c.l.b16 %v3698
  %v3905 = vunpack.c.l.b16 %v3699
  %v3906 = vunpack.c.l.b16 %v3700
  %v3907 = vunpack.c.l.b16 %v3701
  %v3908 = vunpack.c.l.b16 %v3702
  %v3909 = vunpack.c.l.b16 %v3703
  %v3910 = vunpack.c.l.b16 %v3704
  %v3911 = vunpack.c.l.b16 %v3705
  %v3912 = vunpack.c.l.b16 %v3706
  %v3913 = vunpack.c.l.b16 %v3707
  %v3914 = vunpack.c.l.b16 %v3708
  %v3915 = vunpack.c.l.b16 %v3709
  %v3916 = vunpack.c.l.b16 %v3710
  %v3917 = vunpack.c.l.b16 %v3711
  %v3918 = vunpack.c.l.b16 %v3712
  %v3919 = vunpack.c.l.b16 %v3713
  %v3920 = vunpack.c.l.b16 %v3714
  %v3921 = vunpack.c.l.b16 %v3715
  %v3922 = vunpack.c.l.b16 %v3716
  %v3923 = vunpack.c.l.b16 %v3717
  %v3924 = vunpack.c.l.b16 %v3718
  %v3925 = vunpack.c.l.b16 %v3719
  %v3926 = vunpack.c.l.b16 %v3720
  %v3927 = vunpack.c.l.b16 %v3721
  %v3928 = vunpack.c.l.b16 %v3722
  %v3929 = vunpack.c.l.b16 %v3723
  %v3930 = vunpack.c.l.b16 %v3724
  %v3931 = vunpack.c.l.b16 %v3725
  %v3932 = vunpack.c.l.b16 %v3726
  %v3933 = vunpack.c.l.b16 %v3727
  %v3934 = vunpack.c.l.b16 %v3728
  %v3935 = vunpack.c.l.b16 %v3729
  %v3936 = vunpack.c.l.b16 %v3730
  %v3937 = vunpack.c.l.b16 %v3731
  %v3938 = vunpack.c.l.b16 %v3732
  %v3939 = vunpack.c.l.b16 %v3733
  %v3940 = vunpack.c.l.b16 %v3734
  %v3941 = vunpack.c.l.b16 %v3735
  %v3942 = vunpack.c.l.b16 %v3736
  %v3943 = vunpack.c.l.b16 %v3737
  %v3944 = vunpack.c.l.b16 %v3738
  %v3945 = vunpack.c.l.b16 %v3739
  %v3946 = vunpack.c.l.b16 %v3740
  %v3947 = vunpack.c.l.b16 %v3741
  %v3948 = vunpack.c.l.b16 %v3742
  %v3949 = vunpack.c.l.b16 %v3743
  %v3950 = vunpack.c.l.b16 %v3744
  %v3951 = vunpack.c.l.b16 %v3745
  %v3952 = vunpack.c.l.b16 %v3746
  %v3953 = vunpack.c.l.b16 %v3747
  %v3954 = vunpack.c.l.b16 %v3748
  %v3955 = vunpack.c.l.b16 %v3749
  %v3956 = vunpack.c.l.b16 %v3750
  %v3957 = vunpack.c.l.b16 %v3751
  %v3958 = vunpack.c.l.b16 %v3752
  %v3959 = vunpack.c.l.b16 %v3753
  %v3960 = vunpack.c.l.b16 %v3754
  %v3961 = vunpack.c.l.b16 %v3755
  %v3962 = vunpack.c.l.b16 %v3756
  %v3963 = vunpack.c.l.b16 %v3757
  %v3964 = vunpack.c.l.b16 %v3758
  %v3965 = vunpack.c.l.b16 %v3759
  %v3966 = vunpack.c.l.b16 %v3760
  %v3967 = vunpack.c.l.b16 %v3761
  %v3968 = vunpack.c.l.b16 %v3762
  %v3969 = vunpack.c.l.b16 %v3763
  %v3970 = vunpack.c.l.b16 %v3764
  %v3971 = vunpack.c.l.b16 %v3765
  %v3972 = vpack.c.b16 %v3875, %v3874
  %v3973 = vpack.c.b16 %v3877, %v3876
  %v3974 = vpack.c.b16 %v3879, %v3878
  %v3975 = vpack.c.b16 %v3881, %v3880
  %v3976 = vpack.c.b16 %v3883, %v3882
  %v3977 = vpack.c.b16 %v3885, %v3884
  %v3978 = vpack.c.b16 %v3887, %v3886
  %v3979 = vpack.c.b16 %v3889, %v3888
  %v3980 = vpack.c.b16 %v3891, %v3890
  %v3981 = vpack.c.b16 %v3893, %v3892
  %v3982 = vpack.c.b16 %v3895, %v3894
  %v3983 = vpack.c.b16 %v3897, %v3896
  %v3984 = vpack.c.b16 %v3899, %v3898
  %v3985 = vpack.c.b16 %v3901, %v3900
  %v3986 = vpack.c.b16 %v3903, %v3902
  %v3987 = vpack.c.b16 %v3905, %v3904
  %v3988 = vpack.c.b16 %v3907, %v3906
  %v3989 = vpack.c.b16 %v3909, %v3908
  %v3990 = vpack.c.b16 %v3911, %v3910
  %v3991 = vpack.c.b16 %v3913, %v3912
  %v3992 = vpack.c.b16 %v3915, %v3914
  %v3993 = vpack.c.b16 %v3917, %v3916
  %v3994 = vpack.c.b16 %v3919, %v3918
  %v3995 = vpack.c.b16 %v3921, %v3920
  %v3996 = vpack.c.b16 %v3923, %v3922
  %v3997 = vpack.c.b16 %v3925, %v3924
  %v3998 = vpack.c.b16 %v3927, %v3926
  %v3999 = vpack.c.b16 %v3929, %v3928
  %v4000 = vpack.c.b16 %v3931, %v3930
  %v4001 = vpack.c.b16 %v3933, %v3932
  %v4002 = vpack.c.b16 %v3935, %v3934
  %v4003 = vpack.c.b16 %v3937, %v3936
  %v4004 = vpack.c.b16 %v3939, %v3938
  %v4005 = vpack.c.b16 %v3941, %v3940
  %v4006 = vpack.c.b16 %v3943, %v3942
  %v4007 = vpack.c.b16 %v3945, %v3944
  %v4008 = vpack.c.b16 %v3947, %v3946
  %v4009 = vpack.c.b16 %v3949, %v3948
  %v4010 = vpack.c.b16 %v3951, %v3950
  %v4011 = vpack.c.b16 %v3953, %v3952
  %v4012 = vpack.c.b16 %v3955, %v3954
  %v4013 = vpack.c.b16 %v3957, %v3956
  %v4014 = vpack.c.b16 %v3959, %v3958
  %v4015 = vpack.c.b16 %v3961, %v3960
  %v4016 = vpack.c.b16 %v3963, %v3962
  %v4017 = vpack.c.b16 %v3965, %v3964
  %v4018 = vpack.c.b16 %v3967, %v3966
  %v4019 = vpack.c.b16 %v3969, %v3968
  %v4020 = vpack.c.b16 %v3971, %v3970
  %v4031 = vunpack.c.l.b16 %v3766
  %v4032 = vunpack.c.l.b16 %v3767
  %v4033 = vunpack.c.l.b16 %v3768
  %v4034 = vunpack.c.l.b16 %v3769
  %v4035 = vunpack.c.l.b16 %v3770
  %v4036 = vunpack.c.l.b16 %v3771
  %v4037 = vunpack.c.l.b16 %v3772
  %v4038 = vunpack.c.l.b16 %v3773
  %v4039 = vunpack.c.l.b16 %v3774
  %v4040 = vunpack.c.l.b16 %v3775
  %v4041 = vpack.c.b16 %v4032, %v4031
  %v4042 = vpack.c.b16 %v4034, %v4033
  %v4043 = vpack.c.b16 %v4036, %v4035
  %v4044 = vpack.c.b16 %v4038, %v4037
  %v4045 = vpack.c.b16 %v4040, %v4039
  %v4052 = vsel %vm398, %v3972, 0
  %v4055 = vsel %vm398, %v3973, 0
  %v4058 = vsel %vm398, %v3974, 0
  %v4061 = vsel %vm398, %v3975, 0
  %v4064 = vsel %vm398, %v3976, 0
  %v4067 = vsel %vm398, %v3977, 0
  %v4070 = vsel %vm398, %v3978, 0
  %v4073 = vsel %vm398, %v3979, 0
  %v4076 = vsel %vm398, %v3980, 0
  %v4079 = vsel %vm398, %v3981, 0
  %v4082 = vsel %vm398, %v3982, 0
  %v4085 = vsel %vm398, %v3983, 0
  %v4088 = vsel %vm398, %v3984, 0
  %v4091 = vsel %vm398, %v3985, 0
  %v4094 = vsel %vm398, %v3986, 0
  %v4097 = vsel %vm398, %v3987, 0
  %v4100 = vsel %vm398, %v3988, 0
  %v4103 = vsel %vm398, %v3989, 0
  %v4106 = vsel %vm398, %v3990, 0
  %v4109 = vsel %vm398, %v3991, 0
  %v4112 = vsel %vm398, %v3992, 0
  %v4115 = vsel %vm398, %v3993, 0
  %v4118 = vsel %vm398, %v3994, 0
  %v4121 = vsel %vm398, %v3995, 0
  %v4124 = vsel %vm398, %v3996, 0
  %v4127 = vsel %vm398, %v3997, 0
  %v4130 = vsel %vm398, %v3998, 0
  %v4133 = vsel %vm398, %v3999, 0
  %v4136 = vsel %vm398, %v4000, 0
  %v4139 = vsel %vm398, %v4001, 0
  %v4142 = vsel %vm398, %v4002, 0
  %v4145 = vsel %vm398, %v4003, 0
  %v4148 = vsel %vm398, %v4004, 0
  %v4151 = vsel %vm398, %v4005, 0
  %v4154 = vsel %vm398, %v4006, 0
  %v4157 = vsel %vm398, %v4007, 0
  %v4160 = vsel %vm398, %v4008, 0
  %v4163 = vsel %vm398, %v4009, 0
  %v4166 = vsel %vm398, %v4010, 0
  %v4169 = vsel %vm398, %v4011, 0
  %v4172 = vsel %vm398, %v4012, 0
  %v4175 = vsel %vm398, %v4013, 0
  %v4178 = vsel %vm398, %v4014, 0
  %v4181 = vsel %vm398, %v4015, 0
  %v4184 = vsel %vm398, %v4016, 0
  %v4187 = vsel %vm398, %v4017, 0
  %v4190 = vsel %vm398, %v4018, 0
  %v4193 = vsel %vm398, %v4019, 0
  %v4196 = vsel %vm398, %v4020, 0
  %4198 = vmatprep.subr.bf16.mxu0 0
  %4199 = vmatpush1.bf16.msra.mxu0 %v4041
  %4200 = vmatprep.subr.bf16.mxu0 0
  %4201 = vmatpush1.bf16.msra.mxu0 %v4042
  %4202 = vmatprep.subr.bf16.mxu0 0
  %4203 = vmatpush1.bf16.msra.mxu0 %v4043
  %4204 = vmatprep.subr.bf16.mxu0 0
  %4205 = vmatpush1.bf16.msra.mxu0 %v4044
  %4206 = vmatprep.subr.bf16.mxu0 0
  %4207 = vmatpush1.bf16.msra.mxu0 %v4045
  %4208 = vmatprep.subr.bf16.mxu0 0
  %4209 = vmatpush1.bf16.msra.mxu0 0
  %4210 = vmatprep.subr.bf16.mxu0 0
  %4211 = vmatpush1.bf16.msra.mxu0 0
  %4212 = vmatprep.subr.bf16.mxu0 0
  %4213 = vmatpush1.bf16.msra.mxu0 0
  %4214 = vmatprep.subr.bf16.mxu0 0
  %4215 = vmatpush1.bf16.msra.mxu0 0
  %4216 = vmatprep.subr.bf16.mxu0 0
  %4217 = vmatpush1.bf16.msra.mxu0 0
  %4218 = vmatprep.subr.bf16.mxu0 0
  %4219 = vmatpush1.bf16.msra.mxu0 0
  %4220 = vmatprep.subr.bf16.mxu0 0
  %4221 = vmatpush1.bf16.msra.mxu0 0
  %4222 = vmatprep.subr.bf16.mxu0 0
  %4223 = vmatpush1.bf16.msra.mxu0 0
  %4224 = vmatprep.subr.bf16.mxu0 0
  %4225 = vmatpush1.bf16.msra.mxu0 0
  %4226 = vmatprep.subr.bf16.mxu0 0
  %4227 = vmatpush1.bf16.msra.mxu0 0
  %4228 = vmatprep.subr.bf16.mxu0 0
  %4229 = vmatpush1.bf16.msra.mxu0 0
  %4230 = vmatprep.mubr.bf16.mxu0 0
  %4231 = vmatmul.mubr.bf16.gmra.mrb[0].mxu0 %v4052
  %v4232 = vpop.f32.mrb[0].mxu0
  %v4233 = vadd.f32 0.0, %v4232
  %v4234 = vpop.f32.mrb[0].mxu0
  %v4235 = vpop.f32.mrb[0].mxu0
  %v4236 = vadd.f32 0.0, %v4235
  %v4237 = vpop.f32.mrb[0].mxu0
  %4238 = vmatprep.mubr.bf16.mxu0 0
  %4239 = vmatmul.mubr.bf16.gmra.mrb[0].mxu0 %v4055
  %v4240 = vpop.f32.mrb[0].mxu0
  %v4241 = vadd.f32 0.0, %v4240
  %v4242 = vpop.f32.mrb[0].mxu0
  %v4243 = vpop.f32.mrb[0].mxu0
  %v4244 = vadd.f32 0.0, %v4243
  %v4245 = vpop.f32.mrb[0].mxu0
  %4246 = vmatprep.mubr.bf16.mxu0 0
  %4247 = vmatmul.mubr.bf16.gmra.mrb[0].mxu0 %v4058
  %v4248 = vpop.f32.mrb[0].mxu0
  %v4249 = vadd.f32 0.0, %v4248
  %v4250 = vpop.f32.mrb[0].mxu0
  %v4251 = vpop.f32.mrb[0].mxu0
  %v4252 = vadd.f32 0.0, %v4251
  %v4253 = vpop.f32.mrb[0].mxu0
  %4254 = vmatprep.mubr.bf16.mxu0 0
  %4255 = vmatmul.mubr.bf16.gmra.mrb[0].mxu0 %v4061
  %v4256 = vpop.f32.mrb[0].mxu0
  %v4257 = vadd.f32 0.0, %v4256
  %v4258 = vpop.f32.mrb[0].mxu0
  %v4259 = vpop.f32.mrb[0].mxu0
  %v4260 = vadd.f32 0.0, %v4259
  %v4261 = vpop.f32.mrb[0].mxu0
  %4262 = vmatprep.mubr.bf16.mxu0 0
  %4263 = vmatmul.mubr.bf16.gmra.mrb[0].mxu0 %v4064
  %v4264 = vpop.f32.mrb[0].mxu0
  %v4265 = vadd.f32 0.0, %v4264
  %v4266 = vpop.f32.mrb[0].mxu0
  %v4267 = vpop.f32.mrb[0].mxu0
  %v4268 = vadd.f32 0.0, %v4267
  %v4269 = vpop.f32.mrb[0].mxu0
  %4270 = vmatprep.mubr.bf16.mxu0 0
  %4271 = vmatmul.mubr.bf16.gmra.mrb[0].mxu0 %v4067
  %v4272 = vpop.f32.mrb[0].mxu0
  %v4273 = vadd.f32 0.0, %v4272
  %v4274 = vpop.f32.mrb[0].mxu0
  %v4275 = vpop.f32.mrb[0].mxu0
  %v4276 = vadd.f32 0.0, %v4275
  %v4277 = vpop.f32.mrb[0].mxu0
  %4278 = vmatprep.mubr.bf16.mxu0 0
  %4279 = vmatmul.mubr.bf16.gmra.mrb[0].mxu0 %v4070
  %v4280 = vpop.f32.mrb[0].mxu0
  %v4281 = vadd.f32 0.0, %v4280
  %v4282 = vpop.f32.mrb[0].mxu0
  %v4283 = vpop.f32.mrb[0].mxu0
  %v4284 = vadd.f32 0.0, %v4283
  %v4285 = vpop.f32.mrb[0].mxu0
  %4286 = vmatprep.mubr.bf16.mxu0 0
  %4287 = vmatmul.mubr.bf16.gmra.mrb[0].mxu0 %v4073
  %v4288 = vpop.f32.mrb[0].mxu0
  %v4289 = vadd.f32 0.0, %v4288
  %v4290 = vpop.f32.mrb[0].mxu0
  %v4291 = vpop.f32.mrb[0].mxu0
  %v4292 = vadd.f32 0.0, %v4291
  %v4293 = vpop.f32.mrb[0].mxu0
  %4294 = vmatprep.mubr.bf16.mxu0 0
  %4295 = vmatmul.mubr.bf16.gmra.mrb[0].mxu0 %v4076
  %v4296 = vpop.f32.mrb[0].mxu0
  %v4297 = vadd.f32 0.0, %v4296
  %v4298 = vpop.f32.mrb[0].mxu0
  %v4299 = vpop.f32.mrb[0].mxu0
  %v4300 = vadd.f32 0.0, %v4299
  %v4301 = vpop.f32.mrb[0].mxu0
  %4302 = vmatprep.mubr.bf16.mxu0 0
  %4303 = vmatmul.mubr.bf16.gmra.mrb[0].mxu0 %v4079
  %v4304 = vpop.f32.mrb[0].mxu0
  %v4305 = vadd.f32 0.0, %v4304
  %v4306 = vpop.f32.mrb[0].mxu0
  %v4307 = vpop.f32.mrb[0].mxu0
  %v4308 = vadd.f32 0.0, %v4307
  %v4309 = vpop.f32.mrb[0].mxu0
  %4310 = vmatprep.mubr.bf16.mxu0 0
  %4311 = vmatmul.mubr.bf16.gmra.mrb[0].mxu0 %v4082
  %v4312 = vpop.f32.mrb[0].mxu0
  %v4313 = vadd.f32 0.0, %v4312
  %v4314 = vpop.f32.mrb[0].mxu0
  %v4315 = vpop.f32.mrb[0].mxu0
  %v4316 = vadd.f32 0.0, %v4315
  %v4317 = vpop.f32.mrb[0].mxu0
  %4318 = vmatprep.mubr.bf16.mxu0 0
  %4319 = vmatmul.mubr.bf16.gmra.mrb[0].mxu0 %v4085
  %v4320 = vpop.f32.mrb[0].mxu0
  %v4321 = vadd.f32 0.0, %v4320
  %v4322 = vpop.f32.mrb[0].mxu0
  %v4323 = vpop.f32.mrb[0].mxu0
  %v4324 = vadd.f32 0.0, %v4323
  %v4325 = vpop.f32.mrb[0].mxu0
  %4326 = vmatprep.mubr.bf16.mxu0 0
  %4327 = vmatmul.mubr.bf16.gmra.mrb[0].mxu0 %v4088
  %v4328 = vpop.f32.mrb[0].mxu0
  %v4329 = vadd.f32 0.0, %v4328
  %v4330 = vpop.f32.mrb[0].mxu0
  %v4331 = vpop.f32.mrb[0].mxu0
  %v4332 = vadd.f32 0.0, %v4331
  %v4333 = vpop.f32.mrb[0].mxu0
  %4334 = vmatprep.mubr.bf16.mxu0 0
  %4335 = vmatmul.mubr.bf16.gmra.mrb[0].mxu0 %v4091
  %v4336 = vpop.f32.mrb[0].mxu0
  %v4337 = vadd.f32 0.0, %v4336
  %v4338 = vpop.f32.mrb[0].mxu0
  %v4339 = vpop.f32.mrb[0].mxu0
  %v4340 = vadd.f32 0.0, %v4339
  %v4341 = vpop.f32.mrb[0].mxu0
  %4342 = vmatprep.mubr.bf16.mxu0 0
  %4343 = vmatmul.mubr.bf16.gmra.mrb[0].mxu0 %v4094
  %v4344 = vpop.f32.mrb[0].mxu0
  %v4345 = vadd.f32 0.0, %v4344
  %v4346 = vpop.f32.mrb[0].mxu0
  %v4347 = vpop.f32.mrb[0].mxu0
  %v4348 = vadd.f32 0.0, %v4347
  %v4349 = vpop.f32.mrb[0].mxu0
  %4350 = vmatprep.mubr.bf16.mxu0 0
  %4351 = vmatmul.mubr.bf16.gmra.mrb[0].mxu0 %v4097
  %v4352 = vpop.f32.mrb[0].mxu0
  %v4353 = vadd.f32 0.0, %v4352
  %v4354 = vpop.f32.mrb[0].mxu0
  %v4355 = vpop.f32.mrb[0].mxu0
  %v4356 = vadd.f32 0.0, %v4355
  %v4357 = vpop.f32.mrb[0].mxu0
  %4358 = vmatprep.mubr.bf16.mxu0 0
  %4359 = vmatmul.mubr.bf16.gmra.mrb[0].mxu0 %v4100
  %v4360 = vpop.f32.mrb[0].mxu0
  %v4361 = vadd.f32 0.0, %v4360
  %v4362 = vpop.f32.mrb[0].mxu0
  %v4363 = vpop.f32.mrb[0].mxu0
  %v4364 = vadd.f32 0.0, %v4363
  %v4365 = vpop.f32.mrb[0].mxu0
  %4366 = vmatprep.mubr.bf16.mxu0 0
  %4367 = vmatmul.mubr.bf16.gmra.mrb[0].mxu0 %v4103
  %v4368 = vpop.f32.mrb[0].mxu0
  %v4369 = vadd.f32 0.0, %v4368
  %v4370 = vpop.f32.mrb[0].mxu0
  %v4371 = vpop.f32.mrb[0].mxu0
  %v4372 = vadd.f32 0.0, %v4371
  %v4373 = vpop.f32.mrb[0].mxu0
  %4374 = vmatprep.mubr.bf16.mxu0 0
  %4375 = vmatmul.mubr.bf16.gmra.mrb[0].mxu0 %v4106
  %v4376 = vpop.f32.mrb[0].mxu0
  %v4377 = vadd.f32 0.0, %v4376
  %v4378 = vpop.f32.mrb[0].mxu0
  %v4379 = vpop.f32.mrb[0].mxu0
  %v4380 = vadd.f32 0.0, %v4379
  %v4381 = vpop.f32.mrb[0].mxu0
  %4382 = vmatprep.mubr.bf16.mxu0 0
  %4383 = vmatmul.mubr.bf16.gmra.mrb[0].mxu0 %v4109
  %v4384 = vpop.f32.mrb[0].mxu0
  %v4385 = vadd.f32 0.0, %v4384
  %v4386 = vpop.f32.mrb[0].mxu0
  %v4387 = vpop.f32.mrb[0].mxu0
  %v4388 = vadd.f32 0.0, %v4387
  %v4389 = vpop.f32.mrb[0].mxu0
  %4390 = vmatprep.mubr.bf16.mxu0 0
  %4391 = vmatmul.mubr.bf16.gmra.mrb[0].mxu0 %v4112
  %v4392 = vpop.f32.mrb[0].mxu0
  %v4393 = vadd.f32 0.0, %v4392
  %v4394 = vpop.f32.mrb[0].mxu0
  %v4395 = vpop.f32.mrb[0].mxu0
  %v4396 = vadd.f32 0.0, %v4395
  %v4397 = vpop.f32.mrb[0].mxu0
  %4398 = vmatprep.mubr.bf16.mxu0 0
  %4399 = vmatmul.mubr.bf16.gmra.mrb[0].mxu0 %v4115
  %v4400 = vpop.f32.mrb[0].mxu0
  %v4401 = vadd.f32 0.0, %v4400
  %v4402 = vpop.f32.mrb[0].mxu0
  %v4403 = vpop.f32.mrb[0].mxu0
  %v4404 = vadd.f32 0.0, %v4403
  %v4405 = vpop.f32.mrb[0].mxu0
  %4406 = vmatprep.mubr.bf16.mxu0 0
  %4407 = vmatmul.mubr.bf16.gmra.mrb[0].mxu0 %v4118
  %v4408 = vpop.f32.mrb[0].mxu0
  %v4409 = vadd.f32 0.0, %v4408
  %v4410 = vpop.f32.mrb[0].mxu0
  %v4411 = vpop.f32.mrb[0].mxu0
  %v4412 = vadd.f32 0.0, %v4411
  %v4413 = vpop.f32.mrb[0].mxu0
  %4414 = vmatprep.mubr.bf16.mxu0 0
  %4415 = vmatmul.mubr.bf16.gmra.mrb[0].mxu0 %v4121
  %v4416 = vpop.f32.mrb[0].mxu0
  %v4417 = vadd.f32 0.0, %v4416
  %v4418 = vpop.f32.mrb[0].mxu0
  %v4419 = vpop.f32.mrb[0].mxu0
  %v4420 = vadd.f32 0.0, %v4419
  %v4421 = vpop.f32.mrb[0].mxu0
  %4422 = vmatprep.mubr.bf16.mxu0 0
  %4423 = vmatmul.mubr.bf16.gmra.mrb[0].mxu0 %v4124
  %v4424 = vpop.f32.mrb[0].mxu0
  %v4425 = vadd.f32 0.0, %v4424
  %v4426 = vpop.f32.mrb[0].mxu0
  %v4427 = vpop.f32.mrb[0].mxu0
  %v4428 = vadd.f32 0.0, %v4427
  %v4429 = vpop.f32.mrb[0].mxu0
  %4430 = vmatprep.mubr.bf16.mxu0 0
  %4431 = vmatmul.mubr.bf16.gmra.mrb[0].mxu0 %v4127
  %v4432 = vpop.f32.mrb[0].mxu0
  %v4433 = vadd.f32 0.0, %v4432
  %v4434 = vpop.f32.mrb[0].mxu0
  %v4435 = vpop.f32.mrb[0].mxu0
  %v4436 = vadd.f32 0.0, %v4435
  %v4437 = vpop.f32.mrb[0].mxu0
  %4438 = vmatprep.mubr.bf16.mxu0 0
  %4439 = vmatmul.mubr.bf16.gmra.mrb[0].mxu0 %v4130
  %v4440 = vpop.f32.mrb[0].mxu0
  %v4441 = vadd.f32 0.0, %v4440
  %v4442 = vpop.f32.mrb[0].mxu0
  %v4443 = vpop.f32.mrb[0].mxu0
  %v4444 = vadd.f32 0.0, %v4443
  %v4445 = vpop.f32.mrb[0].mxu0
  %4446 = vmatprep.mubr.bf16.mxu0 0
  %4447 = vmatmul.mubr.bf16.gmra.mrb[0].mxu0 %v4133
  %v4448 = vpop.f32.mrb[0].mxu0
  %v4449 = vadd.f32 0.0, %v4448
  %v4450 = vpop.f32.mrb[0].mxu0
  %v4451 = vpop.f32.mrb[0].mxu0
  %v4452 = vadd.f32 0.0, %v4451
  %v4453 = vpop.f32.mrb[0].mxu0
  %4454 = vmatprep.mubr.bf16.mxu0 0
  %4455 = vmatmul.mubr.bf16.gmra.mrb[0].mxu0 %v4136
  %v4456 = vpop.f32.mrb[0].mxu0
  %v4457 = vadd.f32 0.0, %v4456
  %v4458 = vpop.f32.mrb[0].mxu0
  %v4459 = vpop.f32.mrb[0].mxu0
  %v4460 = vadd.f32 0.0, %v4459
  %v4461 = vpop.f32.mrb[0].mxu0
  %4462 = vmatprep.mubr.bf16.mxu0 0
  %4463 = vmatmul.mubr.bf16.gmra.mrb[0].mxu0 %v4139
  %v4464 = vpop.f32.mrb[0].mxu0
  %v4465 = vadd.f32 0.0, %v4464
  %v4466 = vpop.f32.mrb[0].mxu0
  %v4467 = vpop.f32.mrb[0].mxu0
  %v4468 = vadd.f32 0.0, %v4467
  %v4469 = vpop.f32.mrb[0].mxu0
  %4470 = vmatprep.mubr.bf16.mxu0 0
  %4471 = vmatmul.mubr.bf16.gmra.mrb[0].mxu0 %v4142
  %v4472 = vpop.f32.mrb[0].mxu0
  %v4473 = vadd.f32 0.0, %v4472
  %v4474 = vpop.f32.mrb[0].mxu0
  %v4475 = vpop.f32.mrb[0].mxu0
  %v4476 = vadd.f32 0.0, %v4475
  %v4477 = vpop.f32.mrb[0].mxu0
  %4478 = vmatprep.mubr.bf16.mxu0 0
  %4479 = vmatmul.mubr.bf16.gmra.mrb[0].mxu0 %v4145
  %v4480 = vpop.f32.mrb[0].mxu0
  %v4481 = vadd.f32 0.0, %v4480
  %v4482 = vpop.f32.mrb[0].mxu0
  %v4483 = vpop.f32.mrb[0].mxu0
  %v4484 = vadd.f32 0.0, %v4483
  %v4485 = vpop.f32.mrb[0].mxu0
  %4486 = vmatprep.mubr.bf16.mxu0 0
  %4487 = vmatmul.mubr.bf16.gmra.mrb[0].mxu0 %v4148
  %v4488 = vpop.f32.mrb[0].mxu0
  %v4489 = vadd.f32 0.0, %v4488
  %v4490 = vpop.f32.mrb[0].mxu0
  %v4491 = vpop.f32.mrb[0].mxu0
  %v4492 = vadd.f32 0.0, %v4491
  %v4493 = vpop.f32.mrb[0].mxu0
  %4494 = vmatprep.mubr.bf16.mxu0 0
  %4495 = vmatmul.mubr.bf16.gmra.mrb[0].mxu0 %v4151
  %v4496 = vpop.f32.mrb[0].mxu0
  %v4497 = vadd.f32 0.0, %v4496
  %v4498 = vpop.f32.mrb[0].mxu0
  %v4499 = vpop.f32.mrb[0].mxu0
  %v4500 = vadd.f32 0.0, %v4499
  %v4501 = vpop.f32.mrb[0].mxu0
  %4502 = vmatprep.mubr.bf16.mxu0 0
  %4503 = vmatmul.mubr.bf16.gmra.mrb[0].mxu0 %v4154
  %v4504 = vpop.f32.mrb[0].mxu0
  %v4505 = vadd.f32 0.0, %v4504
  %v4506 = vpop.f32.mrb[0].mxu0
  %v4507 = vpop.f32.mrb[0].mxu0
  %v4508 = vadd.f32 0.0, %v4507
  %v4509 = vpop.f32.mrb[0].mxu0
  %4510 = vmatprep.mubr.bf16.mxu0 0
  %4511 = vmatmul.mubr.bf16.gmra.mrb[0].mxu0 %v4157
  %v4512 = vpop.f32.mrb[0].mxu0
  %v4513 = vadd.f32 0.0, %v4512
  %v4514 = vpop.f32.mrb[0].mxu0
  %v4515 = vpop.f32.mrb[0].mxu0
  %v4516 = vadd.f32 0.0, %v4515
  %v4517 = vpop.f32.mrb[0].mxu0
  %4518 = vmatprep.mubr.bf16.mxu0 0
  %4519 = vmatmul.mubr.bf16.gmra.mrb[0].mxu0 %v4160
  %v4520 = vpop.f32.mrb[0].mxu0
  %v4521 = vadd.f32 0.0, %v4520
  %v4522 = vpop.f32.mrb[0].mxu0
  %v4523 = vpop.f32.mrb[0].mxu0
  %v4524 = vadd.f32 0.0, %v4523
  %v4525 = vpop.f32.mrb[0].mxu0
  %4526 = vmatprep.mubr.bf16.mxu0 0
  %4527 = vmatmul.mubr.bf16.gmra.mrb[0].mxu0 %v4163
  %v4528 = vpop.f32.mrb[0].mxu0
  %v4529 = vadd.f32 0.0, %v4528
  %v4530 = vpop.f32.mrb[0].mxu0
  %v4531 = vpop.f32.mrb[0].mxu0
  %v4532 = vadd.f32 0.0, %v4531
  %v4533 = vpop.f32.mrb[0].mxu0
  %4534 = vmatprep.mubr.bf16.mxu0 0
  %4535 = vmatmul.mubr.bf16.gmra.mrb[0].mxu0 %v4166
  %v4536 = vpop.f32.mrb[0].mxu0
  %v4537 = vadd.f32 0.0, %v4536
  %v4538 = vpop.f32.mrb[0].mxu0
  %v4539 = vpop.f32.mrb[0].mxu0
  %v4540 = vadd.f32 0.0, %v4539
  %v4541 = vpop.f32.mrb[0].mxu0
  %4542 = vmatprep.mubr.bf16.mxu0 0
  %4543 = vmatmul.mubr.bf16.gmra.mrb[0].mxu0 %v4169
  %v4544 = vpop.f32.mrb[0].mxu0
  %v4545 = vadd.f32 0.0, %v4544
  %v4546 = vpop.f32.mrb[0].mxu0
  %v4547 = vpop.f32.mrb[0].mxu0
  %v4548 = vadd.f32 0.0, %v4547
  %v4549 = vpop.f32.mrb[0].mxu0
  %4550 = vmatprep.mubr.bf16.mxu0 0
  %4551 = vmatmul.mubr.bf16.gmra.mrb[0].mxu0 %v4172
  %v4552 = vpop.f32.mrb[0].mxu0
  %v4553 = vadd.f32 0.0, %v4552
  %v4554 = vpop.f32.mrb[0].mxu0
  %v4555 = vpop.f32.mrb[0].mxu0
  %v4556 = vadd.f32 0.0, %v4555
  %v4557 = vpop.f32.mrb[0].mxu0
  %4558 = vmatprep.mubr.bf16.mxu0 0
  %4559 = vmatmul.mubr.bf16.gmra.mrb[0].mxu0 %v4175
  %v4560 = vpop.f32.mrb[0].mxu0
  %v4561 = vadd.f32 0.0, %v4560
  %v4562 = vpop.f32.mrb[0].mxu0
  %v4563 = vpop.f32.mrb[0].mxu0
  %v4564 = vadd.f32 0.0, %v4563
  %v4565 = vpop.f32.mrb[0].mxu0
  %4566 = vmatprep.mubr.bf16.mxu0 0
  %4567 = vmatmul.mubr.bf16.gmra.mrb[0].mxu0 %v4178
  %v4568 = vpop.f32.mrb[0].mxu0
  %v4569 = vadd.f32 0.0, %v4568
  %v4570 = vpop.f32.mrb[0].mxu0
  %v4571 = vpop.f32.mrb[0].mxu0
  %v4572 = vadd.f32 0.0, %v4571
  %v4573 = vpop.f32.mrb[0].mxu0
  %4574 = vmatprep.mubr.bf16.mxu0 0
  %4575 = vmatmul.mubr.bf16.gmra.mrb[0].mxu0 %v4181
  %v4576 = vpop.f32.mrb[0].mxu0
  %v4577 = vadd.f32 0.0, %v4576
  %v4578 = vpop.f32.mrb[0].mxu0
  %v4579 = vpop.f32.mrb[0].mxu0
  %v4580 = vadd.f32 0.0, %v4579
  %v4581 = vpop.f32.mrb[0].mxu0
  %4582 = vmatprep.mubr.bf16.mxu0 0
  %4583 = vmatmul.mubr.bf16.gmra.mrb[0].mxu0 %v4184
  %v4584 = vpop.f32.mrb[0].mxu0
  %v4585 = vadd.f32 0.0, %v4584
  %v4586 = vpop.f32.mrb[0].mxu0
  %v4587 = vpop.f32.mrb[0].mxu0
  %v4588 = vadd.f32 0.0, %v4587
  %v4589 = vpop.f32.mrb[0].mxu0
  %4590 = vmatprep.mubr.bf16.mxu0 0
  %4591 = vmatmul.mubr.bf16.gmra.mrb[0].mxu0 %v4187
  %v4592 = vpop.f32.mrb[0].mxu0
  %v4593 = vadd.f32 0.0, %v4592
  %v4594 = vpop.f32.mrb[0].mxu0
  %v4595 = vpop.f32.mrb[0].mxu0
  %v4596 = vadd.f32 0.0, %v4595
  %v4597 = vpop.f32.mrb[0].mxu0
  %4598 = vmatprep.mubr.bf16.mxu0 0
  %4599 = vmatmul.mubr.bf16.gmra.mrb[0].mxu0 %v4190
  %v4600 = vpop.f32.mrb[0].mxu0
  %v4601 = vadd.f32 0.0, %v4600
  %v4602 = vpop.f32.mrb[0].mxu0
  %v4603 = vpop.f32.mrb[0].mxu0
  %v4604 = vadd.f32 0.0, %v4603
  %v4605 = vpop.f32.mrb[0].mxu0
  %4606 = vmatprep.mubr.bf16.mxu0 0
  %4607 = vmatmul.mubr.bf16.gmra.mrb[0].mxu0 %v4193
  %v4608 = vpop.f32.mrb[0].mxu0
  %v4609 = vadd.f32 0.0, %v4608
  %v4610 = vpop.f32.mrb[0].mxu0
  %v4611 = vpop.f32.mrb[0].mxu0
  %v4612 = vadd.f32 0.0, %v4611
  %v4613 = vpop.f32.mrb[0].mxu0
  %4614 = vmatprep.mubr.bf16.mxu0 0
  %4615 = vmatmul.mubr.bf16.gmra.mrb[0].mxu0 %v4196
  %v4616 = vpop.f32.mrb[0].mxu0
  %v4617 = vadd.f32 0.0, %v4616
  %v4618 = vpop.f32.mrb[0].mxu0
  %v4619 = vpop.f32.mrb[0].mxu0
  %v4620 = vadd.f32 0.0, %v4619
  %v4621 = vpop.f32.mrb[0].mxu0
  %4622 = vdwg.mxu0
  %v4623 = vmax.f32 %v3569, %v4233
  %v4624 = vmax.f32 %v3570, %v4236
  %v4625 = vmax.f32 %v3571, %v4241
  %v4626 = vmax.f32 %v3572, %v4244
  %v4627 = vmax.f32 %v3573, %v4249
  %v4628 = vmax.f32 %v3574, %v4252
  %v4629 = vmax.f32 %v3575, %v4257
  %v4630 = vmax.f32 %v3576, %v4260
  %v4631 = vmax.f32 %v3577, %v4265
  %v4632 = vmax.f32 %v3578, %v4268
  %v4633 = vmax.f32 %v3579, %v4273
  %v4634 = vmax.f32 %v3580, %v4276
  %v4635 = vmax.f32 %v3581, %v4281
  %v4636 = vmax.f32 %v3582, %v4284
  %v4637 = vmax.f32 %v3583, %v4289
  %v4638 = vmax.f32 %v3584, %v4292
  %v4639 = vmax.f32 %v3585, %v4297
  %v4640 = vmax.f32 %v3586, %v4300
  %v4641 = vmax.f32 %v3587, %v4305
  %v4642 = vmax.f32 %v3588, %v4308
  %v4643 = vmax.f32 %v3589, %v4313
  %v4644 = vmax.f32 %v3590, %v4316
  %v4645 = vmax.f32 %v3591, %v4321
  %v4646 = vmax.f32 %v3592, %v4324
  %v4647 = vmax.f32 %v3593, %v4329
  %v4648 = vmax.f32 %v3594, %v4332
  %v4649 = vmax.f32 %v3595, %v4337
  %v4650 = vmax.f32 %v3596, %v4340
  %v4651 = vmax.f32 %v3597, %v4345
  %v4652 = vmax.f32 %v3598, %v4348
  %v4653 = vmax.f32 %v3599, %v4353
  %v4654 = vmax.f32 %v3600, %v4356
  %v4655 = vmax.f32 %v3601, %v4361
  %v4656 = vmax.f32 %v3602, %v4364
  %v4657 = vmax.f32 %v3603, %v4369
  %v4658 = vmax.f32 %v3604, %v4372
  %v4659 = vmax.f32 %v3605, %v4377
  %v4660 = vmax.f32 %v3606, %v4380
  %v4661 = vmax.f32 %v3607, %v4385
  %v4662 = vmax.f32 %v3608, %v4388
  %v4663 = vmax.f32 %v3609, %v4393
  %v4664 = vmax.f32 %v3610, %v4396
  %v4665 = vmax.f32 %v3611, %v4401
  %v4666 = vmax.f32 %v3612, %v4404
  %v4667 = vmax.f32 %v3613, %v4409
  %v4668 = vmax.f32 %v3614, %v4412
  %v4669 = vmax.f32 %v3615, %v4417
  %v4670 = vmax.f32 %v3616, %v4420
  %v4671 = vmax.f32 %v3617, %v4425
  %v4672 = vmax.f32 %v3618, %v4428
  %v4673 = vmax.f32 %v3619, %v4433
  %v4674 = vmax.f32 %v3620, %v4436
  %v4675 = vmax.f32 %v3621, %v4441
  %v4676 = vmax.f32 %v3622, %v4444
  %v4677 = vmax.f32 %v3623, %v4449
  %v4678 = vmax.f32 %v3624, %v4452
  %v4679 = vmax.f32 %v3625, %v4457
  %v4680 = vmax.f32 %v3626, %v4460
  %v4681 = vmax.f32 %v3627, %v4465
  %v4682 = vmax.f32 %v3628, %v4468
  %v4683 = vmax.f32 %v3629, %v4473
  %v4684 = vmax.f32 %v3630, %v4476
  %v4685 = vmax.f32 %v3631, %v4481
  %v4686 = vmax.f32 %v3632, %v4484
  %v4687 = vmax.f32 %v3633, %v4489
  %v4688 = vmax.f32 %v3634, %v4492
  %v4689 = vmax.f32 %v3635, %v4497
  %v4690 = vmax.f32 %v3636, %v4500
  %v4691 = vmax.f32 %v3637, %v4505
  %v4692 = vmax.f32 %v3638, %v4508
  %v4693 = vmax.f32 %v3639, %v4513
  %v4694 = vmax.f32 %v3640, %v4516
  %v4695 = vmax.f32 %v3641, %v4521
  %v4696 = vmax.f32 %v3642, %v4524
  %v4697 = vmax.f32 %v3643, %v4529
  %v4698 = vmax.f32 %v3644, %v4532
  %v4699 = vmax.f32 %v3645, %v4537
  %v4700 = vmax.f32 %v3646, %v4540
  %v4701 = vmax.f32 %v3647, %v4545
  %v4702 = vmax.f32 %v3648, %v4548
  %v4703 = vmax.f32 %v3649, %v4553
  %v4704 = vmax.f32 %v3650, %v4556
  %v4705 = vmax.f32 %v3651, %v4561
  %v4706 = vmax.f32 %v3652, %v4564
  %v4707 = vmax.f32 %v3653, %v4569
  %v4708 = vmax.f32 %v3654, %v4572
  %v4709 = vmax.f32 %v3655, %v4577
  %v4710 = vmax.f32 %v3656, %v4580
  %v4711 = vmax.f32 %v3657, %v4585
  %v4712 = vmax.f32 %v3658, %v4588
  %v4713 = vmax.f32 %v3659, %v4593
  %v4714 = vmax.f32 %v3660, %v4596
  %v4715 = vmax.f32 %v3661, %v4601
  %v4716 = vmax.f32 %v3662, %v4604
  %v4717 = vmax.f32 %v3663, %v4609
  %v4718 = vmax.f32 %v3664, %v4612
  %v4719 = vmax.f32 %v3665, %v4617
  %v4720 = vmax.f32 %v3666, %v4620
  %4721 = vst [vmem:[#allocation2] sm:$0xff] %v4623
  %4722 = vst [vmem:[#allocation2 + $0x8] sm:$0xff] %v4624
  %4723 = vst [vmem:[#allocation2 + $0x10] sm:$0xff] %v4625
  %4724 = vst [vmem:[#allocation2 + $0x18] sm:$0xff] %v4626
  %4725 = vst [vmem:[#allocation2 + $0x20] sm:$0xff] %v4627
  %4726 = vst [vmem:[#allocation2 + $0x28] sm:$0xff] %v4628
  %4727 = vst [vmem:[#allocation2 + $0x30] sm:$0xff] %v4629
  %4728 = vst [vmem:[#allocation2 + $0x38] sm:$0xff] %v4630
  %4729 = vst [vmem:[#allocation2 + $0x40] sm:$0xff] %v4631
  %4730 = vst [vmem:[#allocation2 + $0x48] sm:$0xff] %v4632
  %4731 = vst [vmem:[#allocation2 + $0x50] sm:$0xff] %v4633
  %4732 = vst [vmem:[#allocation2 + $0x58] sm:$0xff] %v4634
  %4733 = vst [vmem:[#allocation2 + $0x60] sm:$0xff] %v4635
  %4734 = vst [vmem:[#allocation2 + $0x68] sm:$0xff] %v4636
  %4735 = vst [vmem:[#allocation2 + $0x70] sm:$0xff] %v4637
  %4736 = vst [vmem:[#allocation2 + $0x78] sm:$0xff] %v4638
  %4737 = vst [vmem:[#allocation2 + $0x80] sm:$0xff] %v4639
  %4738 = vst [vmem:[#allocation2 + $0x88] sm:$0xff] %v4640
  %4739 = vst [vmem:[#allocation2 + $0x90] sm:$0xff] %v4641
  %4740 = vst [vmem:[#allocation2 + $0x98] sm:$0xff] %v4642
  %4741 = vst [vmem:[#allocation2 + $0xa0] sm:$0xff] %v4643
  %4742 = vst [vmem:[#allocation2 + $0xa8] sm:$0xff] %v4644
  %4743 = vst [vmem:[#allocation2 + $0xb0] sm:$0xff] %v4645
  %4744 = vst [vmem:[#allocation2 + $0xb8] sm:$0xff] %v4646
  %4745 = vst [vmem:[#allocation2 + $0xc0] sm:$0xff] %v4647
  %4746 = vst [vmem:[#allocation2 + $0xc8] sm:$0xff] %v4648
  %4747 = vst [vmem:[#allocation2 + $0xd0] sm:$0xff] %v4649
  %4748 = vst [vmem:[#allocation2 + $0xd8] sm:$0xff] %v4650
  %4749 = vst [vmem:[#allocation2 + $0xe0] sm:$0xff] %v4651
  %4750 = vst [vmem:[#allocation2 + $0xe8] sm:$0xff] %v4652
  %4751 = vst [vmem:[#allocation2 + $0xf0] sm:$0xff] %v4653
  %4752 = vst [vmem:[#allocation2 + $0xf8] sm:$0xff] %v4654
  %4753 = vst [vmem:[#allocation2 + $0x100] sm:$0xff] %v4655
  %4754 = vst [vmem:[#allocation2 + $0x108] sm:$0xff] %v4656
  %4755 = vst [vmem:[#allocation2 + $0x110] sm:$0xff] %v4657
  %4756 = vst [vmem:[#allocation2 + $0x118] sm:$0xff] %v4658
  %4757 = vst [vmem:[#allocation2 + $0x120] sm:$0xff] %v4659
  %4758 = vst [vmem:[#allocation2 + $0x128] sm:$0xff] %v4660
  %4759 = vst [vmem:[#allocation2 + $0x130] sm:$0xff] %v4661
  %4760 = vst [vmem:[#allocation2 + $0x138] sm:$0xff] %v4662
  %4761 = vst [vmem:[#allocation2 + $0x140] sm:$0xff] %v4663
  %4762 = vst [vmem:[#allocation2 + $0x148] sm:$0xff] %v4664
  %4763 = vst [vmem:[#allocation2 + $0x150] sm:$0xff] %v4665
  %4764 = vst [vmem:[#allocation2 + $0x158] sm:$0xff] %v4666
  %4765 = vst [vmem:[#allocation2 + $0x160] sm:$0xff] %v4667
  %4766 = vst [vmem:[#allocation2 + $0x168] sm:$0xff] %v4668
  %4767 = vst [vmem:[#allocation2 + $0x170] sm:$0xff] %v4669
  %4768 = vst [vmem:[#allocation2 + $0x178] sm:$0xff] %v4670
  %4769 = vst [vmem:[#allocation2 + $0x180] sm:$0xff] %v4671
  %4770 = vst [vmem:[#allocation2 + $0x188] sm:$0xff] %v4672
  %4771 = vst [vmem:[#allocation2 + $0x190] sm:$0xff] %v4673
  %4772 = vst [vmem:[#allocation2 + $0x198] sm:$0xff] %v4674
  %4773 = vst [vmem:[#allocation2 + $0x1a0] sm:$0xff] %v4675
  %4774 = vst [vmem:[#allocation2 + $0x1a8] sm:$0xff] %v4676
  %4775 = vst [vmem:[#allocation2 + $0x1b0] sm:$0xff] %v4677
  %4776 = vst [vmem:[#allocation2 + $0x1b8] sm:$0xff] %v4678
  %4777 = vst [vmem:[#allocation2 + $0x1c0] sm:$0xff] %v4679
  %4778 = vst [vmem:[#allocation2 + $0x1c8] sm:$0xff] %v4680
  %4779 = vst [vmem:[#allocation2 + $0x1d0] sm:$0xff] %v4681
  %4780 = vst [vmem:[#allocation2 + $0x1d8] sm:$0xff] %v4682
  %4781 = vst [vmem:[#allocation2 + $0x1e0] sm:$0xff] %v4683
  %4782 = vst [vmem:[#allocation2 + $0x1e8] sm:$0xff] %v4684
  %4783 = vst [vmem:[#allocation2 + $0x1f0] sm:$0xff] %v4685
  %4784 = vst [vmem:[#allocation2 + $0x1f8] sm:$0xff] %v4686
  %4785 = vst [vmem:[#allocation2 + $0x200] sm:$0xff] %v4687
  %4786 = vst [vmem:[#allocation2 + $0x208] sm:$0xff] %v4688
  %4787 = vst [vmem:[#allocation2 + $0x210] sm:$0xff] %v4689
  %4788 = vst [vmem:[#allocation2 + $0x218] sm:$0xff] %v4690
  %4789 = vst [vmem:[#allocation2 + $0x220] sm:$0xff] %v4691
  %4790 = vst [vmem:[#allocation2 + $0x228] sm:$0xff] %v4692
  %4791 = vst [vmem:[#allocation2 + $0x230] sm:$0xff] %v4693
  %4792 = vst [vmem:[#allocation2 + $0x238] sm:$0xff] %v4694
  %4793 = vst [vmem:[#allocation2 + $0x240] sm:$0xff] %v4695
  %4794 = vst [vmem:[#allocation2 + $0x248] sm:$0xff] %v4696
  %4795 = vst [vmem:[#allocation2 + $0x250] sm:$0xff] %v4697
  %4796 = vst [vmem:[#allocation2 + $0x258] sm:$0xff] %v4698
  %4797 = vst [vmem:[#allocation2 + $0x260] sm:$0xff] %v4699
  %4798 = vst [vmem:[#allocation2 + $0x268] sm:$0xff] %v4700
  %4799 = vst [vmem:[#allocation2 + $0x270] sm:$0xff] %v4701
  %4800 = vst [vmem:[#allocation2 + $0x278] sm:$0xff] %v4702
  %4801 = vst [vmem:[#allocation2 + $0x280] sm:$0xff] %v4703
  %4802 = vst [vmem:[#allocation2 + $0x288] sm:$0xff] %v4704
  %4803 = vst [vmem:[#allocation2 + $0x290] sm:$0xff] %v4705
  %4804 = vst [vmem:[#allocation2 + $0x298] sm:$0xff] %v4706
  %4805 = vst [vmem:[#allocation2 + $0x2a0] sm:$0xff] %v4707
  %4806 = vst [vmem:[#allocation2 + $0x2a8] sm:$0xff] %v4708
  %4807 = vst [vmem:[#allocation2 + $0x2b0] sm:$0xff] %v4709
  %4808 = vst [vmem:[#allocation2 + $0x2b8] sm:$0xff] %v4710
  %4809 = vst [vmem:[#allocation2 + $0x2c0] sm:$0xff] %v4711
  %4810 = vst [vmem:[#allocation2 + $0x2c8] sm:$0xff] %v4712
  %4811 = vst [vmem:[#allocation2 + $0x2d0] sm:$0xff] %v4713
  %4812 = vst [vmem:[#allocation2 + $0x2d8] sm:$0xff] %v4714
  %4813 = vst [vmem:[#allocation2 + $0x2e0] sm:$0xff] %v4715
  %4814 = vst [vmem:[#allocation2 + $0x2e8] sm:$0xff] %v4716
  %4815 = vst [vmem:[#allocation2 + $0x2f0] sm:$0xff] %v4717
  %4816 = vst [vmem:[#allocation2 + $0x2f8] sm:$0xff] %v4718
  %4817 = vst [vmem:[#allocation2 + $0x300] sm:$0xff] %v4719
  %4818 = vst [vmem:[#allocation2 + $0x308] sm:$0xff] %v4720
  %v4819 = vld [vmem:[#allocation2] sm:$0xff]
  %v4820 = vld [vmem:[#allocation2 + $0x8] sm:$0xff]
  %v4821 = vld [vmem:[#allocation2 + $0x10] sm:$0xff]
  %v4822 = vld [vmem:[#allocation2 + $0x18] sm:$0xff]
  %v4823 = vld [vmem:[#allocation2 + $0x20] sm:$0xff]
  %v4824 = vld [vmem:[#allocation2 + $0x28] sm:$0xff]
  %v4825 = vld [vmem:[#allocation2 + $0x30] sm:$0xff]
  %v4826 = vld [vmem:[#allocation2 + $0x38] sm:$0xff]
  %v4827 = vld [vmem:[#allocation2 + $0x40] sm:$0xff]
  %v4828 = vld [vmem:[#allocation2 + $0x48] sm:$0xff]
  %v4829 = vld [vmem:[#allocation2 + $0x50] sm:$0xff]
  %v4830 = vld [vmem:[#allocation2 + $0x58] sm:$0xff]
  %v4831 = vld [vmem:[#allocation2 + $0x60] sm:$0xff]
  %v4832 = vld [vmem:[#allocation2 + $0x68] sm:$0xff]
  %v4833 = vld [vmem:[#allocation2 + $0x70] sm:$0xff]
  %v4834 = vld [vmem:[#allocation2 + $0x78] sm:$0xff]
  %v4835 = vld [vmem:[#allocation2 + $0x80] sm:$0xff]
  %v4836 = vld [vmem:[#allocation2 + $0x88] sm:$0xff]
  %v4837 = vld [vmem:[#allocation2 + $0x90] sm:$0xff]
  %v4838 = vld [vmem:[#allocation2 + $0x98] sm:$0xff]
  %v4839 = vld [vmem:[#allocation2 + $0xa0] sm:$0xff]
  %v4840 = vld [vmem:[#allocation2 + $0xa8] sm:$0xff]
  %v4841 = vld [vmem:[#allocation2 + $0xb0] sm:$0xff]
  %v4842 = vld [vmem:[#allocation2 + $0xb8] sm:$0xff]
  %v4843 = vld [vmem:[#allocation2 + $0xc0] sm:$0xff]
  %v4844 = vld [vmem:[#allocation2 + $0xc8] sm:$0xff]
  %v4845 = vld [vmem:[#allocation2 + $0xd0] sm:$0xff]
  %v4846 = vld [vmem:[#allocation2 + $0xd8] sm:$0xff]
  %v4847 = vld [vmem:[#allocation2 + $0xe0] sm:$0xff]
  %v4848 = vld [vmem:[#allocation2 + $0xe8] sm:$0xff]
  %v4849 = vld [vmem:[#allocation2 + $0xf0] sm:$0xff]
  %v4850 = vld [vmem:[#allocation2 + $0xf8] sm:$0xff]
  %v4851 = vld [vmem:[#allocation2 + $0x100] sm:$0xff]
  %v4852 = vld [vmem:[#allocation2 + $0x108] sm:$0xff]
  %v4853 = vld [vmem:[#allocation2 + $0x110] sm:$0xff]
  %v4854 = vld [vmem:[#allocation2 + $0x118] sm:$0xff]
  %v4855 = vld [vmem:[#allocation2 + $0x120] sm:$0xff]
  %v4856 = vld [vmem:[#allocation2 + $0x128] sm:$0xff]
  %v4857 = vld [vmem:[#allocation2 + $0x130] sm:$0xff]
  %v4858 = vld [vmem:[#allocation2 + $0x138] sm:$0xff]
  %v4859 = vld [vmem:[#allocation2 + $0x140] sm:$0xff]
  %v4860 = vld [vmem:[#allocation2 + $0x148] sm:$0xff]
  %v4861 = vld [vmem:[#allocation2 + $0x150] sm:$0xff]
  %v4862 = vld [vmem:[#allocation2 + $0x158] sm:$0xff]
  %v4863 = vld [vmem:[#allocation2 + $0x160] sm:$0xff]
  %v4864 = vld [vmem:[#allocation2 + $0x168] sm:$0xff]
  %v4865 = vld [vmem:[#allocation2 + $0x170] sm:$0xff]
  %v4866 = vld [vmem:[#allocation2 + $0x178] sm:$0xff]
  %v4867 = vld [vmem:[#allocation2 + $0x180] sm:$0xff]
  %v4868 = vld [vmem:[#allocation2 + $0x188] sm:$0xff]
  %v4869 = vld [vmem:[#allocation2 + $0x190] sm:$0xff]
  %v4870 = vld [vmem:[#allocation2 + $0x198] sm:$0xff]
  %v4871 = vld [vmem:[#allocation2 + $0x1a0] sm:$0xff]
  %v4872 = vld [vmem:[#allocation2 + $0x1a8] sm:$0xff]
  %v4873 = vld [vmem:[#allocation2 + $0x1b0] sm:$0xff]
  %v4874 = vld [vmem:[#allocation2 + $0x1b8] sm:$0xff]
  %v4875 = vld [vmem:[#allocation2 + $0x1c0] sm:$0xff]
  %v4876 = vld [vmem:[#allocation2 + $0x1c8] sm:$0xff]
  %v4877 = vld [vmem:[#allocation2 + $0x1d0] sm:$0xff]
  %v4878 = vld [vmem:[#allocation2 + $0x1d8] sm:$0xff]
  %v4879 = vld [vmem:[#allocation2 + $0x1e0] sm:$0xff]
  %v4880 = vld [vmem:[#allocation2 + $0x1e8] sm:$0xff]
  %v4881 = vld [vmem:[#allocation2 + $0x1f0] sm:$0xff]
  %v4882 = vld [vmem:[#allocation2 + $0x1f8] sm:$0xff]
  %v4883 = vld [vmem:[#allocation2 + $0x200] sm:$0xff]
  %v4884 = vld [vmem:[#allocation2 + $0x208] sm:$0xff]
  %v4885 = vld [vmem:[#allocation2 + $0x210] sm:$0xff]
  %v4886 = vld [vmem:[#allocation2 + $0x218] sm:$0xff]
  %v4887 = vld [vmem:[#allocation2 + $0x220] sm:$0xff]
  %v4888 = vld [vmem:[#allocation2 + $0x228] sm:$0xff]
  %v4889 = vld [vmem:[#allocation2 + $0x230] sm:$0xff]
  %v4890 = vld [vmem:[#allocation2 + $0x238] sm:$0xff]
  %v4891 = vld [vmem:[#allocation2 + $0x240] sm:$0xff]
  %v4892 = vld [vmem:[#allocation2 + $0x248] sm:$0xff]
  %v4893 = vld [vmem:[#allocation2 + $0x250] sm:$0xff]
  %v4894 = vld [vmem:[#allocation2 + $0x258] sm:$0xff]
  %v4895 = vld [vmem:[#allocation2 + $0x260] sm:$0xff]
  %v4896 = vld [vmem:[#allocation2 + $0x268] sm:$0xff]
  %v4897 = vld [vmem:[#allocation2 + $0x270] sm:$0xff]
  %v4898 = vld [vmem:[#allocation2 + $0x278] sm:$0xff]
  %v4899 = vld [vmem:[#allocation2 + $0x280] sm:$0xff]
  %v4900 = vld [vmem:[#allocation2 + $0x288] sm:$0xff]
  %v4901 = vld [vmem:[#allocation2 + $0x290] sm:$0xff]
  %v4902 = vld [vmem:[#allocation2 + $0x298] sm:$0xff]
  %v4903 = vld [vmem:[#allocation2 + $0x2a0] sm:$0xff]
  %v4904 = vld [vmem:[#allocation2 + $0x2a8] sm:$0xff]
  %v4905 = vld [vmem:[#allocation2 + $0x2b0] sm:$0xff]
  %v4906 = vld [vmem:[#allocation2 + $0x2b8] sm:$0xff]
  %v4907 = vld [vmem:[#allocation2 + $0x2c0] sm:$0xff]
  %v4908 = vld [vmem:[#allocation2 + $0x2c8] sm:$0xff]
  %v4909 = vld [vmem:[#allocation2 + $0x2d0] sm:$0xff]
  %v4910 = vld [vmem:[#allocation2 + $0x2d8] sm:$0xff]
  %v4911 = vld [vmem:[#allocation2 + $0x2e0] sm:$0xff]
  %v4912 = vld [vmem:[#allocation2 + $0x2e8] sm:$0xff]
  %v4913 = vld [vmem:[#allocation2 + $0x2f0] sm:$0xff]
  %v4914 = vld [vmem:[#allocation2 + $0x2f8] sm:$0xff]
  %v4915 = vld [vmem:[#allocation2 + $0x300] sm:$0xff]
  %v4916 = vld [vmem:[#allocation2 + $0x308] sm:$0xff]
  %v4917 = vld [vmem:[%s2] sm:$0x1]
  %v4919 = vlaneseq
  %v4920 = vshrl.u32 %v4919, 7
  %v4921 = vsub.s32 0, %v4920
  %v4922 = vrot.slane %v4917, %v4921
  %v4924 = vadd.f32 %v4819, %v4922
  %v4925 = vadd.f32 %v4820, %v4922
  %v4926 = vadd.f32 %v4821, %v4922
  %v4927 = vadd.f32 %v4822, %v4922
  %v4928 = vadd.f32 %v4823, %v4922
  %v4929 = vadd.f32 %v4824, %v4922
  %v4930 = vadd.f32 %v4825, %v4922
  %v4931 = vadd.f32 %v4826, %v4922
  %v4932 = vadd.f32 %v4827, %v4922
  %v4933 = vadd.f32 %v4828, %v4922
  %v4934 = vadd.f32 %v4829, %v4922
  %v4935 = vadd.f32 %v4830, %v4922
  %v4936 = vadd.f32 %v4831, %v4922
  %v4937 = vadd.f32 %v4832, %v4922
  %v4938 = vadd.f32 %v4833, %v4922
  %v4939 = vadd.f32 %v4834, %v4922
  %v4940 = vadd.f32 %v4835, %v4922
  %v4941 = vadd.f32 %v4836, %v4922
  %v4942 = vadd.f32 %v4837, %v4922
  %v4943 = vadd.f32 %v4838, %v4922
  %v4944 = vadd.f32 %v4839, %v4922
  %v4945 = vadd.f32 %v4840, %v4922
  %v4946 = vadd.f32 %v4841, %v4922
  %v4947 = vadd.f32 %v4842, %v4922
  %v4948 = vadd.f32 %v4843, %v4922
  %v4949 = vadd.f32 %v4844, %v4922
  %v4950 = vadd.f32 %v4845, %v4922
  %v4951 = vadd.f32 %v4846, %v4922
  %v4952 = vadd.f32 %v4847, %v4922
  %v4953 = vadd.f32 %v4848, %v4922
  %v4954 = vadd.f32 %v4849, %v4922
  %v4955 = vadd.f32 %v4850, %v4922
  %v4956 = vadd.f32 %v4851, %v4922
  %v4957 = vadd.f32 %v4852, %v4922
  %v4958 = vadd.f32 %v4853, %v4922
  %v4959 = vadd.f32 %v4854, %v4922
  %v4960 = vadd.f32 %v4855, %v4922
  %v4961 = vadd.f32 %v4856, %v4922
  %v4962 = vadd.f32 %v4857, %v4922
  %v4963 = vadd.f32 %v4858, %v4922
  %v4964 = vadd.f32 %v4859, %v4922
  %v4965 = vadd.f32 %v4860, %v4922
  %v4966 = vadd.f32 %v4861, %v4922
  %v4967 = vadd.f32 %v4862, %v4922
  %v4968 = vadd.f32 %v4863, %v4922
  %v4969 = vadd.f32 %v4864, %v4922
  %v4970 = vadd.f32 %v4865, %v4922
  %v4971 = vadd.f32 %v4866, %v4922
  %v4972 = vadd.f32 %v4867, %v4922
  %v4973 = vadd.f32 %v4868, %v4922
  %v4974 = vadd.f32 %v4869, %v4922
  %v4975 = vadd.f32 %v4870, %v4922
  %v4976 = vadd.f32 %v4871, %v4922
  %v4977 = vadd.f32 %v4872, %v4922
  %v4978 = vadd.f32 %v4873, %v4922
  %v4979 = vadd.f32 %v4874, %v4922
  %v4980 = vadd.f32 %v4875, %v4922
  %v4981 = vadd.f32 %v4876, %v4922
  %v4982 = vadd.f32 %v4877, %v4922
  %v4983 = vadd.f32 %v4878, %v4922
  %v4984 = vadd.f32 %v4879, %v4922
  %v4985 = vadd.f32 %v4880, %v4922
  %v4986 = vadd.f32 %v4881, %v4922
  %v4987 = vadd.f32 %v4882, %v4922
  %v4988 = vadd.f32 %v4883, %v4922
  %v4989 = vadd.f32 %v4884, %v4922
  %v4990 = vadd.f32 %v4885, %v4922
  %v4991 = vadd.f32 %v4886, %v4922
  %v4992 = vadd.f32 %v4887, %v4922
  %v4993 = vadd.f32 %v4888, %v4922
  %v4994 = vadd.f32 %v4889, %v4922
  %v4995 = vadd.f32 %v4890, %v4922
  %v4996 = vadd.f32 %v4891, %v4922
  %v4997 = vadd.f32 %v4892, %v4922
  %v4998 = vadd.f32 %v4893, %v4922
  %v4999 = vadd.f32 %v4894, %v4922
  %v5000 = vadd.f32 %v4895, %v4922
  %v5001 = vadd.f32 %v4896, %v4922
  %v5002 = vadd.f32 %v4897, %v4922
  %v5003 = vadd.f32 %v4898, %v4922
  %v5004 = vadd.f32 %v4899, %v4922
  %v5005 = vadd.f32 %v4900, %v4922
  %v5006 = vadd.f32 %v4901, %v4922
  %v5007 = vadd.f32 %v4902, %v4922
  %v5008 = vadd.f32 %v4903, %v4922
  %v5009 = vadd.f32 %v4904, %v4922
  %v5010 = vadd.f32 %v4905, %v4922
  %v5011 = vadd.f32 %v4906, %v4922
  %v5012 = vadd.f32 %v4907, %v4922
  %v5013 = vadd.f32 %v4908, %v4922
  %v5014 = vadd.f32 %v4909, %v4922
  %v5015 = vadd.f32 %v4910, %v4922
  %v5016 = vadd.f32 %v4911, %v4922
  %v5017 = vadd.f32 %v4912, %v4922
  %v5018 = vadd.f32 %v4913, %v4922
  %v5019 = vadd.f32 %v4914, %v4922
  %v5020 = vadd.f32 %v4915, %v4922
  %v5021 = vadd.f32 %v4916, %v4922
  %v5022 = vmax.f32 %v4924, 0.0
  %v5023 = vmax.f32 %v4925, 0.0
  %v5024 = vmax.f32 %v4926, 0.0
  %v5025 = vmax.f32 %v4927, 0.0
  %v5026 = vmax.f32 %v4928, 0.0
  %v5027 = vmax.f32 %v4929, 0.0
  %v5028 = vmax.f32 %v4930, 0.0
  %v5029 = vmax.f32 %v4931, 0.0
  %v5030 = vmax.f32 %v4932, 0.0
  %v5031 = vmax.f32 %v4933, 0.0
  %v5032 = vmax.f32 %v4934, 0.0
  %v5033 = vmax.f32 %v4935, 0.0
  %v5034 = vmax.f32 %v4936, 0.0
  %v5035 = vmax.f32 %v4937, 0.0
  %v5036 = vmax.f32 %v4938, 0.0
  %v5037 = vmax.f32 %v4939, 0.0
  %v5038 = vmax.f32 %v4940, 0.0
  %v5039 = vmax.f32 %v4941, 0.0
  %v5040 = vmax.f32 %v4942, 0.0
  %v5041 = vmax.f32 %v4943, 0.0
  %v5042 = vmax.f32 %v4944, 0.0
  %v5043 = vmax.f32 %v4945, 0.0
  %v5044 = vmax.f32 %v4946, 0.0
  %v5045 = vmax.f32 %v4947, 0.0
  %v5046 = vmax.f32 %v4948, 0.0
  %v5047 = vmax.f32 %v4949, 0.0
  %v5048 = vmax.f32 %v4950, 0.0
  %v5049 = vmax.f32 %v4951, 0.0
  %v5050 = vmax.f32 %v4952, 0.0
  %v5051 = vmax.f32 %v4953, 0.0
  %v5052 = vmax.f32 %v4954, 0.0
  %v5053 = vmax.f32 %v4955, 0.0
  %v5054 = vmax.f32 %v4956, 0.0
  %v5055 = vmax.f32 %v4957, 0.0
  %v5056 = vmax.f32 %v4958, 0.0
  %v5057 = vmax.f32 %v4959, 0.0
  %v5058 = vmax.f32 %v4960, 0.0
  %v5059 = vmax.f32 %v4961, 0.0
  %v5060 = vmax.f32 %v4962, 0.0
  %v5061 = vmax.f32 %v4963, 0.0
  %v5062 = vmax.f32 %v4964, 0.0
  %v5063 = vmax.f32 %v4965, 0.0
  %v5064 = vmax.f32 %v4966, 0.0
  %v5065 = vmax.f32 %v4967, 0.0
  %v5066 = vmax.f32 %v4968, 0.0
  %v5067 = vmax.f32 %v4969, 0.0
  %v5068 = vmax.f32 %v4970, 0.0
  %v5069 = vmax.f32 %v4971, 0.0
  %v5070 = vmax.f32 %v4972, 0.0
  %v5071 = vmax.f32 %v4973, 0.0
  %v5072 = vmax.f32 %v4974, 0.0
  %v5073 = vmax.f32 %v4975, 0.0
  %v5074 = vmax.f32 %v4976, 0.0
  %v5075 = vmax.f32 %v4977, 0.0
  %v5076 = vmax.f32 %v4978, 0.0
  %v5077 = vmax.f32 %v4979, 0.0
  %v5078 = vmax.f32 %v4980, 0.0
  %v5079 = vmax.f32 %v4981, 0.0
  %v5080 = vmax.f32 %v4982, 0.0
  %v5081 = vmax.f32 %v4983, 0.0
  %v5082 = vmax.f32 %v4984, 0.0
  %v5083 = vmax.f32 %v4985, 0.0
  %v5084 = vmax.f32 %v4986, 0.0
  %v5085 = vmax.f32 %v4987, 0.0
  %v5086 = vmax.f32 %v4988, 0.0
  %v5087 = vmax.f32 %v4989, 0.0
  %v5088 = vmax.f32 %v4990, 0.0
  %v5089 = vmax.f32 %v4991, 0.0
  %v5090 = vmax.f32 %v4992, 0.0
  %v5091 = vmax.f32 %v4993, 0.0
  %v5092 = vmax.f32 %v4994, 0.0
  %v5093 = vmax.f32 %v4995, 0.0
  %v5094 = vmax.f32 %v4996, 0.0
  %v5095 = vmax.f32 %v4997, 0.0
  %v5096 = vmax.f32 %v4998, 0.0
  %v5097 = vmax.f32 %v4999, 0.0
  %v5098 = vmax.f32 %v5000, 0.0
  %v5099 = vmax.f32 %v5001, 0.0
  %v5100 = vmax.f32 %v5002, 0.0
  %v5101 = vmax.f32 %v5003, 0.0
  %v5102 = vmax.f32 %v5004, 0.0
  %v5103 = vmax.f32 %v5005, 0.0
  %v5104 = vmax.f32 %v5006, 0.0
  %v5105 = vmax.f32 %v5007, 0.0
  %v5106 = vmax.f32 %v5008, 0.0
  %v5107 = vmax.f32 %v5009, 0.0
  %v5108 = vmax.f32 %v5010, 0.0
  %v5109 = vmax.f32 %v5011, 0.0
  %v5110 = vmax.f32 %v5012, 0.0
  %v5111 = vmax.f32 %v5013, 0.0
  %v5112 = vmax.f32 %v5014, 0.0
  %v5113 = vmax.f32 %v5015, 0.0
  %v5114 = vmax.f32 %v5016, 0.0
  %v5115 = vmax.f32 %v5017, 0.0
  %v5116 = vmax.f32 %v5018, 0.0
  %v5117 = vmax.f32 %v5019, 0.0
  %v5118 = vmax.f32 %v5020, 0.0
  %v5119 = vmax.f32 %v5021, 0.0
  %v5120 = vpack.c.bf16 %v5023, %v5022
  %v5121 = vpack.c.bf16 %v5025, %v5024
  %v5122 = vpack.c.bf16 %v5027, %v5026
  %v5123 = vpack.c.bf16 %v5029, %v5028
  %v5124 = vpack.c.bf16 %v5031, %v5030
  %v5125 = vpack.c.bf16 %v5033, %v5032
  %v5126 = vpack.c.bf16 %v5035, %v5034
  %v5127 = vpack.c.bf16 %v5037, %v5036
  %v5128 = vpack.c.bf16 %v5039, %v5038
  %v5129 = vpack.c.bf16 %v5041, %v5040
  %v5130 = vpack.c.bf16 %v5043, %v5042
  %v5131 = vpack.c.bf16 %v5045, %v5044
  %v5132 = vpack.c.bf16 %v5047, %v5046
  %v5133 = vpack.c.bf16 %v5049, %v5048
  %v5134 = vpack.c.bf16 %v5051, %v5050
  %v5135 = vpack.c.bf16 %v5053, %v5052
  %v5136 = vpack.c.bf16 %v5055, %v5054
  %v5137 = vpack.c.bf16 %v5057, %v5056
  %v5138 = vpack.c.bf16 %v5059, %v5058
  %v5139 = vpack.c.bf16 %v5061, %v5060
  %v5140 = vpack.c.bf16 %v5063, %v5062
  %v5141 = vpack.c.bf16 %v5065, %v5064
  %v5142 = vpack.c.bf16 %v5067, %v5066
  %v5143 = vpack.c.bf16 %v5069, %v5068
  %v5144 = vpack.c.bf16 %v5071, %v5070
  %v5145 = vpack.c.bf16 %v5073, %v5072
  %v5146 = vpack.c.bf16 %v5075, %v5074
  %v5147 = vpack.c.bf16 %v5077, %v5076
  %v5148 = vpack.c.bf16 %v5079, %v5078
  %v5149 = vpack.c.bf16 %v5081, %v5080
  %v5150 = vpack.c.bf16 %v5083, %v5082
  %v5151 = vpack.c.bf16 %v5085, %v5084
  %v5152 = vpack.c.bf16 %v5087, %v5086
  %v5153 = vpack.c.bf16 %v5089, %v5088
  %v5154 = vpack.c.bf16 %v5091, %v5090
  %v5155 = vpack.c.bf16 %v5093, %v5092
  %v5156 = vpack.c.bf16 %v5095, %v5094
  %v5157 = vpack.c.bf16 %v5097, %v5096
  %v5158 = vpack.c.bf16 %v5099, %v5098
  %v5159 = vpack.c.bf16 %v5101, %v5100
  %v5160 = vpack.c.bf16 %v5103, %v5102
  %v5161 = vpack.c.bf16 %v5105, %v5104
  %v5162 = vpack.c.bf16 %v5107, %v5106
  %v5163 = vpack.c.bf16 %v5109, %v5108
  %v5164 = vpack.c.bf16 %v5111, %v5110
  %v5165 = vpack.c.bf16 %v5113, %v5112
  %v5166 = vpack.c.bf16 %v5115, %v5114
  %v5167 = vpack.c.bf16 %v5117, %v5116
  %v5168 = vpack.c.bf16 %v5119, %v5118
  %v5218 = vunpack.c.l.b16 %v5120
  %v5219 = vunpack.c.h.b16 %v5120
  %v5220 = vunpack.c.l.b16 %v5121
  %v5221 = vunpack.c.h.b16 %v5121
  %v5222 = vunpack.c.l.b16 %v5122
  %v5223 = vunpack.c.h.b16 %v5122
  %v5224 = vunpack.c.l.b16 %v5123
  %v5225 = vunpack.c.h.b16 %v5123
  %v5226 = vunpack.c.l.b16 %v5124
  %v5227 = vunpack.c.h.b16 %v5124
  %v5228 = vunpack.c.l.b16 %v5125
  %v5229 = vunpack.c.h.b16 %v5125
  %v5230 = vunpack.c.l.b16 %v5126
  %v5231 = vunpack.c.h.b16 %v5126
  %v5232 = vunpack.c.l.b16 %v5127
  %v5233 = vunpack.c.h.b16 %v5127
  %v5234 = vunpack.c.l.b16 %v5128
  %v5235 = vunpack.c.h.b16 %v5128
  %v5236 = vunpack.c.l.b16 %v5129
  %v5237 = vunpack.c.h.b16 %v5129
  %v5238 = vunpack.c.l.b16 %v5130
  %v5239 = vunpack.c.h.b16 %v5130
  %v5240 = vunpack.c.l.b16 %v5131
  %v5241 = vunpack.c.h.b16 %v5131
  %v5242 = vunpack.c.l.b16 %v5132
  %v5243 = vunpack.c.h.b16 %v5132
  %v5244 = vunpack.c.l.b16 %v5133
  %v5245 = vunpack.c.h.b16 %v5133
  %v5246 = vunpack.c.l.b16 %v5134
  %v5247 = vunpack.c.h.b16 %v5134
  %v5248 = vunpack.c.l.b16 %v5135
  %v5249 = vunpack.c.h.b16 %v5135
  %v5250 = vunpack.c.l.b16 %v5136
  %v5251 = vunpack.c.h.b16 %v5136
  %v5252 = vunpack.c.l.b16 %v5137
  %v5253 = vunpack.c.h.b16 %v5137
  %v5254 = vunpack.c.l.b16 %v5138
  %v5255 = vunpack.c.h.b16 %v5138
  %v5256 = vunpack.c.l.b16 %v5139
  %v5257 = vunpack.c.h.b16 %v5139
  %v5258 = vunpack.c.l.b16 %v5140
  %v5259 = vunpack.c.h.b16 %v5140
  %v5260 = vunpack.c.l.b16 %v5141
  %v5261 = vunpack.c.h.b16 %v5141
  %v5262 = vunpack.c.l.b16 %v5142
  %v5263 = vunpack.c.h.b16 %v5142
  %v5264 = vunpack.c.l.b16 %v5143
  %v5265 = vunpack.c.h.b16 %v5143
  %v5266 = vunpack.c.l.b16 %v5144
  %v5267 = vunpack.c.h.b16 %v5144
  %v5268 = vunpack.c.l.b16 %v5145
  %v5269 = vunpack.c.h.b16 %v5145
  %v5270 = vunpack.c.l.b16 %v5146
  %v5271 = vunpack.c.h.b16 %v5146
  %v5272 = vunpack.c.l.b16 %v5147
  %v5273 = vunpack.c.h.b16 %v5147
  %v5274 = vunpack.c.l.b16 %v5148
  %v5275 = vunpack.c.h.b16 %v5148
  %v5276 = vunpack.c.l.b16 %v5149
  %v5277 = vunpack.c.h.b16 %v5149
  %v5278 = vunpack.c.l.b16 %v5150
  %v5279 = vunpack.c.h.b16 %v5150
  %v5280 = vunpack.c.l.b16 %v5151
  %v5281 = vunpack.c.h.b16 %v5151
  %v5282 = vunpack.c.l.b16 %v5152
  %v5283 = vunpack.c.h.b16 %v5152
  %v5284 = vunpack.c.l.b16 %v5153
  %v5285 = vunpack.c.h.b16 %v5153
  %v5286 = vunpack.c.l.b16 %v5154
  %v5287 = vunpack.c.h.b16 %v5154
  %v5288 = vunpack.c.l.b16 %v5155
  %v5289 = vunpack.c.h.b16 %v5155
  %v5290 = vunpack.c.l.b16 %v5156
  %v5291 = vunpack.c.h.b16 %v5156
  %v5292 = vunpack.c.l.b16 %v5157
  %v5293 = vunpack.c.h.b16 %v5157
  %v5294 = vunpack.c.l.b16 %v5158
  %v5295 = vunpack.c.h.b16 %v5158
  %v5296 = vunpack.c.l.b16 %v5159
  %v5297 = vunpack.c.h.b16 %v5159
  %v5298 = vunpack.c.l.b16 %v5160
  %v5299 = vunpack.c.h.b16 %v5160
  %v5300 = vunpack.c.l.b16 %v5161
  %v5301 = vunpack.c.h.b16 %v5161
  %v5302 = vunpack.c.l.b16 %v5162
  %v5303 = vunpack.c.h.b16 %v5162
  %v5304 = vunpack.c.l.b16 %v5163
  %v5305 = vunpack.c.h.b16 %v5163
  %v5306 = vunpack.c.l.b16 %v5164
  %v5307 = vunpack.c.h.b16 %v5164
  %v5308 = vunpack.c.l.b16 %v5165
  %v5309 = vunpack.c.h.b16 %v5165
  %v5310 = vunpack.c.l.b16 %v5166
  %v5311 = vunpack.c.h.b16 %v5166
  %v5312 = vunpack.c.l.b16 %v5167
  %v5313 = vunpack.c.h.b16 %v5167
  %v5314 = vunpack.c.l.b16 %v5168
  %v5315 = vunpack.c.h.b16 %v5168
  %v5316 = vpack.c.b16 %v5218, %v5218
  %v5317 = vpack.c.b16 %v5219, %v5219
  %v5318 = vpack.c.b16 %v5220, %v5220
  %v5319 = vpack.c.b16 %v5221, %v5221
  %v5320 = vpack.c.b16 %v5222, %v5222
  %v5321 = vpack.c.b16 %v5223, %v5223
  %v5322 = vpack.c.b16 %v5224, %v5224
  %v5323 = vpack.c.b16 %v5225, %v5225
  %v5324 = vpack.c.b16 %v5226, %v5226
  %v5325 = vpack.c.b16 %v5227, %v5227
  %v5326 = vpack.c.b16 %v5228, %v5228
  %v5327 = vpack.c.b16 %v5229, %v5229
  %v5328 = vpack.c.b16 %v5230, %v5230
  %v5329 = vpack.c.b16 %v5231, %v5231
  %v5330 = vpack.c.b16 %v5232, %v5232
  %v5331 = vpack.c.b16 %v5233, %v5233
  %v5332 = vpack.c.b16 %v5234, %v5234
  %v5333 = vpack.c.b16 %v5235, %v5235
  %v5334 = vpack.c.b16 %v5236, %v5236
  %v5335 = vpack.c.b16 %v5237, %v5237
  %v5336 = vpack.c.b16 %v5238, %v5238
  %v5337 = vpack.c.b16 %v5239, %v5239
  %v5338 = vpack.c.b16 %v5240, %v5240
  %v5339 = vpack.c.b16 %v5241, %v5241
  %v5340 = vpack.c.b16 %v5242, %v5242
  %v5341 = vpack.c.b16 %v5243, %v5243
  %v5342 = vpack.c.b16 %v5244, %v5244
  %v5343 = vpack.c.b16 %v5245, %v5245
  %v5344 = vpack.c.b16 %v5246, %v5246
  %v5345 = vpack.c.b16 %v5247, %v5247
  %v5346 = vpack.c.b16 %v5248, %v5248
  %v5347 = vpack.c.b16 %v5249, %v5249
  %v5348 = vpack.c.b16 %v5250, %v5250
  %v5349 = vpack.c.b16 %v5251, %v5251
  %v5350 = vpack.c.b16 %v5252, %v5252
  %v5351 = vpack.c.b16 %v5253, %v5253
  %v5352 = vpack.c.b16 %v5254, %v5254
  %v5353 = vpack.c.b16 %v5255, %v5255
  %v5354 = vpack.c.b16 %v5256, %v5256
  %v5355 = vpack.c.b16 %v5257, %v5257
  %v5356 = vpack.c.b16 %v5258, %v5258
  %v5357 = vpack.c.b16 %v5259, %v5259
  %v5358 = vpack.c.b16 %v5260, %v5260
  %v5359 = vpack.c.b16 %v5261, %v5261
  %v5360 = vpack.c.b16 %v5262, %v5262
  %v5361 = vpack.c.b16 %v5263, %v5263
  %v5362 = vpack.c.b16 %v5264, %v5264
  %v5363 = vpack.c.b16 %v5265, %v5265
  %v5364 = vpack.c.b16 %v5266, %v5266
  %v5365 = vpack.c.b16 %v5267, %v5267
  %v5366 = vpack.c.b16 %v5268, %v5268
  %v5367 = vpack.c.b16 %v5269, %v5269
  %v5368 = vpack.c.b16 %v5270, %v5270
  %v5369 = vpack.c.b16 %v5271, %v5271
  %v5370 = vpack.c.b16 %v5272, %v5272
  %v5371 = vpack.c.b16 %v5273, %v5273
  %v5372 = vpack.c.b16 %v5274, %v5274
  %v5373 = vpack.c.b16 %v5275, %v5275
  %v5374 = vpack.c.b16 %v5276, %v5276
  %v5375 = vpack.c.b16 %v5277, %v5277
  %v5376 = vpack.c.b16 %v5278, %v5278
  %v5377 = vpack.c.b16 %v5279, %v5279
  %v5378 = vpack.c.b16 %v5280, %v5280
  %v5379 = vpack.c.b16 %v5281, %v5281
  %v5380 = vpack.c.b16 %v5282, %v5282
  %v5381 = vpack.c.b16 %v5283, %v5283
  %v5382 = vpack.c.b16 %v5284, %v5284
  %v5383 = vpack.c.b16 %v5285, %v5285
  %v5384 = vpack.c.b16 %v5286, %v5286
  %v5385 = vpack.c.b16 %v5287, %v5287
  %v5386 = vpack.c.b16 %v5288, %v5288
  %v5387 = vpack.c.b16 %v5289, %v5289
  %v5388 = vpack.c.b16 %v5290, %v5290
  %v5389 = vpack.c.b16 %v5291, %v5291
  %v5390 = vpack.c.b16 %v5292, %v5292
  %v5391 = vpack.c.b16 %v5293, %v5293
  %v5392 = vpack.c.b16 %v5294, %v5294
  %v5393 = vpack.c.b16 %v5295, %v5295
  %v5394 = vpack.c.b16 %v5296, %v5296
  %v5395 = vpack.c.b16 %v5297, %v5297
  %v5396 = vpack.c.b16 %v5298, %v5298
  %v5397 = vpack.c.b16 %v5299, %v5299
  %v5398 = vpack.c.b16 %v5300, %v5300
  %v5399 = vpack.c.b16 %v5301, %v5301
  %v5400 = vpack.c.b16 %v5302, %v5302
  %v5401 = vpack.c.b16 %v5303, %v5303
  %v5402 = vpack.c.b16 %v5304, %v5304
  %v5403 = vpack.c.b16 %v5305, %v5305
  %v5404 = vpack.c.b16 %v5306, %v5306
  %v5405 = vpack.c.b16 %v5307, %v5307
  %v5406 = vpack.c.b16 %v5308, %v5308
  %v5407 = vpack.c.b16 %v5309, %v5309
  %v5408 = vpack.c.b16 %v5310, %v5310
  %v5409 = vpack.c.b16 %v5311, %v5311
  %v5410 = vpack.c.b16 %v5312, %v5312
  %v5411 = vpack.c.b16 %v5313, %v5313
  %v5412 = vpack.c.b16 %v5314, %v5314
  %v5413 = vpack.c.b16 %v5315, %v5315
  %5512 = vst [vmem:[%s3] sm:$0xf] %v5316
  %5513 = vst [vmem:[%s3 + $0x4] sm:$0xf] %v5317
  %5514 = vst [vmem:[%s3 + $0x8] sm:$0xf] %v5318
  %5515 = vst [vmem:[%s3 + $0xc] sm:$0xf] %v5319
  %5516 = vst [vmem:[%s3 + $0x10] sm:$0xf] %v5320
  %5517 = vst [vmem:[%s3 + $0x14] sm:$0xf] %v5321
  %5518 = vst [vmem:[%s3 + $0x18] sm:$0xf] %v5322
  %5519 = vst [vmem:[%s3 + $0x1c] sm:$0xf] %v5323
  %5520 = vst [vmem:[%s3 + $0x20] sm:$0xf] %v5324
  %5521 = vst [vmem:[%s3 + $0x24] sm:$0xf] %v5325
  %5522 = vst [vmem:[%s3 + $0x28] sm:$0xf] %v5326
  %5523 = vst [vmem:[%s3 + $0x2c] sm:$0xf] %v5327
  %5524 = vst [vmem:[%s3 + $0x30] sm:$0xf] %v5328
  %5525 = vst [vmem:[%s3 + $0x34] sm:$0xf] %v5329
  %5526 = vst [vmem:[%s3 + $0x38] sm:$0xf] %v5330
  %5527 = vst [vmem:[%s3 + $0x3c] sm:$0xf] %v5331
  %5528 = vst [vmem:[%s3 + $0x40] sm:$0xf] %v5332
  %5529 = vst [vmem:[%s3 + $0x44] sm:$0xf] %v5333
  %5530 = vst [vmem:[%s3 + $0x48] sm:$0xf] %v5334
  %5531 = vst [vmem:[%s3 + $0x4c] sm:$0xf] %v5335
  %5532 = vst [vmem:[%s3 + $0x50] sm:$0xf] %v5336
  %5533 = vst [vmem:[%s3 + $0x54] sm:$0xf] %v5337
  %5534 = vst [vmem:[%s3 + $0x58] sm:$0xf] %v5338
  %5535 = vst [vmem:[%s3 + $0x5c] sm:$0xf] %v5339
  %5536 = vst [vmem:[%s3 + $0x60] sm:$0xf] %v5340
  %5537 = vst [vmem:[%s3 + $0x64] sm:$0xf] %v5341
  %5538 = vst [vmem:[%s3 + $0x68] sm:$0xf] %v5342
  %5539 = vst [vmem:[%s3 + $0x6c] sm:$0xf] %v5343
  %5540 = vst [vmem:[%s3 + $0x70] sm:$0xf] %v5344
  %5541 = vst [vmem:[%s3 + $0x74] sm:$0xf] %v5345
  %5542 = vst [vmem:[%s3 + $0x78] sm:$0xf] %v5346
  %5543 = vst [vmem:[%s3 + $0x7c] sm:$0xf] %v5347
  %5544 = vst [vmem:[%s3 + $0x80] sm:$0xf] %v5348
  %5545 = vst [vmem:[%s3 + $0x84] sm:$0xf] %v5349
  %5546 = vst [vmem:[%s3 + $0x88] sm:$0xf] %v5350
  %5547 = vst [vmem:[%s3 + $0x8c] sm:$0xf] %v5351
  %5548 = vst [vmem:[%s3 + $0x90] sm:$0xf] %v5352
  %5549 = vst [vmem:[%s3 + $0x94] sm:$0xf] %v5353
  %5550 = vst [vmem:[%s3 + $0x98] sm:$0xf] %v5354
  %5551 = vst [vmem:[%s3 + $0x9c] sm:$0xf] %v5355
  %5552 = vst [vmem:[%s3 + $0xa0] sm:$0xf] %v5356
  %5553 = vst [vmem:[%s3 + $0xa4] sm:$0xf] %v5357
  %5554 = vst [vmem:[%s3 + $0xa8] sm:$0xf] %v5358
  %5555 = vst [vmem:[%s3 + $0xac] sm:$0xf] %v5359
  %5556 = vst [vmem:[%s3 + $0xb0] sm:$0xf] %v5360
  %5557 = vst [vmem:[%s3 + $0xb4] sm:$0xf] %v5361
  %5558 = vst [vmem:[%s3 + $0xb8] sm:$0xf] %v5362
  %5559 = vst [vmem:[%s3 + $0xbc] sm:$0xf] %v5363
  %5560 = vst [vmem:[%s3 + $0xc0] sm:$0xf] %v5364
  %5561 = vst [vmem:[%s3 + $0xc4] sm:$0xf] %v5365
  %5562 = vst [vmem:[%s3 + $0xc8] sm:$0xf] %v5366
  %5563 = vst [vmem:[%s3 + $0xcc] sm:$0xf] %v5367
  %5564 = vst [vmem:[%s3 + $0xd0] sm:$0xf] %v5368
  %5565 = vst [vmem:[%s3 + $0xd4] sm:$0xf] %v5369
  %5566 = vst [vmem:[%s3 + $0xd8] sm:$0xf] %v5370
  %5567 = vst [vmem:[%s3 + $0xdc] sm:$0xf] %v5371
  %5568 = vst [vmem:[%s3 + $0xe0] sm:$0xf] %v5372
  %5569 = vst [vmem:[%s3 + $0xe4] sm:$0xf] %v5373
  %5570 = vst [vmem:[%s3 + $0xe8] sm:$0xf] %v5374
  %5571 = vst [vmem:[%s3 + $0xec] sm:$0xf] %v5375
  %5572 = vst [vmem:[%s3 + $0xf0] sm:$0xf] %v5376
  %5573 = vst [vmem:[%s3 + $0xf4] sm:$0xf] %v5377
  %5574 = vst [vmem:[%s3 + $0xf8] sm:$0xf] %v5378
  %5575 = vst [vmem:[%s3 + $0xfc] sm:$0xf] %v5379
  %5576 = vst [vmem:[%s3 + $0x100] sm:$0xf] %v5380
  %5577 = vst [vmem:[%s3 + $0x104] sm:$0xf] %v5381
  %5578 = vst [vmem:[%s3 + $0x108] sm:$0xf] %v5382
  %5579 = vst [vmem:[%s3 + $0x10c] sm:$0xf] %v5383
  %5580 = vst [vmem:[%s3 + $0x110] sm:$0xf] %v5384
  %5581 = vst [vmem:[%s3 + $0x114] sm:$0xf] %v5385
  %5582 = vst [vmem:[%s3 + $0x118] sm:$0xf] %v5386
  %5583 = vst [vmem:[%s3 + $0x11c] sm:$0xf] %v5387
  %5584 = vst [vmem:[%s3 + $0x120] sm:$0xf] %v5388
  %5585 = vst [vmem:[%s3 + $0x124] sm:$0xf] %v5389
  %5586 = vst [vmem:[%s3 + $0x128] sm:$0xf] %v5390
  %5587 = vst [vmem:[%s3 + $0x12c] sm:$0xf] %v5391
  %5588 = vst [vmem:[%s3 + $0x130] sm:$0xf] %v5392
  %5589 = vst [vmem:[%s3 + $0x134] sm:$0xf] %v5393
  %5590 = vst [vmem:[%s3 + $0x138] sm:$0xf] %v5394
  %5591 = vst [vmem:[%s3 + $0x13c] sm:$0xf] %v5395
  %5592 = vst [vmem:[%s3 + $0x140] sm:$0xf] %v5396
  %5593 = vst [vmem:[%s3 + $0x144] sm:$0xf] %v5397
  %5594 = vst [vmem:[%s3 + $0x148] sm:$0xf] %v5398
  %5595 = vst [vmem:[%s3 + $0x14c] sm:$0xf] %v5399
  %5596 = vst [vmem:[%s3 + $0x150] sm:$0xf] %v5400
  %5597 = vst [vmem:[%s3 + $0x154] sm:$0xf] %v5401
  %5598 = vst [vmem:[%s3 + $0x158] sm:$0xf] %v5402
  %5599 = vst [vmem:[%s3 + $0x15c] sm:$0xf] %v5403
  %5600 = vst [vmem:[%s3 + $0x160] sm:$0xf] %v5404
  %5601 = vst [vmem:[%s3 + $0x164] sm:$0xf] %v5405
  %5602 = vst [vmem:[%s3 + $0x168] sm:$0xf] %v5406
  %5603 = vst [vmem:[%s3 + $0x16c] sm:$0xf] %v5407
  %5604 = vst [vmem:[%s3 + $0x170] sm:$0xf] %v5408
  %5605 = vst [vmem:[%s3 + $0x174] sm:$0xf] %v5409
  %5606 = vst [vmem:[%s3 + $0x178] sm:$0xf] %v5410
  %5607 = vst [vmem:[%s3 + $0x17c] sm:$0xf] %v5411
  %5608 = vst [vmem:[%s3 + $0x180] sm:$0xf] %v5412
  %5609 = vst [vmem:[%s3 + $0x184] sm:$0xf] %v5413
  // Predicated region
  $region14: #{net_forward.2} parent=0 // pred_check
    _
  $region15: #{net_forward.2} parent=0 // pred_check_branch
    %5611 = sbr.rel (0) target = $region17
  $region16: #{net_forward.2} parent=0 // pred_region
    _
  $region17: #{net_forward.2} parent=0 // pred_fallthru
    _
  // Predicated region
  $region18: #{net_forward.2} parent=0 // pred_check
    _
  $region19: #{net_forward.2} parent=0 // pred_check_branch
    %5613 = sbr.rel (0) target = $region21
  $region20: #{net_forward.2} parent=0 // pred_region
    _
  $region21: #{net_forward.2} parent=0 // pred_fallthru
    _

// kernel: net_forward.3
$region0: #{net_forward.3}
  #allocation0 [shape = 'u32[]', space=smem, size = 0x4, offset = 0x4, fixed_abs, tag = 'smem constant byte address 0x4 - core index']
  #allocation1 [shape = 'u32[144,128]{1,0:T(1,128)}', space=vmem, size = 0x12000, scoped, tag = 'internal scratch']
  #allocation2 [shape = 'bf16[112,128]{1,0:T(16,128)(2,1)}', space=vmem, size = 0x7000, scoped, tag = 'scratch operand']
  %s0 = inlined_call_operand.vmem [shape: bf16[1,4,112,160], index: 0, kind: input, shape index: {}]
  %s1 = inlined_call_operand.vmem [shape: bf16[160,128], index: 1, kind: input, shape index: {}]
  %s2 = inlined_call_operand.vmem [shape: f32[1,128], index: 2, kind: input, shape index: {}]
  %s3 = inlined_call_operand.vmem [shape: bf16[25,128,128], index: 3, kind: input, shape index: {}]
  %s4 = inlined_call_operand.vmem [shape: f32[1,128], index: 4, kind: input, shape index: {}]
  %s5 = inlined_call_operand.vmem [shape: bf16[128,128], index: 5, kind: input, shape index: {}]
  %s6 = inlined_call_operand.vmem [shape: f32[1,128], index: 6, kind: input, shape index: {}]
  %s7 = inlined_call_operand.vmem [shape: bf16[128,128], index: 7, kind: input, shape index: {}]
  %s8 = inlined_call_operand.vmem [shape: f32[1,128], index: 8, kind: input, shape index: {}]
  %s9 = inlined_call_operand.vmem [shape: f32[1,4,128], index: 9, kind: output, shape index: {}]
  %s10 = sld [smem:[#allocation0]]
  $region46: #{net_forward.3} parent=0
    _
  %s12 = ssub.s32 1, %s10
  %s13 = scalar_select 0, %s12, %s10
  // Predicated region
  $region2: #{net_forward.3} parent=0 // pred_check
    _
  $region3: #{net_forward.3} parent=0 // pred_check_branch
    %15 = sbr.rel (0) target = $region5
  $region4: #{net_forward.3} parent=0 // pred_region
    _
  $region5: #{net_forward.3} parent=0 // pred_fallthru
    _
  // Predicated region
  $region6: #{net_forward.3} parent=0 // pred_check
    _
  $region7: #{net_forward.3} parent=0 // pred_check_branch
    %17 = sbr.rel (0) target = $region9
  $region8: #{net_forward.3} parent=0 // pred_region
    _
  $region9: #{net_forward.3} parent=0 // pred_fallthru
    _
  // Predicated region
  $region10: #{net_forward.3} parent=0 // pred_check
    _
  $region11: #{net_forward.3} parent=0 // pred_check_branch
    %19 = sbr.rel (0) target = $region13
  $region12: #{net_forward.3} parent=0 // pred_region
    _
  $region13: #{net_forward.3} parent=0 // pred_fallthru
    _
  // Predicated region
  $region14: #{net_forward.3} parent=0 // pred_check
    _
  $region15: #{net_forward.3} parent=0 // pred_check_branch
    %21 = sbr.rel (0) target = $region17
  $region16: #{net_forward.3} parent=0 // pred_region
    _
  $region17: #{net_forward.3} parent=0 // pred_fallthru
    _
  // Predicated region
  $region18: #{net_forward.3} parent=0 // pred_check
    _
  $region19: #{net_forward.3} parent=0 // pred_check_branch
    %23 = sbr.rel (0) target = $region21
  $region20: #{net_forward.3} parent=0 // pred_region
    _
  $region21: #{net_forward.3} parent=0 // pred_fallthru
    _
  // Predicated region
  $region22: #{net_forward.3} parent=0 // pred_check
    _
  $region23: #{net_forward.3} parent=0 // pred_check_branch
    %25 = sbr.rel (0) target = $region25
  $region24: #{net_forward.3} parent=0 // pred_region
    _
  $region25: #{net_forward.3} parent=0 // pred_fallthru
    _
  // Predicated region
  $region26: #{net_forward.3} parent=0 // pred_check
    _
  $region27: #{net_forward.3} parent=0 // pred_check_branch
    %27 = sbr.rel (0) target = $region29
  $region28: #{net_forward.3} parent=0 // pred_region
    _
  $region29: #{net_forward.3} parent=0 // pred_fallthru
    _
  // Predicated region
  $region30: #{net_forward.3} parent=0 // pred_check
    _
  $region31: #{net_forward.3} parent=0 // pred_check_branch
    %29 = sbr.rel (0) target = $region33
  $region32: #{net_forward.3} parent=0 // pred_region
    _
  $region33: #{net_forward.3} parent=0 // pred_fallthru
    _
  // Predicated region
  $region34: #{net_forward.3} parent=0 // pred_check
    _
  $region35: #{net_forward.3} parent=0 // pred_check_branch
    %31 = sbr.rel (0) target = $region37
  $region36: #{net_forward.3} parent=0 // pred_region
    _
  $region37: #{net_forward.3} parent=0 // pred_fallthru
    _
  %v33 = vld [vmem:[%s0] sm:$0xff]
  %v34 = vld [vmem:[%s0 + $0x8] sm:$0xff]
  %v35 = vld [vmem:[%s0 + $0x10] sm:$0xff]
  %v36 = vld [vmem:[%s0 + $0x18] sm:$0xff]
  %v37 = vld [vmem:[%s0 + $0x20] sm:$0xff]
  %v38 = vld [vmem:[%s0 + $0x28] sm:$0xff]
  %v39 = vld [vmem:[%s0 + $0x30] sm:$0xff]
  %v40 = vld [vmem:[%s0 + $0x38] sm:$0xff]
  %v41 = vld [vmem:[%s0 + $0x40] sm:$0xff]
  %v42 = vld [vmem:[%s0 + $0x48] sm:$0xff]
  %v43 = vld [vmem:[%s0 + $0x50] sm:$0xff]
  %v44 = vld [vmem:[%s0 + $0x58] sm:$0xff]
  %v45 = vld [vmem:[%s0 + $0x60] sm:$0xff]
  %v46 = vld [vmem:[%s0 + $0x68] sm:$0xff]
  %v47 = vld [vmem:[%s1] sm:$0xf]
  %v48 = vld [vmem:[%s1 + $0x4] sm:$0xf]
  %v49 = vld [vmem:[%s1 + $0x8] sm:$0xf]
  %v50 = vld [vmem:[%s1 + $0xc] sm:$0xf]
  %v51 = vld [vmem:[%s1 + $0x10] sm:$0xf]
  %v52 = vld [vmem:[%s1 + $0x14] sm:$0xf]
  %v53 = vld [vmem:[%s1 + $0x18] sm:$0xf]
  %v54 = vld [vmem:[%s1 + $0x1c] sm:$0xf]
  %v55 = vld [vmem:[%s1 + $0x20] sm:$0xf]
  %v56 = vld [vmem:[%s1 + $0x24] sm:$0xf]
  %v57 = vld [vmem:[%s1 + $0x28] sm:$0xf]
  %v58 = vld [vmem:[%s1 + $0x2c] sm:$0xf]
  %v59 = vld [vmem:[%s1 + $0x30] sm:$0xf]
  %v60 = vld [vmem:[%s1 + $0x34] sm:$0xf]
  %v61 = vld [vmem:[%s1 + $0x38] sm:$0xf]
  %v62 = vld [vmem:[%s1 + $0x3c] sm:$0xf]
  %v63 = vld [vmem:[%s1 + $0x40] sm:$0xf]
  %v64 = vld [vmem:[%s1 + $0x44] sm:$0xf]
  %v65 = vld [vmem:[%s1 + $0x48] sm:$0xf]
  %v66 = vld [vmem:[%s1 + $0x4c] sm:$0xf]
  %v81 = vunpack.c.l.b16 %v33
  %v82 = vunpack.c.h.b16 %v33
  %v83 = vunpack.c.l.b16 %v34
  %v84 = vunpack.c.h.b16 %v34
  %v85 = vunpack.c.l.b16 %v35
  %v86 = vunpack.c.h.b16 %v35
  %v87 = vunpack.c.l.b16 %v36
  %v88 = vunpack.c.h.b16 %v36
  %v89 = vunpack.c.l.b16 %v37
  %v90 = vunpack.c.h.b16 %v37
  %v91 = vunpack.c.l.b16 %v38
  %v92 = vunpack.c.h.b16 %v38
  %v93 = vunpack.c.l.b16 %v39
  %v94 = vunpack.c.h.b16 %v39
  %v95 = vunpack.c.l.b16 %v40
  %v96 = vunpack.c.h.b16 %v40
  %v97 = vunpack.c.l.b16 %v41
  %v98 = vunpack.c.h.b16 %v41
  %v99 = vunpack.c.l.b16 %v42
  %v100 = vunpack.c.h.b16 %v42
  %v101 = vunpack.c.l.b16 %v43
  %v102 = vunpack.c.h.b16 %v43
  %v103 = vunpack.c.l.b16 %v44
  %v104 = vunpack.c.h.b16 %v44
  %v105 = vunpack.c.l.b16 %v45
  %v106 = vunpack.c.h.b16 %v45
  %v107 = vunpack.c.l.b16 %v46
  %v108 = vunpack.c.h.b16 %v46
  %v109 = vpack.c.b16 %v83, %v81
  %v110 = vpack.c.b16 %v84, %v82
  %v111 = vpack.c.b16 %v87, %v85
  %v112 = vpack.c.b16 %v88, %v86
  %v113 = vpack.c.b16 %v91, %v89
  %v114 = vpack.c.b16 %v92, %v90
  %v115 = vpack.c.b16 %v95, %v93
  %v116 = vpack.c.b16 %v96, %v94
  %v117 = vpack.c.b16 %v99, %v97
  %v118 = vpack.c.b16 %v100, %v98
  %v119 = vpack.c.b16 %v103, %v101
  %v120 = vpack.c.b16 %v104, %v102
  %v121 = vpack.c.b16 %v107, %v105
  %v122 = vpack.c.b16 %v108, %v106
  %v150 = vunpack.c.l.b16 %v47
  %v151 = vunpack.c.l.b16 %v48
  %v152 = vunpack.c.l.b16 %v49
  %v153 = vunpack.c.l.b16 %v50
  %v154 = vunpack.c.l.b16 %v51
  %v155 = vunpack.c.l.b16 %v52
  %v156 = vunpack.c.l.b16 %v53
  %v157 = vunpack.c.l.b16 %v54
  %v158 = vunpack.c.l.b16 %v55
  %v159 = vunpack.c.l.b16 %v56
  %v160 = vunpack.c.l.b16 %v57
  %v161 = vunpack.c.l.b16 %v58
  %v162 = vunpack.c.l.b16 %v59
  %v163 = vunpack.c.l.b16 %v60
  %v164 = vunpack.c.l.b16 %v61
  %v165 = vunpack.c.l.b16 %v62
  %v166 = vunpack.c.l.b16 %v63
  %v167 = vunpack.c.l.b16 %v64
  %v168 = vunpack.c.l.b16 %v65
  %v169 = vunpack.c.l.b16 %v66
  %v170 = vpack.c.b16 %v151, %v150
  %v171 = vpack.c.b16 %v153, %v152
  %v172 = vpack.c.b16 %v155, %v154
  %v173 = vpack.c.b16 %v157, %v156
  %v174 = vpack.c.b16 %v159, %v158
  %v175 = vpack.c.b16 %v161, %v160
  %v176 = vpack.c.b16 %v163, %v162
  %v177 = vpack.c.b16 %v165, %v164
  %v178 = vpack.c.b16 %v167, %v166
  %v179 = vpack.c.b16 %v169, %v168
  %vm190 = vcmask 261120
  %v192 = vsel %vm190, %v110, 0
  %v195 = vsel %vm190, %v112, 0
  %v198 = vsel %vm190, %v114, 0
  %v201 = vsel %vm190, %v116, 0
  %v204 = vsel %vm190, %v118, 0
  %v207 = vsel %vm190, %v120, 0
  %v210 = vsel %vm190, %v122, 0
  %212 = vmatprep.subr.bf16.mxu0 0
  %213 = vmatpush1.bf16.msra.mxu0 %v170
  %214 = vmatprep.subr.bf16.mxu0 0
  %215 = vmatpush1.bf16.msra.mxu0 %v171
  %216 = vmatprep.subr.bf16.mxu0 0
  %217 = vmatpush1.bf16.msra.mxu0 %v172
  %218 = vmatprep.subr.bf16.mxu0 0
  %219 = vmatpush1.bf16.msra.mxu0 %v173
  %220 = vmatprep.subr.bf16.mxu0 0
  %221 = vmatpush1.bf16.msra.mxu0 %v174
  %222 = vmatprep.subr.bf16.mxu0 0
  %223 = vmatpush1.bf16.msra.mxu0 %v175
  %224 = vmatprep.subr.bf16.mxu0 0
  %225 = vmatpush1.bf16.msra.mxu0 %v176
  %226 = vmatprep.subr.bf16.mxu0 0
  %227 = vmatpush1.bf16.msra.mxu0 %v177
  %228 = vmatprep.subr.bf16.mxu0 0
  %229 = vmatpush1.bf16.msra.mxu0 %v178
  %230 = vmatprep.subr.bf16.mxu0 0
  %231 = vmatpush1.bf16.msra.mxu0 %v179
  %232 = vmatprep.subr.bf16.mxu0 0
  %233 = vmatpush1.bf16.msra.mxu0 0
  %234 = vmatprep.subr.bf16.mxu0 0
  %235 = vmatpush1.bf16.msra.mxu0 0
  %236 = vmatprep.subr.bf16.mxu0 0
  %237 = vmatpush1.bf16.msra.mxu0 0
  %238 = vmatprep.subr.bf16.mxu0 0
  %239 = vmatpush1.bf16.msra.mxu0 0
  %240 = vmatprep.subr.bf16.mxu0 0
  %241 = vmatpush1.bf16.msra.mxu0 0
  %242 = vmatprep.subr.bf16.mxu0 0
  %243 = vmatpush1.bf16.msra.mxu0 0
  %244 = vmatprep.mubr.bf16.mxu0 %v192
  %245 = vmatmul.mubr.bf16.gmra.mrb[0].mxu0 %v109
  %v246 = vpop.f32.mrb[0].mxu0
  %v247 = vadd.f32 0.0, %v246
  %v248 = vpop.f32.mrb[0].mxu0
  %v249 = vpop.f32.mrb[0].mxu0
  %v250 = vadd.f32 0.0, %v249
  %v251 = vpop.f32.mrb[0].mxu0
  %252 = vmatprep.mubr.bf16.mxu0 %v195
  %253 = vmatmul.mubr.bf16.gmra.mrb[0].mxu0 %v111
  %v254 = vpop.f32.mrb[0].mxu0
  %v255 = vadd.f32 0.0, %v254
  %v256 = vpop.f32.mrb[0].mxu0
  %v257 = vpop.f32.mrb[0].mxu0
  %v258 = vadd.f32 0.0, %v257
  %v259 = vpop.f32.mrb[0].mxu0
  %260 = vmatprep.mubr.bf16.mxu0 %v198
  %261 = vmatmul.mubr.bf16.gmra.mrb[0].mxu0 %v113
  %v262 = vpop.f32.mrb[0].mxu0
  %v263 = vadd.f32 0.0, %v262
  %v264 = vpop.f32.mrb[0].mxu0
  %v265 = vpop.f32.mrb[0].mxu0
  %v266 = vadd.f32 0.0, %v265
  %v267 = vpop.f32.mrb[0].mxu0
  %268 = vmatprep.mubr.bf16.mxu0 %v201
  %269 = vmatmul.mubr.bf16.gmra.mrb[0].mxu0 %v115
  %v270 = vpop.f32.mrb[0].mxu0
  %v271 = vadd.f32 0.0, %v270
  %v272 = vpop.f32.mrb[0].mxu0
  %v273 = vpop.f32.mrb[0].mxu0
  %v274 = vadd.f32 0.0, %v273
  %v275 = vpop.f32.mrb[0].mxu0
  %276 = vmatprep.mubr.bf16.mxu0 %v204
  %277 = vmatmul.mubr.bf16.gmra.mrb[0].mxu0 %v117
  %v278 = vpop.f32.mrb[0].mxu0
  %v279 = vadd.f32 0.0, %v278
  %v280 = vpop.f32.mrb[0].mxu0
  %v281 = vpop.f32.mrb[0].mxu0
  %v282 = vadd.f32 0.0, %v281
  %v283 = vpop.f32.mrb[0].mxu0
  %284 = vmatprep.mubr.bf16.mxu0 %v207
  %285 = vmatmul.mubr.bf16.gmra.mrb[0].mxu0 %v119
  %v286 = vpop.f32.mrb[0].mxu0
  %v287 = vadd.f32 0.0, %v286
  %v288 = vpop.f32.mrb[0].mxu0
  %v289 = vpop.f32.mrb[0].mxu0
  %v290 = vadd.f32 0.0, %v289
  %v291 = vpop.f32.mrb[0].mxu0
  %292 = vmatprep.mubr.bf16.mxu0 %v210
  %293 = vmatmul.mubr.bf16.gmra.mrb[0].mxu0 %v121
  %v294 = vpop.f32.mrb[0].mxu0
  %v295 = vadd.f32 0.0, %v294
  %v296 = vpop.f32.mrb[0].mxu0
  %v297 = vpop.f32.mrb[0].mxu0
  %v298 = vadd.f32 0.0, %v297
  %v299 = vpop.f32.mrb[0].mxu0
  %300 = vdwg.mxu0
  %s301 = scalar_lea.vmem %s0, 112
  %v302 = vld [vmem:[%s301] sm:$0xff]
  %v303 = vld [vmem:[%s301 + $0x8] sm:$0xff]
  %v304 = vld [vmem:[%s301 + $0x10] sm:$0xff]
  %v305 = vld [vmem:[%s301 + $0x18] sm:$0xff]
  %v306 = vld [vmem:[%s301 + $0x20] sm:$0xff]
  %v307 = vld [vmem:[%s301 + $0x28] sm:$0xff]
  %v308 = vld [vmem:[%s301 + $0x30] sm:$0xff]
  %v309 = vld [vmem:[%s301 + $0x38] sm:$0xff]
  %v310 = vld [vmem:[%s301 + $0x40] sm:$0xff]
  %v311 = vld [vmem:[%s301 + $0x48] sm:$0xff]
  %v312 = vld [vmem:[%s301 + $0x50] sm:$0xff]
  %v313 = vld [vmem:[%s301 + $0x58] sm:$0xff]
  %v314 = vld [vmem:[%s301 + $0x60] sm:$0xff]
  %v315 = vld [vmem:[%s301 + $0x68] sm:$0xff]
  %v330 = vunpack.c.l.b16 %v302
  %v331 = vunpack.c.h.b16 %v302
  %v332 = vunpack.c.l.b16 %v303
  %v333 = vunpack.c.h.b16 %v303
  %v334 = vunpack.c.l.b16 %v304
  %v335 = vunpack.c.h.b16 %v304
  %v336 = vunpack.c.l.b16 %v305
  %v337 = vunpack.c.h.b16 %v305
  %v338 = vunpack.c.l.b16 %v306
  %v339 = vunpack.c.h.b16 %v306
  %v340 = vunpack.c.l.b16 %v307
  %v341 = vunpack.c.h.b16 %v307
  %v342 = vunpack.c.l.b16 %v308
  %v343 = vunpack.c.h.b16 %v308
  %v344 = vunpack.c.l.b16 %v309
  %v345 = vunpack.c.h.b16 %v309
  %v346 = vunpack.c.l.b16 %v310
  %v347 = vunpack.c.h.b16 %v310
  %v348 = vunpack.c.l.b16 %v311
  %v349 = vunpack.c.h.b16 %v311
  %v350 = vunpack.c.l.b16 %v312
  %v351 = vunpack.c.h.b16 %v312
  %v352 = vunpack.c.l.b16 %v313
  %v353 = vunpack.c.h.b16 %v313
  %v354 = vunpack.c.l.b16 %v314
  %v355 = vunpack.c.h.b16 %v314
  %v356 = vunpack.c.l.b16 %v315
  %v357 = vunpack.c.h.b16 %v315
  %v358 = vpack.c.b16 %v332, %v330
  %v359 = vpack.c.b16 %v333, %v331
  %v360 = vpack.c.b16 %v336, %v334
  %v361 = vpack.c.b16 %v337, %v335
  %v362 = vpack.c.b16 %v340, %v338
  %v363 = vpack.c.b16 %v341, %v339
  %v364 = vpack.c.b16 %v344, %v342
  %v365 = vpack.c.b16 %v345, %v343
  %v366 = vpack.c.b16 %v348, %v346
  %v367 = vpack.c.b16 %v349, %v347
  %v368 = vpack.c.b16 %v352, %v350
  %v369 = vpack.c.b16 %v353, %v351
  %v370 = vpack.c.b16 %v356, %v354
  %v371 = vpack.c.b16 %v357, %v355
  %v380 = vsel %vm190, %v359, 0
  %v383 = vsel %vm190, %v361, 0
  %v386 = vsel %vm190, %v363, 0
  %v389 = vsel %vm190, %v365, 0
  %v392 = vsel %vm190, %v367, 0
  %v395 = vsel %vm190, %v369, 0
  %v398 = vsel %vm190, %v371, 0
  %400 = vmatprep.subr.bf16.mxu0 0
  %401 = vmatpush1.bf16.msra.mxu0 %v170
  %402 = vmatprep.subr.bf16.mxu0 0
  %403 = vmatpush1.bf16.msra.mxu0 %v171
  %404 = vmatprep.subr.bf16.mxu0 0
  %405 = vmatpush1.bf16.msra.mxu0 %v172
  %406 = vmatprep.subr.bf16.mxu0 0
  %407 = vmatpush1.bf16.msra.mxu0 %v173
  %408 = vmatprep.subr.bf16.mxu0 0
  %409 = vmatpush1.bf16.msra.mxu0 %v174
  %410 = vmatprep.subr.bf16.mxu0 0
  %411 = vmatpush1.bf16.msra.mxu0 %v175
  %412 = vmatprep.subr.bf16.mxu0 0
  %413 = vmatpush1.bf16.msra.mxu0 %v176
  %414 = vmatprep.subr.bf16.mxu0 0
  %415 = vmatpush1.bf16.msra.mxu0 %v177
  %416 = vmatprep.subr.bf16.mxu0 0
  %417 = vmatpush1.bf16.msra.mxu0 %v178
  %418 = vmatprep.subr.bf16.mxu0 0
  %419 = vmatpush1.bf16.msra.mxu0 %v179
  %420 = vmatprep.subr.bf16.mxu0 0
  %421 = vmatpush1.bf16.msra.mxu0 0
  %422 = vmatprep.subr.bf16.mxu0 0
  %423 = vmatpush1.bf16.msra.mxu0 0
  %424 = vmatprep.subr.bf16.mxu0 0
  %425 = vmatpush1.bf16.msra.mxu0 0
  %426 = vmatprep.subr.bf16.mxu0 0
  %427 = vmatpush1.bf16.msra.mxu0 0
  %428 = vmatprep.subr.bf16.mxu0 0
  %429 = vmatpush1.bf16.msra.mxu0 0
  %430 = vmatprep.subr.bf16.mxu0 0
  %431 = vmatpush1.bf16.msra.mxu0 0
  %432 = vmatprep.mubr.bf16.mxu0 %v380
  %433 = vmatmul.mubr.bf16.gmra.mrb[0].mxu0 %v358
  %v434 = vpop.f32.mrb[0].mxu0
  %v435 = vadd.f32 0.0, %v434
  %v436 = vpop.f32.mrb[0].mxu0
  %v437 = vpop.f32.mrb[0].mxu0
  %v438 = vadd.f32 0.0, %v437
  %v439 = vpop.f32.mrb[0].mxu0
  %440 = vmatprep.mubr.bf16.mxu0 %v383
  %441 = vmatmul.mubr.bf16.gmra.mrb[0].mxu0 %v360
  %v442 = vpop.f32.mrb[0].mxu0
  %v443 = vadd.f32 0.0, %v442
  %v444 = vpop.f32.mrb[0].mxu0
  %v445 = vpop.f32.mrb[0].mxu0
  %v446 = vadd.f32 0.0, %v445
  %v447 = vpop.f32.mrb[0].mxu0
  %448 = vmatprep.mubr.bf16.mxu0 %v386
  %449 = vmatmul.mubr.bf16.gmra.mrb[0].mxu0 %v362
  %v450 = vpop.f32.mrb[0].mxu0
  %v451 = vadd.f32 0.0, %v450
  %v452 = vpop.f32.mrb[0].mxu0
  %v453 = vpop.f32.mrb[0].mxu0
  %v454 = vadd.f32 0.0, %v453
  %v455 = vpop.f32.mrb[0].mxu0
  %456 = vmatprep.mubr.bf16.mxu0 %v389
  %457 = vmatmul.mubr.bf16.gmra.mrb[0].mxu0 %v364
  %v458 = vpop.f32.mrb[0].mxu0
  %v459 = vadd.f32 0.0, %v458
  %v460 = vpop.f32.mrb[0].mxu0
  %v461 = vpop.f32.mrb[0].mxu0
  %v462 = vadd.f32 0.0, %v461
  %v463 = vpop.f32.mrb[0].mxu0
  %464 = vmatprep.mubr.bf16.mxu0 %v392
  %465 = vmatmul.mubr.bf16.gmra.mrb[0].mxu0 %v366
  %v466 = vpop.f32.mrb[0].mxu0
  %v467 = vadd.f32 0.0, %v466
  %v468 = vpop.f32.mrb[0].mxu0
  %v469 = vpop.f32.mrb[0].mxu0
  %v470 = vadd.f32 0.0, %v469
  %v471 = vpop.f32.mrb[0].mxu0
  %472 = vmatprep.mubr.bf16.mxu0 %v395
  %473 = vmatmul.mubr.bf16.gmra.mrb[0].mxu0 %v368
  %v474 = vpop.f32.mrb[0].mxu0
  %v475 = vadd.f32 0.0, %v474
  %v476 = vpop.f32.mrb[0].mxu0
  %v477 = vpop.f32.mrb[0].mxu0
  %v478 = vadd.f32 0.0, %v477
  %v479 = vpop.f32.mrb[0].mxu0
  %480 = vmatprep.mubr.bf16.mxu0 %v398
  %481 = vmatmul.mubr.bf16.gmra.mrb[0].mxu0 %v370
  %v482 = vpop.f32.mrb[0].mxu0
  %v483 = vadd.f32 0.0, %v482
  %v484 = vpop.f32.mrb[0].mxu0
  %v485 = vpop.f32.mrb[0].mxu0
  %v486 = vadd.f32 0.0, %v485
  %v487 = vpop.f32.mrb[0].mxu0
  %488 = vdwg.mxu0
  %v489 = vmax.f32 %v247, %v435
  %v490 = vmax.f32 %v250, %v438
  %v491 = vmax.f32 %v255, %v443
  %v492 = vmax.f32 %v258, %v446
  %v493 = vmax.f32 %v263, %v451
  %v494 = vmax.f32 %v266, %v454
  %v495 = vmax.f32 %v271, %v459
  %v496 = vmax.f32 %v274, %v462
  %v497 = vmax.f32 %v279, %v467
  %v498 = vmax.f32 %v282, %v470
  %v499 = vmax.f32 %v287, %v475
  %v500 = vmax.f32 %v290, %v478
  %v501 = vmax.f32 %v295, %v483
  %v502 = vmax.f32 %v298, %v486
  %s503 = scalar_lea.vmem %s0, 224
  %v504 = vld [vmem:[%s503] sm:$0xff]
  %v505 = vld [vmem:[%s503 + $0x8] sm:$0xff]
  %v506 = vld [vmem:[%s503 + $0x10] sm:$0xff]
  %v507 = vld [vmem:[%s503 + $0x18] sm:$0xff]
  %v508 = vld [vmem:[%s503 + $0x20] sm:$0xff]
  %v509 = vld [vmem:[%s503 + $0x28] sm:$0xff]
  %v510 = vld [vmem:[%s503 + $0x30] sm:$0xff]
  %v511 = vld [vmem:[%s503 + $0x38] sm:$0xff]
  %v512 = vld [vmem:[%s503 + $0x40] sm:$0xff]
  %v513 = vld [vmem:[%s503 + $0x48] sm:$0xff]
  %v514 = vld [vmem:[%s503 + $0x50] sm:$0xff]
  %v515 = vld [vmem:[%s503 + $0x58] sm:$0xff]
  %v516 = vld [vmem:[%s503 + $0x60] sm:$0xff]
  %v517 = vld [vmem:[%s503 + $0x68] sm:$0xff]
  %v532 = vunpack.c.l.b16 %v504
  %v533 = vunpack.c.h.b16 %v504
  %v534 = vunpack.c.l.b16 %v505
  %v535 = vunpack.c.h.b16 %v505
  %v536 = vunpack.c.l.b16 %v506
  %v537 = vunpack.c.h.b16 %v506
  %v538 = vunpack.c.l.b16 %v507
  %v539 = vunpack.c.h.b16 %v507
  %v540 = vunpack.c.l.b16 %v508
  %v541 = vunpack.c.h.b16 %v508
  %v542 = vunpack.c.l.b16 %v509
  %v543 = vunpack.c.h.b16 %v509
  %v544 = vunpack.c.l.b16 %v510
  %v545 = vunpack.c.h.b16 %v510
  %v546 = vunpack.c.l.b16 %v511
  %v547 = vunpack.c.h.b16 %v511
  %v548 = vunpack.c.l.b16 %v512
  %v549 = vunpack.c.h.b16 %v512
  %v550 = vunpack.c.l.b16 %v513
  %v551 = vunpack.c.h.b16 %v513
  %v552 = vunpack.c.l.b16 %v514
  %v553 = vunpack.c.h.b16 %v514
  %v554 = vunpack.c.l.b16 %v515
  %v555 = vunpack.c.h.b16 %v515
  %v556 = vunpack.c.l.b16 %v516
  %v557 = vunpack.c.h.b16 %v516
  %v558 = vunpack.c.l.b16 %v517
  %v559 = vunpack.c.h.b16 %v517
  %v560 = vpack.c.b16 %v534, %v532
  %v561 = vpack.c.b16 %v535, %v533
  %v562 = vpack.c.b16 %v538, %v536
  %v563 = vpack.c.b16 %v539, %v537
  %v564 = vpack.c.b16 %v542, %v540
  %v565 = vpack.c.b16 %v543, %v541
  %v566 = vpack.c.b16 %v546, %v544
  %v567 = vpack.c.b16 %v547, %v545
  %v568 = vpack.c.b16 %v550, %v548
  %v569 = vpack.c.b16 %v551, %v549
  %v570 = vpack.c.b16 %v554, %v552
  %v571 = vpack.c.b16 %v555, %v553
  %v572 = vpack.c.b16 %v558, %v556
  %v573 = vpack.c.b16 %v559, %v557
  %v582 = vsel %vm190, %v561, 0
  %v585 = vsel %vm190, %v563, 0
  %v588 = vsel %vm190, %v565, 0
  %v591 = vsel %vm190, %v567, 0
  %v594 = vsel %vm190, %v569, 0
  %v597 = vsel %vm190, %v571, 0
  %v600 = vsel %vm190, %v573, 0
  %602 = vmatprep.subr.bf16.mxu0 0
  %603 = vmatpush1.bf16.msra.mxu0 %v170
  %604 = vmatprep.subr.bf16.mxu0 0
  %605 = vmatpush1.bf16.msra.mxu0 %v171
  %606 = vmatprep.subr.bf16.mxu0 0
  %607 = vmatpush1.bf16.msra.mxu0 %v172
  %608 = vmatprep.subr.bf16.mxu0 0
  %609 = vmatpush1.bf16.msra.mxu0 %v173
  %610 = vmatprep.subr.bf16.mxu0 0
  %611 = vmatpush1.bf16.msra.mxu0 %v174
  %612 = vmatprep.subr.bf16.mxu0 0
  %613 = vmatpush1.bf16.msra.mxu0 %v175
  %614 = vmatprep.subr.bf16.mxu0 0
  %615 = vmatpush1.bf16.msra.mxu0 %v176
  %616 = vmatprep.subr.bf16.mxu0 0
  %617 = vmatpush1.bf16.msra.mxu0 %v177
  %618 = vmatprep.subr.bf16.mxu0 0
  %619 = vmatpush1.bf16.msra.mxu0 %v178
  %620 = vmatprep.subr.bf16.mxu0 0
  %621 = vmatpush1.bf16.msra.mxu0 %v179
  %622 = vmatprep.subr.bf16.mxu0 0
  %623 = vmatpush1.bf16.msra.mxu0 0
  %624 = vmatprep.subr.bf16.mxu0 0
  %625 = vmatpush1.bf16.msra.mxu0 0
  %626 = vmatprep.subr.bf16.mxu0 0
  %627 = vmatpush1.bf16.msra.mxu0 0
  %628 = vmatprep.subr.bf16.mxu0 0
  %629 = vmatpush1.bf16.msra.mxu0 0
  %630 = vmatprep.subr.bf16.mxu0 0
  %631 = vmatpush1.bf16.msra.mxu0 0
  %632 = vmatprep.subr.bf16.mxu0 0
  %633 = vmatpush1.bf16.msra.mxu0 0
  %634 = vmatprep.mubr.bf16.mxu0 %v582
  %635 = vmatmul.mubr.bf16.gmra.mrb[0].mxu0 %v560
  %v636 = vpop.f32.mrb[0].mxu0
  %v637 = vadd.f32 0.0, %v636
  %v638 = vpop.f32.mrb[0].mxu0
  %v639 = vpop.f32.mrb[0].mxu0
  %v640 = vadd.f32 0.0, %v639
  %v641 = vpop.f32.mrb[0].mxu0
  %642 = vmatprep.mubr.bf16.mxu0 %v585
  %643 = vmatmul.mubr.bf16.gmra.mrb[0].mxu0 %v562
  %v644 = vpop.f32.mrb[0].mxu0
  %v645 = vadd.f32 0.0, %v644
  %v646 = vpop.f32.mrb[0].mxu0
  %v647 = vpop.f32.mrb[0].mxu0
  %v648 = vadd.f32 0.0, %v647
  %v649 = vpop.f32.mrb[0].mxu0
  %650 = vmatprep.mubr.bf16.mxu0 %v588
  %651 = vmatmul.mubr.bf16.gmra.mrb[0].mxu0 %v564
  %v652 = vpop.f32.mrb[0].mxu0
  %v653 = vadd.f32 0.0, %v652
  %v654 = vpop.f32.mrb[0].mxu0
  %v655 = vpop.f32.mrb[0].mxu0
  %v656 = vadd.f32 0.0, %v655
  %v657 = vpop.f32.mrb[0].mxu0
  %658 = vmatprep.mubr.bf16.mxu0 %v591
  %659 = vmatmul.mubr.bf16.gmra.mrb[0].mxu0 %v566
  %v660 = vpop.f32.mrb[0].mxu0
  %v661 = vadd.f32 0.0, %v660
  %v662 = vpop.f32.mrb[0].mxu0
  %v663 = vpop.f32.mrb[0].mxu0
  %v664 = vadd.f32 0.0, %v663
  %v665 = vpop.f32.mrb[0].mxu0
  %666 = vmatprep.mubr.bf16.mxu0 %v594
  %667 = vmatmul.mubr.bf16.gmra.mrb[0].mxu0 %v568
  %v668 = vpop.f32.mrb[0].mxu0
  %v669 = vadd.f32 0.0, %v668
  %v670 = vpop.f32.mrb[0].mxu0
  %v671 = vpop.f32.mrb[0].mxu0
  %v672 = vadd.f32 0.0, %v671
  %v673 = vpop.f32.mrb[0].mxu0
  %674 = vmatprep.mubr.bf16.mxu0 %v597
  %675 = vmatmul.mubr.bf16.gmra.mrb[0].mxu0 %v570
  %v676 = vpop.f32.mrb[0].mxu0
  %v677 = vadd.f32 0.0, %v676
  %v678 = vpop.f32.mrb[0].mxu0
  %v679 = vpop.f32.mrb[0].mxu0
  %v680 = vadd.f32 0.0, %v679
  %v681 = vpop.f32.mrb[0].mxu0
  %682 = vmatprep.mubr.bf16.mxu0 %v600
  %683 = vmatmul.mubr.bf16.gmra.mrb[0].mxu0 %v572
  %v684 = vpop.f32.mrb[0].mxu0
  %v685 = vadd.f32 0.0, %v684
  %v686 = vpop.f32.mrb[0].mxu0
  %v687 = vpop.f32.mrb[0].mxu0
  %v688 = vadd.f32 0.0, %v687
  %v689 = vpop.f32.mrb[0].mxu0
  %690 = vdwg.mxu0
  %v691 = vmax.f32 %v489, %v637
  %v692 = vmax.f32 %v490, %v640
  %v693 = vmax.f32 %v491, %v645
  %v694 = vmax.f32 %v492, %v648
  %v695 = vmax.f32 %v493, %v653
  %v696 = vmax.f32 %v494, %v656
  %v697 = vmax.f32 %v495, %v661
  %v698 = vmax.f32 %v496, %v664
  %v699 = vmax.f32 %v497, %v669
  %v700 = vmax.f32 %v498, %v672
  %v701 = vmax.f32 %v499, %v677
  %v702 = vmax.f32 %v500, %v680
  %v703 = vmax.f32 %v501, %v685
  %v704 = vmax.f32 %v502, %v688
  %s705 = scalar_lea.vmem %s0, 336
  %v706 = vld [vmem:[%s705] sm:$0xff]
  %v707 = vld [vmem:[%s705 + $0x8] sm:$0xff]
  %v708 = vld [vmem:[%s705 + $0x10] sm:$0xff]
  %v709 = vld [vmem:[%s705 + $0x18] sm:$0xff]
  %v710 = vld [vmem:[%s705 + $0x20] sm:$0xff]
  %v711 = vld [vmem:[%s705 + $0x28] sm:$0xff]
  %v712 = vld [vmem:[%s705 + $0x30] sm:$0xff]
  %v713 = vld [vmem:[%s705 + $0x38] sm:$0xff]
  %v714 = vld [vmem:[%s705 + $0x40] sm:$0xff]
  %v715 = vld [vmem:[%s705 + $0x48] sm:$0xff]
  %v716 = vld [vmem:[%s705 + $0x50] sm:$0xff]
  %v717 = vld [vmem:[%s705 + $0x58] sm:$0xff]
  %v718 = vld [vmem:[%s705 + $0x60] sm:$0xff]
  %v719 = vld [vmem:[%s705 + $0x68] sm:$0xff]
  %v734 = vunpack.c.l.b16 %v706
  %v735 = vunpack.c.h.b16 %v706
  %v736 = vunpack.c.l.b16 %v707
  %v737 = vunpack.c.h.b16 %v707
  %v738 = vunpack.c.l.b16 %v708
  %v739 = vunpack.c.h.b16 %v708
  %v740 = vunpack.c.l.b16 %v709
  %v741 = vunpack.c.h.b16 %v709
  %v742 = vunpack.c.l.b16 %v710
  %v743 = vunpack.c.h.b16 %v710
  %v744 = vunpack.c.l.b16 %v711
  %v745 = vunpack.c.h.b16 %v711
  %v746 = vunpack.c.l.b16 %v712
  %v747 = vunpack.c.h.b16 %v712
  %v748 = vunpack.c.l.b16 %v713
  %v749 = vunpack.c.h.b16 %v713
  %v750 = vunpack.c.l.b16 %v714
  %v751 = vunpack.c.h.b16 %v714
  %v752 = vunpack.c.l.b16 %v715
  %v753 = vunpack.c.h.b16 %v715
  %v754 = vunpack.c.l.b16 %v716
  %v755 = vunpack.c.h.b16 %v716
  %v756 = vunpack.c.l.b16 %v717
  %v757 = vunpack.c.h.b16 %v717
  %v758 = vunpack.c.l.b16 %v718
  %v759 = vunpack.c.h.b16 %v718
  %v760 = vunpack.c.l.b16 %v719
  %v761 = vunpack.c.h.b16 %v719
  %v762 = vpack.c.b16 %v736, %v734
  %v763 = vpack.c.b16 %v737, %v735
  %v764 = vpack.c.b16 %v740, %v738
  %v765 = vpack.c.b16 %v741, %v739
  %v766 = vpack.c.b16 %v744, %v742
  %v767 = vpack.c.b16 %v745, %v743
  %v768 = vpack.c.b16 %v748, %v746
  %v769 = vpack.c.b16 %v749, %v747
  %v770 = vpack.c.b16 %v752, %v750
  %v771 = vpack.c.b16 %v753, %v751
  %v772 = vpack.c.b16 %v756, %v754
  %v773 = vpack.c.b16 %v757, %v755
  %v774 = vpack.c.b16 %v760, %v758
  %v775 = vpack.c.b16 %v761, %v759
  %v784 = vsel %vm190, %v763, 0
  %v787 = vsel %vm190, %v765, 0
  %v790 = vsel %vm190, %v767, 0
  %v793 = vsel %vm190, %v769, 0
  %v796 = vsel %vm190, %v771, 0
  %v799 = vsel %vm190, %v773, 0
  %v802 = vsel %vm190, %v775, 0
  %804 = vmatprep.subr.bf16.mxu0 0
  %805 = vmatpush1.bf16.msra.mxu0 %v170
  %806 = vmatprep.subr.bf16.mxu0 0
  %807 = vmatpush1.bf16.msra.mxu0 %v171
  %808 = vmatprep.subr.bf16.mxu0 0
  %809 = vmatpush1.bf16.msra.mxu0 %v172
  %810 = vmatprep.subr.bf16.mxu0 0
  %811 = vmatpush1.bf16.msra.mxu0 %v173
  %812 = vmatprep.subr.bf16.mxu0 0
  %813 = vmatpush1.bf16.msra.mxu0 %v174
  %814 = vmatprep.subr.bf16.mxu0 0
  %815 = vmatpush1.bf16.msra.mxu0 %v175
  %816 = vmatprep.subr.bf16.mxu0 0
  %817 = vmatpush1.bf16.msra.mxu0 %v176
  %818 = vmatprep.subr.bf16.mxu0 0
  %819 = vmatpush1.bf16.msra.mxu0 %v177
  %820 = vmatprep.subr.bf16.mxu0 0
  %821 = vmatpush1.bf16.msra.mxu0 %v178
  %822 = vmatprep.subr.bf16.mxu0 0
  %823 = vmatpush1.bf16.msra.mxu0 %v179
  %824 = vmatprep.subr.bf16.mxu0 0
  %825 = vmatpush1.bf16.msra.mxu0 0
  %826 = vmatprep.subr.bf16.mxu0 0
  %827 = vmatpush1.bf16.msra.mxu0 0
  %828 = vmatprep.subr.bf16.mxu0 0
  %829 = vmatpush1.bf16.msra.mxu0 0
  %830 = vmatprep.subr.bf16.mxu0 0
  %831 = vmatpush1.bf16.msra.mxu0 0
  %832 = vmatprep.subr.bf16.mxu0 0
  %833 = vmatpush1.bf16.msra.mxu0 0
  %834 = vmatprep.subr.bf16.mxu0 0
  %835 = vmatpush1.bf16.msra.mxu0 0
  %836 = vmatprep.mubr.bf16.mxu0 %v784
  %837 = vmatmul.mubr.bf16.gmra.mrb[0].mxu0 %v762
  %v838 = vpop.f32.mrb[0].mxu0
  %v839 = vadd.f32 0.0, %v838
  %v840 = vpop.f32.mrb[0].mxu0
  %v841 = vpop.f32.mrb[0].mxu0
  %v842 = vadd.f32 0.0, %v841
  %v843 = vpop.f32.mrb[0].mxu0
  %844 = vmatprep.mubr.bf16.mxu0 %v787
  %845 = vmatmul.mubr.bf16.gmra.mrb[0].mxu0 %v764
  %v846 = vpop.f32.mrb[0].mxu0
  %v847 = vadd.f32 0.0, %v846
  %v848 = vpop.f32.mrb[0].mxu0
  %v849 = vpop.f32.mrb[0].mxu0
  %v850 = vadd.f32 0.0, %v849
  %v851 = vpop.f32.mrb[0].mxu0
  %852 = vmatprep.mubr.bf16.mxu0 %v790
  %853 = vmatmul.mubr.bf16.gmra.mrb[0].mxu0 %v766
  %v854 = vpop.f32.mrb[0].mxu0
  %v855 = vadd.f32 0.0, %v854
  %v856 = vpop.f32.mrb[0].mxu0
  %v857 = vpop.f32.mrb[0].mxu0
  %v858 = vadd.f32 0.0, %v857
  %v859 = vpop.f32.mrb[0].mxu0
  %860 = vmatprep.mubr.bf16.mxu0 %v793
  %861 = vmatmul.mubr.bf16.gmra.mrb[0].mxu0 %v768
  %v862 = vpop.f32.mrb[0].mxu0
  %v863 = vadd.f32 0.0, %v862
  %v864 = vpop.f32.mrb[0].mxu0
  %v865 = vpop.f32.mrb[0].mxu0
  %v866 = vadd.f32 0.0, %v865
  %v867 = vpop.f32.mrb[0].mxu0
  %868 = vmatprep.mubr.bf16.mxu0 %v796
  %869 = vmatmul.mubr.bf16.gmra.mrb[0].mxu0 %v770
  %v870 = vpop.f32.mrb[0].mxu0
  %v871 = vadd.f32 0.0, %v870
  %v872 = vpop.f32.mrb[0].mxu0
  %v873 = vpop.f32.mrb[0].mxu0
  %v874 = vadd.f32 0.0, %v873
  %v875 = vpop.f32.mrb[0].mxu0
  %876 = vmatprep.mubr.bf16.mxu0 %v799
  %877 = vmatmul.mubr.bf16.gmra.mrb[0].mxu0 %v772
  %v878 = vpop.f32.mrb[0].mxu0
  %v879 = vadd.f32 0.0, %v878
  %v880 = vpop.f32.mrb[0].mxu0
  %v881 = vpop.f32.mrb[0].mxu0
  %v882 = vadd.f32 0.0, %v881
  %v883 = vpop.f32.mrb[0].mxu0
  %884 = vmatprep.mubr.bf16.mxu0 %v802
  %885 = vmatmul.mubr.bf16.gmra.mrb[0].mxu0 %v774
  %v886 = vpop.f32.mrb[0].mxu0
  %v887 = vadd.f32 0.0, %v886
  %v888 = vpop.f32.mrb[0].mxu0
  %v889 = vpop.f32.mrb[0].mxu0
  %v890 = vadd.f32 0.0, %v889
  %v891 = vpop.f32.mrb[0].mxu0
  %892 = vdwg.mxu0
  %v893 = vmax.f32 %v691, %v839
  %v894 = vmax.f32 %v692, %v842
  %v895 = vmax.f32 %v693, %v847
  %v896 = vmax.f32 %v694, %v850
  %v897 = vmax.f32 %v695, %v855
  %v898 = vmax.f32 %v696, %v858
  %v899 = vmax.f32 %v697, %v863
  %v900 = vmax.f32 %v698, %v866
  %v901 = vmax.f32 %v699, %v871
  %v902 = vmax.f32 %v700, %v874
  %v903 = vmax.f32 %v701, %v879
  %v904 = vmax.f32 %v702, %v882
  %v905 = vmax.f32 %v703, %v887
  %v906 = vmax.f32 %v704, %v890
  %v907 = vld [vmem:[%s2] sm:$0x1]
  %v909 = vlaneseq
  %v910 = vshrl.u32 %v909, 7
  %v911 = vsub.s32 0, %v910
  %v912 = vrot.slane %v907, %v911
  %v914 = vadd.f32 %v893, %v912
  %v915 = vadd.f32 %v894, %v912
  %v916 = vadd.f32 %v895, %v912
  %v917 = vadd.f32 %v896, %v912
  %v918 = vadd.f32 %v897, %v912
  %v919 = vadd.f32 %v898, %v912
  %v920 = vadd.f32 %v899, %v912
  %v921 = vadd.f32 %v900, %v912
  %v922 = vadd.f32 %v901, %v912
  %v923 = vadd.f32 %v902, %v912
  %v924 = vadd.f32 %v903, %v912
  %v925 = vadd.f32 %v904, %v912
  %v926 = vadd.f32 %v905, %v912
  %v927 = vadd.f32 %v906, %v912
  %v928 = vmax.f32 %v914, 0.0
  %v929 = vmax.f32 %v915, 0.0
  %v930 = vmax.f32 %v916, 0.0
  %v931 = vmax.f32 %v917, 0.0
  %v932 = vmax.f32 %v918, 0.0
  %v933 = vmax.f32 %v919, 0.0
  %v934 = vmax.f32 %v920, 0.0
  %v935 = vmax.f32 %v921, 0.0
  %v936 = vmax.f32 %v922, 0.0
  %v937 = vmax.f32 %v923, 0.0
  %v938 = vmax.f32 %v924, 0.0
  %v939 = vmax.f32 %v925, 0.0
  %v940 = vmax.f32 %v926, 0.0
  %v941 = vmax.f32 %v927, 0.0
  %v942 = vpack.c.bf16 %v929, %v928
  %v943 = vpack.c.bf16 %v931, %v930
  %v944 = vpack.c.bf16 %v933, %v932
  %v945 = vpack.c.bf16 %v935, %v934
  %v946 = vpack.c.bf16 %v937, %v936
  %v947 = vpack.c.bf16 %v939, %v938
  %v948 = vpack.c.bf16 %v941, %v940
  %949 = vst [vmem:[#allocation2] sm:$0xff] %v942
  %950 = vst [vmem:[#allocation2 + $0x8] sm:$0xff] %v943
  %951 = vst [vmem:[#allocation2 + $0x10] sm:$0xff] %v944
  %952 = vst [vmem:[#allocation2 + $0x18] sm:$0xff] %v945
  %953 = vst [vmem:[#allocation2 + $0x20] sm:$0xff] %v946
  %954 = vst [vmem:[#allocation2 + $0x28] sm:$0xff] %v947
  %955 = vst [vmem:[#allocation2 + $0x30] sm:$0xff] %v948
  %v956 = vld [vmem:[#allocation2] sm:$0x3]
  %v957 = vld [vmem:[%s3] sm:$0xf]
  %v958 = vld [vmem:[%s3 + $0x4] sm:$0xf]
  %v959 = vld [vmem:[%s3 + $0x8] sm:$0xf]
  %v960 = vld [vmem:[%s3 + $0xc] sm:$0xf]
  %v961 = vld [vmem:[%s3 + $0x10] sm:$0xf]
  %v962 = vld [vmem:[%s3 + $0x14] sm:$0xf]
  %v963 = vld [vmem:[%s3 + $0x18] sm:$0xf]
  %v964 = vld [vmem:[%s3 + $0x1c] sm:$0xf]
  %v965 = vld [vmem:[%s3 + $0x20] sm:$0xf]
  %v966 = vld [vmem:[%s3 + $0x24] sm:$0xf]
  %v967 = vld [vmem:[%s3 + $0x28] sm:$0xf]
  %v968 = vld [vmem:[%s3 + $0x2c] sm:$0xf]
  %v969 = vld [vmem:[%s3 + $0x30] sm:$0xf]
  %v970 = vld [vmem:[%s3 + $0x34] sm:$0xf]
  %v971 = vld [vmem:[%s3 + $0x38] sm:$0xf]
  %v972 = vld [vmem:[%s3 + $0x3c] sm:$0xf]
  %v973 = vld [vmem:[#allocation2 + $0x8] sm:$0x3]
  %s974 = scalar_lea.vmem %s3, 256
  %v975 = vld [vmem:[%s974] sm:$0xf]
  %v976 = vld [vmem:[%s974 + $0x4] sm:$0xf]
  %v977 = vld [vmem:[%s974 + $0x8] sm:$0xf]
  %v978 = vld [vmem:[%s974 + $0xc] sm:$0xf]
  %v979 = vld [vmem:[%s974 + $0x10] sm:$0xf]
  %v980 = vld [vmem:[%s974 + $0x14] sm:$0xf]
  %v981 = vld [vmem:[%s974 + $0x18] sm:$0xf]
  %v982 = vld [vmem:[%s974 + $0x1c] sm:$0xf]
  %v983 = vld [vmem:[%s974 + $0x20] sm:$0xf]
  %v984 = vld [vmem:[%s974 + $0x24] sm:$0xf]
  %v985 = vld [vmem:[%s974 + $0x28] sm:$0xf]
  %v986 = vld [vmem:[%s974 + $0x2c] sm:$0xf]
  %v987 = vld [vmem:[%s974 + $0x30] sm:$0xf]
  %v988 = vld [vmem:[%s974 + $0x34] sm:$0xf]
  %v989 = vld [vmem:[%s974 + $0x38] sm:$0xf]
  %v990 = vld [vmem:[%s974 + $0x3c] sm:$0xf]
  %v1007 = vunpack.c.l.b16 %v975
  %v1008 = vunpack.c.l.b16 %v976
  %v1009 = vunpack.c.l.b16 %v977
  %v1010 = vunpack.c.l.b16 %v978
  %v1011 = vunpack.c.l.b16 %v979
  %v1012 = vunpack.c.l.b16 %v980
  %v1013 = vunpack.c.l.b16 %v981
  %v1014 = vunpack.c.l.b16 %v982
  %v1015 = vunpack.c.l.b16 %v983
  %v1016 = vunpack.c.l.b16 %v984
  %v1017 = vunpack.c.l.b16 %v985
  %v1018 = vunpack.c.l.b16 %v986
  %v1019 = vunpack.c.l.b16 %v987
  %v1020 = vunpack.c.l.b16 %v988
  %v1021 = vunpack.c.l.b16 %v989
  %v1022 = vunpack.c.l.b16 %v990
  %v1023 = vpack.c.b16 %v1008, %v1007
  %v1024 = vpack.c.b16 %v1010, %v1009
  %v1025 = vpack.c.b16 %v1012, %v1011
  %v1026 = vpack.c.b16 %v1014, %v1013
  %v1027 = vpack.c.b16 %v1016, %v1015
  %v1028 = vpack.c.b16 %v1018, %v1017
  %v1029 = vpack.c.b16 %v1020, %v1019
  %v1030 = vpack.c.b16 %v1022, %v1021
  %1039 = vmatprep.subr.bf16.mxu0 0
  %1040 = vmatpush1.bf16.msra.mxu0 %v1023
  %1041 = vmatprep.subr.bf16.mxu0 0
  %1042 = vmatpush1.bf16.msra.mxu0 %v1024
  %1043 = vmatprep.subr.bf16.mxu0 0
  %1044 = vmatpush1.bf16.msra.mxu0 %v1025
  %1045 = vmatprep.subr.bf16.mxu0 0
  %1046 = vmatpush1.bf16.msra.mxu0 %v1026
  %1047 = vmatprep.subr.bf16.mxu0 0
  %1048 = vmatpush1.bf16.msra.mxu0 %v1027
  %1049 = vmatprep.subr.bf16.mxu0 0
  %1050 = vmatpush1.bf16.msra.mxu0 %v1028
  %1051 = vmatprep.subr.bf16.mxu0 0
  %1052 = vmatpush1.bf16.msra.mxu0 %v1029
  %1053 = vmatprep.subr.bf16.mxu0 0
  %1054 = vmatpush1.bf16.msra.mxu0 %v1030
  %1055 = vmatprep.subr.bf16.mxu0 0
  %1056 = vmatpush1.bf16.msra.mxu0 0
  %1057 = vmatprep.subr.bf16.mxu0 0
  %1058 = vmatpush1.bf16.msra.mxu0 0
  %1059 = vmatprep.subr.bf16.mxu0 0
  %1060 = vmatpush1.bf16.msra.mxu0 0
  %1061 = vmatprep.subr.bf16.mxu0 0
  %1062 = vmatpush1.bf16.msra.mxu0 0
  %1063 = vmatprep.subr.bf16.mxu0 0
  %1064 = vmatpush1.bf16.msra.mxu0 0
  %1065 = vmatprep.subr.bf16.mxu0 0
  %1066 = vmatpush1.bf16.msra.mxu0 0
  %1067 = vmatprep.subr.bf16.mxu0 0
  %1068 = vmatpush1.bf16.msra.mxu0 0
  %1069 = vmatprep.subr.bf16.mxu0 0
  %1070 = vmatpush1.bf16.msra.mxu0 0
  %1071 = vmatprep.mubr.bf16.mxu0 0
  %1072 = vmatmul.mubr.bf16.gmra.mrb[0].mxu0 %v973
  %v1073 = vpop.f32.mrb[0].mxu0
  %v1074 = vadd.f32 0.0, %v1073
  %v1075 = vpop.f32.mrb[0].mxu0
  %v1076 = vpop.f32.mrb[0].mxu0
  %v1077 = vpop.f32.mrb[0].mxu0
  %1078 = vdwg.mxu0
  %v1095 = vunpack.c.l.b16 %v957
  %v1096 = vunpack.c.l.b16 %v958
  %v1097 = vunpack.c.l.b16 %v959
  %v1098 = vunpack.c.l.b16 %v960
  %v1099 = vunpack.c.l.b16 %v961
  %v1100 = vunpack.c.l.b16 %v962
  %v1101 = vunpack.c.l.b16 %v963
  %v1102 = vunpack.c.l.b16 %v964
  %v1103 = vunpack.c.l.b16 %v965
  %v1104 = vunpack.c.l.b16 %v966
  %v1105 = vunpack.c.l.b16 %v967
  %v1106 = vunpack.c.l.b16 %v968
  %v1107 = vunpack.c.l.b16 %v969
  %v1108 = vunpack.c.l.b16 %v970
  %v1109 = vunpack.c.l.b16 %v971
  %v1110 = vunpack.c.l.b16 %v972
  %v1111 = vpack.c.b16 %v1096, %v1095
  %v1112 = vpack.c.b16 %v1098, %v1097
  %v1113 = vpack.c.b16 %v1100, %v1099
  %v1114 = vpack.c.b16 %v1102, %v1101
  %v1115 = vpack.c.b16 %v1104, %v1103
  %v1116 = vpack.c.b16 %v1106, %v1105
  %v1117 = vpack.c.b16 %v1108, %v1107
  %v1118 = vpack.c.b16 %v1110, %v1109
  %1127 = vmatprep.subr.bf16.mxu0 0
  %1128 = vmatpush1.bf16.msra.mxu0 %v1111
  %1129 = vmatprep.subr.bf16.mxu0 0
  %1130 = vmatpush1.bf16.msra.mxu0 %v1112
  %1131 = vmatprep.subr.bf16.mxu0 0
  %1132 = vmatpush1.bf16.msra.mxu0 %v1113
  %1133 = vmatprep.subr.bf16.mxu0 0
  %1134 = vmatpush1.bf16.msra.mxu0 %v1114
  %1135 = vmatprep.subr.bf16.mxu0 0
  %1136 = vmatpush1.bf16.msra.mxu0 %v1115
  %1137 = vmatprep.subr.bf16.mxu0 0
  %1138 = vmatpush1.bf16.msra.mxu0 %v1116
  %1139 = vmatprep.subr.bf16.mxu0 0
  %1140 = vmatpush1.bf16.msra.mxu0 %v1117
  %1141 = vmatprep.subr.bf16.mxu0 0
  %1142 = vmatpush1.bf16.msra.mxu0 %v1118
  %1143 = vmatprep.subr.bf16.mxu0 0
  %1144 = vmatpush1.bf16.msra.mxu0 0
  %1145 = vmatprep.subr.bf16.mxu0 0
  %1146 = vmatpush1.bf16.msra.mxu0 0
  %1147 = vmatprep.subr.bf16.mxu0 0
  %1148 = vmatpush1.bf16.msra.mxu0 0
  %1149 = vmatprep.subr.bf16.mxu0 0
  %1150 = vmatpush1.bf16.msra.mxu0 0
  %1151 = vmatprep.subr.bf16.mxu0 0
  %1152 = vmatpush1.bf16.msra.mxu0 0
  %1153 = vmatprep.subr.bf16.mxu0 0
  %1154 = vmatpush1.bf16.msra.mxu0 0
  %1155 = vmatprep.subr.bf16.mxu0 0
  %1156 = vmatpush1.bf16.msra.mxu0 0
  %1157 = vmatprep.subr.bf16.mxu0 0
  %1158 = vmatpush1.bf16.msra.mxu0 0
  %1159 = vmatprep.mubr.bf16.mxu0 0
  %1160 = vmatmul.mubr.bf16.gmra.mrb[0].mxu0 %v956
  %v1161 = vpop.f32.mrb[0].mxu0
  %v1162 = vadd.f32 %v1074, %v1161
  %v1163 = vpop.f32.mrb[0].mxu0
  %v1164 = vpop.f32.mrb[0].mxu0
  %v1165 = vpop.f32.mrb[0].mxu0
  %1166 = vdwg.mxu0
  %v1167 = vld [vmem:[#allocation2 + $0x10] sm:$0x3]
  %s1168 = scalar_lea.vmem %s3, 512
  %v1169 = vld [vmem:[%s1168] sm:$0xf]
  %v1170 = vld [vmem:[%s1168 + $0x4] sm:$0xf]
  %v1171 = vld [vmem:[%s1168 + $0x8] sm:$0xf]
  %v1172 = vld [vmem:[%s1168 + $0xc] sm:$0xf]
  %v1173 = vld [vmem:[%s1168 + $0x10] sm:$0xf]
  %v1174 = vld [vmem:[%s1168 + $0x14] sm:$0xf]
  %v1175 = vld [vmem:[%s1168 + $0x18] sm:$0xf]
  %v1176 = vld [vmem:[%s1168 + $0x1c] sm:$0xf]
  %v1177 = vld [vmem:[%s1168 + $0x20] sm:$0xf]
  %v1178 = vld [vmem:[%s1168 + $0x24] sm:$0xf]
  %v1179 = vld [vmem:[%s1168 + $0x28] sm:$0xf]
  %v1180 = vld [vmem:[%s1168 + $0x2c] sm:$0xf]
  %v1181 = vld [vmem:[%s1168 + $0x30] sm:$0xf]
  %v1182 = vld [vmem:[%s1168 + $0x34] sm:$0xf]
  %v1183 = vld [vmem:[%s1168 + $0x38] sm:$0xf]
  %v1184 = vld [vmem:[%s1168 + $0x3c] sm:$0xf]
  %v1201 = vunpack.c.l.b16 %v1169
  %v1202 = vunpack.c.l.b16 %v1170
  %v1203 = vunpack.c.l.b16 %v1171
  %v1204 = vunpack.c.l.b16 %v1172
  %v1205 = vunpack.c.l.b16 %v1173
  %v1206 = vunpack.c.l.b16 %v1174
  %v1207 = vunpack.c.l.b16 %v1175
  %v1208 = vunpack.c.l.b16 %v1176
  %v1209 = vunpack.c.l.b16 %v1177
  %v1210 = vunpack.c.l.b16 %v1178
  %v1211 = vunpack.c.l.b16 %v1179
  %v1212 = vunpack.c.l.b16 %v1180
  %v1213 = vunpack.c.l.b16 %v1181
  %v1214 = vunpack.c.l.b16 %v1182
  %v1215 = vunpack.c.l.b16 %v1183
  %v1216 = vunpack.c.l.b16 %v1184
  %v1217 = vpack.c.b16 %v1202, %v1201
  %v1218 = vpack.c.b16 %v1204, %v1203
  %v1219 = vpack.c.b16 %v1206, %v1205
  %v1220 = vpack.c.b16 %v1208, %v1207
  %v1221 = vpack.c.b16 %v1210, %v1209
  %v1222 = vpack.c.b16 %v1212, %v1211
  %v1223 = vpack.c.b16 %v1214, %v1213
  %v1224 = vpack.c.b16 %v1216, %v1215
  %1233 = vmatprep.subr.bf16.mxu0 0
  %1234 = vmatpush1.bf16.msra.mxu0 %v1217
  %1235 = vmatprep.subr.bf16.mxu0 0
  %1236 = vmatpush1.bf16.msra.mxu0 %v1218
  %1237 = vmatprep.subr.bf16.mxu0 0
  %1238 = vmatpush1.bf16.msra.mxu0 %v1219
  %1239 = vmatprep.subr.bf16.mxu0 0
  %1240 = vmatpush1.bf16.msra.mxu0 %v1220
  %1241 = vmatprep.subr.bf16.mxu0 0
  %1242 = vmatpush1.bf16.msra.mxu0 %v1221
  %1243 = vmatprep.subr.bf16.mxu0 0
  %1244 = vmatpush1.bf16.msra.mxu0 %v1222
  %1245 = vmatprep.subr.bf16.mxu0 0
  %1246 = vmatpush1.bf16.msra.mxu0 %v1223
  %1247 = vmatprep.subr.bf16.mxu0 0
  %1248 = vmatpush1.bf16.msra.mxu0 %v1224
  %1249 = vmatprep.subr.bf16.mxu0 0
  %1250 = vmatpush1.bf16.msra.mxu0 0
  %1251 = vmatprep.subr.bf16.mxu0 0
  %1252 = vmatpush1.bf16.msra.mxu0 0
  %1253 = vmatprep.subr.bf16.mxu0 0
  %1254 = vmatpush1.bf16.msra.mxu0 0
  %1255 = vmatprep.subr.bf16.mxu0 0
  %1256 = vmatpush1.bf16.msra.mxu0 0
  %1257 = vmatprep.subr.bf16.mxu0 0
  %1258 = vmatpush1.bf16.msra.mxu0 0
  %1259 = vmatprep.subr.bf16.mxu0 0
  %1260 = vmatpush1.bf16.msra.mxu0 0
  %1261 = vmatprep.subr.bf16.mxu0 0
  %1262 = vmatpush1.bf16.msra.mxu0 0
  %1263 = vmatprep.subr.bf16.mxu0 0
  %1264 = vmatpush1.bf16.msra.mxu0 0
  %1265 = vmatprep.mubr.bf16.mxu0 0
  %1266 = vmatmul.mubr.bf16.gmra.mrb[0].mxu0 %v1167
  %v1267 = vpop.f32.mrb[0].mxu0
  %v1268 = vadd.f32 0.0, %v1267
  %v1269 = vpop.f32.mrb[0].mxu0
  %v1270 = vpop.f32.mrb[0].mxu0
  %v1271 = vpop.f32.mrb[0].mxu0
  %1272 = vdwg.mxu0
  %v1273 = vadd.f32 %v1162, %v1268
  %v1274 = vld [vmem:[#allocation2 + $0x18] sm:$0x3]
  %s1275 = scalar_lea.vmem %s3, 768
  %v1276 = vld [vmem:[%s1275] sm:$0xf]
  %v1277 = vld [vmem:[%s1275 + $0x4] sm:$0xf]
  %v1278 = vld [vmem:[%s1275 + $0x8] sm:$0xf]
  %v1279 = vld [vmem:[%s1275 + $0xc] sm:$0xf]
  %v1280 = vld [vmem:[%s1275 + $0x10] sm:$0xf]
  %v1281 = vld [vmem:[%s1275 + $0x14] sm:$0xf]
  %v1282 = vld [vmem:[%s1275 + $0x18] sm:$0xf]
  %v1283 = vld [vmem:[%s1275 + $0x1c] sm:$0xf]
  %v1284 = vld [vmem:[%s1275 + $0x20] sm:$0xf]
  %v1285 = vld [vmem:[%s1275 + $0x24] sm:$0xf]
  %v1286 = vld [vmem:[%s1275 + $0x28] sm:$0xf]
  %v1287 = vld [vmem:[%s1275 + $0x2c] sm:$0xf]
  %v1288 = vld [vmem:[%s1275 + $0x30] sm:$0xf]
  %v1289 = vld [vmem:[%s1275 + $0x34] sm:$0xf]
  %v1290 = vld [vmem:[%s1275 + $0x38] sm:$0xf]
  %v1291 = vld [vmem:[%s1275 + $0x3c] sm:$0xf]
  %v1308 = vunpack.c.l.b16 %v1276
  %v1309 = vunpack.c.l.b16 %v1277
  %v1310 = vunpack.c.l.b16 %v1278
  %v1311 = vunpack.c.l.b16 %v1279
  %v1312 = vunpack.c.l.b16 %v1280
  %v1313 = vunpack.c.l.b16 %v1281
  %v1314 = vunpack.c.l.b16 %v1282
  %v1315 = vunpack.c.l.b16 %v1283
  %v1316 = vunpack.c.l.b16 %v1284
  %v1317 = vunpack.c.l.b16 %v1285
  %v1318 = vunpack.c.l.b16 %v1286
  %v1319 = vunpack.c.l.b16 %v1287
  %v1320 = vunpack.c.l.b16 %v1288
  %v1321 = vunpack.c.l.b16 %v1289
  %v1322 = vunpack.c.l.b16 %v1290
  %v1323 = vunpack.c.l.b16 %v1291
  %v1324 = vpack.c.b16 %v1309, %v1308
  %v1325 = vpack.c.b16 %v1311, %v1310
  %v1326 = vpack.c.b16 %v1313, %v1312
  %v1327 = vpack.c.b16 %v1315, %v1314
  %v1328 = vpack.c.b16 %v1317, %v1316
  %v1329 = vpack.c.b16 %v1319, %v1318
  %v1330 = vpack.c.b16 %v1321, %v1320
  %v1331 = vpack.c.b16 %v1323, %v1322
  %1340 = vmatprep.subr.bf16.mxu0 0
  %1341 = vmatpush1.bf16.msra.mxu0 %v1324
  %1342 = vmatprep.subr.bf16.mxu0 0
  %1343 = vmatpush1.bf16.msra.mxu0 %v1325
  %1344 = vmatprep.subr.bf16.mxu0 0
  %1345 = vmatpush1.bf16.msra.mxu0 %v1326
  %1346 = vmatprep.subr.bf16.mxu0 0
  %1347 = vmatpush1.bf16.msra.mxu0 %v1327
  %1348 = vmatprep.subr.bf16.mxu0 0
  %1349 = vmatpush1.bf16.msra.mxu0 %v1328
  %1350 = vmatprep.subr.bf16.mxu0 0
  %1351 = vmatpush1.bf16.msra.mxu0 %v1329
  %1352 = vmatprep.subr.bf16.mxu0 0
  %1353 = vmatpush1.bf16.msra.mxu0 %v1330
  %1354 = vmatprep.subr.bf16.mxu0 0
  %1355 = vmatpush1.bf16.msra.mxu0 %v1331
  %1356 = vmatprep.subr.bf16.mxu0 0
  %1357 = vmatpush1.bf16.msra.mxu0 0
  %1358 = vmatprep.subr.bf16.mxu0 0
  %1359 = vmatpush1.bf16.msra.mxu0 0
  %1360 = vmatprep.subr.bf16.mxu0 0
  %1361 = vmatpush1.bf16.msra.mxu0 0
  %1362 = vmatprep.subr.bf16.mxu0 0
  %1363 = vmatpush1.bf16.msra.mxu0 0
  %1364 = vmatprep.subr.bf16.mxu0 0
  %1365 = vmatpush1.bf16.msra.mxu0 0
  %1366 = vmatprep.subr.bf16.mxu0 0
  %1367 = vmatpush1.bf16.msra.mxu0 0
  %1368 = vmatprep.subr.bf16.mxu0 0
  %1369 = vmatpush1.bf16.msra.mxu0 0
  %1370 = vmatprep.subr.bf16.mxu0 0
  %1371 = vmatpush1.bf16.msra.mxu0 0
  %1372 = vmatprep.mubr.bf16.mxu0 0
  %1373 = vmatmul.mubr.bf16.gmra.mrb[0].mxu0 %v1274
  %v1374 = vpop.f32.mrb[0].mxu0
  %v1375 = vadd.f32 0.0, %v1374
  %v1376 = vpop.f32.mrb[0].mxu0
  %v1377 = vpop.f32.mrb[0].mxu0
  %v1378 = vpop.f32.mrb[0].mxu0
  %1379 = vdwg.mxu0
  %v1380 = vadd.f32 %v1273, %v1375
  %v1381 = vld [vmem:[#allocation2 + $0x20] sm:$0x3]
  %s1382 = scalar_lea.vmem %s3, 1024
  %v1383 = vld [vmem:[%s1382] sm:$0xf]
  %v1384 = vld [vmem:[%s1382 + $0x4] sm:$0xf]
  %v1385 = vld [vmem:[%s1382 + $0x8] sm:$0xf]
  %v1386 = vld [vmem:[%s1382 + $0xc] sm:$0xf]
  %v1387 = vld [vmem:[%s1382 + $0x10] sm:$0xf]
  %v1388 = vld [vmem:[%s1382 + $0x14] sm:$0xf]
  %v1389 = vld [vmem:[%s1382 + $0x18] sm:$0xf]
  %v1390 = vld [vmem:[%s1382 + $0x1c] sm:$0xf]
  %v1391 = vld [vmem:[%s1382 + $0x20] sm:$0xf]
  %v1392 = vld [vmem:[%s1382 + $0x24] sm:$0xf]
  %v1393 = vld [vmem:[%s1382 + $0x28] sm:$0xf]
  %v1394 = vld [vmem:[%s1382 + $0x2c] sm:$0xf]
  %v1395 = vld [vmem:[%s1382 + $0x30] sm:$0xf]
  %v1396 = vld [vmem:[%s1382 + $0x34] sm:$0xf]
  %v1397 = vld [vmem:[%s1382 + $0x38] sm:$0xf]
  %v1398 = vld [vmem:[%s1382 + $0x3c] sm:$0xf]
  %v1415 = vunpack.c.l.b16 %v1383
  %v1416 = vunpack.c.l.b16 %v1384
  %v1417 = vunpack.c.l.b16 %v1385
  %v1418 = vunpack.c.l.b16 %v1386
  %v1419 = vunpack.c.l.b16 %v1387
  %v1420 = vunpack.c.l.b16 %v1388
  %v1421 = vunpack.c.l.b16 %v1389
  %v1422 = vunpack.c.l.b16 %v1390
  %v1423 = vunpack.c.l.b16 %v1391
  %v1424 = vunpack.c.l.b16 %v1392
  %v1425 = vunpack.c.l.b16 %v1393
  %v1426 = vunpack.c.l.b16 %v1394
  %v1427 = vunpack.c.l.b16 %v1395
  %v1428 = vunpack.c.l.b16 %v1396
  %v1429 = vunpack.c.l.b16 %v1397
  %v1430 = vunpack.c.l.b16 %v1398
  %v1431 = vpack.c.b16 %v1416, %v1415
  %v1432 = vpack.c.b16 %v1418, %v1417
  %v1433 = vpack.c.b16 %v1420, %v1419
  %v1434 = vpack.c.b16 %v1422, %v1421
  %v1435 = vpack.c.b16 %v1424, %v1423
  %v1436 = vpack.c.b16 %v1426, %v1425
  %v1437 = vpack.c.b16 %v1428, %v1427
  %v1438 = vpack.c.b16 %v1430, %v1429
  %1447 = vmatprep.subr.bf16.mxu0 0
  %1448 = vmatpush1.bf16.msra.mxu0 %v1431
  %1449 = vmatprep.subr.bf16.mxu0 0
  %1450 = vmatpush1.bf16.msra.mxu0 %v1432
  %1451 = vmatprep.subr.bf16.mxu0 0
  %1452 = vmatpush1.bf16.msra.mxu0 %v1433
  %1453 = vmatprep.subr.bf16.mxu0 0
  %1454 = vmatpush1.bf16.msra.mxu0 %v1434
  %1455 = vmatprep.subr.bf16.mxu0 0
  %1456 = vmatpush1.bf16.msra.mxu0 %v1435
  %1457 = vmatprep.subr.bf16.mxu0 0
  %1458 = vmatpush1.bf16.msra.mxu0 %v1436
  %1459 = vmatprep.subr.bf16.mxu0 0
  %1460 = vmatpush1.bf16.msra.mxu0 %v1437
  %1461 = vmatprep.subr.bf16.mxu0 0
  %1462 = vmatpush1.bf16.msra.mxu0 %v1438
  %1463 = vmatprep.subr.bf16.mxu0 0
  %1464 = vmatpush1.bf16.msra.mxu0 0
  %1465 = vmatprep.subr.bf16.mxu0 0
  %1466 = vmatpush1.bf16.msra.mxu0 0
  %1467 = vmatprep.subr.bf16.mxu0 0
  %1468 = vmatpush1.bf16.msra.mxu0 0
  %1469 = vmatprep.subr.bf16.mxu0 0
  %1470 = vmatpush1.bf16.msra.mxu0 0
  %1471 = vmatprep.subr.bf16.mxu0 0
  %1472 = vmatpush1.bf16.msra.mxu0 0
  %1473 = vmatprep.subr.bf16.mxu0 0
  %1474 = vmatpush1.bf16.msra.mxu0 0
  %1475 = vmatprep.subr.bf16.mxu0 0
  %1476 = vmatpush1.bf16.msra.mxu0 0
  %1477 = vmatprep.subr.bf16.mxu0 0
  %1478 = vmatpush1.bf16.msra.mxu0 0
  %1479 = vmatprep.mubr.bf16.mxu0 0
  %1480 = vmatmul.mubr.bf16.gmra.mrb[0].mxu0 %v1381
  %v1481 = vpop.f32.mrb[0].mxu0
  %v1482 = vadd.f32 0.0, %v1481
  %v1483 = vpop.f32.mrb[0].mxu0
  %v1484 = vpop.f32.mrb[0].mxu0
  %v1485 = vpop.f32.mrb[0].mxu0
  %1486 = vdwg.mxu0
  %v1487 = vadd.f32 %v1380, %v1482
  %v1488 = vld [vmem:[#allocation2 + $0x28] sm:$0x3]
  %s1489 = scalar_lea.vmem %s3, 1280
  %v1490 = vld [vmem:[%s1489] sm:$0xf]
  %v1491 = vld [vmem:[%s1489 + $0x4] sm:$0xf]
  %v1492 = vld [vmem:[%s1489 + $0x8] sm:$0xf]
  %v1493 = vld [vmem:[%s1489 + $0xc] sm:$0xf]
  %v1494 = vld [vmem:[%s1489 + $0x10] sm:$0xf]
  %v1495 = vld [vmem:[%s1489 + $0x14] sm:$0xf]
  %v1496 = vld [vmem:[%s1489 + $0x18] sm:$0xf]
  %v1497 = vld [vmem:[%s1489 + $0x1c] sm:$0xf]
  %v1498 = vld [vmem:[%s1489 + $0x20] sm:$0xf]
  %v1499 = vld [vmem:[%s1489 + $0x24] sm:$0xf]
  %v1500 = vld [vmem:[%s1489 + $0x28] sm:$0xf]
  %v1501 = vld [vmem:[%s1489 + $0x2c] sm:$0xf]
  %v1502 = vld [vmem:[%s1489 + $0x30] sm:$0xf]
  %v1503 = vld [vmem:[%s1489 + $0x34] sm:$0xf]
  %v1504 = vld [vmem:[%s1489 + $0x38] sm:$0xf]
  %v1505 = vld [vmem:[%s1489 + $0x3c] sm:$0xf]
  %v1522 = vunpack.c.l.b16 %v1490
  %v1523 = vunpack.c.l.b16 %v1491
  %v1524 = vunpack.c.l.b16 %v1492
  %v1525 = vunpack.c.l.b16 %v1493
  %v1526 = vunpack.c.l.b16 %v1494
  %v1527 = vunpack.c.l.b16 %v1495
  %v1528 = vunpack.c.l.b16 %v1496
  %v1529 = vunpack.c.l.b16 %v1497
  %v1530 = vunpack.c.l.b16 %v1498
  %v1531 = vunpack.c.l.b16 %v1499
  %v1532 = vunpack.c.l.b16 %v1500
  %v1533 = vunpack.c.l.b16 %v1501
  %v1534 = vunpack.c.l.b16 %v1502
  %v1535 = vunpack.c.l.b16 %v1503
  %v1536 = vunpack.c.l.b16 %v1504
  %v1537 = vunpack.c.l.b16 %v1505
  %v1538 = vpack.c.b16 %v1523, %v1522
  %v1539 = vpack.c.b16 %v1525, %v1524
  %v1540 = vpack.c.b16 %v1527, %v1526
  %v1541 = vpack.c.b16 %v1529, %v1528
  %v1542 = vpack.c.b16 %v1531, %v1530
  %v1543 = vpack.c.b16 %v1533, %v1532
  %v1544 = vpack.c.b16 %v1535, %v1534
  %v1545 = vpack.c.b16 %v1537, %v1536
  %1554 = vmatprep.subr.bf16.mxu0 0
  %1555 = vmatpush1.bf16.msra.mxu0 %v1538
  %1556 = vmatprep.subr.bf16.mxu0 0
  %1557 = vmatpush1.bf16.msra.mxu0 %v1539
  %1558 = vmatprep.subr.bf16.mxu0 0
  %1559 = vmatpush1.bf16.msra.mxu0 %v1540
  %1560 = vmatprep.subr.bf16.mxu0 0
  %1561 = vmatpush1.bf16.msra.mxu0 %v1541
  %1562 = vmatprep.subr.bf16.mxu0 0
  %1563 = vmatpush1.bf16.msra.mxu0 %v1542
  %1564 = vmatprep.subr.bf16.mxu0 0
  %1565 = vmatpush1.bf16.msra.mxu0 %v1543
  %1566 = vmatprep.subr.bf16.mxu0 0
  %1567 = vmatpush1.bf16.msra.mxu0 %v1544
  %1568 = vmatprep.subr.bf16.mxu0 0
  %1569 = vmatpush1.bf16.msra.mxu0 %v1545
  %1570 = vmatprep.subr.bf16.mxu0 0
  %1571 = vmatpush1.bf16.msra.mxu0 0
  %1572 = vmatprep.subr.bf16.mxu0 0
  %1573 = vmatpush1.bf16.msra.mxu0 0
  %1574 = vmatprep.subr.bf16.mxu0 0
  %1575 = vmatpush1.bf16.msra.mxu0 0
  %1576 = vmatprep.subr.bf16.mxu0 0
  %1577 = vmatpush1.bf16.msra.mxu0 0
  %1578 = vmatprep.subr.bf16.mxu0 0
  %1579 = vmatpush1.bf16.msra.mxu0 0
  %1580 = vmatprep.subr.bf16.mxu0 0
  %1581 = vmatpush1.bf16.msra.mxu0 0
  %1582 = vmatprep.subr.bf16.mxu0 0
  %1583 = vmatpush1.bf16.msra.mxu0 0
  %1584 = vmatprep.subr.bf16.mxu0 0
  %1585 = vmatpush1.bf16.msra.mxu0 0
  %1586 = vmatprep.mubr.bf16.mxu0 0
  %1587 = vmatmul.mubr.bf16.gmra.mrb[0].mxu0 %v1488
  %v1588 = vpop.f32.mrb[0].mxu0
  %v1589 = vadd.f32 0.0, %v1588
  %v1590 = vpop.f32.mrb[0].mxu0
  %v1591 = vpop.f32.mrb[0].mxu0
  %v1592 = vpop.f32.mrb[0].mxu0
  %1593 = vdwg.mxu0
  %v1594 = vadd.f32 %v1487, %v1589
  %v1595 = vld [vmem:[#allocation2 + $0x30] sm:$0x3]
  %s1596 = scalar_lea.vmem %s3, 1536
  %v1597 = vld [vmem:[%s1596] sm:$0xf]
  %v1598 = vld [vmem:[%s1596 + $0x4] sm:$0xf]
  %v1599 = vld [vmem:[%s1596 + $0x8] sm:$0xf]
  %v1600 = vld [vmem:[%s1596 + $0xc] sm:$0xf]
  %v1601 = vld [vmem:[%s1596 + $0x10] sm:$0xf]
  %v1602 = vld [vmem:[%s1596 + $0x14] sm:$0xf]
  %v1603 = vld [vmem:[%s1596 + $0x18] sm:$0xf]
  %v1604 = vld [vmem:[%s1596 + $0x1c] sm:$0xf]
  %v1605 = vld [vmem:[%s1596 + $0x20] sm:$0xf]
  %v1606 = vld [vmem:[%s1596 + $0x24] sm:$0xf]
  %v1607 = vld [vmem:[%s1596 + $0x28] sm:$0xf]
  %v1608 = vld [vmem:[%s1596 + $0x2c] sm:$0xf]
  %v1609 = vld [vmem:[%s1596 + $0x30] sm:$0xf]
  %v1610 = vld [vmem:[%s1596 + $0x34] sm:$0xf]
  %v1611 = vld [vmem:[%s1596 + $0x38] sm:$0xf]
  %v1612 = vld [vmem:[%s1596 + $0x3c] sm:$0xf]
  %v1629 = vunpack.c.l.b16 %v1597
  %v1630 = vunpack.c.l.b16 %v1598
  %v1631 = vunpack.c.l.b16 %v1599
  %v1632 = vunpack.c.l.b16 %v1600
  %v1633 = vunpack.c.l.b16 %v1601
  %v1634 = vunpack.c.l.b16 %v1602
  %v1635 = vunpack.c.l.b16 %v1603
  %v1636 = vunpack.c.l.b16 %v1604
  %v1637 = vunpack.c.l.b16 %v1605
  %v1638 = vunpack.c.l.b16 %v1606
  %v1639 = vunpack.c.l.b16 %v1607
  %v1640 = vunpack.c.l.b16 %v1608
  %v1641 = vunpack.c.l.b16 %v1609
  %v1642 = vunpack.c.l.b16 %v1610
  %v1643 = vunpack.c.l.b16 %v1611
  %v1644 = vunpack.c.l.b16 %v1612
  %v1645 = vpack.c.b16 %v1630, %v1629
  %v1646 = vpack.c.b16 %v1632, %v1631
  %v1647 = vpack.c.b16 %v1634, %v1633
  %v1648 = vpack.c.b16 %v1636, %v1635
  %v1649 = vpack.c.b16 %v1638, %v1637
  %v1650 = vpack.c.b16 %v1640, %v1639
  %v1651 = vpack.c.b16 %v1642, %v1641
  %v1652 = vpack.c.b16 %v1644, %v1643
  %1661 = vmatprep.subr.bf16.mxu0 0
  %1662 = vmatpush1.bf16.msra.mxu0 %v1645
  %1663 = vmatprep.subr.bf16.mxu0 0
  %1664 = vmatpush1.bf16.msra.mxu0 %v1646
  %1665 = vmatprep.subr.bf16.mxu0 0
  %1666 = vmatpush1.bf16.msra.mxu0 %v1647
  %1667 = vmatprep.subr.bf16.mxu0 0
  %1668 = vmatpush1.bf16.msra.mxu0 %v1648
  %1669 = vmatprep.subr.bf16.mxu0 0
  %1670 = vmatpush1.bf16.msra.mxu0 %v1649
  %1671 = vmatprep.subr.bf16.mxu0 0
  %1672 = vmatpush1.bf16.msra.mxu0 %v1650
  %1673 = vmatprep.subr.bf16.mxu0 0
  %1674 = vmatpush1.bf16.msra.mxu0 %v1651
  %1675 = vmatprep.subr.bf16.mxu0 0
  %1676 = vmatpush1.bf16.msra.mxu0 %v1652
  %1677 = vmatprep.subr.bf16.mxu0 0
  %1678 = vmatpush1.bf16.msra.mxu0 0
  %1679 = vmatprep.subr.bf16.mxu0 0
  %1680 = vmatpush1.bf16.msra.mxu0 0
  %1681 = vmatprep.subr.bf16.mxu0 0
  %1682 = vmatpush1.bf16.msra.mxu0 0
  %1683 = vmatprep.subr.bf16.mxu0 0
  %1684 = vmatpush1.bf16.msra.mxu0 0
  %1685 = vmatprep.subr.bf16.mxu0 0
  %1686 = vmatpush1.bf16.msra.mxu0 0
  %1687 = vmatprep.subr.bf16.mxu0 0
  %1688 = vmatpush1.bf16.msra.mxu0 0
  %1689 = vmatprep.subr.bf16.mxu0 0
  %1690 = vmatpush1.bf16.msra.mxu0 0
  %1691 = vmatprep.subr.bf16.mxu0 0
  %1692 = vmatpush1.bf16.msra.mxu0 0
  %1693 = vmatprep.mubr.bf16.mxu0 0
  %1694 = vmatmul.mubr.bf16.gmra.mrb[0].mxu0 %v1595
  %v1695 = vpop.f32.mrb[0].mxu0
  %v1696 = vadd.f32 0.0, %v1695
  %v1697 = vpop.f32.mrb[0].mxu0
  %v1698 = vpop.f32.mrb[0].mxu0
  %v1699 = vpop.f32.mrb[0].mxu0
  %1700 = vdwg.mxu0
  %v1701 = vadd.f32 %v1594, %v1696
  %v1702 = vld [vmem:[#allocation2] sm:$0xc]
  %s1703 = scalar_lea.vmem %s3, 64
  %v1704 = vld [vmem:[%s1703] sm:$0xf]
  %v1705 = vld [vmem:[%s1703 + $0x4] sm:$0xf]
  %v1706 = vld [vmem:[%s1703 + $0x8] sm:$0xf]
  %v1707 = vld [vmem:[%s1703 + $0xc] sm:$0xf]
  %v1708 = vld [vmem:[%s1703 + $0x10] sm:$0xf]
  %v1709 = vld [vmem:[%s1703 + $0x14] sm:$0xf]
  %v1710 = vld [vmem:[%s1703 + $0x18] sm:$0xf]
  %v1711 = vld [vmem:[%s1703 + $0x1c] sm:$0xf]
  %v1712 = vld [vmem:[%s1703 + $0x20] sm:$0xf]
  %v1713 = vld [vmem:[%s1703 + $0x24] sm:$0xf]
  %v1714 = vld [vmem:[%s1703 + $0x28] sm:$0xf]
  %v1715 = vld [vmem:[%s1703 + $0x2c] sm:$0xf]
  %v1716 = vld [vmem:[%s1703 + $0x30] sm:$0xf]
  %v1717 = vld [vmem:[%s1703 + $0x34] sm:$0xf]
  %v1718 = vld [vmem:[%s1703 + $0x38] sm:$0xf]
  %v1719 = vld [vmem:[%s1703 + $0x3c] sm:$0xf]
  %v1720 = vld [vmem:[#allocation2 + $0x8] sm:$0xc]
  %s1721 = scalar_lea.vmem %s3, 320
  %v1722 = vld [vmem:[%s1721] sm:$0xf]
  %v1723 = vld [vmem:[%s1721 + $0x4] sm:$0xf]
  %v1724 = vld [vmem:[%s1721 + $0x8] sm:$0xf]
  %v1725 = vld [vmem:[%s1721 + $0xc] sm:$0xf]
  %v1726 = vld [vmem:[%s1721 + $0x10] sm:$0xf]
  %v1727 = vld [vmem:[%s1721 + $0x14] sm:$0xf]
  %v1728 = vld [vmem:[%s1721 + $0x18] sm:$0xf]
  %v1729 = vld [vmem:[%s1721 + $0x1c] sm:$0xf]
  %v1730 = vld [vmem:[%s1721 + $0x20] sm:$0xf]
  %v1731 = vld [vmem:[%s1721 + $0x24] sm:$0xf]
  %v1732 = vld [vmem:[%s1721 + $0x28] sm:$0xf]
  %v1733 = vld [vmem:[%s1721 + $0x2c] sm:$0xf]
  %v1734 = vld [vmem:[%s1721 + $0x30] sm:$0xf]
  %v1735 = vld [vmem:[%s1721 + $0x34] sm:$0xf]
  %v1736 = vld [vmem:[%s1721 + $0x38] sm:$0xf]
  %v1737 = vld [vmem:[%s1721 + $0x3c] sm:$0xf]
  %v1739 = vrot.slane %v1720, 2
  %v1757 = vunpack.c.l.b16 %v1722
  %v1758 = vunpack.c.l.b16 %v1723
  %v1759 = vunpack.c.l.b16 %v1724
  %v1760 = vunpack.c.l.b16 %v1725
  %v1761 = vunpack.c.l.b16 %v1726
  %v1762 = vunpack.c.l.b16 %v1727
  %v1763 = vunpack.c.l.b16 %v1728
  %v1764 = vunpack.c.l.b16 %v1729
  %v1765 = vunpack.c.l.b16 %v1730
  %v1766 = vunpack.c.l.b16 %v1731
  %v1767 = vunpack.c.l.b16 %v1732
  %v1768 = vunpack.c.l.b16 %v1733
  %v1769 = vunpack.c.l.b16 %v1734
  %v1770 = vunpack.c.l.b16 %v1735
  %v1771 = vunpack.c.l.b16 %v1736
  %v1772 = vunpack.c.l.b16 %v1737
  %v1773 = vpack.c.b16 %v1758, %v1757
  %v1774 = vpack.c.b16 %v1760, %v1759
  %v1775 = vpack.c.b16 %v1762, %v1761
  %v1776 = vpack.c.b16 %v1764, %v1763
  %v1777 = vpack.c.b16 %v1766, %v1765
  %v1778 = vpack.c.b16 %v1768, %v1767
  %v1779 = vpack.c.b16 %v1770, %v1769
  %v1780 = vpack.c.b16 %v1772, %v1771
  %1789 = vmatprep.subr.bf16.mxu0 0
  %1790 = vmatpush1.bf16.msra.mxu0 %v1773
  %1791 = vmatprep.subr.bf16.mxu0 0
  %1792 = vmatpush1.bf16.msra.mxu0 %v1774
  %1793 = vmatprep.subr.bf16.mxu0 0
  %1794 = vmatpush1.bf16.msra.mxu0 %v1775
  %1795 = vmatprep.subr.bf16.mxu0 0
  %1796 = vmatpush1.bf16.msra.mxu0 %v1776
  %1797 = vmatprep.subr.bf16.mxu0 0
  %1798 = vmatpush1.bf16.msra.mxu0 %v1777
  %1799 = vmatprep.subr.bf16.mxu0 0
  %1800 = vmatpush1.bf16.msra.mxu0 %v1778
  %1801 = vmatprep.subr.bf16.mxu0 0
  %1802 = vmatpush1.bf16.msra.mxu0 %v1779
  %1803 = vmatprep.subr.bf16.mxu0 0
  %1804 = vmatpush1.bf16.msra.mxu0 %v1780
  %1805 = vmatprep.subr.bf16.mxu0 0
  %1806 = vmatpush1.bf16.msra.mxu0 0
  %1807 = vmatprep.subr.bf16.mxu0 0
  %1808 = vmatpush1.bf16.msra.mxu0 0
  %1809 = vmatprep.subr.bf16.mxu0 0
  %1810 = vmatpush1.bf16.msra.mxu0 0
  %1811 = vmatprep.subr.bf16.mxu0 0
  %1812 = vmatpush1.bf16.msra.mxu0 0
  %1813 = vmatprep.subr.bf16.mxu0 0
  %1814 = vmatpush1.bf16.msra.mxu0 0
  %1815 = vmatprep.subr.bf16.mxu0 0
  %1816 = vmatpush1.bf16.msra.mxu0 0
  %1817 = vmatprep.subr.bf16.mxu0 0
  %1818 = vmatpush1.bf16.msra.mxu0 0
  %1819 = vmatprep.subr.bf16.mxu0 0
  %1820 = vmatpush1.bf16.msra.mxu0 0
  %1821 = vmatprep.mubr.bf16.mxu0 0
  %1822 = vmatmul.mubr.bf16.gmra.mrb[0].mxu0 %v1739
  %v1823 = vpop.f32.mrb[0].mxu0
  %v1824 = vadd.f32 0.0, %v1823
  %v1825 = vpop.f32.mrb[0].mxu0
  %v1826 = vpop.f32.mrb[0].mxu0
  %v1827 = vpop.f32.mrb[0].mxu0
  %1828 = vdwg.mxu0
  %v1830 = vrot.slane %v1702, 2
  %v1848 = vunpack.c.l.b16 %v1704
  %v1849 = vunpack.c.l.b16 %v1705
  %v1850 = vunpack.c.l.b16 %v1706
  %v1851 = vunpack.c.l.b16 %v1707
  %v1852 = vunpack.c.l.b16 %v1708
  %v1853 = vunpack.c.l.b16 %v1709
  %v1854 = vunpack.c.l.b16 %v1710
  %v1855 = vunpack.c.l.b16 %v1711
  %v1856 = vunpack.c.l.b16 %v1712
  %v1857 = vunpack.c.l.b16 %v1713
  %v1858 = vunpack.c.l.b16 %v1714
  %v1859 = vunpack.c.l.b16 %v1715
  %v1860 = vunpack.c.l.b16 %v1716
  %v1861 = vunpack.c.l.b16 %v1717
  %v1862 = vunpack.c.l.b16 %v1718
  %v1863 = vunpack.c.l.b16 %v1719
  %v1864 = vpack.c.b16 %v1849, %v1848
  %v1865 = vpack.c.b16 %v1851, %v1850
  %v1866 = vpack.c.b16 %v1853, %v1852
  %v1867 = vpack.c.b16 %v1855, %v1854
  %v1868 = vpack.c.b16 %v1857, %v1856
  %v1869 = vpack.c.b16 %v1859, %v1858
  %v1870 = vpack.c.b16 %v1861, %v1860
  %v1871 = vpack.c.b16 %v1863, %v1862
  %1880 = vmatprep.subr.bf16.mxu0 0
  %1881 = vmatpush1.bf16.msra.mxu0 %v1864
  %1882 = vmatprep.subr.bf16.mxu0 0
  %1883 = vmatpush1.bf16.msra.mxu0 %v1865
  %1884 = vmatprep.subr.bf16.mxu0 0
  %1885 = vmatpush1.bf16.msra.mxu0 %v1866
  %1886 = vmatprep.subr.bf16.mxu0 0
  %1887 = vmatpush1.bf16.msra.mxu0 %v1867
  %1888 = vmatprep.subr.bf16.mxu0 0
  %1889 = vmatpush1.bf16.msra.mxu0 %v1868
  %1890 = vmatprep.subr.bf16.mxu0 0
  %1891 = vmatpush1.bf16.msra.mxu0 %v1869
  %1892 = vmatprep.subr.bf16.mxu0 0
  %1893 = vmatpush1.bf16.msra.mxu0 %v1870
  %1894 = vmatprep.subr.bf16.mxu0 0
  %1895 = vmatpush1.bf16.msra.mxu0 %v1871
  %1896 = vmatprep.subr.bf16.mxu0 0
  %1897 = vmatpush1.bf16.msra.mxu0 0
  %1898 = vmatprep.subr.bf16.mxu0 0
  %1899 = vmatpush1.bf16.msra.mxu0 0
  %1900 = vmatprep.subr.bf16.mxu0 0
  %1901 = vmatpush1.bf16.msra.mxu0 0
  %1902 = vmatprep.subr.bf16.mxu0 0
  %1903 = vmatpush1.bf16.msra.mxu0 0
  %1904 = vmatprep.subr.bf16.mxu0 0
  %1905 = vmatpush1.bf16.msra.mxu0 0
  %1906 = vmatprep.subr.bf16.mxu0 0
  %1907 = vmatpush1.bf16.msra.mxu0 0
  %1908 = vmatprep.subr.bf16.mxu0 0
  %1909 = vmatpush1.bf16.msra.mxu0 0
  %1910 = vmatprep.subr.bf16.mxu0 0
  %1911 = vmatpush1.bf16.msra.mxu0 0
  %1912 = vmatprep.mubr.bf16.mxu0 0
  %1913 = vmatmul.mubr.bf16.gmra.mrb[0].mxu0 %v1830
  %v1914 = vpop.f32.mrb[0].mxu0
  %v1915 = vadd.f32 %v1824, %v1914
  %v1916 = vpop.f32.mrb[0].mxu0
  %v1917 = vpop.f32.mrb[0].mxu0
  %v1918 = vpop.f32.mrb[0].mxu0
  %1919 = vdwg.mxu0
  %v1920 = vld [vmem:[#allocation2 + $0x10] sm:$0xc]
  %s1921 = scalar_lea.vmem %s3, 576
  %v1922 = vld [vmem:[%s1921] sm:$0xf]
  %v1923 = vld [vmem:[%s1921 + $0x4] sm:$0xf]
  %v1924 = vld [vmem:[%s1921 + $0x8] sm:$0xf]
  %v1925 = vld [vmem:[%s1921 + $0xc] sm:$0xf]
  %v1926 = vld [vmem:[%s1921 + $0x10] sm:$0xf]
  %v1927 = vld [vmem:[%s1921 + $0x14] sm:$0xf]
  %v1928 = vld [vmem:[%s1921 + $0x18] sm:$0xf]
  %v1929 = vld [vmem:[%s1921 + $0x1c] sm:$0xf]
  %v1930 = vld [vmem:[%s1921 + $0x20] sm:$0xf]
  %v1931 = vld [vmem:[%s1921 + $0x24] sm:$0xf]
  %v1932 = vld [vmem:[%s1921 + $0x28] sm:$0xf]
  %v1933 = vld [vmem:[%s1921 + $0x2c] sm:$0xf]
  %v1934 = vld [vmem:[%s1921 + $0x30] sm:$0xf]
  %v1935 = vld [vmem:[%s1921 + $0x34] sm:$0xf]
  %v1936 = vld [vmem:[%s1921 + $0x38] sm:$0xf]
  %v1937 = vld [vmem:[%s1921 + $0x3c] sm:$0xf]
  %v1939 = vrot.slane %v1920, 2
  %v1957 = vunpack.c.l.b16 %v1922
  %v1958 = vunpack.c.l.b16 %v1923
  %v1959 = vunpack.c.l.b16 %v1924
  %v1960 = vunpack.c.l.b16 %v1925
  %v1961 = vunpack.c.l.b16 %v1926
  %v1962 = vunpack.c.l.b16 %v1927
  %v1963 = vunpack.c.l.b16 %v1928
  %v1964 = vunpack.c.l.b16 %v1929
  %v1965 = vunpack.c.l.b16 %v1930
  %v1966 = vunpack.c.l.b16 %v1931
  %v1967 = vunpack.c.l.b16 %v1932
  %v1968 = vunpack.c.l.b16 %v1933
  %v1969 = vunpack.c.l.b16 %v1934
  %v1970 = vunpack.c.l.b16 %v1935
  %v1971 = vunpack.c.l.b16 %v1936
  %v1972 = vunpack.c.l.b16 %v1937
  %v1973 = vpack.c.b16 %v1958, %v1957
  %v1974 = vpack.c.b16 %v1960, %v1959
  %v1975 = vpack.c.b16 %v1962, %v1961
  %v1976 = vpack.c.b16 %v1964, %v1963
  %v1977 = vpack.c.b16 %v1966, %v1965
  %v1978 = vpack.c.b16 %v1968, %v1967
  %v1979 = vpack.c.b16 %v1970, %v1969
  %v1980 = vpack.c.b16 %v1972, %v1971
  %1989 = vmatprep.subr.bf16.mxu0 0
  %1990 = vmatpush1.bf16.msra.mxu0 %v1973
  %1991 = vmatprep.subr.bf16.mxu0 0
  %1992 = vmatpush1.bf16.msra.mxu0 %v1974
  %1993 = vmatprep.subr.bf16.mxu0 0
  %1994 = vmatpush1.bf16.msra.mxu0 %v1975
  %1995 = vmatprep.subr.bf16.mxu0 0
  %1996 = vmatpush1.bf16.msra.mxu0 %v1976
  %1997 = vmatprep.subr.bf16.mxu0 0
  %1998 = vmatpush1.bf16.msra.mxu0 %v1977
  %1999 = vmatprep.subr.bf16.mxu0 0
  %2000 = vmatpush1.bf16.msra.mxu0 %v1978
  %2001 = vmatprep.subr.bf16.mxu0 0
  %2002 = vmatpush1.bf16.msra.mxu0 %v1979
  %2003 = vmatprep.subr.bf16.mxu0 0
  %2004 = vmatpush1.bf16.msra.mxu0 %v1980
  %2005 = vmatprep.subr.bf16.mxu0 0
  %2006 = vmatpush1.bf16.msra.mxu0 0
  %2007 = vmatprep.subr.bf16.mxu0 0
  %2008 = vmatpush1.bf16.msra.mxu0 0
  %2009 = vmatprep.subr.bf16.mxu0 0
  %2010 = vmatpush1.bf16.msra.mxu0 0
  %2011 = vmatprep.subr.bf16.mxu0 0
  %2012 = vmatpush1.bf16.msra.mxu0 0
  %2013 = vmatprep.subr.bf16.mxu0 0
  %2014 = vmatpush1.bf16.msra.mxu0 0
  %2015 = vmatprep.subr.bf16.mxu0 0
  %2016 = vmatpush1.bf16.msra.mxu0 0
  %2017 = vmatprep.subr.bf16.mxu0 0
  %2018 = vmatpush1.bf16.msra.mxu0 0
  %2019 = vmatprep.subr.bf16.mxu0 0
  %2020 = vmatpush1.bf16.msra.mxu0 0
  %2021 = vmatprep.mubr.bf16.mxu0 0
  %2022 = vmatmul.mubr.bf16.gmra.mrb[0].mxu0 %v1939
  %v2023 = vpop.f32.mrb[0].mxu0
  %v2024 = vadd.f32 0.0, %v2023
  %v2025 = vpop.f32.mrb[0].mxu0
  %v2026 = vpop.f32.mrb[0].mxu0
  %v2027 = vpop.f32.mrb[0].mxu0
  %2028 = vdwg.mxu0
  %v2029 = vadd.f32 %v1915, %v2024
  %v2030 = vld [vmem:[#allocation2 + $0x18] sm:$0xc]
  %s2031 = scalar_lea.vmem %s3, 832
  %v2032 = vld [vmem:[%s2031] sm:$0xf]
  %v2033 = vld [vmem:[%s2031 + $0x4] sm:$0xf]
  %v2034 = vld [vmem:[%s2031 + $0x8] sm:$0xf]
  %v2035 = vld [vmem:[%s2031 + $0xc] sm:$0xf]
  %v2036 = vld [vmem:[%s2031 + $0x10] sm:$0xf]
  %v2037 = vld [vmem:[%s2031 + $0x14] sm:$0xf]
  %v2038 = vld [vmem:[%s2031 + $0x18] sm:$0xf]
  %v2039 = vld [vmem:[%s2031 + $0x1c] sm:$0xf]
  %v2040 = vld [vmem:[%s2031 + $0x20] sm:$0xf]
  %v2041 = vld [vmem:[%s2031 + $0x24] sm:$0xf]
  %v2042 = vld [vmem:[%s2031 + $0x28] sm:$0xf]
  %v2043 = vld [vmem:[%s2031 + $0x2c] sm:$0xf]
  %v2044 = vld [vmem:[%s2031 + $0x30] sm:$0xf]
  %v2045 = vld [vmem:[%s2031 + $0x34] sm:$0xf]
  %v2046 = vld [vmem:[%s2031 + $0x38] sm:$0xf]
  %v2047 = vld [vmem:[%s2031 + $0x3c] sm:$0xf]
  %v2049 = vrot.slane %v2030, 2
  %v2067 = vunpack.c.l.b16 %v2032
  %v2068 = vunpack.c.l.b16 %v2033
  %v2069 = vunpack.c.l.b16 %v2034
  %v2070 = vunpack.c.l.b16 %v2035
  %v2071 = vunpack.c.l.b16 %v2036
  %v2072 = vunpack.c.l.b16 %v2037
  %v2073 = vunpack.c.l.b16 %v2038
  %v2074 = vunpack.c.l.b16 %v2039
  %v2075 = vunpack.c.l.b16 %v2040
  %v2076 = vunpack.c.l.b16 %v2041
  %v2077 = vunpack.c.l.b16 %v2042
  %v2078 = vunpack.c.l.b16 %v2043
  %v2079 = vunpack.c.l.b16 %v2044
  %v2080 = vunpack.c.l.b16 %v2045
  %v2081 = vunpack.c.l.b16 %v2046
  %v2082 = vunpack.c.l.b16 %v2047
  %v2083 = vpack.c.b16 %v2068, %v2067
  %v2084 = vpack.c.b16 %v2070, %v2069
  %v2085 = vpack.c.b16 %v2072, %v2071
  %v2086 = vpack.c.b16 %v2074, %v2073
  %v2087 = vpack.c.b16 %v2076, %v2075
  %v2088 = vpack.c.b16 %v2078, %v2077
  %v2089 = vpack.c.b16 %v2080, %v2079
  %v2090 = vpack.c.b16 %v2082, %v2081
  %2099 = vmatprep.subr.bf16.mxu0 0
  %2100 = vmatpush1.bf16.msra.mxu0 %v2083
  %2101 = vmatprep.subr.bf16.mxu0 0
  %2102 = vmatpush1.bf16.msra.mxu0 %v2084
  %2103 = vmatprep.subr.bf16.mxu0 0
  %2104 = vmatpush1.bf16.msra.mxu0 %v2085
  %2105 = vmatprep.subr.bf16.mxu0 0
  %2106 = vmatpush1.bf16.msra.mxu0 %v2086
  %2107 = vmatprep.subr.bf16.mxu0 0
  %2108 = vmatpush1.bf16.msra.mxu0 %v2087
  %2109 = vmatprep.subr.bf16.mxu0 0
  %2110 = vmatpush1.bf16.msra.mxu0 %v2088
  %2111 = vmatprep.subr.bf16.mxu0 0
  %2112 = vmatpush1.bf16.msra.mxu0 %v2089
  %2113 = vmatprep.subr.bf16.mxu0 0
  %2114 = vmatpush1.bf16.msra.mxu0 %v2090
  %2115 = vmatprep.subr.bf16.mxu0 0
  %2116 = vmatpush1.bf16.msra.mxu0 0
  %2117 = vmatprep.subr.bf16.mxu0 0
  %2118 = vmatpush1.bf16.msra.mxu0 0
  %2119 = vmatprep.subr.bf16.mxu0 0
  %2120 = vmatpush1.bf16.msra.mxu0 0
  %2121 = vmatprep.subr.bf16.mxu0 0
  %2122 = vmatpush1.bf16.msra.mxu0 0
  %2123 = vmatprep.subr.bf16.mxu0 0
  %2124 = vmatpush1.bf16.msra.mxu0 0
  %2125 = vmatprep.subr.bf16.mxu0 0
  %2126 = vmatpush1.bf16.msra.mxu0 0
  %2127 = vmatprep.subr.bf16.mxu0 0
  %2128 = vmatpush1.bf16.msra.mxu0 0
  %2129 = vmatprep.subr.bf16.mxu0 0
  %2130 = vmatpush1.bf16.msra.mxu0 0
  %2131 = vmatprep.mubr.bf16.mxu0 0
  %2132 = vmatmul.mubr.bf16.gmra.mrb[0].mxu0 %v2049
  %v2133 = vpop.f32.mrb[0].mxu0
  %v2134 = vadd.f32 0.0, %v2133
  %v2135 = vpop.f32.mrb[0].mxu0
  %v2136 = vpop.f32.mrb[0].mxu0
  %v2137 = vpop.f32.mrb[0].mxu0
  %2138 = vdwg.mxu0
  %v2139 = vadd.f32 %v2029, %v2134
  %v2140 = vld [vmem:[#allocation2 + $0x20] sm:$0xc]
  %s2141 = scalar_lea.vmem %s3, 1088
  %v2142 = vld [vmem:[%s2141] sm:$0xf]
  %v2143 = vld [vmem:[%s2141 + $0x4] sm:$0xf]
  %v2144 = vld [vmem:[%s2141 + $0x8] sm:$0xf]
  %v2145 = vld [vmem:[%s2141 + $0xc] sm:$0xf]
  %v2146 = vld [vmem:[%s2141 + $0x10] sm:$0xf]
  %v2147 = vld [vmem:[%s2141 + $0x14] sm:$0xf]
  %v2148 = vld [vmem:[%s2141 + $0x18] sm:$0xf]
  %v2149 = vld [vmem:[%s2141 + $0x1c] sm:$0xf]
  %v2150 = vld [vmem:[%s2141 + $0x20] sm:$0xf]
  %v2151 = vld [vmem:[%s2141 + $0x24] sm:$0xf]
  %v2152 = vld [vmem:[%s2141 + $0x28] sm:$0xf]
  %v2153 = vld [vmem:[%s2141 + $0x2c] sm:$0xf]
  %v2154 = vld [vmem:[%s2141 + $0x30] sm:$0xf]
  %v2155 = vld [vmem:[%s2141 + $0x34] sm:$0xf]
  %v2156 = vld [vmem:[%s2141 + $0x38] sm:$0xf]
  %v2157 = vld [vmem:[%s2141 + $0x3c] sm:$0xf]
  %v2159 = vrot.slane %v2140, 2
  %v2177 = vunpack.c.l.b16 %v2142
  %v2178 = vunpack.c.l.b16 %v2143
  %v2179 = vunpack.c.l.b16 %v2144
  %v2180 = vunpack.c.l.b16 %v2145
  %v2181 = vunpack.c.l.b16 %v2146
  %v2182 = vunpack.c.l.b16 %v2147
  %v2183 = vunpack.c.l.b16 %v2148
  %v2184 = vunpack.c.l.b16 %v2149
  %v2185 = vunpack.c.l.b16 %v2150
  %v2186 = vunpack.c.l.b16 %v2151
  %v2187 = vunpack.c.l.b16 %v2152
  %v2188 = vunpack.c.l.b16 %v2153
  %v2189 = vunpack.c.l.b16 %v2154
  %v2190 = vunpack.c.l.b16 %v2155
  %v2191 = vunpack.c.l.b16 %v2156
  %v2192 = vunpack.c.l.b16 %v2157
  %v2193 = vpack.c.b16 %v2178, %v2177
  %v2194 = vpack.c.b16 %v2180, %v2179
  %v2195 = vpack.c.b16 %v2182, %v2181
  %v2196 = vpack.c.b16 %v2184, %v2183
  %v2197 = vpack.c.b16 %v2186, %v2185
  %v2198 = vpack.c.b16 %v2188, %v2187
  %v2199 = vpack.c.b16 %v2190, %v2189
  %v2200 = vpack.c.b16 %v2192, %v2191
  %2209 = vmatprep.subr.bf16.mxu0 0
  %2210 = vmatpush1.bf16.msra.mxu0 %v2193
  %2211 = vmatprep.subr.bf16.mxu0 0
  %2212 = vmatpush1.bf16.msra.mxu0 %v2194
  %2213 = vmatprep.subr.bf16.mxu0 0
  %2214 = vmatpush1.bf16.msra.mxu0 %v2195
  %2215 = vmatprep.subr.bf16.mxu0 0
  %2216 = vmatpush1.bf16.msra.mxu0 %v2196
  %2217 = vmatprep.subr.bf16.mxu0 0
  %2218 = vmatpush1.bf16.msra.mxu0 %v2197
  %2219 = vmatprep.subr.bf16.mxu0 0
  %2220 = vmatpush1.bf16.msra.mxu0 %v2198
  %2221 = vmatprep.subr.bf16.mxu0 0
  %2222 = vmatpush1.bf16.msra.mxu0 %v2199
  %2223 = vmatprep.subr.bf16.mxu0 0
  %2224 = vmatpush1.bf16.msra.mxu0 %v2200
  %2225 = vmatprep.subr.bf16.mxu0 0
  %2226 = vmatpush1.bf16.msra.mxu0 0
  %2227 = vmatprep.subr.bf16.mxu0 0
  %2228 = vmatpush1.bf16.msra.mxu0 0
  %2229 = vmatprep.subr.bf16.mxu0 0
  %2230 = vmatpush1.bf16.msra.mxu0 0
  %2231 = vmatprep.subr.bf16.mxu0 0
  %2232 = vmatpush1.bf16.msra.mxu0 0
  %2233 = vmatprep.subr.bf16.mxu0 0
  %2234 = vmatpush1.bf16.msra.mxu0 0
  %2235 = vmatprep.subr.bf16.mxu0 0
  %2236 = vmatpush1.bf16.msra.mxu0 0
  %2237 = vmatprep.subr.bf16.mxu0 0
  %2238 = vmatpush1.bf16.msra.mxu0 0
  %2239 = vmatprep.subr.bf16.mxu0 0
  %2240 = vmatpush1.bf16.msra.mxu0 0
  %2241 = vmatprep.mubr.bf16.mxu0 0
  %2242 = vmatmul.mubr.bf16.gmra.mrb[0].mxu0 %v2159
  %v2243 = vpop.f32.mrb[0].mxu0
  %v2244 = vadd.f32 0.0, %v2243
  %v2245 = vpop.f32.mrb[0].mxu0
  %v2246 = vpop.f32.mrb[0].mxu0
  %v2247 = vpop.f32.mrb[0].mxu0
  %2248 = vdwg.mxu0
  %v2249 = vadd.f32 %v2139, %v2244
  %v2250 = vld [vmem:[#allocation2 + $0x28] sm:$0xc]
  %s2251 = scalar_lea.vmem %s3, 1344
  %v2252 = vld [vmem:[%s2251] sm:$0xf]
  %v2253 = vld [vmem:[%s2251 + $0x4] sm:$0xf]
  %v2254 = vld [vmem:[%s2251 + $0x8] sm:$0xf]
  %v2255 = vld [vmem:[%s2251 + $0xc] sm:$0xf]
  %v2256 = vld [vmem:[%s2251 + $0x10] sm:$0xf]
  %v2257 = vld [vmem:[%s2251 + $0x14] sm:$0xf]
  %v2258 = vld [vmem:[%s2251 + $0x18] sm:$0xf]
  %v2259 = vld [vmem:[%s2251 + $0x1c] sm:$0xf]
  %v2260 = vld [vmem:[%s2251 + $0x20] sm:$0xf]
  %v2261 = vld [vmem:[%s2251 + $0x24] sm:$0xf]
  %v2262 = vld [vmem:[%s2251 + $0x28] sm:$0xf]
  %v2263 = vld [vmem:[%s2251 + $0x2c] sm:$0xf]
  %v2264 = vld [vmem:[%s2251 + $0x30] sm:$0xf]
  %v2265 = vld [vmem:[%s2251 + $0x34] sm:$0xf]
  %v2266 = vld [vmem:[%s2251 + $0x38] sm:$0xf]
  %v2267 = vld [vmem:[%s2251 + $0x3c] sm:$0xf]
  %v2269 = vrot.slane %v2250, 2
  %v2287 = vunpack.c.l.b16 %v2252
  %v2288 = vunpack.c.l.b16 %v2253
  %v2289 = vunpack.c.l.b16 %v2254
  %v2290 = vunpack.c.l.b16 %v2255
  %v2291 = vunpack.c.l.b16 %v2256
  %v2292 = vunpack.c.l.b16 %v2257
  %v2293 = vunpack.c.l.b16 %v2258
  %v2294 = vunpack.c.l.b16 %v2259
  %v2295 = vunpack.c.l.b16 %v2260
  %v2296 = vunpack.c.l.b16 %v2261
  %v2297 = vunpack.c.l.b16 %v2262
  %v2298 = vunpack.c.l.b16 %v2263
  %v2299 = vunpack.c.l.b16 %v2264
  %v2300 = vunpack.c.l.b16 %v2265
  %v2301 = vunpack.c.l.b16 %v2266
  %v2302 = vunpack.c.l.b16 %v2267
  %v2303 = vpack.c.b16 %v2288, %v2287
  %v2304 = vpack.c.b16 %v2290, %v2289
  %v2305 = vpack.c.b16 %v2292, %v2291
  %v2306 = vpack.c.b16 %v2294, %v2293
  %v2307 = vpack.c.b16 %v2296, %v2295
  %v2308 = vpack.c.b16 %v2298, %v2297
  %v2309 = vpack.c.b16 %v2300, %v2299
  %v2310 = vpack.c.b16 %v2302, %v2301
  %2319 = vmatprep.subr.bf16.mxu0 0
  %2320 = vmatpush1.bf16.msra.mxu0 %v2303
  %2321 = vmatprep.subr.bf16.mxu0 0
  %2322 = vmatpush1.bf16.msra.mxu0 %v2304
  %2323 = vmatprep.subr.bf16.mxu0 0
  %2324 = vmatpush1.bf16.msra.mxu0 %v2305
  %2325 = vmatprep.subr.bf16.mxu0 0
  %2326 = vmatpush1.bf16.msra.mxu0 %v2306
  %2327 = vmatprep.subr.bf16.mxu0 0
  %2328 = vmatpush1.bf16.msra.mxu0 %v2307
  %2329 = vmatprep.subr.bf16.mxu0 0
  %2330 = vmatpush1.bf16.msra.mxu0 %v2308
  %2331 = vmatprep.subr.bf16.mxu0 0
  %2332 = vmatpush1.bf16.msra.mxu0 %v2309
  %2333 = vmatprep.subr.bf16.mxu0 0
  %2334 = vmatpush1.bf16.msra.mxu0 %v2310
  %2335 = vmatprep.subr.bf16.mxu0 0
  %2336 = vmatpush1.bf16.msra.mxu0 0
  %2337 = vmatprep.subr.bf16.mxu0 0
  %2338 = vmatpush1.bf16.msra.mxu0 0
  %2339 = vmatprep.subr.bf16.mxu0 0
  %2340 = vmatpush1.bf16.msra.mxu0 0
  %2341 = vmatprep.subr.bf16.mxu0 0
  %2342 = vmatpush1.bf16.msra.mxu0 0
  %2343 = vmatprep.subr.bf16.mxu0 0
  %2344 = vmatpush1.bf16.msra.mxu0 0
  %2345 = vmatprep.subr.bf16.mxu0 0
  %2346 = vmatpush1.bf16.msra.mxu0 0
  %2347 = vmatprep.subr.bf16.mxu0 0
  %2348 = vmatpush1.bf16.msra.mxu0 0
  %2349 = vmatprep.subr.bf16.mxu0 0
  %2350 = vmatpush1.bf16.msra.mxu0 0
  %2351 = vmatprep.mubr.bf16.mxu0 0
  %2352 = vmatmul.mubr.bf16.gmra.mrb[0].mxu0 %v2269
  %v2353 = vpop.f32.mrb[0].mxu0
  %v2354 = vadd.f32 0.0, %v2353
  %v2355 = vpop.f32.mrb[0].mxu0
  %v2356 = vpop.f32.mrb[0].mxu0
  %v2357 = vpop.f32.mrb[0].mxu0
  %2358 = vdwg.mxu0
  %v2359 = vadd.f32 %v2249, %v2354
  %v2360 = vld [vmem:[#allocation2] sm:$0x30]
  %s2361 = scalar_lea.vmem %s3, 128
  %v2362 = vld [vmem:[%s2361] sm:$0xf]
  %v2363 = vld [vmem:[%s2361 + $0x4] sm:$0xf]
  %v2364 = vld [vmem:[%s2361 + $0x8] sm:$0xf]
  %v2365 = vld [vmem:[%s2361 + $0xc] sm:$0xf]
  %v2366 = vld [vmem:[%s2361 + $0x10] sm:$0xf]
  %v2367 = vld [vmem:[%s2361 + $0x14] sm:$0xf]
  %v2368 = vld [vmem:[%s2361 + $0x18] sm:$0xf]
  %v2369 = vld [vmem:[%s2361 + $0x1c] sm:$0xf]
  %v2370 = vld [vmem:[%s2361 + $0x20] sm:$0xf]
  %v2371 = vld [vmem:[%s2361 + $0x24] sm:$0xf]
  %v2372 = vld [vmem:[%s2361 + $0x28] sm:$0xf]
  %v2373 = vld [vmem:[%s2361 + $0x2c] sm:$0xf]
  %v2374 = vld [vmem:[%s2361 + $0x30] sm:$0xf]
  %v2375 = vld [vmem:[%s2361 + $0x34] sm:$0xf]
  %v2376 = vld [vmem:[%s2361 + $0x38] sm:$0xf]
  %v2377 = vld [vmem:[%s2361 + $0x3c] sm:$0xf]
  %v2378 = vld [vmem:[#allocation2 + $0x8] sm:$0x30]
  %s2379 = scalar_lea.vmem %s3, 384
  %v2380 = vld [vmem:[%s2379] sm:$0xf]
  %v2381 = vld [vmem:[%s2379 + $0x4] sm:$0xf]
  %v2382 = vld [vmem:[%s2379 + $0x8] sm:$0xf]
  %v2383 = vld [vmem:[%s2379 + $0xc] sm:$0xf]
  %v2384 = vld [vmem:[%s2379 + $0x10] sm:$0xf]
  %v2385 = vld [vmem:[%s2379 + $0x14] sm:$0xf]
  %v2386 = vld [vmem:[%s2379 + $0x18] sm:$0xf]
  %v2387 = vld [vmem:[%s2379 + $0x1c] sm:$0xf]
  %v2388 = vld [vmem:[%s2379 + $0x20] sm:$0xf]
  %v2389 = vld [vmem:[%s2379 + $0x24] sm:$0xf]
  %v2390 = vld [vmem:[%s2379 + $0x28] sm:$0xf]
  %v2391 = vld [vmem:[%s2379 + $0x2c] sm:$0xf]
  %v2392 = vld [vmem:[%s2379 + $0x30] sm:$0xf]
  %v2393 = vld [vmem:[%s2379 + $0x34] sm:$0xf]
  %v2394 = vld [vmem:[%s2379 + $0x38] sm:$0xf]
  %v2395 = vld [vmem:[%s2379 + $0x3c] sm:$0xf]
  %v2397 = vrot.slane %v2378, 4
  %v2415 = vunpack.c.l.b16 %v2380
  %v2416 = vunpack.c.l.b16 %v2381
  %v2417 = vunpack.c.l.b16 %v2382
  %v2418 = vunpack.c.l.b16 %v2383
  %v2419 = vunpack.c.l.b16 %v2384
  %v2420 = vunpack.c.l.b16 %v2385
  %v2421 = vunpack.c.l.b16 %v2386
  %v2422 = vunpack.c.l.b16 %v2387
  %v2423 = vunpack.c.l.b16 %v2388
  %v2424 = vunpack.c.l.b16 %v2389
  %v2425 = vunpack.c.l.b16 %v2390
  %v2426 = vunpack.c.l.b16 %v2391
  %v2427 = vunpack.c.l.b16 %v2392
  %v2428 = vunpack.c.l.b16 %v2393
  %v2429 = vunpack.c.l.b16 %v2394
  %v2430 = vunpack.c.l.b16 %v2395
  %v2431 = vpack.c.b16 %v2416, %v2415
  %v2432 = vpack.c.b16 %v2418, %v2417
  %v2433 = vpack.c.b16 %v2420, %v2419
  %v2434 = vpack.c.b16 %v2422, %v2421
  %v2435 = vpack.c.b16 %v2424, %v2423
  %v2436 = vpack.c.b16 %v2426, %v2425
  %v2437 = vpack.c.b16 %v2428, %v2427
  %v2438 = vpack.c.b16 %v2430, %v2429
  %2447 = vmatprep.subr.bf16.mxu0 0
  %2448 = vmatpush1.bf16.msra.mxu0 %v2431
  %2449 = vmatprep.subr.bf16.mxu0 0
  %2450 = vmatpush1.bf16.msra.mxu0 %v2432
  %2451 = vmatprep.subr.bf16.mxu0 0
  %2452 = vmatpush1.bf16.msra.mxu0 %v2433
  %2453 = vmatprep.subr.bf16.mxu0 0
  %2454 = vmatpush1.bf16.msra.mxu0 %v2434
  %2455 = vmatprep.subr.bf16.mxu0 0
  %2456 = vmatpush1.bf16.msra.mxu0 %v2435
  %2457 = vmatprep.subr.bf16.mxu0 0
  %2458 = vmatpush1.bf16.msra.mxu0 %v2436
  %2459 = vmatprep.subr.bf16.mxu0 0
  %2460 = vmatpush1.bf16.msra.mxu0 %v2437
  %2461 = vmatprep.subr.bf16.mxu0 0
  %2462 = vmatpush1.bf16.msra.mxu0 %v2438
  %2463 = vmatprep.subr.bf16.mxu0 0
  %2464 = vmatpush1.bf16.msra.mxu0 0
  %2465 = vmatprep.subr.bf16.mxu0 0
  %2466 = vmatpush1.bf16.msra.mxu0 0
  %2467 = vmatprep.subr.bf16.mxu0 0
  %2468 = vmatpush1.bf16.msra.mxu0 0
  %2469 = vmatprep.subr.bf16.mxu0 0
  %2470 = vmatpush1.bf16.msra.mxu0 0
  %2471 = vmatprep.subr.bf16.mxu0 0
  %2472 = vmatpush1.bf16.msra.mxu0 0
  %2473 = vmatprep.subr.bf16.mxu0 0
  %2474 = vmatpush1.bf16.msra.mxu0 0
  %2475 = vmatprep.subr.bf16.mxu0 0
  %2476 = vmatpush1.bf16.msra.mxu0 0
  %2477 = vmatprep.subr.bf16.mxu0 0
  %2478 = vmatpush1.bf16.msra.mxu0 0
  %2479 = vmatprep.mubr.bf16.mxu0 0
  %2480 = vmatmul.mubr.bf16.gmra.mrb[0].mxu0 %v2397
  %v2481 = vpop.f32.mrb[0].mxu0
  %v2482 = vadd.f32 0.0, %v2481
  %v2483 = vpop.f32.mrb[0].mxu0
  %v2484 = vpop.f32.mrb[0].mxu0
  %v2485 = vpop.f32.mrb[0].mxu0
  %2486 = vdwg.mxu0
  %v2488 = vrot.slane %v2360, 4
  %v2506 = vunpack.c.l.b16 %v2362
  %v2507 = vunpack.c.l.b16 %v2363
  %v2508 = vunpack.c.l.b16 %v2364
  %v2509 = vunpack.c.l.b16 %v2365
  %v2510 = vunpack.c.l.b16 %v2366
  %v2511 = vunpack.c.l.b16 %v2367
  %v2512 = vunpack.c.l.b16 %v2368
  %v2513 = vunpack.c.l.b16 %v2369
  %v2514 = vunpack.c.l.b16 %v2370
  %v2515 = vunpack.c.l.b16 %v2371
  %v2516 = vunpack.c.l.b16 %v2372
  %v2517 = vunpack.c.l.b16 %v2373
  %v2518 = vunpack.c.l.b16 %v2374
  %v2519 = vunpack.c.l.b16 %v2375
  %v2520 = vunpack.c.l.b16 %v2376
  %v2521 = vunpack.c.l.b16 %v2377
  %v2522 = vpack.c.b16 %v2507, %v2506
  %v2523 = vpack.c.b16 %v2509, %v2508
  %v2524 = vpack.c.b16 %v2511, %v2510
  %v2525 = vpack.c.b16 %v2513, %v2512
  %v2526 = vpack.c.b16 %v2515, %v2514
  %v2527 = vpack.c.b16 %v2517, %v2516
  %v2528 = vpack.c.b16 %v2519, %v2518
  %v2529 = vpack.c.b16 %v2521, %v2520
  %2538 = vmatprep.subr.bf16.mxu0 0
  %2539 = vmatpush1.bf16.msra.mxu0 %v2522
  %2540 = vmatprep.subr.bf16.mxu0 0
  %2541 = vmatpush1.bf16.msra.mxu0 %v2523
  %2542 = vmatprep.subr.bf16.mxu0 0
  %2543 = vmatpush1.bf16.msra.mxu0 %v2524
  %2544 = vmatprep.subr.bf16.mxu0 0
  %2545 = vmatpush1.bf16.msra.mxu0 %v2525
  %2546 = vmatprep.subr.bf16.mxu0 0
  %2547 = vmatpush1.bf16.msra.mxu0 %v2526
  %2548 = vmatprep.subr.bf16.mxu0 0
  %2549 = vmatpush1.bf16.msra.mxu0 %v2527
  %2550 = vmatprep.subr.bf16.mxu0 0
  %2551 = vmatpush1.bf16.msra.mxu0 %v2528
  %2552 = vmatprep.subr.bf16.mxu0 0
  %2553 = vmatpush1.bf16.msra.mxu0 %v2529
  %2554 = vmatprep.subr.bf16.mxu0 0
  %2555 = vmatpush1.bf16.msra.mxu0 0
  %2556 = vmatprep.subr.bf16.mxu0 0
  %2557 = vmatpush1.bf16.msra.mxu0 0
  %2558 = vmatprep.subr.bf16.mxu0 0
  %2559 = vmatpush1.bf16.msra.mxu0 0
  %2560 = vmatprep.subr.bf16.mxu0 0
  %2561 = vmatpush1.bf16.msra.mxu0 0
  %2562 = vmatprep.subr.bf16.mxu0 0
  %2563 = vmatpush1.bf16.msra.mxu0 0
  %2564 = vmatprep.subr.bf16.mxu0 0
  %2565 = vmatpush1.bf16.msra.mxu0 0
  %2566 = vmatprep.subr.bf16.mxu0 0
  %2567 = vmatpush1.bf16.msra.mxu0 0
  %2568 = vmatprep.subr.bf16.mxu0 0
  %2569 = vmatpush1.bf16.msra.mxu0 0
  %2570 = vmatprep.mubr.bf16.mxu0 0
  %2571 = vmatmul.mubr.bf16.gmra.mrb[0].mxu0 %v2488
  %v2572 = vpop.f32.mrb[0].mxu0
  %v2573 = vadd.f32 %v2482, %v2572
  %v2574 = vpop.f32.mrb[0].mxu0
  %v2575 = vpop.f32.mrb[0].mxu0
  %v2576 = vpop.f32.mrb[0].mxu0
  %2577 = vdwg.mxu0
  %v2578 = vld [vmem:[#allocation2 + $0x10] sm:$0x30]
  %s2579 = scalar_lea.vmem %s3, 640
  %v2580 = vld [vmem:[%s2579] sm:$0xf]
  %v2581 = vld [vmem:[%s2579 + $0x4] sm:$0xf]
  %v2582 = vld [vmem:[%s2579 + $0x8] sm:$0xf]
  %v2583 = vld [vmem:[%s2579 + $0xc] sm:$0xf]
  %v2584 = vld [vmem:[%s2579 + $0x10] sm:$0xf]
  %v2585 = vld [vmem:[%s2579 + $0x14] sm:$0xf]
  %v2586 = vld [vmem:[%s2579 + $0x18] sm:$0xf]
  %v2587 = vld [vmem:[%s2579 + $0x1c] sm:$0xf]
  %v2588 = vld [vmem:[%s2579 + $0x20] sm:$0xf]
  %v2589 = vld [vmem:[%s2579 + $0x24] sm:$0xf]
  %v2590 = vld [vmem:[%s2579 + $0x28] sm:$0xf]
  %v2591 = vld [vmem:[%s2579 + $0x2c] sm:$0xf]
  %v2592 = vld [vmem:[%s2579 + $0x30] sm:$0xf]
  %v2593 = vld [vmem:[%s2579 + $0x34] sm:$0xf]
  %v2594 = vld [vmem:[%s2579 + $0x38] sm:$0xf]
  %v2595 = vld [vmem:[%s2579 + $0x3c] sm:$0xf]
  %v2597 = vrot.slane %v2578, 4
  %v2615 = vunpack.c.l.b16 %v2580
  %v2616 = vunpack.c.l.b16 %v2581
  %v2617 = vunpack.c.l.b16 %v2582
  %v2618 = vunpack.c.l.b16 %v2583
  %v2619 = vunpack.c.l.b16 %v2584
  %v2620 = vunpack.c.l.b16 %v2585
  %v2621 = vunpack.c.l.b16 %v2586
  %v2622 = vunpack.c.l.b16 %v2587
  %v2623 = vunpack.c.l.b16 %v2588
  %v2624 = vunpack.c.l.b16 %v2589
  %v2625 = vunpack.c.l.b16 %v2590
  %v2626 = vunpack.c.l.b16 %v2591
  %v2627 = vunpack.c.l.b16 %v2592
  %v2628 = vunpack.c.l.b16 %v2593
  %v2629 = vunpack.c.l.b16 %v2594
  %v2630 = vunpack.c.l.b16 %v2595
  %v2631 = vpack.c.b16 %v2616, %v2615
  %v2632 = vpack.c.b16 %v2618, %v2617
  %v2633 = vpack.c.b16 %v2620, %v2619
  %v2634 = vpack.c.b16 %v2622, %v2621
  %v2635 = vpack.c.b16 %v2624, %v2623
  %v2636 = vpack.c.b16 %v2626, %v2625
  %v2637 = vpack.c.b16 %v2628, %v2627
  %v2638 = vpack.c.b16 %v2630, %v2629
  %2647 = vmatprep.subr.bf16.mxu0 0
  %2648 = vmatpush1.bf16.msra.mxu0 %v2631
  %2649 = vmatprep.subr.bf16.mxu0 0
  %2650 = vmatpush1.bf16.msra.mxu0 %v2632
  %2651 = vmatprep.subr.bf16.mxu0 0
  %2652 = vmatpush1.bf16.msra.mxu0 %v2633
  %2653 = vmatprep.subr.bf16.mxu0 0
  %2654 = vmatpush1.bf16.msra.mxu0 %v2634
  %2655 = vmatprep.subr.bf16.mxu0 0
  %2656 = vmatpush1.bf16.msra.mxu0 %v2635
  %2657 = vmatprep.subr.bf16.mxu0 0
  %2658 = vmatpush1.bf16.msra.mxu0 %v2636
  %2659 = vmatprep.subr.bf16.mxu0 0
  %2660 = vmatpush1.bf16.msra.mxu0 %v2637
  %2661 = vmatprep.subr.bf16.mxu0 0
  %2662 = vmatpush1.bf16.msra.mxu0 %v2638
  %2663 = vmatprep.subr.bf16.mxu0 0
  %2664 = vmatpush1.bf16.msra.mxu0 0
  %2665 = vmatprep.subr.bf16.mxu0 0
  %2666 = vmatpush1.bf16.msra.mxu0 0
  %2667 = vmatprep.subr.bf16.mxu0 0
  %2668 = vmatpush1.bf16.msra.mxu0 0
  %2669 = vmatprep.subr.bf16.mxu0 0
  %2670 = vmatpush1.bf16.msra.mxu0 0
  %2671 = vmatprep.subr.bf16.mxu0 0
  %2672 = vmatpush1.bf16.msra.mxu0 0
  %2673 = vmatprep.subr.bf16.mxu0 0
  %2674 = vmatpush1.bf16.msra.mxu0 0
  %2675 = vmatprep.subr.bf16.mxu0 0
  %2676 = vmatpush1.bf16.msra.mxu0 0
  %2677 = vmatprep.subr.bf16.mxu0 0
  %2678 = vmatpush1.bf16.msra.mxu0 0
  %2679 = vmatprep.mubr.bf16.mxu0 0
  %2680 = vmatmul.mubr.bf16.gmra.mrb[0].mxu0 %v2597
  %v2681 = vpop.f32.mrb[0].mxu0
  %v2682 = vadd.f32 0.0, %v2681
  %v2683 = vpop.f32.mrb[0].mxu0
  %v2684 = vpop.f32.mrb[0].mxu0
  %v2685 = vpop.f32.mrb[0].mxu0
  %2686 = vdwg.mxu0
  %v2687 = vadd.f32 %v2573, %v2682
  %v2688 = vld [vmem:[#allocation2 + $0x18] sm:$0x30]
  %s2689 = scalar_lea.vmem %s3, 896
  %v2690 = vld [vmem:[%s2689] sm:$0xf]
  %v2691 = vld [vmem:[%s2689 + $0x4] sm:$0xf]
  %v2692 = vld [vmem:[%s2689 + $0x8] sm:$0xf]
  %v2693 = vld [vmem:[%s2689 + $0xc] sm:$0xf]
  %v2694 = vld [vmem:[%s2689 + $0x10] sm:$0xf]
  %v2695 = vld [vmem:[%s2689 + $0x14] sm:$0xf]
  %v2696 = vld [vmem:[%s2689 + $0x18] sm:$0xf]
  %v2697 = vld [vmem:[%s2689 + $0x1c] sm:$0xf]
  %v2698 = vld [vmem:[%s2689 + $0x20] sm:$0xf]
  %v2699 = vld [vmem:[%s2689 + $0x24] sm:$0xf]
  %v2700 = vld [vmem:[%s2689 + $0x28] sm:$0xf]
  %v2701 = vld [vmem:[%s2689 + $0x2c] sm:$0xf]
  %v2702 = vld [vmem:[%s2689 + $0x30] sm:$0xf]
  %v2703 = vld [vmem:[%s2689 + $0x34] sm:$0xf]
  %v2704 = vld [vmem:[%s2689 + $0x38] sm:$0xf]
  %v2705 = vld [vmem:[%s2689 + $0x3c] sm:$0xf]
  %v2707 = vrot.slane %v2688, 4
  %v2725 = vunpack.c.l.b16 %v2690
  %v2726 = vunpack.c.l.b16 %v2691
  %v2727 = vunpack.c.l.b16 %v2692
  %v2728 = vunpack.c.l.b16 %v2693
  %v2729 = vunpack.c.l.b16 %v2694
  %v2730 = vunpack.c.l.b16 %v2695
  %v2731 = vunpack.c.l.b16 %v2696
  %v2732 = vunpack.c.l.b16 %v2697
  %v2733 = vunpack.c.l.b16 %v2698
  %v2734 = vunpack.c.l.b16 %v2699
  %v2735 = vunpack.c.l.b16 %v2700
  %v2736 = vunpack.c.l.b16 %v2701
  %v2737 = vunpack.c.l.b16 %v2702
  %v2738 = vunpack.c.l.b16 %v2703
  %v2739 = vunpack.c.l.b16 %v2704
  %v2740 = vunpack.c.l.b16 %v2705
  %v2741 = vpack.c.b16 %v2726, %v2725
  %v2742 = vpack.c.b16 %v2728, %v2727
  %v2743 = vpack.c.b16 %v2730, %v2729
  %v2744 = vpack.c.b16 %v2732, %v2731
  %v2745 = vpack.c.b16 %v2734, %v2733
  %v2746 = vpack.c.b16 %v2736, %v2735
  %v2747 = vpack.c.b16 %v2738, %v2737
  %v2748 = vpack.c.b16 %v2740, %v2739
  %2757 = vmatprep.subr.bf16.mxu0 0
  %2758 = vmatpush1.bf16.msra.mxu0 %v2741
  %2759 = vmatprep.subr.bf16.mxu0 0
  %2760 = vmatpush1.bf16.msra.mxu0 %v2742
  %2761 = vmatprep.subr.bf16.mxu0 0
  %2762 = vmatpush1.bf16.msra.mxu0 %v2743
  %2763 = vmatprep.subr.bf16.mxu0 0
  %2764 = vmatpush1.bf16.msra.mxu0 %v2744
  %2765 = vmatprep.subr.bf16.mxu0 0
  %2766 = vmatpush1.bf16.msra.mxu0 %v2745
  %2767 = vmatprep.subr.bf16.mxu0 0
  %2768 = vmatpush1.bf16.msra.mxu0 %v2746
  %2769 = vmatprep.subr.bf16.mxu0 0
  %2770 = vmatpush1.bf16.msra.mxu0 %v2747
  %2771 = vmatprep.subr.bf16.mxu0 0
  %2772 = vmatpush1.bf16.msra.mxu0 %v2748
  %2773 = vmatprep.subr.bf16.mxu0 0
  %2774 = vmatpush1.bf16.msra.mxu0 0
  %2775 = vmatprep.subr.bf16.mxu0 0
  %2776 = vmatpush1.bf16.msra.mxu0 0
  %2777 = vmatprep.subr.bf16.mxu0 0
  %2778 = vmatpush1.bf16.msra.mxu0 0
  %2779 = vmatprep.subr.bf16.mxu0 0
  %2780 = vmatpush1.bf16.msra.mxu0 0
  %2781 = vmatprep.subr.bf16.mxu0 0
  %2782 = vmatpush1.bf16.msra.mxu0 0
  %2783 = vmatprep.subr.bf16.mxu0 0
  %2784 = vmatpush1.bf16.msra.mxu0 0
  %2785 = vmatprep.subr.bf16.mxu0 0
  %2786 = vmatpush1.bf16.msra.mxu0 0
  %2787 = vmatprep.subr.bf16.mxu0 0
  %2788 = vmatpush1.bf16.msra.mxu0 0
  %2789 = vmatprep.mubr.bf16.mxu0 0
  %2790 = vmatmul.mubr.bf16.gmra.mrb[0].mxu0 %v2707
  %v2791 = vpop.f32.mrb[0].mxu0
  %v2792 = vadd.f32 0.0, %v2791
  %v2793 = vpop.f32.mrb[0].mxu0
  %v2794 = vpop.f32.mrb[0].mxu0
  %v2795 = vpop.f32.mrb[0].mxu0
  %2796 = vdwg.mxu0
  %v2797 = vadd.f32 %v2687, %v2792
  %v2798 = vld [vmem:[#allocation2 + $0x20] sm:$0x30]
  %s2799 = scalar_lea.vmem %s3, 1152
  %v2800 = vld [vmem:[%s2799] sm:$0xf]
  %v2801 = vld [vmem:[%s2799 + $0x4] sm:$0xf]
  %v2802 = vld [vmem:[%s2799 + $0x8] sm:$0xf]
  %v2803 = vld [vmem:[%s2799 + $0xc] sm:$0xf]
  %v2804 = vld [vmem:[%s2799 + $0x10] sm:$0xf]
  %v2805 = vld [vmem:[%s2799 + $0x14] sm:$0xf]
  %v2806 = vld [vmem:[%s2799 + $0x18] sm:$0xf]
  %v2807 = vld [vmem:[%s2799 + $0x1c] sm:$0xf]
  %v2808 = vld [vmem:[%s2799 + $0x20] sm:$0xf]
  %v2809 = vld [vmem:[%s2799 + $0x24] sm:$0xf]
  %v2810 = vld [vmem:[%s2799 + $0x28] sm:$0xf]
  %v2811 = vld [vmem:[%s2799 + $0x2c] sm:$0xf]
  %v2812 = vld [vmem:[%s2799 + $0x30] sm:$0xf]
  %v2813 = vld [vmem:[%s2799 + $0x34] sm:$0xf]
  %v2814 = vld [vmem:[%s2799 + $0x38] sm:$0xf]
  %v2815 = vld [vmem:[%s2799 + $0x3c] sm:$0xf]
  %v2817 = vrot.slane %v2798, 4
  %v2835 = vunpack.c.l.b16 %v2800
  %v2836 = vunpack.c.l.b16 %v2801
  %v2837 = vunpack.c.l.b16 %v2802
  %v2838 = vunpack.c.l.b16 %v2803
  %v2839 = vunpack.c.l.b16 %v2804
  %v2840 = vunpack.c.l.b16 %v2805
  %v2841 = vunpack.c.l.b16 %v2806
  %v2842 = vunpack.c.l.b16 %v2807
  %v2843 = vunpack.c.l.b16 %v2808
  %v2844 = vunpack.c.l.b16 %v2809
  %v2845 = vunpack.c.l.b16 %v2810
  %v2846 = vunpack.c.l.b16 %v2811
  %v2847 = vunpack.c.l.b16 %v2812
  %v2848 = vunpack.c.l.b16 %v2813
  %v2849 = vunpack.c.l.b16 %v2814
  %v2850 = vunpack.c.l.b16 %v2815
  %v2851 = vpack.c.b16 %v2836, %v2835
  %v2852 = vpack.c.b16 %v2838, %v2837
  %v2853 = vpack.c.b16 %v2840, %v2839
  %v2854 = vpack.c.b16 %v2842, %v2841
  %v2855 = vpack.c.b16 %v2844, %v2843
  %v2856 = vpack.c.b16 %v2846, %v2845
  %v2857 = vpack.c.b16 %v2848, %v2847
  %v2858 = vpack.c.b16 %v2850, %v2849
  %2867 = vmatprep.subr.bf16.mxu0 0
  %2868 = vmatpush1.bf16.msra.mxu0 %v2851
  %2869 = vmatprep.subr.bf16.mxu0 0
  %2870 = vmatpush1.bf16.msra.mxu0 %v2852
  %2871 = vmatprep.subr.bf16.mxu0 0
  %2872 = vmatpush1.bf16.msra.mxu0 %v2853
  %2873 = vmatprep.subr.bf16.mxu0 0
  %2874 = vmatpush1.bf16.msra.mxu0 %v2854
  %2875 = vmatprep.subr.bf16.mxu0 0
  %2876 = vmatpush1.bf16.msra.mxu0 %v2855
  %2877 = vmatprep.subr.bf16.mxu0 0
  %2878 = vmatpush1.bf16.msra.mxu0 %v2856
  %2879 = vmatprep.subr.bf16.mxu0 0
  %2880 = vmatpush1.bf16.msra.mxu0 %v2857
  %2881 = vmatprep.subr.bf16.mxu0 0
  %2882 = vmatpush1.bf16.msra.mxu0 %v2858
  %2883 = vmatprep.subr.bf16.mxu0 0
  %2884 = vmatpush1.bf16.msra.mxu0 0
  %2885 = vmatprep.subr.bf16.mxu0 0
  %2886 = vmatpush1.bf16.msra.mxu0 0
  %2887 = vmatprep.subr.bf16.mxu0 0
  %2888 = vmatpush1.bf16.msra.mxu0 0
  %2889 = vmatprep.subr.bf16.mxu0 0
  %2890 = vmatpush1.bf16.msra.mxu0 0
  %2891 = vmatprep.subr.bf16.mxu0 0
  %2892 = vmatpush1.bf16.msra.mxu0 0
  %2893 = vmatprep.subr.bf16.mxu0 0
  %2894 = vmatpush1.bf16.msra.mxu0 0
  %2895 = vmatprep.subr.bf16.mxu0 0
  %2896 = vmatpush1.bf16.msra.mxu0 0
  %2897 = vmatprep.subr.bf16.mxu0 0
  %2898 = vmatpush1.bf16.msra.mxu0 0
  %2899 = vmatprep.mubr.bf16.mxu0 0
  %2900 = vmatmul.mubr.bf16.gmra.mrb[0].mxu0 %v2817
  %v2901 = vpop.f32.mrb[0].mxu0
  %v2902 = vadd.f32 0.0, %v2901
  %v2903 = vpop.f32.mrb[0].mxu0
  %v2904 = vpop.f32.mrb[0].mxu0
  %v2905 = vpop.f32.mrb[0].mxu0
  %2906 = vdwg.mxu0
  %v2907 = vadd.f32 %v2797, %v2902
  %v2908 = vld [vmem:[#allocation2 + $0x28] sm:$0x30]
  %s2909 = scalar_lea.vmem %s3, 1408
  %v2910 = vld [vmem:[%s2909] sm:$0xf]
  %v2911 = vld [vmem:[%s2909 + $0x4] sm:$0xf]
  %v2912 = vld [vmem:[%s2909 + $0x8] sm:$0xf]
  %v2913 = vld [vmem:[%s2909 + $0xc] sm:$0xf]
  %v2914 = vld [vmem:[%s2909 + $0x10] sm:$0xf]
  %v2915 = vld [vmem:[%s2909 + $0x14] sm:$0xf]
  %v2916 = vld [vmem:[%s2909 + $0x18] sm:$0xf]
  %v2917 = vld [vmem:[%s2909 + $0x1c] sm:$0xf]
  %v2918 = vld [vmem:[%s2909 + $0x20] sm:$0xf]
  %v2919 = vld [vmem:[%s2909 + $0x24] sm:$0xf]
  %v2920 = vld [vmem:[%s2909 + $0x28] sm:$0xf]
  %v2921 = vld [vmem:[%s2909 + $0x2c] sm:$0xf]
  %v2922 = vld [vmem:[%s2909 + $0x30] sm:$0xf]
  %v2923 = vld [vmem:[%s2909 + $0x34] sm:$0xf]
  %v2924 = vld [vmem:[%s2909 + $0x38] sm:$0xf]
  %v2925 = vld [vmem:[%s2909 + $0x3c] sm:$0xf]
  %v2927 = vrot.slane %v2908, 4
  %v2945 = vunpack.c.l.b16 %v2910
  %v2946 = vunpack.c.l.b16 %v2911
  %v2947 = vunpack.c.l.b16 %v2912
  %v2948 = vunpack.c.l.b16 %v2913
  %v2949 = vunpack.c.l.b16 %v2914
  %v2950 = vunpack.c.l.b16 %v2915
  %v2951 = vunpack.c.l.b16 %v2916
  %v2952 = vunpack.c.l.b16 %v2917
  %v2953 = vunpack.c.l.b16 %v2918
  %v2954 = vunpack.c.l.b16 %v2919
  %v2955 = vunpack.c.l.b16 %v2920
  %v2956 = vunpack.c.l.b16 %v2921
  %v2957 = vunpack.c.l.b16 %v2922
  %v2958 = vunpack.c.l.b16 %v2923
  %v2959 = vunpack.c.l.b16 %v2924
  %v2960 = vunpack.c.l.b16 %v2925
  %v2961 = vpack.c.b16 %v2946, %v2945
  %v2962 = vpack.c.b16 %v2948, %v2947
  %v2963 = vpack.c.b16 %v2950, %v2949
  %v2964 = vpack.c.b16 %v2952, %v2951
  %v2965 = vpack.c.b16 %v2954, %v2953
  %v2966 = vpack.c.b16 %v2956, %v2955
  %v2967 = vpack.c.b16 %v2958, %v2957
  %v2968 = vpack.c.b16 %v2960, %v2959
  %2977 = vmatprep.subr.bf16.mxu0 0
  %2978 = vmatpush1.bf16.msra.mxu0 %v2961
  %2979 = vmatprep.subr.bf16.mxu0 0
  %2980 = vmatpush1.bf16.msra.mxu0 %v2962
  %2981 = vmatprep.subr.bf16.mxu0 0
  %2982 = vmatpush1.bf16.msra.mxu0 %v2963
  %2983 = vmatprep.subr.bf16.mxu0 0
  %2984 = vmatpush1.bf16.msra.mxu0 %v2964
  %2985 = vmatprep.subr.bf16.mxu0 0
  %2986 = vmatpush1.bf16.msra.mxu0 %v2965
  %2987 = vmatprep.subr.bf16.mxu0 0
  %2988 = vmatpush1.bf16.msra.mxu0 %v2966
  %2989 = vmatprep.subr.bf16.mxu0 0
  %2990 = vmatpush1.bf16.msra.mxu0 %v2967
  %2991 = vmatprep.subr.bf16.mxu0 0
  %2992 = vmatpush1.bf16.msra.mxu0 %v2968
  %2993 = vmatprep.subr.bf16.mxu0 0
  %2994 = vmatpush1.bf16.msra.mxu0 0
  %2995 = vmatprep.subr.bf16.mxu0 0
  %2996 = vmatpush1.bf16.msra.mxu0 0
  %2997 = vmatprep.subr.bf16.mxu0 0
  %2998 = vmatpush1.bf16.msra.mxu0 0
  %2999 = vmatprep.subr.bf16.mxu0 0
  %3000 = vmatpush1.bf16.msra.mxu0 0
  %3001 = vmatprep.subr.bf16.mxu0 0
  %3002 = vmatpush1.bf16.msra.mxu0 0
  %3003 = vmatprep.subr.bf16.mxu0 0
  %3004 = vmatpush1.bf16.msra.mxu0 0
  %3005 = vmatprep.subr.bf16.mxu0 0
  %3006 = vmatpush1.bf16.msra.mxu0 0
  %3007 = vmatprep.subr.bf16.mxu0 0
  %3008 = vmatpush1.bf16.msra.mxu0 0
  %3009 = vmatprep.mubr.bf16.mxu0 0
  %3010 = vmatmul.mubr.bf16.gmra.mrb[0].mxu0 %v2927
  %v3011 = vpop.f32.mrb[0].mxu0
  %v3012 = vadd.f32 0.0, %v3011
  %v3013 = vpop.f32.mrb[0].mxu0
  %v3014 = vpop.f32.mrb[0].mxu0
  %v3015 = vpop.f32.mrb[0].mxu0
  %3016 = vdwg.mxu0
  %v3017 = vadd.f32 %v2907, %v3012
  %v3018 = vld [vmem:[#allocation2] sm:$0xc0]
  %s3019 = scalar_lea.vmem %s3, 192
  %v3020 = vld [vmem:[%s3019] sm:$0xf]
  %v3021 = vld [vmem:[%s3019 + $0x4] sm:$0xf]
  %v3022 = vld [vmem:[%s3019 + $0x8] sm:$0xf]
  %v3023 = vld [vmem:[%s3019 + $0xc] sm:$0xf]
  %v3024 = vld [vmem:[%s3019 + $0x10] sm:$0xf]
  %v3025 = vld [vmem:[%s3019 + $0x14] sm:$0xf]
  %v3026 = vld [vmem:[%s3019 + $0x18] sm:$0xf]
  %v3027 = vld [vmem:[%s3019 + $0x1c] sm:$0xf]
  %v3028 = vld [vmem:[%s3019 + $0x20] sm:$0xf]
  %v3029 = vld [vmem:[%s3019 + $0x24] sm:$0xf]
  %v3030 = vld [vmem:[%s3019 + $0x28] sm:$0xf]
  %v3031 = vld [vmem:[%s3019 + $0x2c] sm:$0xf]
  %v3032 = vld [vmem:[%s3019 + $0x30] sm:$0xf]
  %v3033 = vld [vmem:[%s3019 + $0x34] sm:$0xf]
  %v3034 = vld [vmem:[%s3019 + $0x38] sm:$0xf]
  %v3035 = vld [vmem:[%s3019 + $0x3c] sm:$0xf]
  %v3036 = vld [vmem:[#allocation2 + $0x8] sm:$0xc0]
  %s3037 = scalar_lea.vmem %s3, 448
  %v3038 = vld [vmem:[%s3037] sm:$0xf]
  %v3039 = vld [vmem:[%s3037 + $0x4] sm:$0xf]
  %v3040 = vld [vmem:[%s3037 + $0x8] sm:$0xf]
  %v3041 = vld [vmem:[%s3037 + $0xc] sm:$0xf]
  %v3042 = vld [vmem:[%s3037 + $0x10] sm:$0xf]
  %v3043 = vld [vmem:[%s3037 + $0x14] sm:$0xf]
  %v3044 = vld [vmem:[%s3037 + $0x18] sm:$0xf]
  %v3045 = vld [vmem:[%s3037 + $0x1c] sm:$0xf]
  %v3046 = vld [vmem:[%s3037 + $0x20] sm:$0xf]
  %v3047 = vld [vmem:[%s3037 + $0x24] sm:$0xf]
  %v3048 = vld [vmem:[%s3037 + $0x28] sm:$0xf]
  %v3049 = vld [vmem:[%s3037 + $0x2c] sm:$0xf]
  %v3050 = vld [vmem:[%s3037 + $0x30] sm:$0xf]
  %v3051 = vld [vmem:[%s3037 + $0x34] sm:$0xf]
  %v3052 = vld [vmem:[%s3037 + $0x38] sm:$0xf]
  %v3053 = vld [vmem:[%s3037 + $0x3c] sm:$0xf]
  %v3055 = vrot.slane %v3036, 6
  %v3073 = vunpack.c.l.b16 %v3038
  %v3074 = vunpack.c.l.b16 %v3039
  %v3075 = vunpack.c.l.b16 %v3040
  %v3076 = vunpack.c.l.b16 %v3041
  %v3077 = vunpack.c.l.b16 %v3042
  %v3078 = vunpack.c.l.b16 %v3043
  %v3079 = vunpack.c.l.b16 %v3044
  %v3080 = vunpack.c.l.b16 %v3045
  %v3081 = vunpack.c.l.b16 %v3046
  %v3082 = vunpack.c.l.b16 %v3047
  %v3083 = vunpack.c.l.b16 %v3048
  %v3084 = vunpack.c.l.b16 %v3049
  %v3085 = vunpack.c.l.b16 %v3050
  %v3086 = vunpack.c.l.b16 %v3051
  %v3087 = vunpack.c.l.b16 %v3052
  %v3088 = vunpack.c.l.b16 %v3053
  %v3089 = vpack.c.b16 %v3074, %v3073
  %v3090 = vpack.c.b16 %v3076, %v3075
  %v3091 = vpack.c.b16 %v3078, %v3077
  %v3092 = vpack.c.b16 %v3080, %v3079
  %v3093 = vpack.c.b16 %v3082, %v3081
  %v3094 = vpack.c.b16 %v3084, %v3083
  %v3095 = vpack.c.b16 %v3086, %v3085
  %v3096 = vpack.c.b16 %v3088, %v3087
  %3105 = vmatprep.subr.bf16.mxu0 0
  %3106 = vmatpush1.bf16.msra.mxu0 %v3089
  %3107 = vmatprep.subr.bf16.mxu0 0
  %3108 = vmatpush1.bf16.msra.mxu0 %v3090
  %3109 = vmatprep.subr.bf16.mxu0 0
  %3110 = vmatpush1.bf16.msra.mxu0 %v3091
  %3111 = vmatprep.subr.bf16.mxu0 0
  %3112 = vmatpush1.bf16.msra.mxu0 %v3092
  %3113 = vmatprep.subr.bf16.mxu0 0
  %3114 = vmatpush1.bf16.msra.mxu0 %v3093
  %3115 = vmatprep.subr.bf16.mxu0 0
  %3116 = vmatpush1.bf16.msra.mxu0 %v3094
  %3117 = vmatprep.subr.bf16.mxu0 0
  %3118 = vmatpush1.bf16.msra.mxu0 %v3095
  %3119 = vmatprep.subr.bf16.mxu0 0
  %3120 = vmatpush1.bf16.msra.mxu0 %v3096
  %3121 = vmatprep.subr.bf16.mxu0 0
  %3122 = vmatpush1.bf16.msra.mxu0 0
  %3123 = vmatprep.subr.bf16.mxu0 0
  %3124 = vmatpush1.bf16.msra.mxu0 0
  %3125 = vmatprep.subr.bf16.mxu0 0
  %3126 = vmatpush1.bf16.msra.mxu0 0
  %3127 = vmatprep.subr.bf16.mxu0 0
  %3128 = vmatpush1.bf16.msra.mxu0 0
  %3129 = vmatprep.subr.bf16.mxu0 0
  %3130 = vmatpush1.bf16.msra.mxu0 0
  %3131 = vmatprep.subr.bf16.mxu0 0
  %3132 = vmatpush1.bf16.msra.mxu0 0
  %3133 = vmatprep.subr.bf16.mxu0 0
  %3134 = vmatpush1.bf16.msra.mxu0 0
  %3135 = vmatprep.subr.bf16.mxu0 0
  %3136 = vmatpush1.bf16.msra.mxu0 0
  %3137 = vmatprep.mubr.bf16.mxu0 0
  %3138 = vmatmul.mubr.bf16.gmra.mrb[0].mxu0 %v3055
  %v3139 = vpop.f32.mrb[0].mxu0
  %v3140 = vadd.f32 0.0, %v3139
  %v3141 = vpop.f32.mrb[0].mxu0
  %v3142 = vpop.f32.mrb[0].mxu0
  %v3143 = vpop.f32.mrb[0].mxu0
  %3144 = vdwg.mxu0
  %v3146 = vrot.slane %v3018, 6
  %v3164 = vunpack.c.l.b16 %v3020
  %v3165 = vunpack.c.l.b16 %v3021
  %v3166 = vunpack.c.l.b16 %v3022
  %v3167 = vunpack.c.l.b16 %v3023
  %v3168 = vunpack.c.l.b16 %v3024
  %v3169 = vunpack.c.l.b16 %v3025
  %v3170 = vunpack.c.l.b16 %v3026
  %v3171 = vunpack.c.l.b16 %v3027
  %v3172 = vunpack.c.l.b16 %v3028
  %v3173 = vunpack.c.l.b16 %v3029
  %v3174 = vunpack.c.l.b16 %v3030
  %v3175 = vunpack.c.l.b16 %v3031
  %v3176 = vunpack.c.l.b16 %v3032
  %v3177 = vunpack.c.l.b16 %v3033
  %v3178 = vunpack.c.l.b16 %v3034
  %v3179 = vunpack.c.l.b16 %v3035
  %v3180 = vpack.c.b16 %v3165, %v3164
  %v3181 = vpack.c.b16 %v3167, %v3166
  %v3182 = vpack.c.b16 %v3169, %v3168
  %v3183 = vpack.c.b16 %v3171, %v3170
  %v3184 = vpack.c.b16 %v3173, %v3172
  %v3185 = vpack.c.b16 %v3175, %v3174
  %v3186 = vpack.c.b16 %v3177, %v3176
  %v3187 = vpack.c.b16 %v3179, %v3178
  %3196 = vmatprep.subr.bf16.mxu0 0
  %3197 = vmatpush1.bf16.msra.mxu0 %v3180
  %3198 = vmatprep.subr.bf16.mxu0 0
  %3199 = vmatpush1.bf16.msra.mxu0 %v3181
  %3200 = vmatprep.subr.bf16.mxu0 0
  %3201 = vmatpush1.bf16.msra.mxu0 %v3182
  %3202 = vmatprep.subr.bf16.mxu0 0
  %3203 = vmatpush1.bf16.msra.mxu0 %v3183
  %3204 = vmatprep.subr.bf16.mxu0 0
  %3205 = vmatpush1.bf16.msra.mxu0 %v3184
  %3206 = vmatprep.subr.bf16.mxu0 0
  %3207 = vmatpush1.bf16.msra.mxu0 %v3185
  %3208 = vmatprep.subr.bf16.mxu0 0
  %3209 = vmatpush1.bf16.msra.mxu0 %v3186
  %3210 = vmatprep.subr.bf16.mxu0 0
  %3211 = vmatpush1.bf16.msra.mxu0 %v3187
  %3212 = vmatprep.subr.bf16.mxu0 0
  %3213 = vmatpush1.bf16.msra.mxu0 0
  %3214 = vmatprep.subr.bf16.mxu0 0
  %3215 = vmatpush1.bf16.msra.mxu0 0
  %3216 = vmatprep.subr.bf16.mxu0 0
  %3217 = vmatpush1.bf16.msra.mxu0 0
  %3218 = vmatprep.subr.bf16.mxu0 0
  %3219 = vmatpush1.bf16.msra.mxu0 0
  %3220 = vmatprep.subr.bf16.mxu0 0
  %3221 = vmatpush1.bf16.msra.mxu0 0
  %3222 = vmatprep.subr.bf16.mxu0 0
  %3223 = vmatpush1.bf16.msra.mxu0 0
  %3224 = vmatprep.subr.bf16.mxu0 0
  %3225 = vmatpush1.bf16.msra.mxu0 0
  %3226 = vmatprep.subr.bf16.mxu0 0
  %3227 = vmatpush1.bf16.msra.mxu0 0
  %3228 = vmatprep.mubr.bf16.mxu0 0
  %3229 = vmatmul.mubr.bf16.gmra.mrb[0].mxu0 %v3146
  %v3230 = vpop.f32.mrb[0].mxu0
  %v3231 = vadd.f32 %v3140, %v3230
  %v3232 = vpop.f32.mrb[0].mxu0
  %v3233 = vpop.f32.mrb[0].mxu0
  %v3234 = vpop.f32.mrb[0].mxu0
  %3235 = vdwg.mxu0
  %v3236 = vld [vmem:[#allocation2 + $0x10] sm:$0xc0]
  %s3237 = scalar_lea.vmem %s3, 704
  %v3238 = vld [vmem:[%s3237] sm:$0xf]
  %v3239 = vld [vmem:[%s3237 + $0x4] sm:$0xf]
  %v3240 = vld [vmem:[%s3237 + $0x8] sm:$0xf]
  %v3241 = vld [vmem:[%s3237 + $0xc] sm:$0xf]
  %v3242 = vld [vmem:[%s3237 + $0x10] sm:$0xf]
  %v3243 = vld [vmem:[%s3237 + $0x14] sm:$0xf]
  %v3244 = vld [vmem:[%s3237 + $0x18] sm:$0xf]
  %v3245 = vld [vmem:[%s3237 + $0x1c] sm:$0xf]
  %v3246 = vld [vmem:[%s3237 + $0x20] sm:$0xf]
  %v3247 = vld [vmem:[%s3237 + $0x24] sm:$0xf]
  %v3248 = vld [vmem:[%s3237 + $0x28] sm:$0xf]
  %v3249 = vld [vmem:[%s3237 + $0x2c] sm:$0xf]
  %v3250 = vld [vmem:[%s3237 + $0x30] sm:$0xf]
  %v3251 = vld [vmem:[%s3237 + $0x34] sm:$0xf]
  %v3252 = vld [vmem:[%s3237 + $0x38] sm:$0xf]
  %v3253 = vld [vmem:[%s3237 + $0x3c] sm:$0xf]
  %v3255 = vrot.slane %v3236, 6
  %v3273 = vunpack.c.l.b16 %v3238
  %v3274 = vunpack.c.l.b16 %v3239
  %v3275 = vunpack.c.l.b16 %v3240
  %v3276 = vunpack.c.l.b16 %v3241
  %v3277 = vunpack.c.l.b16 %v3242
  %v3278 = vunpack.c.l.b16 %v3243
  %v3279 = vunpack.c.l.b16 %v3244
  %v3280 = vunpack.c.l.b16 %v3245
  %v3281 = vunpack.c.l.b16 %v3246
  %v3282 = vunpack.c.l.b16 %v3247
  %v3283 = vunpack.c.l.b16 %v3248
  %v3284 = vunpack.c.l.b16 %v3249
  %v3285 = vunpack.c.l.b16 %v3250
  %v3286 = vunpack.c.l.b16 %v3251
  %v3287 = vunpack.c.l.b16 %v3252
  %v3288 = vunpack.c.l.b16 %v3253
  %v3289 = vpack.c.b16 %v3274, %v3273
  %v3290 = vpack.c.b16 %v3276, %v3275
  %v3291 = vpack.c.b16 %v3278, %v3277
  %v3292 = vpack.c.b16 %v3280, %v3279
  %v3293 = vpack.c.b16 %v3282, %v3281
  %v3294 = vpack.c.b16 %v3284, %v3283
  %v3295 = vpack.c.b16 %v3286, %v3285
  %v3296 = vpack.c.b16 %v3288, %v3287
  %3305 = vmatprep.subr.bf16.mxu0 0
  %3306 = vmatpush1.bf16.msra.mxu0 %v3289
  %3307 = vmatprep.subr.bf16.mxu0 0
  %3308 = vmatpush1.bf16.msra.mxu0 %v3290
  %3309 = vmatprep.subr.bf16.mxu0 0
  %3310 = vmatpush1.bf16.msra.mxu0 %v3291
  %3311 = vmatprep.subr.bf16.mxu0 0
  %3312 = vmatpush1.bf16.msra.mxu0 %v3292
  %3313 = vmatprep.subr.bf16.mxu0 0
  %3314 = vmatpush1.bf16.msra.mxu0 %v3293
  %3315 = vmatprep.subr.bf16.mxu0 0
  %3316 = vmatpush1.bf16.msra.mxu0 %v3294
  %3317 = vmatprep.subr.bf16.mxu0 0
  %3318 = vmatpush1.bf16.msra.mxu0 %v3295
  %3319 = vmatprep.subr.bf16.mxu0 0
  %3320 = vmatpush1.bf16.msra.mxu0 %v3296
  %3321 = vmatprep.subr.bf16.mxu0 0
  %3322 = vmatpush1.bf16.msra.mxu0 0
  %3323 = vmatprep.subr.bf16.mxu0 0
  %3324 = vmatpush1.bf16.msra.mxu0 0
  %3325 = vmatprep.subr.bf16.mxu0 0
  %3326 = vmatpush1.bf16.msra.mxu0 0
  %3327 = vmatprep.subr.bf16.mxu0 0
  %3328 = vmatpush1.bf16.msra.mxu0 0
  %3329 = vmatprep.subr.bf16.mxu0 0
  %3330 = vmatpush1.bf16.msra.mxu0 0
  %3331 = vmatprep.subr.bf16.mxu0 0
  %3332 = vmatpush1.bf16.msra.mxu0 0
  %3333 = vmatprep.subr.bf16.mxu0 0
  %3334 = vmatpush1.bf16.msra.mxu0 0
  %3335 = vmatprep.subr.bf16.mxu0 0
  %3336 = vmatpush1.bf16.msra.mxu0 0
  %3337 = vmatprep.mubr.bf16.mxu0 0
  %3338 = vmatmul.mubr.bf16.gmra.mrb[0].mxu0 %v3255
  %v3339 = vpop.f32.mrb[0].mxu0
  %v3340 = vadd.f32 0.0, %v3339
  %v3341 = vpop.f32.mrb[0].mxu0
  %v3342 = vpop.f32.mrb[0].mxu0
  %v3343 = vpop.f32.mrb[0].mxu0
  %3344 = vdwg.mxu0
  %v3345 = vadd.f32 %v3231, %v3340
  %v3346 = vld [vmem:[#allocation2 + $0x18] sm:$0xc0]
  %s3347 = scalar_lea.vmem %s3, 960
  %v3348 = vld [vmem:[%s3347] sm:$0xf]
  %v3349 = vld [vmem:[%s3347 + $0x4] sm:$0xf]
  %v3350 = vld [vmem:[%s3347 + $0x8] sm:$0xf]
  %v3351 = vld [vmem:[%s3347 + $0xc] sm:$0xf]
  %v3352 = vld [vmem:[%s3347 + $0x10] sm:$0xf]
  %v3353 = vld [vmem:[%s3347 + $0x14] sm:$0xf]
  %v3354 = vld [vmem:[%s3347 + $0x18] sm:$0xf]
  %v3355 = vld [vmem:[%s3347 + $0x1c] sm:$0xf]
  %v3356 = vld [vmem:[%s3347 + $0x20] sm:$0xf]
  %v3357 = vld [vmem:[%s3347 + $0x24] sm:$0xf]
  %v3358 = vld [vmem:[%s3347 + $0x28] sm:$0xf]
  %v3359 = vld [vmem:[%s3347 + $0x2c] sm:$0xf]
  %v3360 = vld [vmem:[%s3347 + $0x30] sm:$0xf]
  %v3361 = vld [vmem:[%s3347 + $0x34] sm:$0xf]
  %v3362 = vld [vmem:[%s3347 + $0x38] sm:$0xf]
  %v3363 = vld [vmem:[%s3347 + $0x3c] sm:$0xf]
  %v3365 = vrot.slane %v3346, 6
  %v3383 = vunpack.c.l.b16 %v3348
  %v3384 = vunpack.c.l.b16 %v3349
  %v3385 = vunpack.c.l.b16 %v3350
  %v3386 = vunpack.c.l.b16 %v3351
  %v3387 = vunpack.c.l.b16 %v3352
  %v3388 = vunpack.c.l.b16 %v3353
  %v3389 = vunpack.c.l.b16 %v3354
  %v3390 = vunpack.c.l.b16 %v3355
  %v3391 = vunpack.c.l.b16 %v3356
  %v3392 = vunpack.c.l.b16 %v3357
  %v3393 = vunpack.c.l.b16 %v3358
  %v3394 = vunpack.c.l.b16 %v3359
  %v3395 = vunpack.c.l.b16 %v3360
  %v3396 = vunpack.c.l.b16 %v3361
  %v3397 = vunpack.c.l.b16 %v3362
  %v3398 = vunpack.c.l.b16 %v3363
  %v3399 = vpack.c.b16 %v3384, %v3383
  %v3400 = vpack.c.b16 %v3386, %v3385
  %v3401 = vpack.c.b16 %v3388, %v3387
  %v3402 = vpack.c.b16 %v3390, %v3389
  %v3403 = vpack.c.b16 %v3392, %v3391
  %v3404 = vpack.c.b16 %v3394, %v3393
  %v3405 = vpack.c.b16 %v3396, %v3395
  %v3406 = vpack.c.b16 %v3398, %v3397
  %3415 = vmatprep.subr.bf16.mxu0 0
  %3416 = vmatpush1.bf16.msra.mxu0 %v3399
  %3417 = vmatprep.subr.bf16.mxu0 0
  %3418 = vmatpush1.bf16.msra.mxu0 %v3400
  %3419 = vmatprep.subr.bf16.mxu0 0
  %3420 = vmatpush1.bf16.msra.mxu0 %v3401
  %3421 = vmatprep.subr.bf16.mxu0 0
  %3422 = vmatpush1.bf16.msra.mxu0 %v3402
  %3423 = vmatprep.subr.bf16.mxu0 0
  %3424 = vmatpush1.bf16.msra.mxu0 %v3403
  %3425 = vmatprep.subr.bf16.mxu0 0
  %3426 = vmatpush1.bf16.msra.mxu0 %v3404
  %3427 = vmatprep.subr.bf16.mxu0 0
  %3428 = vmatpush1.bf16.msra.mxu0 %v3405
  %3429 = vmatprep.subr.bf16.mxu0 0
  %3430 = vmatpush1.bf16.msra.mxu0 %v3406
  %3431 = vmatprep.subr.bf16.mxu0 0
  %3432 = vmatpush1.bf16.msra.mxu0 0
  %3433 = vmatprep.subr.bf16.mxu0 0
  %3434 = vmatpush1.bf16.msra.mxu0 0
  %3435 = vmatprep.subr.bf16.mxu0 0
  %3436 = vmatpush1.bf16.msra.mxu0 0
  %3437 = vmatprep.subr.bf16.mxu0 0
  %3438 = vmatpush1.bf16.msra.mxu0 0
  %3439 = vmatprep.subr.bf16.mxu0 0
  %3440 = vmatpush1.bf16.msra.mxu0 0
  %3441 = vmatprep.subr.bf16.mxu0 0
  %3442 = vmatpush1.bf16.msra.mxu0 0
  %3443 = vmatprep.subr.bf16.mxu0 0
  %3444 = vmatpush1.bf16.msra.mxu0 0
  %3445 = vmatprep.subr.bf16.mxu0 0
  %3446 = vmatpush1.bf16.msra.mxu0 0
  %3447 = vmatprep.mubr.bf16.mxu0 0
  %3448 = vmatmul.mubr.bf16.gmra.mrb[0].mxu0 %v3365
  %v3449 = vpop.f32.mrb[0].mxu0
  %v3450 = vadd.f32 0.0, %v3449
  %v3451 = vpop.f32.mrb[0].mxu0
  %v3452 = vpop.f32.mrb[0].mxu0
  %v3453 = vpop.f32.mrb[0].mxu0
  %3454 = vdwg.mxu0
  %v3455 = vadd.f32 %v3345, %v3450
  %v3456 = vld [vmem:[#allocation2 + $0x20] sm:$0xc0]
  %s3457 = scalar_lea.vmem %s3, 1216
  %v3458 = vld [vmem:[%s3457] sm:$0xf]
  %v3459 = vld [vmem:[%s3457 + $0x4] sm:$0xf]
  %v3460 = vld [vmem:[%s3457 + $0x8] sm:$0xf]
  %v3461 = vld [vmem:[%s3457 + $0xc] sm:$0xf]
  %v3462 = vld [vmem:[%s3457 + $0x10] sm:$0xf]
  %v3463 = vld [vmem:[%s3457 + $0x14] sm:$0xf]
  %v3464 = vld [vmem:[%s3457 + $0x18] sm:$0xf]
  %v3465 = vld [vmem:[%s3457 + $0x1c] sm:$0xf]
  %v3466 = vld [vmem:[%s3457 + $0x20] sm:$0xf]
  %v3467 = vld [vmem:[%s3457 + $0x24] sm:$0xf]
  %v3468 = vld [vmem:[%s3457 + $0x28] sm:$0xf]
  %v3469 = vld [vmem:[%s3457 + $0x2c] sm:$0xf]
  %v3470 = vld [vmem:[%s3457 + $0x30] sm:$0xf]
  %v3471 = vld [vmem:[%s3457 + $0x34] sm:$0xf]
  %v3472 = vld [vmem:[%s3457 + $0x38] sm:$0xf]
  %v3473 = vld [vmem:[%s3457 + $0x3c] sm:$0xf]
  %v3475 = vrot.slane %v3456, 6
  %v3493 = vunpack.c.l.b16 %v3458
  %v3494 = vunpack.c.l.b16 %v3459
  %v3495 = vunpack.c.l.b16 %v3460
  %v3496 = vunpack.c.l.b16 %v3461
  %v3497 = vunpack.c.l.b16 %v3462
  %v3498 = vunpack.c.l.b16 %v3463
  %v3499 = vunpack.c.l.b16 %v3464
  %v3500 = vunpack.c.l.b16 %v3465
  %v3501 = vunpack.c.l.b16 %v3466
  %v3502 = vunpack.c.l.b16 %v3467
  %v3503 = vunpack.c.l.b16 %v3468
  %v3504 = vunpack.c.l.b16 %v3469
  %v3505 = vunpack.c.l.b16 %v3470
  %v3506 = vunpack.c.l.b16 %v3471
  %v3507 = vunpack.c.l.b16 %v3472
  %v3508 = vunpack.c.l.b16 %v3473
  %v3509 = vpack.c.b16 %v3494, %v3493
  %v3510 = vpack.c.b16 %v3496, %v3495
  %v3511 = vpack.c.b16 %v3498, %v3497
  %v3512 = vpack.c.b16 %v3500, %v3499
  %v3513 = vpack.c.b16 %v3502, %v3501
  %v3514 = vpack.c.b16 %v3504, %v3503
  %v3515 = vpack.c.b16 %v3506, %v3505
  %v3516 = vpack.c.b16 %v3508, %v3507
  %3525 = vmatprep.subr.bf16.mxu0 0
  %3526 = vmatpush1.bf16.msra.mxu0 %v3509
  %3527 = vmatprep.subr.bf16.mxu0 0
  %3528 = vmatpush1.bf16.msra.mxu0 %v3510
  %3529 = vmatprep.subr.bf16.mxu0 0
  %3530 = vmatpush1.bf16.msra.mxu0 %v3511
  %3531 = vmatprep.subr.bf16.mxu0 0
  %3532 = vmatpush1.bf16.msra.mxu0 %v3512
  %3533 = vmatprep.subr.bf16.mxu0 0
  %3534 = vmatpush1.bf16.msra.mxu0 %v3513
  %3535 = vmatprep.subr.bf16.mxu0 0
  %3536 = vmatpush1.bf16.msra.mxu0 %v3514
  %3537 = vmatprep.subr.bf16.mxu0 0
  %3538 = vmatpush1.bf16.msra.mxu0 %v3515
  %3539 = vmatprep.subr.bf16.mxu0 0
  %3540 = vmatpush1.bf16.msra.mxu0 %v3516
  %3541 = vmatprep.subr.bf16.mxu0 0
  %3542 = vmatpush1.bf16.msra.mxu0 0
  %3543 = vmatprep.subr.bf16.mxu0 0
  %3544 = vmatpush1.bf16.msra.mxu0 0
  %3545 = vmatprep.subr.bf16.mxu0 0
  %3546 = vmatpush1.bf16.msra.mxu0 0
  %3547 = vmatprep.subr.bf16.mxu0 0
  %3548 = vmatpush1.bf16.msra.mxu0 0
  %3549 = vmatprep.subr.bf16.mxu0 0
  %3550 = vmatpush1.bf16.msra.mxu0 0
  %3551 = vmatprep.subr.bf16.mxu0 0
  %3552 = vmatpush1.bf16.msra.mxu0 0
  %3553 = vmatprep.subr.bf16.mxu0 0
  %3554 = vmatpush1.bf16.msra.mxu0 0
  %3555 = vmatprep.subr.bf16.mxu0 0
  %3556 = vmatpush1.bf16.msra.mxu0 0
  %3557 = vmatprep.mubr.bf16.mxu0 0
  %3558 = vmatmul.mubr.bf16.gmra.mrb[0].mxu0 %v3475
  %v3559 = vpop.f32.mrb[0].mxu0
  %v3560 = vadd.f32 0.0, %v3559
  %v3561 = vpop.f32.mrb[0].mxu0
  %v3562 = vpop.f32.mrb[0].mxu0
  %v3563 = vpop.f32.mrb[0].mxu0
  %3564 = vdwg.mxu0
  %v3565 = vadd.f32 %v3455, %v3560
  %v3566 = vld [vmem:[#allocation2 + $0x28] sm:$0xc0]
  %s3567 = scalar_lea.vmem %s3, 1472
  %v3568 = vld [vmem:[%s3567] sm:$0xf]
  %v3569 = vld [vmem:[%s3567 + $0x4] sm:$0xf]
  %v3570 = vld [vmem:[%s3567 + $0x8] sm:$0xf]
  %v3571 = vld [vmem:[%s3567 + $0xc] sm:$0xf]
  %v3572 = vld [vmem:[%s3567 + $0x10] sm:$0xf]
  %v3573 = vld [vmem:[%s3567 + $0x14] sm:$0xf]
  %v3574 = vld [vmem:[%s3567 + $0x18] sm:$0xf]
  %v3575 = vld [vmem:[%s3567 + $0x1c] sm:$0xf]
  %v3576 = vld [vmem:[%s3567 + $0x20] sm:$0xf]
  %v3577 = vld [vmem:[%s3567 + $0x24] sm:$0xf]
  %v3578 = vld [vmem:[%s3567 + $0x28] sm:$0xf]
  %v3579 = vld [vmem:[%s3567 + $0x2c] sm:$0xf]
  %v3580 = vld [vmem:[%s3567 + $0x30] sm:$0xf]
  %v3581 = vld [vmem:[%s3567 + $0x34] sm:$0xf]
  %v3582 = vld [vmem:[%s3567 + $0x38] sm:$0xf]
  %v3583 = vld [vmem:[%s3567 + $0x3c] sm:$0xf]
  %v3585 = vrot.slane %v3566, 6
  %v3603 = vunpack.c.l.b16 %v3568
  %v3604 = vunpack.c.l.b16 %v3569
  %v3605 = vunpack.c.l.b16 %v3570
  %v3606 = vunpack.c.l.b16 %v3571
  %v3607 = vunpack.c.l.b16 %v3572
  %v3608 = vunpack.c.l.b16 %v3573
  %v3609 = vunpack.c.l.b16 %v3574
  %v3610 = vunpack.c.l.b16 %v3575
  %v3611 = vunpack.c.l.b16 %v3576
  %v3612 = vunpack.c.l.b16 %v3577
  %v3613 = vunpack.c.l.b16 %v3578
  %v3614 = vunpack.c.l.b16 %v3579
  %v3615 = vunpack.c.l.b16 %v3580
  %v3616 = vunpack.c.l.b16 %v3581
  %v3617 = vunpack.c.l.b16 %v3582
  %v3618 = vunpack.c.l.b16 %v3583
  %v3619 = vpack.c.b16 %v3604, %v3603
  %v3620 = vpack.c.b16 %v3606, %v3605
  %v3621 = vpack.c.b16 %v3608, %v3607
  %v3622 = vpack.c.b16 %v3610, %v3609
  %v3623 = vpack.c.b16 %v3612, %v3611
  %v3624 = vpack.c.b16 %v3614, %v3613
  %v3625 = vpack.c.b16 %v3616, %v3615
  %v3626 = vpack.c.b16 %v3618, %v3617
  %3635 = vmatprep.subr.bf16.mxu0 0
  %3636 = vmatpush1.bf16.msra.mxu0 %v3619
  %3637 = vmatprep.subr.bf16.mxu0 0
  %3638 = vmatpush1.bf16.msra.mxu0 %v3620
  %3639 = vmatprep.subr.bf16.mxu0 0
  %3640 = vmatpush1.bf16.msra.mxu0 %v3621
  %3641 = vmatprep.subr.bf16.mxu0 0
  %3642 = vmatpush1.bf16.msra.mxu0 %v3622
  %3643 = vmatprep.subr.bf16.mxu0 0
  %3644 = vmatpush1.bf16.msra.mxu0 %v3623
  %3645 = vmatprep.subr.bf16.mxu0 0
  %3646 = vmatpush1.bf16.msra.mxu0 %v3624
  %3647 = vmatprep.subr.bf16.mxu0 0
  %3648 = vmatpush1.bf16.msra.mxu0 %v3625
  %3649 = vmatprep.subr.bf16.mxu0 0
  %3650 = vmatpush1.bf16.msra.mxu0 %v3626
  %3651 = vmatprep.subr.bf16.mxu0 0
  %3652 = vmatpush1.bf16.msra.mxu0 0
  %3653 = vmatprep.subr.bf16.mxu0 0
  %3654 = vmatpush1.bf16.msra.mxu0 0
  %3655 = vmatprep.subr.bf16.mxu0 0
  %3656 = vmatpush1.bf16.msra.mxu0 0
  %3657 = vmatprep.subr.bf16.mxu0 0
  %3658 = vmatpush1.bf16.msra.mxu0 0
  %3659 = vmatprep.subr.bf16.mxu0 0
  %3660 = vmatpush1.bf16.msra.mxu0 0
  %3661 = vmatprep.subr.bf16.mxu0 0
  %3662 = vmatpush1.bf16.msra.mxu0 0
  %3663 = vmatprep.subr.bf16.mxu0 0
  %3664 = vmatpush1.bf16.msra.mxu0 0
  %3665 = vmatprep.subr.bf16.mxu0 0
  %3666 = vmatpush1.bf16.msra.mxu0 0
  %3667 = vmatprep.mubr.bf16.mxu0 0
  %3668 = vmatmul.mubr.bf16.gmra.mrb[0].mxu0 %v3585
  %v3669 = vpop.f32.mrb[0].mxu0
  %v3670 = vadd.f32 0.0, %v3669
  %v3671 = vpop.f32.mrb[0].mxu0
  %v3672 = vpop.f32.mrb[0].mxu0
  %v3673 = vpop.f32.mrb[0].mxu0
  %3674 = vdwg.mxu0
  %v3675 = vadd.f32 %v3565, %v3670
  %v3676 = vadd.f32 %v1701, %v2359
  %v3677 = vadd.f32 %v3017, %v3675
  %v3678 = vadd.f32 %v3676, %v3677
  %v3679 = vld [vmem:[%s4] sm:$0x1]
  %v3681 = vlaneseq
  %v3682 = vshrl.u32 %v3681, 7
  %v3683 = vsub.s32 0, %v3682
  %v3684 = vrot.slane %v3679, %v3683
  %v3686 = vadd.f32 %v3678, %v3684
  %v3687 = vmax.f32 %v3686, 0.0
  %v3688 = vpack.c.bf16 %v3687, %v3687
  %v3689 = vld [vmem:[%s5] sm:$0xf]
  %v3690 = vld [vmem:[%s5 + $0x4] sm:$0xf]
  %v3691 = vld [vmem:[%s5 + $0x8] sm:$0xf]
  %v3692 = vld [vmem:[%s5 + $0xc] sm:$0xf]
  %v3693 = vld [vmem:[%s5 + $0x10] sm:$0xf]
  %v3694 = vld [vmem:[%s5 + $0x14] sm:$0xf]
  %v3695 = vld [vmem:[%s5 + $0x18] sm:$0xf]
  %v3696 = vld [vmem:[%s5 + $0x1c] sm:$0xf]
  %v3697 = vld [vmem:[%s5 + $0x20] sm:$0xf]
  %v3698 = vld [vmem:[%s5 + $0x24] sm:$0xf]
  %v3699 = vld [vmem:[%s5 + $0x28] sm:$0xf]
  %v3700 = vld [vmem:[%s5 + $0x2c] sm:$0xf]
  %v3701 = vld [vmem:[%s5 + $0x30] sm:$0xf]
  %v3702 = vld [vmem:[%s5 + $0x34] sm:$0xf]
  %v3703 = vld [vmem:[%s5 + $0x38] sm:$0xf]
  %v3704 = vld [vmem:[%s5 + $0x3c] sm:$0xf]
  %v3705 = vld [vmem:[%s6] sm:$0x1]
  %v3707 = vlaneseq
  %v3708 = vshrl.u32 %v3707, 7
  %v3709 = vsub.s32 0, %v3708
  %v3710 = vrot.slane %v3705, %v3709
  %v3728 = vunpack.c.l.b16 %v3689
  %v3729 = vunpack.c.l.b16 %v3690
  %v3730 = vunpack.c.l.b16 %v3691
  %v3731 = vunpack.c.l.b16 %v3692
  %v3732 = vunpack.c.l.b16 %v3693
  %v3733 = vunpack.c.l.b16 %v3694
  %v3734 = vunpack.c.l.b16 %v3695
  %v3735 = vunpack.c.l.b16 %v3696
  %v3736 = vunpack.c.l.b16 %v3697
  %v3737 = vunpack.c.l.b16 %v3698
  %v3738 = vunpack.c.l.b16 %v3699
  %v3739 = vunpack.c.l.b16 %v3700
  %v3740 = vunpack.c.l.b16 %v3701
  %v3741 = vunpack.c.l.b16 %v3702
  %v3742 = vunpack.c.l.b16 %v3703
  %v3743 = vunpack.c.l.b16 %v3704
  %v3744 = vpack.c.b16 %v3729, %v3728
  %v3745 = vpack.c.b16 %v3731, %v3730
  %v3746 = vpack.c.b16 %v3733, %v3732
  %v3747 = vpack.c.b16 %v3735, %v3734
  %v3748 = vpack.c.b16 %v3737, %v3736
  %v3749 = vpack.c.b16 %v3739, %v3738
  %v3750 = vpack.c.b16 %v3741, %v3740
  %v3751 = vpack.c.b16 %v3743, %v3742
  %3760 = vmatprep.subr.bf16.mxu0 0
  %3761 = vmatpush1.bf16.msra.mxu0 %v3744
  %3762 = vmatprep.subr.bf16.mxu0 0
  %3763 = vmatpush1.bf16.msra.mxu0 %v3745
  %3764 = vmatprep.subr.bf16.mxu0 0
  %3765 = vmatpush1.bf16.msra.mxu0 %v3746
  %3766 = vmatprep.subr.bf16.mxu0 0
  %3767 = vmatpush1.bf16.msra.mxu0 %v3747
  %3768 = vmatprep.subr.bf16.mxu0 0
  %3769 = vmatpush1.bf16.msra.mxu0 %v3748
  %3770 = vmatprep.subr.bf16.mxu0 0
  %3771 = vmatpush1.bf16.msra.mxu0 %v3749
  %3772 = vmatprep.subr.bf16.mxu0 0
  %3773 = vmatpush1.bf16.msra.mxu0 %v3750
  %3774 = vmatprep.subr.bf16.mxu0 0
  %3775 = vmatpush1.bf16.msra.mxu0 %v3751
  %3776 = vmatprep.subr.bf16.mxu0 0
  %3777 = vmatpush1.bf16.msra.mxu0 0
  %3778 = vmatprep.subr.bf16.mxu0 0
  %3779 = vmatpush1.bf16.msra.mxu0 0
  %3780 = vmatprep.subr.bf16.mxu0 0
  %3781 = vmatpush1.bf16.msra.mxu0 0
  %3782 = vmatprep.subr.bf16.mxu0 0
  %3783 = vmatpush1.bf16.msra.mxu0 0
  %3784 = vmatprep.subr.bf16.mxu0 0
  %3785 = vmatpush1.bf16.msra.mxu0 0
  %3786 = vmatprep.subr.bf16.mxu0 0
  %3787 = vmatpush1.bf16.msra.mxu0 0
  %3788 = vmatprep.subr.bf16.mxu0 0
  %3789 = vmatpush1.bf16.msra.mxu0 0
  %3790 = vmatprep.subr.bf16.mxu0 0
  %3791 = vmatpush1.bf16.msra.mxu0 0
  %3792 = vmatprep.mubr.bf16.mxu0 0
  %3793 = vmatmul.mubr.bf16.gmra.mrb[0].mxu0 %v3688
  %v3794 = vpop.f32.mrb[0].mxu0
  %v3795 = vadd.f32 %v3710, %v3794
  %v3796 = vpop.f32.mrb[0].mxu0
  %v3797 = vpop.f32.mrb[0].mxu0
  %v3798 = vpop.f32.mrb[0].mxu0
  %3799 = vdwg.mxu0
  %v3800 = vmax.f32 %v3795, 0.0
  %v3801 = vpack.c.bf16 %v3800, %v3800
  %v3802 = vld [vmem:[%s7] sm:$0xf]
  %v3803 = vld [vmem:[%s7 + $0x4] sm:$0xf]
  %v3804 = vld [vmem:[%s7 + $0x8] sm:$0xf]
  %v3805 = vld [vmem:[%s7 + $0xc] sm:$0xf]
  %v3806 = vld [vmem:[%s7 + $0x10] sm:$0xf]
  %v3807 = vld [vmem:[%s7 + $0x14] sm:$0xf]
  %v3808 = vld [vmem:[%s7 + $0x18] sm:$0xf]
  %v3809 = vld [vmem:[%s7 + $0x1c] sm:$0xf]
  %v3810 = vld [vmem:[%s7 + $0x20] sm:$0xf]
  %v3811 = vld [vmem:[%s7 + $0x24] sm:$0xf]
  %v3812 = vld [vmem:[%s7 + $0x28] sm:$0xf]
  %v3813 = vld [vmem:[%s7 + $0x2c] sm:$0xf]
  %v3814 = vld [vmem:[%s7 + $0x30] sm:$0xf]
  %v3815 = vld [vmem:[%s7 + $0x34] sm:$0xf]
  %v3816 = vld [vmem:[%s7 + $0x38] sm:$0xf]
  %v3817 = vld [vmem:[%s7 + $0x3c] sm:$0xf]
  %v3818 = vld [vmem:[%s8] sm:$0x1]
  %v3820 = vlaneseq
  %v3821 = vshrl.u32 %v3820, 7
  %v3822 = vsub.s32 0, %v3821
  %v3823 = vrot.slane %v3818, %v3822
  %v3841 = vunpack.c.l.b16 %v3802
  %v3842 = vunpack.c.l.b16 %v3803
  %v3843 = vunpack.c.l.b16 %v3804
  %v3844 = vunpack.c.l.b16 %v3805
  %v3845 = vunpack.c.l.b16 %v3806
  %v3846 = vunpack.c.l.b16 %v3807
  %v3847 = vunpack.c.l.b16 %v3808
  %v3848 = vunpack.c.l.b16 %v3809
  %v3849 = vunpack.c.l.b16 %v3810
  %v3850 = vunpack.c.l.b16 %v3811
  %v3851 = vunpack.c.l.b16 %v3812
  %v3852 = vunpack.c.l.b16 %v3813
  %v3853 = vunpack.c.l.b16 %v3814
  %v3854 = vunpack.c.l.b16 %v3815
  %v3855 = vunpack.c.l.b16 %v3816
  %v3856 = vunpack.c.l.b16 %v3817
  %v3857 = vpack.c.b16 %v3842, %v3841
  %v3858 = vpack.c.b16 %v3844, %v3843
  %v3859 = vpack.c.b16 %v3846, %v3845
  %v3860 = vpack.c.b16 %v3848, %v3847
  %v3861 = vpack.c.b16 %v3850, %v3849
  %v3862 = vpack.c.b16 %v3852, %v3851
  %v3863 = vpack.c.b16 %v3854, %v3853
  %v3864 = vpack.c.b16 %v3856, %v3855
  %3873 = vmatprep.subr.bf16.mxu0 0
  %3874 = vmatpush1.bf16.msra.mxu0 %v3857
  %3875 = vmatprep.subr.bf16.mxu0 0
  %3876 = vmatpush1.bf16.msra.mxu0 %v3858
  %3877 = vmatprep.subr.bf16.mxu0 0
  %3878 = vmatpush1.bf16.msra.mxu0 %v3859
  %3879 = vmatprep.subr.bf16.mxu0 0
  %3880 = vmatpush1.bf16.msra.mxu0 %v3860
  %3881 = vmatprep.subr.bf16.mxu0 0
  %3882 = vmatpush1.bf16.msra.mxu0 %v3861
  %3883 = vmatprep.subr.bf16.mxu0 0
  %3884 = vmatpush1.bf16.msra.mxu0 %v3862
  %3885 = vmatprep.subr.bf16.mxu0 0
  %3886 = vmatpush1.bf16.msra.mxu0 %v3863
  %3887 = vmatprep.subr.bf16.mxu0 0
  %3888 = vmatpush1.bf16.msra.mxu0 %v3864
  %3889 = vmatprep.subr.bf16.mxu0 0
  %3890 = vmatpush1.bf16.msra.mxu0 0
  %3891 = vmatprep.subr.bf16.mxu0 0
  %3892 = vmatpush1.bf16.msra.mxu0 0
  %3893 = vmatprep.subr.bf16.mxu0 0
  %3894 = vmatpush1.bf16.msra.mxu0 0
  %3895 = vmatprep.subr.bf16.mxu0 0
  %3896 = vmatpush1.bf16.msra.mxu0 0
  %3897 = vmatprep.subr.bf16.mxu0 0
  %3898 = vmatpush1.bf16.msra.mxu0 0
  %3899 = vmatprep.subr.bf16.mxu0 0
  %3900 = vmatpush1.bf16.msra.mxu0 0
  %3901 = vmatprep.subr.bf16.mxu0 0
  %3902 = vmatpush1.bf16.msra.mxu0 0
  %3903 = vmatprep.subr.bf16.mxu0 0
  %3904 = vmatpush1.bf16.msra.mxu0 0
  %3905 = vmatprep.mubr.bf16.mxu0 0
  %3906 = vmatmul.mubr.bf16.gmra.mrb[0].mxu0 %v3801
  %v3907 = vpop.f32.mrb[0].mxu0
  %v3908 = vadd.f32 %v3823, %v3907
  %v3909 = vpop.f32.mrb[0].mxu0
  %v3910 = vpop.f32.mrb[0].mxu0
  %v3911 = vpop.f32.mrb[0].mxu0
  %3912 = vdwg.mxu0
  %3913 = vst [vmem:[%s9] sm:$0xf] %v3908
  // Predicated region
  $region38: #{net_forward.3} parent=0 // pred_check
    _
  $region39: #{net_forward.3} parent=0 // pred_check_branch
    %3915 = sbr.rel (0) target = $region41
  $region40: #{net_forward.3} parent=0 // pred_region
    _
  $region41: #{net_forward.3} parent=0 // pred_fallthru
    _
  // Predicated region
  $region42: #{net_forward.3} parent=0 // pred_check
    _
  $region43: #{net_forward.3} parent=0 // pred_check_branch
    %3917 = sbr.rel (0) target = $region45
  $region44: #{net_forward.3} parent=0 // pred_region
    _
  $region45: #{net_forward.3} parent=0 // pred_fallthru
    _

</llo_original>
